<compile_context>
chip_gen: v7x
topology: tpu7x:2x2x1
jax: 0.10.0
libtpu: 0.0.40
codegen_flags: <defaults>
</compile_context>

<pallas_src>
import math
import functools

import jax
import jax.numpy as jnp
from jax import lax
from jax.experimental import pallas as pl
from jax.experimental.pallas import tpu as pltpu


# ----------------------------------------------------------------------------
# Helpers
# ----------------------------------------------------------------------------

def _layernorm(x, g, b, eps=1e-5):
    mu = jnp.mean(x, axis=-1, keepdims=True)
    var = jnp.mean((x - mu) ** 2, axis=-1, keepdims=True)
    return (x - mu) * lax.rsqrt(var + eps) * g + b


def _vmem_limit():
    """Generation-aware scoped-VMEM budget (v7x: 64 MiB physical, v5e/v6e: 128)."""
    try:
        cap = pltpu.get_tpu_info().vmem_capacity_bytes
    except Exception:
        cap = 64 * 1024 * 1024                  # conservative fallback
    return int(min(cap * 3 // 4, 96 * 1024 * 1024))


def _pick_row_tile(n, target):
    """Largest multiple-of-8 divisor of n that is <= target, preferring >=2 steps."""
    if n <= 8:
        return n
    rt_max = min(target, n)
    rt_max -= rt_max % 8
    best = None
    for cand in range(rt_max, 7, -8):
        if n % cand == 0:
            if cand < n:
                return cand                     # exact tiling, >=2 grid steps
            best = cand
    return best if best is not None else n      # fall back: single full block


def _pick_batch_tile(B, Lq, Lk, E, budget_bytes):
    """Per-sample VMEM footprint -> batch tile; keep >=2 grid steps when B >= 2."""
    per = 4 * (8 * Lq * E + 8 * Lk * E + 2 * Lq * Lk + 2 * Lk) + 1
    bt = max(1, min(B, budget_bytes // per))
    if B >= 2:
        bt = min(bt, B // 2)                    # pipelining + v7x 2nd TensorCore
    while B % bt:
        bt -= 1
    return max(bt, 1)


# ----------------------------------------------------------------------------
# Kernels
# ----------------------------------------------------------------------------

def mlp2_kernel(x_ref, w1_ref, b1_ref, w2_ref, b2_ref, o_ref, *, act):
    """out = Linear2(act(Linear1(x)));  bf16 MXU operands, f32 accumulation."""
    f32, bf16 = jnp.float32, jnp.bfloat16
    h = jnp.dot(x_ref[...].astype(bf16), w1_ref[...],
                preferred_element_type=f32) + b1_ref[...]
    if act == "leaky":
        h = jnp.where(h >= 0.0, h, 0.01 * h)            # nn.LeakyReLU default slope
    else:  # silu
        h = h * pl.reciprocal(1.0 + jnp.exp(-h), approx=True)
    o_ref[...] = jnp.dot(h.astype(bf16), w2_ref[...],
                         preferred_element_type=f32) + b2_ref[...]


def tail_kernel(t_ref, freqs_ref, x_ref,
                tw1c_ref, tw1s_ref, tb1_ref, tw2_ref, tb2_ref,
                fw1x_ref, fw1t_ref, fb1_ref, fw2_ref, fb2_ref, o_ref):
    """Fused TimestepEmbedder + final_layer.

    final_layer(concat([x_pooled, t_emb])) is computed as
    x_pooled @ fw1[:2E] + t_emb @ fw1[2E:] (no in-kernel concat)."""
    f32, bf16 = jnp.float32, jnp.bfloat16
    args = t_ref[...] * freqs_ref[...]                         # (B, half) f32
    # sinusoidal embedding: [cos | sin] folded into two matmul slabs of tw1
    h = (jnp.dot(jnp.cos(args).astype(bf16), tw1c_ref[...], preferred_element_type=f32)
         + jnp.dot(jnp.sin(args).astype(bf16), tw1s_ref[...], preferred_element_type=f32)
         + tb1_ref[...])
    h = h * pl.reciprocal(1.0 + jnp.exp(-h), approx=True)      # SiLU (EUP)
    t_emb = jnp.dot(h.astype(bf16), tw2_ref[...],
                    preferred_element_type=f32) + tb2_ref[...]  # (B, E)

    h1 = (jnp.dot(x_ref[...].astype(bf16), fw1x_ref[...], preferred_element_type=f32)
          + jnp.dot(t_emb.astype(bf16), fw1t_ref[...], preferred_element_type=f32)
          + fb1_ref[...])
    h1 = jnp.where(h1 >= 0.0, h1, 0.01 * h1)                   # LeakyReLU
    o_ref[...] = jnp.dot(h1.astype(bf16), fw2_ref[...],
                         preferred_element_type=f32) + fb2_ref[...]


def cab_kernel(q_ref, kv_ref, m_ref,
               wq_ref, bq_ref, wkv_ref, bkv_ref, wo_ref, bo_ref,
               g1_ref, be1_ref, fw1_ref, fb1_ref, fw2_ref, fb2_ref,
               g2_ref, be2_ref, o_ref, ctx_ref, *, heads):
    """One CrossAttentionBlock on a batch tile (key == value assumed)."""
    f32, bf16 = jnp.float32, jnp.bfloat16
    q_in = q_ref[...]                        # (bt, lq, e) f32
    kv_in = kv_ref[...]                      # (bt, lk, e) f32
    pad_b = m_ref[...] > 0.5                 # (bt, 1, lk) True where key is padding
    bt, lq, e = q_in.shape
    lk = kv_in.shape[1]
    dh = e // heads
    scale = 1.0 / math.sqrt(dh)
    rows_q = bt * lq

    q2 = q_in.reshape(rows_q, e)             # f32 residual
    kv2 = kv_in.reshape(bt * lk, e)

    # --- fused projections: single 2-D MXU matmuls (bf16 in, f32 acc) -------
    qp = jnp.dot(q2.astype(bf16), wq_ref[...],
                 preferred_element_type=f32) + bq_ref[...]          # (rows_q, e)
    kvp = jnp.dot(kv2.astype(bf16), wkv_ref[...],
                  preferred_element_type=f32) + bkv_ref[...]        # (bt*lk, 2e)
    qp = (qp * scale).astype(bf16).reshape(bt, lq, e)
    kp = kvp[:, :e].astype(bf16).reshape(bt, lk, e)
    vp = kvp[:, e:].astype(bf16).reshape(bt, lk, e)

    # --- multi-head attention: per-head context lands in VMEM scratch so the
    #     out-projection is ONE (rows_q, e) @ (e, e) matmul -------------------
    for h in range(heads):
        sl = slice(h * dh, (h + 1) * dh)
        s = jnp.einsum('bqd,bkd->bqk', qp[..., sl], kp[..., sl],
                       preferred_element_type=f32)                  # (bt,lq,lk) f32
        s = jnp.where(pad_b, -1e30, s)                              # f32 mask
        s_max = jnp.max(s, axis=-1, keepdims=True)
        ex = jnp.exp(s - s_max)
        p = ex * pl.reciprocal(jnp.sum(ex, axis=-1, keepdims=True), approx=True)
        oh = jnp.einsum('bqk,bkd->bqd', p.astype(bf16), vp[..., sl],
                        preferred_element_type=f32)                 # (bt,lq,dh)
        ctx_ref[:, sl] = oh.reshape(rows_q, dh)

    attn = jnp.dot(ctx_ref[...].astype(bf16), wo_ref[...],
                   preferred_element_type=f32) + bo_ref[...]        # (rows_q, e)

    x = _layernorm(attn + q2, g1_ref[...], be1_ref[...])
    ff = jnp.dot(x.astype(bf16), fw1_ref[...],
                 preferred_element_type=f32) + fb1_ref[...]
    ff = jnp.maximum(ff, 0.0)
    ff = jnp.dot(ff.astype(bf16), fw2_ref[...],
                 preferred_element_type=f32) + fb2_ref[...]
    o_ref[...] = _layernorm(ff + x, g2_ref[...], be2_ref[...]).reshape(bt, lq, e)


# ----------------------------------------------------------------------------
# Wrappers
# ----------------------------------------------------------------------------

def mlp2(x, w1, b1, w2, b2, act, row_tile=512):
    """Row-tiled fused 2-layer MLP; weights stay resident across row tiles."""
    n, din = x.shape
    dh1 = w1.shape[1]
    dout = w2.shape[1]
    rt = _pick_row_tile(n, row_tile)
    return pl.pallas_call(
        functools.partial(mlp2_kernel, act=act),
        out_shape=jax.ShapeDtypeStruct((n, dout), jnp.float32),
        grid=(n // rt,),
        in_specs=[pl.BlockSpec((rt, din), lambda i: (i, 0)),
                  pl.BlockSpec((din, dh1), lambda i: (0, 0)),
                  pl.BlockSpec((1, dh1), lambda i: (0, 0)),
                  pl.BlockSpec((dh1, dout), lambda i: (0, 0)),
                  pl.BlockSpec((1, dout), lambda i: (0, 0))],
        out_specs=pl.BlockSpec((rt, dout), lambda i: (i, 0)),
        compiler_params=pltpu.CompilerParams(
            dimension_semantics=("parallel",),
            vmem_limit_bytes=_vmem_limit()),
    )(x, w1, b1, w2, b2)


def cross_attention_block(q, kv, pad_mask, params, heads, batch_tile=None):
    """CrossAttentionBlock with key == value (true for every call in inv_cog)."""
    B, Lq, E = q.shape
    Lk = kv.shape[1]
    vmem_limit = _vmem_limit()
    bt = batch_tile if batch_tile is not None else _pick_batch_tile(
        B, Lq, Lk, E, vmem_limit // 3)
    assert B % bt == 0
    data_specs = [
        pl.BlockSpec((bt, Lq, E), lambda i: (i, 0, 0)),
        pl.BlockSpec((bt, Lk, E), lambda i: (i, 0, 0)),
        pl.BlockSpec((bt, 1, Lk), lambda i: (i, 0, 0)),
    ]
    # All weights/biases are 2-D; constant index map keeps them resident.
    w_specs = [pl.BlockSpec(p.shape, lambda i: (0, 0)) for p in params]
    return pl.pallas_call(
        functools.partial(cab_kernel, heads=heads),
        out_shape=jax.ShapeDtypeStruct((B, Lq, E), jnp.float32),
        grid=(B // bt,),
        in_specs=data_specs + w_specs,
        out_specs=pl.BlockSpec((bt, Lq, E), lambda i: (i, 0, 0)),
        scratch_shapes=[pltpu.VMEM((bt * Lq, E), jnp.float32)],
        compiler_params=pltpu.CompilerParams(
            dimension_semantics=("parallel",),
            vmem_limit_bytes=vmem_limit),
    )(q, kv, pad_mask, *params)


def fused_tail(x_pooled, t, t_params, final_params, E, freq_size=256):
    """TimestepEmbedder + final_layer in a single pallas_call."""
    B = x_pooled.shape[0]
    half = freq_size // 2
    tw1, tb1, tw2, tb2 = t_params
    fw1, fb1, fw2, fb2 = final_params
    freqs = jnp.exp(-math.log(10000.0) *
                    jnp.arange(half, dtype=jnp.float32) / half).reshape(1, half)
    return pl.pallas_call(
        tail_kernel,
        out_shape=jax.ShapeDtypeStruct((B, 2 * E), jnp.float32),
    )(t.reshape(B, 1).astype(jnp.float32), freqs, x_pooled,
      tw1[:half], tw1[half:], tb1, tw2, tb2,
      fw1[:2 * E], fw1[2 * E:], fb1, fw2, fb2)


# ----------------------------------------------------------------------------
# Parameter init (deterministic, synthetic).  Matmul weights in bf16, the rest f32.
# ----------------------------------------------------------------------------

def _w(key, shape, dtype=jnp.bfloat16):
    return (jax.random.normal(key, shape, jnp.float32) * 0.02).astype(dtype)


def init_cab_params(key, E, forward_expansion=1):
    ks = jax.random.split(key, 5)
    fe = forward_expansion * E
    f32 = jnp.float32
    return (
        _w(ks[0], (E, E)), jnp.zeros((1, E), f32),               # wq, bq
        _w(ks[1], (E, 2 * E)), jnp.zeros((1, 2 * E), f32),       # wkv (K|V packed), bkv
        _w(ks[2], (E, E)), jnp.zeros((1, E), f32),               # wo, bo
        jnp.ones((1, E), f32), jnp.zeros((1, E), f32),           # LN1
        _w(ks[3], (E, fe)), jnp.zeros((1, fe), f32),             # ff1
        _w(ks[4], (fe, E)), jnp.zeros((1, E), f32),              # ff2
        jnp.ones((1, E), f32), jnp.zeros((1, E), f32),           # LN2
    )


def init_params(key, item_num, E, sem_hidden, freq_size=256):
    ks = jax.random.split(key, 12)
    f32 = jnp.float32
    params = {}
    params["ce_table"] = _w(ks[0], (item_num + 1, E), f32)
    params["se_table"] = _w(ks[1], (item_num + 1, sem_hidden), f32)
    params["adapter"] = (_w(ks[2], (sem_hidden, 512)), jnp.zeros((1, 512), f32),
                         _w(ks[3], (512, E)), jnp.zeros((1, E), f32))
    params["cab1"] = init_cab_params(ks[4], E)
    params["cab2"] = init_cab_params(ks[5], E)
    params["cab3"] = init_cab_params(ks[6], 2 * E)
    params["t_embedder"] = (_w(ks[7], (freq_size, E)), jnp.zeros((1, E), f32),
                            _w(ks[8], (E, E)), jnp.zeros((1, E), f32))
    params["final"] = (_w(ks[9], (3 * E, 2 * E)), jnp.zeros((1, 2 * E), f32),
                       _w(ks[10], (2 * E, 2 * E)), jnp.zeros((1, 2 * E), f32))
    return params


# ----------------------------------------------------------------------------
# inv_cog forward
# ----------------------------------------------------------------------------

def inv_cog_forward(params, x_t, t, ctx_log_seqs, ctx_answers,
                    classifier_free_guidance, *, E, heads):
    B, L = ctx_log_seqs.shape
    scale = E ** 0.5
    pad_mask = (ctx_answers == 0).astype(jnp.float32)[:, None, :]   # (B, 1, L)

    # ---- log2feats -----------------------------------------------------
    if classifier_free_guidance:
        # Reference computes ctx_feats then multiplies by 0.0; emitting zeros
        # directly is numerically identical and skips adapter + cab1 + cab2.
        ctx_feats = jnp.zeros((B, L, 2 * E), jnp.float32)
    else:
        id_seqs = params["ce_table"][ctx_log_seqs] * scale            # (B, L, E)
        id_seqs = id_seqs * ctx_answers[..., None]

        llm_raw = params["se_table"][ctx_log_seqs]                    # (B, L, sem_hidden)
        sem_hidden = llm_raw.shape[-1]
        aw1, ab1, aw2, ab2 = params["adapter"]
        llm_seqs = mlp2(llm_raw.reshape(B * L, sem_hidden), aw1, ab1, aw2, ab2,
                        act="leaky").reshape(B, L, E)
        llm_seqs = llm_seqs * scale
        llm_seqs = llm_seqs * ctx_answers[..., None]

        cross_id = cross_attention_block(llm_seqs, id_seqs, pad_mask,
                                         params["cab1"], heads)
        cross_llm = cross_attention_block(id_seqs, llm_seqs, pad_mask,
                                          params["cab2"], heads)
        ctx_feats = jnp.concatenate([cross_id, cross_llm], axis=-1)   # (B, L, 2E)

    # ---- cross-attn 3 --------------------------------------------------
    # All broadcast query rows are identical and the block is row-wise, so run
    # with Lq=1 and drop the masked mean pool (mean of identical rows == row).
    q = x_t[:, None, :]                                               # (B, 1, 2E)
    att3 = cross_attention_block(q, ctx_feats, pad_mask, params["cab3"], heads)
    x_pooled = att3[:, 0, :]                                          # (B, 2E)

    # ---- timestep embedding + final layer (fused tail kernel) ----------
    return fused_tail(x_pooled, t, params["t_embedder"], params["final"], E)


# ----------------------------------------------------------------------------
# Demo
# ----------------------------------------------------------------------------

if __name__ == "__main__":
    B, L, E = 2, 8, 32            # inv_embed_size = cross_embed_size = ce_embed_size
    HEADS = 4
    ITEM_NUM = 50
    SEM_HIDDEN = 1024             # config['semantic_extractor'] == 'bge-m3'

    key = jax.random.PRNGKey(0)
    kp, kx, ks = jax.random.split(key, 3)
    params = init_params(kp, ITEM_NUM, E, SEM_HIDDEN)

    x_t = jax.random.normal(kx, (B, 2 * E), jnp.float32)
    t = jnp.array([3.0, 11.5], jnp.float32)
    ctx_log_seqs = jax.random.randint(ks, (B, L), 0, ITEM_NUM)
    ctx_answers = jnp.array([[1., -1., 1., 1., 0., 0., 0., 0.],
                             [1., 1., -1., 1., 1., -1., 0., 0.]], jnp.float32)

    fwd = jax.jit(functools.partial(inv_cog_forward, E=E, heads=HEADS),
                  static_argnums=(5,))
    out = fwd(params, x_t, t, ctx_log_seqs, ctx_answers, False)
    out = jax.block_until_ready(out)
    assert out.shape == (B, 2 * E)
    assert bool(jnp.all(jnp.isfinite(out)))
    print("KERNEL_OK")
</pallas_src>

<mosaic_0001>
module attributes {stable_mosaic.version = 11 : i64} {
  func.func @mlp2_kernel(%arg0: i32, %arg1: memref<8x1024xf32, #tpu.memory_space<vmem>>, %arg2: memref<1024x512xbf16, #tpu.memory_space<vmem>>, %arg3: memref<1x512xf32, #tpu.memory_space<vmem>>, %arg4: memref<512x32xbf16, #tpu.memory_space<vmem>>, %arg5: memref<1x32xf32, #tpu.memory_space<vmem>>, %arg6: memref<8x32xf32, #tpu.memory_space<vmem>>) attributes {dimension_semantics = [#tpu.dimension_semantics<parallel>], iteration_bounds = array<i64: 2>, scalar_prefetch = 0 : i64, scratch_operands = 0 : i64, tpu.core_type = #tpu.core_type<tc>, window_params = [{transform_indices = @transform_0, window_bounds = array<i64: 8, 1024>}, {pipeline_mode = #tpu.pipeline_mode<synchronous>, transform_indices = @transform_1, window_bounds = array<i64: 1024, 512>}, {pipeline_mode = #tpu.pipeline_mode<synchronous>, transform_indices = @transform_2, window_bounds = array<i64: 1, 512>}, {pipeline_mode = #tpu.pipeline_mode<synchronous>, transform_indices = @transform_3, window_bounds = array<i64: 512, 32>}, {pipeline_mode = #tpu.pipeline_mode<synchronous>, transform_indices = @transform_4, window_bounds = array<i64: 1, 32>}, {transform_indices = @transform_5, window_bounds = array<i64: 8, 32>}]} {
    %c0 = arith.constant 0 : index
    %c0_0 = arith.constant 0 : index
    %0 = vector.load %arg1[%c0, %c0_0] : memref<8x1024xf32, #tpu.memory_space<vmem>>, vector<8x1024xf32>
    %1 = arith.truncf %0 : vector<8x1024xf32> to vector<8x1024xbf16>
    %c0_1 = arith.constant 0 : index
    %c0_2 = arith.constant 0 : index
    %2 = vector.load %arg2[%c0_1, %c0_2] : memref<1024x512xbf16, #tpu.memory_space<vmem>>, vector<1024x512xbf16>
    %cst = arith.constant dense<0.000000e+00> : vector<8x512xf32>
    %3 = tpu.matmul %1, %2, %cst {dimension_numbers = #tpu.dot_dimension_numbers<[1], [0], [0], [1], [0, 0, 1, 1], [], []>} : vector<8x1024xbf16>, vector<1024x512xbf16>, vector<8x512xf32> -> vector<8x512xf32>
    %c0_3 = arith.constant 0 : index
    %c0_4 = arith.constant 0 : index
    %4 = vector.load %arg3[%c0_3, %c0_4] : memref<1x512xf32, #tpu.memory_space<vmem>>, vector<1x512xf32>
    %5 = vector.broadcast %4 : vector<1x512xf32> to vector<8x512xf32>
    %6 = arith.addf %3, %5 : vector<8x512xf32>
    %cst_5 = arith.constant 0.000000e+00 : f32
    %7 = vector.broadcast %cst_5 : f32 to vector<8x512xf32>
    %8 = arith.cmpf oge, %6, %7 : vector<8x512xf32>
    %cst_6 = arith.constant 0.00999999977 : f32
    %9 = vector.broadcast %cst_6 : f32 to vector<8x512xf32>
    %10 = arith.mulf %9, %6 : vector<8x512xf32>
    %11 = arith.select %8, %6, %10 : vector<8x512xi1>, vector<8x512xf32>
    %12 = arith.truncf %11 : vector<8x512xf32> to vector<8x512xbf16>
    %c0_7 = arith.constant 0 : index
    %c0_8 = arith.constant 0 : index
    %13 = vector.load %arg4[%c0_7, %c0_8] : memref<512x32xbf16, #tpu.memory_space<vmem>>, vector<512x32xbf16>
    %cst_9 = arith.constant dense<0.000000e+00> : vector<8x32xf32>
    %14 = tpu.matmul %12, %13, %cst_9 {dimension_numbers = #tpu.dot_dimension_numbers<[1], [0], [0], [1], [0, 0, 1, 1], [], []>} : vector<8x512xbf16>, vector<512x32xbf16>, vector<8x32xf32> -> vector<8x32xf32>
    %c0_10 = arith.constant 0 : index
    %c0_11 = arith.constant 0 : index
    %15 = vector.load %arg5[%c0_10, %c0_11] : memref<1x32xf32, #tpu.memory_space<vmem>>, vector<1x32xf32>
    %16 = vector.broadcast %15 : vector<1x32xf32> to vector<8x32xf32>
    %17 = arith.addf %14, %16 : vector<8x32xf32>
    %c0_12 = arith.constant 0 : index
    %c0_13 = arith.constant 0 : index
    %18 = vector.load %arg6[%c0_12, %c0_13] : memref<8x32xf32, #tpu.memory_space<vmem>>, vector<8x32xf32>
    tpu.vector_store %arg6[%c0_12, %c0_13], %17 {strides = array<i32>} : memref<8x32xf32, #tpu.memory_space<vmem>>, vector<8x32xf32>,
    return
  }
  func.func @transform_0(%arg0: i32) -> (i32, i32) {
    %c0_i32 = arith.constant 0 : i32
    %c0_i32_0 = arith.constant 0 : i32
    return %arg0, %c0_i32 : i32, i32
  }
  func.func @transform_1(%arg0: i32) -> (i32, i32) {
    %c0_i32 = arith.constant 0 : i32
    %c0_i32_0 = arith.constant 0 : i32
    %c0_i32_1 = arith.constant 0 : i32
    return %c0_i32, %c0_i32_0 : i32, i32
  }
  func.func @transform_2(%arg0: i32) -> (i32, i32) {
    %c0_i32 = arith.constant 0 : i32
    %c0_i32_0 = arith.constant 0 : i32
    %c0_i32_1 = arith.constant 0 : i32
    return %c0_i32, %c0_i32_0 : i32, i32
  }
  func.func @transform_3(%arg0: i32) -> (i32, i32) {
    %c0_i32 = arith.constant 0 : i32
    %c0_i32_0 = arith.constant 0 : i32
    %c0_i32_1 = arith.constant 0 : i32
    return %c0_i32, %c0_i32_0 : i32, i32
  }
  func.func @transform_4(%arg0: i32) -> (i32, i32) {
    %c0_i32 = arith.constant 0 : i32
    %c0_i32_0 = arith.constant 0 : i32
    %c0_i32_1 = arith.constant 0 : i32
    return %c0_i32, %c0_i32_0 : i32, i32
  }
  func.func @transform_5(%arg0: i32) -> (i32, i32) {
    %c0_i32 = arith.constant 0 : i32
    %c0_i32_0 = arith.constant 0 : i32
    return %arg0, %c0_i32 : i32, i32
  }
}

module attributes {stable_mosaic.version = 11 : i64} {
  func.func @cab_kernel(%arg0: i32, %arg1: memref<1x8x32xf32, #tpu.memory_space<vmem>>, %arg2: memref<1x8x32xf32, #tpu.memory_space<vmem>>, %arg3: memref<1x1x8xf32, #tpu.memory_space<vmem>>, %arg4: memref<32x32xbf16, #tpu.memory_space<vmem>>, %arg5: memref<1x32xf32, #tpu.memory_space<vmem>>, %arg6: memref<32x64xbf16, #tpu.memory_space<vmem>>, %arg7: memref<1x64xf32, #tpu.memory_space<vmem>>, %arg8: memref<32x32xbf16, #tpu.memory_space<vmem>>, %arg9: memref<1x32xf32, #tpu.memory_space<vmem>>, %arg10: memref<1x32xf32, #tpu.memory_space<vmem>>, %arg11: memref<1x32xf32, #tpu.memory_space<vmem>>, %arg12: memref<32x32xbf16, #tpu.memory_space<vmem>>, %arg13: memref<1x32xf32, #tpu.memory_space<vmem>>, %arg14: memref<32x32xbf16, #tpu.memory_space<vmem>>, %arg15: memref<1x32xf32, #tpu.memory_space<vmem>>, %arg16: memref<1x32xf32, #tpu.memory_space<vmem>>, %arg17: memref<1x32xf32, #tpu.memory_space<vmem>>, %arg18: memref<1x8x32xf32, #tpu.memory_space<vmem>>, %arg19: memref<8x32xf32, #tpu.memory_space<vmem>>) attributes {dimension_semantics = [#tpu.dimension_semantics<parallel>], iteration_bounds = array<i64: 2>, scalar_prefetch = 0 : i64, scratch_operands = 1 : i64, tpu.core_type = #tpu.core_type<tc>, window_params = [{transform_indices = @transform_0, window_bounds = array<i64: 1, 8, 32>}, {transform_indices = @transform_1, window_bounds = array<i64: 1, 8, 32>}, {transform_indices = @transform_2, window_bounds = array<i64: 1, 1, 8>}, {pipeline_mode = #tpu.pipeline_mode<synchronous>, transform_indices = @transform_3, window_bounds = array<i64: 32, 32>}, {pipeline_mode = #tpu.pipeline_mode<synchronous>, transform_indices = @transform_4, window_bounds = array<i64: 1, 32>}, {pipeline_mode = #tpu.pipeline_mode<synchronous>, transform_indices = @transform_5, window_bounds = array<i64: 32, 64>}, {pipeline_mode = #tpu.pipeline_mode<synchronous>, transform_indices = @transform_6, window_bounds = array<i64: 1, 64>}, {pipeline_mode = #tpu.pipeline_mode<synchronous>, transform_indices = @transform_7, window_bounds = array<i64: 32, 32>}, {pipeline_mode = #tpu.pipeline_mode<synchronous>, transform_indices = @transform_8, window_bounds = array<i64: 1, 32>}, {pipeline_mode = #tpu.pipeline_mode<synchronous>, transform_indices = @transform_9, window_bounds = array<i64: 1, 32>}, {pipeline_mode = #tpu.pipeline_mode<synchronous>, transform_indices = @transform_10, window_bounds = array<i64: 1, 32>}, {pipeline_mode = #tpu.pipeline_mode<synchronous>, transform_indices = @transform_11, window_bounds = array<i64: 32, 32>}, {pipeline_mode = #tpu.pipeline_mode<synchronous>, transform_indices = @transform_12, window_bounds = array<i64: 1, 32>}, {pipeline_mode = #tpu.pipeline_mode<synchronous>, transform_indices = @transform_13, window_bounds = array<i64: 32, 32>}, {pipeline_mode = #tpu.pipeline_mode<synchronous>, transform_indices = @transform_14, window_bounds = array<i64: 1, 32>}, {pipeline_mode = #tpu.pipeline_mode<synchronous>, transform_indices = @transform_15, window_bounds = array<i64: 1, 32>}, {pipeline_mode = #tpu.pipeline_mode<synchronous>, transform_indices = @transform_16, window_bounds = array<i64: 1, 32>}, {transform_indices = @transform_17, window_bounds = array<i64: 1, 8, 32>}]} {
    %c0 = arith.constant 0 : index
    %c0_0 = arith.constant 0 : index
    %c0_1 = arith.constant 0 : index
    %0 = vector.load %arg1[%c0, %c0_0, %c0_1] : memref<1x8x32xf32, #tpu.memory_space<vmem>>, vector<1x8x32xf32>
    %c0_2 = arith.constant 0 : index
    %c0_3 = arith.constant 0 : index
    %c0_4 = arith.constant 0 : index
    %1 = vector.load %arg2[%c0_2, %c0_3, %c0_4] : memref<1x8x32xf32, #tpu.memory_space<vmem>>, vector<1x8x32xf32>
    %c0_5 = arith.constant 0 : index
    %c0_6 = arith.constant 0 : index
    %c0_7 = arith.constant 0 : index
    %2 = vector.load %arg3[%c0_5, %c0_6, %c0_7] : memref<1x1x8xf32, #tpu.memory_space<vmem>>, vector<1x1x8xf32>
    %cst = arith.constant 5.000000e-01 : f32
    %3 = vector.broadcast %cst : f32 to vector<1x1x8xf32>
    %4 = arith.cmpf ogt, %2, %3 : vector<1x1x8xf32>
    %5 = vector.shape_cast %0 : vector<1x8x32xf32> to vector<8x32xf32>
    %6 = vector.shape_cast %1 : vector<1x8x32xf32> to vector<8x32xf32>
    %7 = arith.truncf %5 : vector<8x32xf32> to vector<8x32xbf16>
    %c0_8 = arith.constant 0 : index
    %c0_9 = arith.constant 0 : index
    %8 = vector.load %arg4[%c0_8, %c0_9] : memref<32x32xbf16, #tpu.memory_space<vmem>>, vector<32x32xbf16>
    %cst_10 = arith.constant dense<0.000000e+00> : vector<8x32xf32>
    %9 = tpu.matmul %7, %8, %cst_10 {dimension_numbers = #tpu.dot_dimension_numbers<[1], [0], [0], [1], [0, 0, 1, 1], [], []>} : vector<8x32xbf16>, vector<32x32xbf16>, vector<8x32xf32> -> vector<8x32xf32>
    %c0_11 = arith.constant 0 : index
    %c0_12 = arith.constant 0 : index
    %10 = vector.load %arg5[%c0_11, %c0_12] : memref<1x32xf32, #tpu.memory_space<vmem>>, vector<1x32xf32>
    %11 = vector.broadcast %10 : vector<1x32xf32> to vector<8x32xf32>
    %12 = arith.addf %9, %11 : vector<8x32xf32>
    %13 = arith.truncf %6 : vector<8x32xf32> to vector<8x32xbf16>
    %c0_13 = arith.constant 0 : index
    %c0_14 = arith.constant 0 : index
    %14 = vector.load %arg6[%c0_13, %c0_14] : memref<32x64xbf16, #tpu.memory_space<vmem>>, vector<32x64xbf16>
    %cst_15 = arith.constant dense<0.000000e+00> : vector<8x64xf32>
    %15 = tpu.matmul %13, %14, %cst_15 {dimension_numbers = #tpu.dot_dimension_numbers<[1], [0], [0], [1], [0, 0, 1, 1], [], []>} : vector<8x32xbf16>, vector<32x64xbf16>, vector<8x64xf32> -> vector<8x64xf32>
    %c0_16 = arith.constant 0 : index
    %c0_17 = arith.constant 0 : index
    %16 = vector.load %arg7[%c0_16, %c0_17] : memref<1x64xf32, #tpu.memory_space<vmem>>, vector<1x64xf32>
    %17 = vector.broadcast %16 : vector<1x64xf32> to vector<8x64xf32>
    %18 = arith.addf %15, %17 : vector<8x64xf32>
    %cst_18 = arith.constant 0.353553385 : f32
    %19 = vector.broadcast %cst_18 : f32 to vector<8x32xf32>
    %20 = arith.mulf %12, %19 : vector<8x32xf32>
    %21 = arith.truncf %20 : vector<8x32xf32> to vector<8x32xbf16>
    %22 = vector.shape_cast %21 : vector<8x32xbf16> to vector<1x8x32xbf16>
    %23 = vector.extract_strided_slice %18 {offsets = [0, 0], sizes = [8, 32], strides = [1, 1]} : vector<8x64xf32> to vector<8x32xf32>
    %24 = arith.truncf %23 : vector<8x32xf32> to vector<8x32xbf16>
    %25 = vector.shape_cast %24 : vector<8x32xbf16> to vector<1x8x32xbf16>
    %26 = vector.extract_strided_slice %18 {offsets = [0, 32], sizes = [8, 32], strides = [1, 1]} : vector<8x64xf32> to vector<8x32xf32>
    %27 = arith.truncf %26 : vector<8x32xf32> to vector<8x32xbf16>
    %28 = vector.shape_cast %27 : vector<8x32xbf16> to vector<1x8x32xbf16>
    %29 = vector.extract_strided_slice %22 {offsets = [0, 0, 0], sizes = [1, 8, 8], strides = [1, 1, 1]} : vector<1x8x32xbf16> to vector<1x8x8xbf16>
    %30 = vector.extract_strided_slice %25 {offsets = [0, 0, 0], sizes = [1, 8, 8], strides = [1, 1, 1]} : vector<1x8x32xbf16> to vector<1x8x8xbf16>
    "tpu.trace_start"() <{level = 10 : i32, message = "bqd,bkd->bqk"}> : () -> ()
    %cst_19 = arith.constant dense<0.000000e+00> : vector<1x8x8xf32>
    %31 = tpu.matmul %29, %30, %cst_19 {dimension_numbers = #tpu.dot_dimension_numbers<[2], [2], [1], [1], [0, 0, 0, 1, 1, 1], [0], [0]>} : vector<1x8x8xbf16>, vector<1x8x8xbf16>, vector<1x8x8xf32> -> vector<1x8x8xf32>
    %cst_20 = arith.constant -1.000000e+30 : f32
    "tpu.trace_stop"() : () -> ()
    %32 = vector.shape_cast %4 : vector<1x1x8xi1> to vector<1x1x8xi1>
    %33 = vector.broadcast %32 : vector<1x1x8xi1> to vector<1x8x8xi1>
    %34 = vector.broadcast %cst_20 : f32 to vector<1x8x8xf32>
    %35 = arith.select %33, %34, %31 : vector<1x8x8xi1>, vector<1x8x8xf32>
    %cst_21 = arith.constant dense<0xFF800000> : vector<1x8xf32>
    %36 = vector.multi_reduction <maximumf>, %35, %cst_21 [2] : vector<1x8x8xf32> to vector<1x8xf32>
    %37 = vector.shape_cast %36 : vector<1x8xf32> to vector<1x8x1xf32>
    %38 = vector.broadcast %37 : vector<1x8x1xf32> to vector<1x8x8xf32>
    %39 = arith.subf %35, %38 : vector<1x8x8xf32>
    %40 = math.exp %39 : vector<1x8x8xf32>
    %cst_22 = arith.constant dense<0.000000e+00> : vector<1x8xf32>
    %41 = vector.multi_reduction <add>, %40, %cst_22 [2] : vector<1x8x8xf32> to vector<1x8xf32>
    %42 = vector.shape_cast %41 : vector<1x8xf32> to vector<1x8x1xf32>
    %43 = tpu.reciprocal %42 {approx = true} : vector<1x8x1xf32> -> vector<1x8x1xf32>
    %44 = vector.broadcast %43 : vector<1x8x1xf32> to vector<1x8x8xf32>
    %45 = arith.mulf %40, %44 : vector<1x8x8xf32>
    %46 = arith.truncf %45 : vector<1x8x8xf32> to vector<1x8x8xbf16>
    %47 = vector.extract_strided_slice %28 {offsets = [0, 0, 0], sizes = [1, 8, 8], strides = [1, 1, 1]} : vector<1x8x32xbf16> to vector<1x8x8xbf16>
    "tpu.trace_start"() <{level = 10 : i32, message = "bqk,bkd->bqd"}> : () -> ()
    %cst_23 = arith.constant dense<0.000000e+00> : vector<1x8x8xf32>
    %48 = tpu.matmul %46, %47, %cst_23 {dimension_numbers = #tpu.dot_dimension_numbers<[2], [1], [1], [2], [0, 0, 0, 1, 1, 2], [0], [0]>} : vector<1x8x8xbf16>, vector<1x8x8xbf16>, vector<1x8x8xf32> -> vector<1x8x8xf32>
    "tpu.trace_stop"() : () -> ()
    %49 = vector.shape_cast %48 : vector<1x8x8xf32> to vector<8x8xf32>
    %c0_24 = arith.constant 0 : index
    %c0_25 = arith.constant 0 : index
    %50 = vector.load %arg19[%c0_24, %c0_25] : memref<8x32xf32, #tpu.memory_space<vmem>>, vector<8x8xf32>
    tpu.vector_store %arg19[%c0_24, %c0_25], %49 {strides = array<i32>} : memref<8x32xf32, #tpu.memory_space<vmem>>, vector<8x8xf32>,
    %51 = vector.extract_strided_slice %22 {offsets = [0, 0, 8], sizes = [1, 8, 8], strides = [1, 1, 1]} : vector<1x8x32xbf16> to vector<1x8x8xbf16>
    %52 = vector.extract_strided_slice %25 {offsets = [0, 0, 8], sizes = [1, 8, 8], strides = [1, 1, 1]} : vector<1x8x32xbf16> to vector<1x8x8xbf16>
    "tpu.trace_start"() <{level = 10 : i32, message = "bqd,bkd->bqk"}> : () -> ()
    %cst_26 = arith.constant dense<0.000000e+00> : vector<1x8x8xf32>
    %53 = tpu.matmul %51, %52, %cst_26 {dimension_numbers = #tpu.dot_dimension_numbers<[2], [2], [1], [1], [0, 0, 0, 1, 1, 1], [0], [0]>} : vector<1x8x8xbf16>, vector<1x8x8xbf16>, vector<1x8x8xf32> -> vector<1x8x8xf32>
    %cst_27 = arith.constant -1.000000e+30 : f32
    "tpu.trace_stop"() : () -> ()
    %54 = vector.shape_cast %4 : vector<1x1x8xi1> to vector<1x1x8xi1>
    %55 = vector.broadcast %54 : vector<1x1x8xi1> to vector<1x8x8xi1>
    %56 = vector.broadcast %cst_27 : f32 to vector<1x8x8xf32>
    %57 = arith.select %55, %56, %53 : vector<1x8x8xi1>, vector<1x8x8xf32>
    %cst_28 = arith.constant dense<0xFF800000> : vector<1x8xf32>
    %58 = vector.multi_reduction <maximumf>, %57, %cst_28 [2] : vector<1x8x8xf32> to vector<1x8xf32>
    %59 = vector.shape_cast %58 : vector<1x8xf32> to vector<1x8x1xf32>
    %60 = vector.broadcast %59 : vector<1x8x1xf32> to vector<1x8x8xf32>
    %61 = arith.subf %57, %60 : vector<1x8x8xf32>
    %62 = math.exp %61 : vector<1x8x8xf32>
    %cst_29 = arith.constant dense<0.000000e+00> : vector<1x8xf32>
    %63 = vector.multi_reduction <add>, %62, %cst_29 [2] : vector<1x8x8xf32> to vector<1x8xf32>
    %64 = vector.shape_cast %63 : vector<1x8xf32> to vector<1x8x1xf32>
    %65 = tpu.reciprocal %64 {approx = true} : vector<1x8x1xf32> -> vector<1x8x1xf32>
    %66 = vector.broadcast %65 : vector<1x8x1xf32> to vector<1x8x8xf32>
    %67 = arith.mulf %62, %66 : vector<1x8x8xf32>
    %68 = arith.truncf %67 : vector<1x8x8xf32> to vector<1x8x8xbf16>
    %69 = vector.extract_strided_slice %28 {offsets = [0, 0, 8], sizes = [1, 8, 8], strides = [1, 1, 1]} : vector<1x8x32xbf16> to vector<1x8x8xbf16>
    "tpu.trace_start"() <{level = 10 : i32, message = "bqk,bkd->bqd"}> : () -> ()
    %cst_30 = arith.constant dense<0.000000e+00> : vector<1x8x8xf32>
    %70 = tpu.matmul %68, %69, %cst_30 {dimension_numbers = #tpu.dot_dimension_numbers<[2], [1], [1], [2], [0, 0, 0, 1, 1, 2], [0], [0]>} : vector<1x8x8xbf16>, vector<1x8x8xbf16>, vector<1x8x8xf32> -> vector<1x8x8xf32>
    "tpu.trace_stop"() : () -> ()
    %71 = vector.shape_cast %70 : vector<1x8x8xf32> to vector<8x8xf32>
    %c0_31 = arith.constant 0 : index
    %c8 = arith.constant 8 : index
    %72 = vector.load %arg19[%c0_31, %c8] : memref<8x32xf32, #tpu.memory_space<vmem>>, vector<8x8xf32>
    tpu.vector_store %arg19[%c0_31, %c8], %71 {strides = array<i32>} : memref<8x32xf32, #tpu.memory_space<vmem>>, vector<8x8xf32>,
    %73 = vector.extract_strided_slice %22 {offsets = [0, 0, 16], sizes = [1, 8, 8], strides = [1, 1, 1]} : vector<1x8x32xbf16> to vector<1x8x8xbf16>
    %74 = vector.extract_strided_slice %25 {offsets = [0, 0, 16], sizes = [1, 8, 8], strides = [1, 1, 1]} : vector<1x8x32xbf16> to vector<1x8x8xbf16>
    "tpu.trace_start"() <{level = 10 : i32, message = "bqd,bkd->bqk"}> : () -> ()
    %cst_32 = arith.constant dense<0.000000e+00> : vector<1x8x8xf32>
    %75 = tpu.matmul %73, %74, %cst_32 {dimension_numbers = #tpu.dot_dimension_numbers<[2], [2], [1], [1], [0, 0, 0, 1, 1, 1], [0], [0]>} : vector<1x8x8xbf16>, vector<1x8x8xbf16>, vector<1x8x8xf32> -> vector<1x8x8xf32>
    %cst_33 = arith.constant -1.000000e+30 : f32
    "tpu.trace_stop"() : () -> ()
    %76 = vector.shape_cast %4 : vector<1x1x8xi1> to vector<1x1x8xi1>
    %77 = vector.broadcast %76 : vector<1x1x8xi1> to vector<1x8x8xi1>
    %78 = vector.broadcast %cst_33 : f32 to vector<1x8x8xf32>
    %79 = arith.select %77, %78, %75 : vector<1x8x8xi1>, vector<1x8x8xf32>
    %cst_34 = arith.constant dense<0xFF800000> : vector<1x8xf32>
    %80 = vector.multi_reduction <maximumf>, %79, %cst_34 [2] : vector<1x8x8xf32> to vector<1x8xf32>
    %81 = vector.shape_cast %80 : vector<1x8xf32> to vector<1x8x1xf32>
    %82 = vector.broadcast %81 : vector<1x8x1xf32> to vector<1x8x8xf32>
    %83 = arith.subf %79, %82 : vector<1x8x8xf32>
    %84 = math.exp %83 : vector<1x8x8xf32>
    %cst_35 = arith.constant dense<0.000000e+00> : vector<1x8xf32>
    %85 = vector.multi_reduction <add>, %84, %cst_35 [2] : vector<1x8x8xf32> to vector<1x8xf32>
    %86 = vector.shape_cast %85 : vector<1x8xf32> to vector<1x8x1xf32>
    %87 = tpu.reciprocal %86 {approx = true} : vector<1x8x1xf32> -> vector<1x8x1xf32>
    %88 = vector.broadcast %87 : vector<1x8x1xf32> to vector<1x8x8xf32>
    %89 = arith.mulf %84, %88 : vector<1x8x8xf32>
    %90 = arith.truncf %89 : vector<1x8x8xf32> to vector<1x8x8xbf16>
    %91 = vector.extract_strided_slice %28 {offsets = [0, 0, 16], sizes = [1, 8, 8], strides = [1, 1, 1]} : vector<1x8x32xbf16> to vector<1x8x8xbf16>
    "tpu.trace_start"() <{level = 10 : i32, message = "bqk,bkd->bqd"}> : () -> ()
    %cst_36 = arith.constant dense<0.000000e+00> : vector<1x8x8xf32>
    %92 = tpu.matmul %90, %91, %cst_36 {dimension_numbers = #tpu.dot_dimension_numbers<[2], [1], [1], [2], [0, 0, 0, 1, 1, 2], [0], [0]>} : vector<1x8x8xbf16>, vector<1x8x8xbf16>, vector<1x8x8xf32> -> vector<1x8x8xf32>
    "tpu.trace_stop"() : () -> ()
    %93 = vector.shape_cast %92 : vector<1x8x8xf32> to vector<8x8xf32>
    %c0_37 = arith.constant 0 : index
    %c16 = arith.constant 16 : index
    %94 = vector.load %arg19[%c0_37, %c16] : memref<8x32xf32, #tpu.memory_space<vmem>>, vector<8x8xf32>
    tpu.vector_store %arg19[%c0_37, %c16], %93 {strides = array<i32>} : memref<8x32xf32, #tpu.memory_space<vmem>>, vector<8x8xf32>,
    %95 = vector.extract_strided_slice %22 {offsets = [0, 0, 24], sizes = [1, 8, 8], strides = [1, 1, 1]} : vector<1x8x32xbf16> to vector<1x8x8xbf16>
    %96 = vector.extract_strided_slice %25 {offsets = [0, 0, 24], sizes = [1, 8, 8], strides = [1, 1, 1]} : vector<1x8x32xbf16> to vector<1x8x8xbf16>
    "tpu.trace_start"() <{level = 10 : i32, message = "bqd,bkd->bqk"}> : () -> ()
    %cst_38 = arith.constant dense<0.000000e+00> : vector<1x8x8xf32>
    %97 = tpu.matmul %95, %96, %cst_38 {dimension_numbers = #tpu.dot_dimension_numbers<[2], [2], [1], [1], [0, 0, 0, 1, 1, 1], [0], [0]>} : vector<1x8x8xbf16>, vector<1x8x8xbf16>, vector<1x8x8xf32> -> vector<1x8x8xf32>
    %cst_39 = arith.constant -1.000000e+30 : f32
    "tpu.trace_stop"() : () -> ()
    %98 = vector.shape_cast %4 : vector<1x1x8xi1> to vector<1x1x8xi1>
    %99 = vector.broadcast %98 : vector<1x1x8xi1> to vector<1x8x8xi1>
    %100 = vector.broadcast %cst_39 : f32 to vector<1x8x8xf32>
    %101 = arith.select %99, %100, %97 : vector<1x8x8xi1>, vector<1x8x8xf32>
    %cst_40 = arith.constant dense<0xFF800000> : vector<1x8xf32>
    %102 = vector.multi_reduction <maximumf>, %101, %cst_40 [2] : vector<1x8x8xf32> to vector<1x8xf32>
    %103 = vector.shape_cast %102 : vector<1x8xf32> to vector<1x8x1xf32>
    %104 = vector.broadcast %103 : vector<1x8x1xf32> to vector<1x8x8xf32>
    %105 = arith.subf %101, %104 : vector<1x8x8xf32>
    %106 = math.exp %105 : vector<1x8x8xf32>
    %cst_41 = arith.constant dense<0.000000e+00> : vector<1x8xf32>
    %107 = vector.multi_reduction <add>, %106, %cst_41 [2] : vector<1x8x8xf32> to vector<1x8xf32>
    %108 = vector.shape_cast %107 : vector<1x8xf32> to vector<1x8x1xf32>
    %109 = tpu.reciprocal %108 {approx = true} : vector<1x8x1xf32> -> vector<1x8x1xf32>
    %110 = vector.broadcast %109 : vector<1x8x1xf32> to vector<1x8x8xf32>
    %111 = arith.mulf %106, %110 : vector<1x8x8xf32>
    %112 = arith.truncf %111 : vector<1x8x8xf32> to vector<1x8x8xbf16>
    %113 = vector.extract_strided_slice %28 {offsets = [0, 0, 24], sizes = [1, 8, 8], strides = [1, 1, 1]} : vector<1x8x32xbf16> to vector<1x8x8xbf16>
    "tpu.trace_start"() <{level = 10 : i32, message = "bqk,bkd->bqd"}> : () -> ()
    %cst_42 = arith.constant dense<0.000000e+00> : vector<1x8x8xf32>
    %114 = tpu.matmul %112, %113, %cst_42 {dimension_numbers = #tpu.dot_dimension_numbers<[2], [1], [1], [2], [0, 0, 0, 1, 1, 2], [0], [0]>} : vector<1x8x8xbf16>, vector<1x8x8xbf16>, vector<1x8x8xf32> -> vector<1x8x8xf32>
    "tpu.trace_stop"() : () -> ()
    %115 = vector.shape_cast %114 : vector<1x8x8xf32> to vector<8x8xf32>
    %c0_43 = arith.constant 0 : index
    %c24 = arith.constant 24 : index
    %116 = vector.load %arg19[%c0_43, %c24] : memref<8x32xf32, #tpu.memory_space<vmem>>, vector<8x8xf32>
    tpu.vector_store %arg19[%c0_43, %c24], %115 {strides = array<i32>} : memref<8x32xf32, #tpu.memory_space<vmem>>, vector<8x8xf32>,
    %c0_44 = arith.constant 0 : index
    %c0_45 = arith.constant 0 : index
    %117 = vector.load %arg19[%c0_44, %c0_45] : memref<8x32xf32, #tpu.memory_space<vmem>>, vector<8x32xf32>
    %118 = arith.truncf %117 : vector<8x32xf32> to vector<8x32xbf16>
    %c0_46 = arith.constant 0 : index
    %c0_47 = arith.constant 0 : index
    %119 = vector.load %arg8[%c0_46, %c0_47] : memref<32x32xbf16, #tpu.memory_space<vmem>>, vector<32x32xbf16>
    %cst_48 = arith.constant dense<0.000000e+00> : vector<8x32xf32>
    %120 = tpu.matmul %118, %119, %cst_48 {dimension_numbers = #tpu.dot_dimension_numbers<[1], [0], [0], [1], [0, 0, 1, 1], [], []>} : vector<8x32xbf16>, vector<32x32xbf16>, vector<8x32xf32> -> vector<8x32xf32>
    %c0_49 = arith.constant 0 : index
    %c0_50 = arith.constant 0 : index
    %121 = vector.load %arg9[%c0_49, %c0_50] : memref<1x32xf32, #tpu.memory_space<vmem>>, vector<1x32xf32>
    %122 = vector.broadcast %121 : vector<1x32xf32> to vector<8x32xf32>
    %123 = arith.addf %120, %122 : vector<8x32xf32>
    %124 = arith.addf %123, %5 : vector<8x32xf32>
    %c0_51 = arith.constant 0 : index
    %c0_52 = arith.constant 0 : index
    %125 = vector.load %arg10[%c0_51, %c0_52] : memref<1x32xf32, #tpu.memory_space<vmem>>, vector<1x32xf32>
    %c0_53 = arith.constant 0 : index
    %c0_54 = arith.constant 0 : index
    %126 = vector.load %arg11[%c0_53, %c0_54] : memref<1x32xf32, #tpu.memory_space<vmem>>, vector<1x32xf32>
    %cst_55 = arith.constant dense<0.000000e+00> : vector<8xf32>
    %127 = vector.multi_reduction <add>, %124, %cst_55 [1] : vector<8x32xf32> to vector<8xf32>
    %128 = vector.shape_cast %127 : vector<8xf32> to vector<8x1xf32>
    %cst_56 = arith.constant 3.200000e+01 : f32
    %129 = vector.broadcast %cst_56 : f32 to vector<8x1xf32>
    %130 = arith.divf %128, %129 : vector<8x1xf32>
    %131 = vector.broadcast %130 : vector<8x1xf32> to vector<8x32xf32>
    %132 = arith.subf %124, %131 : vector<8x32xf32>
    %133 = arith.mulf %132, %132 : vector<8x32xf32>
    %cst_57 = arith.constant dense<0.000000e+00> : vector<8xf32>
    %134 = vector.multi_reduction <add>, %133, %cst_57 [1] : vector<8x32xf32> to vector<8xf32>
    %135 = vector.shape_cast %134 : vector<8xf32> to vector<8x1xf32>
    %cst_58 = arith.constant 3.200000e+01 : f32
    %136 = vector.broadcast %cst_58 : f32 to vector<8x1xf32>
    %137 = arith.divf %135, %136 : vector<8x1xf32>
    %138 = vector.broadcast %130 : vector<8x1xf32> to vector<8x32xf32>
    %139 = arith.subf %124, %138 : vector<8x32xf32>
    %cst_59 = arith.constant 9.99999974E-6 : f32
    %140 = vector.broadcast %cst_59 : f32 to vector<8x1xf32>
    %141 = arith.addf %137, %140 : vector<8x1xf32>
    %142 = math.rsqrt %141 : vector<8x1xf32>
    %143 = vector.broadcast %142 : vector<8x1xf32> to vector<8x32xf32>
    %144 = arith.mulf %139, %143 : vector<8x32xf32>
    %145 = vector.broadcast %125 : vector<1x32xf32> to vector<8x32xf32>
    %146 = arith.mulf %144, %145 : vector<8x32xf32>
    %147 = vector.broadcast %126 : vector<1x32xf32> to vector<8x32xf32>
    %148 = arith.addf %146, %147 : vector<8x32xf32>
    %149 = arith.truncf %148 : vector<8x32xf32> to vector<8x32xbf16>
    %c0_60 = arith.constant 0 : index
    %c0_61 = arith.constant 0 : index
    %150 = vector.load %arg12[%c0_60, %c0_61] : memref<32x32xbf16, #tpu.memory_space<vmem>>, vector<32x32xbf16>
    %cst_62 = arith.constant dense<0.000000e+00> : vector<8x32xf32>
    %151 = tpu.matmul %149, %150, %cst_62 {dimension_numbers = #tpu.dot_dimension_numbers<[1], [0], [0], [1], [0, 0, 1, 1], [], []>} : vector<8x32xbf16>, vector<32x32xbf16>, vector<8x32xf32> -> vector<8x32xf32>
    %c0_63 = arith.constant 0 : index
    %c0_64 = arith.constant 0 : index
    %152 = vector.load %arg13[%c0_63, %c0_64] : memref<1x32xf32, #tpu.memory_space<vmem>>, vector<1x32xf32>
    %153 = vector.broadcast %152 : vector<1x32xf32> to vector<8x32xf32>
    %154 = arith.addf %151, %153 : vector<8x32xf32>
    %cst_65 = arith.constant 0.000000e+00 : f32
    %155 = vector.broadcast %cst_65 : f32 to vector<8x32xf32>
    %156 = arith.maximumf %154, %155 : vector<8x32xf32>
    %157 = arith.truncf %156 : vector<8x32xf32> to vector<8x32xbf16>
    %c0_66 = arith.constant 0 : index
    %c0_67 = arith.constant 0 : index
    %158 = vector.load %arg14[%c0_66, %c0_67] : memref<32x32xbf16, #tpu.memory_space<vmem>>, vector<32x32xbf16>
    %cst_68 = arith.constant dense<0.000000e+00> : vector<8x32xf32>
    %159 = tpu.matmul %157, %158, %cst_68 {dimension_numbers = #tpu.dot_dimension_numbers<[1], [0], [0], [1], [0, 0, 1, 1], [], []>} : vector<8x32xbf16>, vector<32x32xbf16>, vector<8x32xf32> -> vector<8x32xf32>
    %c0_69 = arith.constant 0 : index
    %c0_70 = arith.constant 0 : index
    %160 = vector.load %arg15[%c0_69, %c0_70] : memref<1x32xf32, #tpu.memory_space<vmem>>, vector<1x32xf32>
    %161 = vector.broadcast %160 : vector<1x32xf32> to vector<8x32xf32>
    %162 = arith.addf %159, %161 : vector<8x32xf32>
    %163 = arith.addf %162, %148 : vector<8x32xf32>
    %c0_71 = arith.constant 0 : index
    %c0_72 = arith.constant 0 : index
    %164 = vector.load %arg16[%c0_71, %c0_72] : memref<1x32xf32, #tpu.memory_space<vmem>>, vector<1x32xf32>
    %c0_73 = arith.constant 0 : index
    %c0_74 = arith.constant 0 : index
    %165 = vector.load %arg17[%c0_73, %c0_74] : memref<1x32xf32, #tpu.memory_space<vmem>>, vector<1x32xf32>
    %cst_75 = arith.constant dense<0.000000e+00> : vector<8xf32>
    %166 = vector.multi_reduction <add>, %163, %cst_75 [1] : vector<8x32xf32> to vector<8xf32>
    %167 = vector.shape_cast %166 : vector<8xf32> to vector<8x1xf32>
    %cst_76 = arith.constant 3.200000e+01 : f32
    %168 = vector.broadcast %cst_76 : f32 to vector<8x1xf32>
    %169 = arith.divf %167, %168 : vector<8x1xf32>
    %170 = vector.broadcast %169 : vector<8x1xf32> to vector<8x32xf32>
    %171 = arith.subf %163, %170 : vector<8x32xf32>
    %172 = arith.mulf %171, %171 : vector<8x32xf32>
    %cst_77 = arith.constant dense<0.000000e+00> : vector<8xf32>
    %173 = vector.multi_reduction <add>, %172, %cst_77 [1] : vector<8x32xf32> to vector<8xf32>
    %174 = vector.shape_cast %173 : vector<8xf32> to vector<8x1xf32>
    %cst_78 = arith.constant 3.200000e+01 : f32
    %175 = vector.broadcast %cst_78 : f32 to vector<8x1xf32>
    %176 = arith.divf %174, %175 : vector<8x1xf32>
    %177 = vector.broadcast %169 : vector<8x1xf32> to vector<8x32xf32>
    %178 = arith.subf %163, %177 : vector<8x32xf32>
    %cst_79 = arith.constant 9.99999974E-6 : f32
    %179 = vector.broadcast %cst_79 : f32 to vector<8x1xf32>
    %180 = arith.addf %176, %179 : vector<8x1xf32>
    %181 = math.rsqrt %180 : vector<8x1xf32>
    %182 = vector.broadcast %181 : vector<8x1xf32> to vector<8x32xf32>
    %183 = arith.mulf %178, %182 : vector<8x32xf32>
    %184 = vector.broadcast %164 : vector<1x32xf32> to vector<8x32xf32>
    %185 = arith.mulf %183, %184 : vector<8x32xf32>
    %186 = vector.broadcast %165 : vector<1x32xf32> to vector<8x32xf32>
    %187 = arith.addf %185, %186 : vector<8x32xf32>
    %188 = vector.shape_cast %187 : vector<8x32xf32> to vector<1x8x32xf32>
    %c0_80 = arith.constant 0 : index
    %c0_81 = arith.constant 0 : index
    %c0_82 = arith.constant 0 : index
    %189 = vector.load %arg18[%c0_80, %c0_81, %c0_82] : memref<1x8x32xf32, #tpu.memory_space<vmem>>, vector<1x8x32xf32>
    tpu.vector_store %arg18[%c0_80, %c0_81, %c0_82], %188 {strides = array<i32>} : memref<1x8x32xf32, #tpu.memory_space<vmem>>, vector<1x8x32xf32>,
    return
  }
  func.func @transform_0(%arg0: i32) -> (i32, i32, i32) {
    %c0_i32 = arith.constant 0 : i32
    %c0_i32_0 = arith.constant 0 : i32
    %c0_i32_1 = arith.constant 0 : i32
    return %arg0, %c0_i32, %c0_i32_0 : i32, i32, i32
  }
  func.func @transform_1(%arg0: i32) -> (i32, i32, i32) {
    %c0_i32 = arith.constant 0 : i32
    %c0_i32_0 = arith.constant 0 : i32
    %c0_i32_1 = arith.constant 0 : i32
    return %arg0, %c0_i32, %c0_i32_0 : i32, i32, i32
  }
  func.func @transform_2(%arg0: i32) -> (i32, i32, i32) {
    %c0_i32 = arith.constant 0 : i32
    %c0_i32_0 = arith.constant 0 : i32
    %c0_i32_1 = arith.constant 0 : i32
    return %arg0, %c0_i32, %c0_i32_0 : i32, i32, i32
  }
  func.func @transform_3(%arg0: i32) -> (i32, i32) {
    %c0_i32 = arith.constant 0 : i32
    %c0_i32_0 = arith.constant 0 : i32
    %c0_i32_1 = arith.constant 0 : i32
    return %c0_i32, %c0_i32_0 : i32, i32
  }
  func.func @transform_4(%arg0: i32) -> (i32, i32) {
    %c0_i32 = arith.constant 0 : i32
    %c0_i32_0 = arith.constant 0 : i32
    %c0_i32_1 = arith.constant 0 : i32
    return %c0_i32, %c0_i32_0 : i32, i32
  }
  func.func @transform_5(%arg0: i32) -> (i32, i32) {
    %c0_i32 = arith.constant 0 : i32
    %c0_i32_0 = arith.constant 0 : i32
    %c0_i32_1 = arith.constant 0 : i32
    return %c0_i32, %c0_i32_0 : i32, i32
  }
  func.func @transform_6(%arg0: i32) -> (i32, i32) {
    %c0_i32 = arith.constant 0 : i32
    %c0_i32_0 = arith.constant 0 : i32
    %c0_i32_1 = arith.constant 0 : i32
    return %c0_i32, %c0_i32_0 : i32, i32
  }
  func.func @transform_7(%arg0: i32) -> (i32, i32) {
    %c0_i32 = arith.constant 0 : i32
    %c0_i32_0 = arith.constant 0 : i32
    %c0_i32_1 = arith.constant 0 : i32
    return %c0_i32, %c0_i32_0 : i32, i32
  }
  func.func @transform_8(%arg0: i32) -> (i32, i32) {
    %c0_i32 = arith.constant 0 : i32
    %c0_i32_0 = arith.constant 0 : i32
    %c0_i32_1 = arith.constant 0 : i32
    return %c0_i32, %c0_i32_0 : i32, i32
  }
  func.func @transform_9(%arg0: i32) -> (i32, i32) {
    %c0_i32 = arith.constant 0 : i32
    %c0_i32_0 = arith.constant 0 : i32
    %c0_i32_1 = arith.constant 0 : i32
    return %c0_i32, %c0_i32_0 : i32, i32
  }
  func.func @transform_10(%arg0: i32) -> (i32, i32) {
    %c0_i32 = arith.constant 0 : i32
    %c0_i32_0 = arith.constant 0 : i32
    %c0_i32_1 = arith.constant 0 : i32
    return %c0_i32, %c0_i32_0 : i32, i32
  }
  func.func @transform_11(%arg0: i32) -> (i32, i32) {
    %c0_i32 = arith.constant 0 : i32
    %c0_i32_0 = arith.constant 0 : i32
    %c0_i32_1 = arith.constant 0 : i32
    return %c0_i32, %c0_i32_0 : i32, i32
  }
  func.func @transform_12(%arg0: i32) -> (i32, i32) {
    %c0_i32 = arith.constant 0 : i32
    %c0_i32_0 = arith.constant 0 : i32
    %c0_i32_1 = arith.constant 0 : i32
    return %c0_i32, %c0_i32_0 : i32, i32
  }
  func.func @transform_13(%arg0: i32) -> (i32, i32) {
    %c0_i32 = arith.constant 0 : i32
    %c0_i32_0 = arith.constant 0 : i32
    %c0_i32_1 = arith.constant 0 : i32
    return %c0_i32, %c0_i32_0 : i32, i32
  }
  func.func @transform_14(%arg0: i32) -> (i32, i32) {
    %c0_i32 = arith.constant 0 : i32
    %c0_i32_0 = arith.constant 0 : i32
    %c0_i32_1 = arith.constant 0 : i32
    return %c0_i32, %c0_i32_0 : i32, i32
  }
  func.func @transform_15(%arg0: i32) -> (i32, i32) {
    %c0_i32 = arith.constant 0 : i32
    %c0_i32_0 = arith.constant 0 : i32
    %c0_i32_1 = arith.constant 0 : i32
    return %c0_i32, %c0_i32_0 : i32, i32
  }
  func.func @transform_16(%arg0: i32) -> (i32, i32) {
    %c0_i32 = arith.constant 0 : i32
    %c0_i32_0 = arith.constant 0 : i32
    %c0_i32_1 = arith.constant 0 : i32
    return %c0_i32, %c0_i32_0 : i32, i32
  }
  func.func @transform_17(%arg0: i32) -> (i32, i32, i32) {
    %c0_i32 = arith.constant 0 : i32
    %c0_i32_0 = arith.constant 0 : i32
    %c0_i32_1 = arith.constant 0 : i32
    return %arg0, %c0_i32, %c0_i32_0 : i32, i32, i32
  }
}

module attributes {stable_mosaic.version = 11 : i64} {
  func.func @cab_kernel(%arg0: i32, %arg1: memref<1x1x64xf32, #tpu.memory_space<vmem>>, %arg2: memref<1x8x64xf32, #tpu.memory_space<vmem>>, %arg3: memref<1x1x8xf32, #tpu.memory_space<vmem>>, %arg4: memref<64x64xbf16, #tpu.memory_space<vmem>>, %arg5: memref<1x64xf32, #tpu.memory_space<vmem>>, %arg6: memref<64x128xbf16, #tpu.memory_space<vmem>>, %arg7: memref<1x128xf32, #tpu.memory_space<vmem>>, %arg8: memref<64x64xbf16, #tpu.memory_space<vmem>>, %arg9: memref<1x64xf32, #tpu.memory_space<vmem>>, %arg10: memref<1x64xf32, #tpu.memory_space<vmem>>, %arg11: memref<1x64xf32, #tpu.memory_space<vmem>>, %arg12: memref<64x64xbf16, #tpu.memory_space<vmem>>, %arg13: memref<1x64xf32, #tpu.memory_space<vmem>>, %arg14: memref<64x64xbf16, #tpu.memory_space<vmem>>, %arg15: memref<1x64xf32, #tpu.memory_space<vmem>>, %arg16: memref<1x64xf32, #tpu.memory_space<vmem>>, %arg17: memref<1x64xf32, #tpu.memory_space<vmem>>, %arg18: memref<1x1x64xf32, #tpu.memory_space<vmem>>, %arg19: memref<1x64xf32, #tpu.memory_space<vmem>>) attributes {dimension_semantics = [#tpu.dimension_semantics<parallel>], iteration_bounds = array<i64: 2>, scalar_prefetch = 0 : i64, scratch_operands = 1 : i64, tpu.core_type = #tpu.core_type<tc>, window_params = [{transform_indices = @transform_0, window_bounds = array<i64: 1, 1, 64>}, {transform_indices = @transform_1, window_bounds = array<i64: 1, 8, 64>}, {transform_indices = @transform_2, window_bounds = array<i64: 1, 1, 8>}, {pipeline_mode = #tpu.pipeline_mode<synchronous>, transform_indices = @transform_3, window_bounds = array<i64: 64, 64>}, {pipeline_mode = #tpu.pipeline_mode<synchronous>, transform_indices = @transform_4, window_bounds = array<i64: 1, 64>}, {pipeline_mode = #tpu.pipeline_mode<synchronous>, transform_indices = @transform_5, window_bounds = array<i64: 64, 128>}, {pipeline_mode = #tpu.pipeline_mode<synchronous>, transform_indices = @transform_6, window_bounds = array<i64: 1, 128>}, {pipeline_mode = #tpu.pipeline_mode<synchronous>, transform_indices = @transform_7, window_bounds = array<i64: 64, 64>}, {pipeline_mode = #tpu.pipeline_mode<synchronous>, transform_indices = @transform_8, window_bounds = array<i64: 1, 64>}, {pipeline_mode = #tpu.pipeline_mode<synchronous>, transform_indices = @transform_9, window_bounds = array<i64: 1, 64>}, {pipeline_mode = #tpu.pipeline_mode<synchronous>, transform_indices = @transform_10, window_bounds = array<i64: 1, 64>}, {pipeline_mode = #tpu.pipeline_mode<synchronous>, transform_indices = @transform_11, window_bounds = array<i64: 64, 64>}, {pipeline_mode = #tpu.pipeline_mode<synchronous>, transform_indices = @transform_12, window_bounds = array<i64: 1, 64>}, {pipeline_mode = #tpu.pipeline_mode<synchronous>, transform_indices = @transform_13, window_bounds = array<i64: 64, 64>}, {pipeline_mode = #tpu.pipeline_mode<synchronous>, transform_indices = @transform_14, window_bounds = array<i64: 1, 64>}, {pipeline_mode = #tpu.pipeline_mode<synchronous>, transform_indices = @transform_15, window_bounds = array<i64: 1, 64>}, {pipeline_mode = #tpu.pipeline_mode<synchronous>, transform_indices = @transform_16, window_bounds = array<i64: 1, 64>}, {transform_indices = @transform_17, window_bounds = array<i64: 1, 1, 64>}]} {
    %c0 = arith.constant 0 : index
    %c0_0 = arith.constant 0 : index
    %c0_1 = arith.constant 0 : index
    %0 = vector.load %arg1[%c0, %c0_0, %c0_1] : memref<1x1x64xf32, #tpu.memory_space<vmem>>, vector<1x1x64xf32>
    %c0_2 = arith.constant 0 : index
    %c0_3 = arith.constant 0 : index
    %c0_4 = arith.constant 0 : index
    %1 = vector.load %arg2[%c0_2, %c0_3, %c0_4] : memref<1x8x64xf32, #tpu.memory_space<vmem>>, vector<1x8x64xf32>
    %c0_5 = arith.constant 0 : index
    %c0_6 = arith.constant 0 : index
    %c0_7 = arith.constant 0 : index
    %2 = vector.load %arg3[%c0_5, %c0_6, %c0_7] : memref<1x1x8xf32, #tpu.memory_space<vmem>>, vector<1x1x8xf32>
    %cst = arith.constant 5.000000e-01 : f32
    %3 = vector.broadcast %cst : f32 to vector<1x1x8xf32>
    %4 = arith.cmpf ogt, %2, %3 : vector<1x1x8xf32>
    %5 = vector.shape_cast %0 : vector<1x1x64xf32> to vector<1x64xf32>
    %6 = vector.shape_cast %1 : vector<1x8x64xf32> to vector<8x64xf32>
    %7 = arith.truncf %5 : vector<1x64xf32> to vector<1x64xbf16>
    %c0_8 = arith.constant 0 : index
    %c0_9 = arith.constant 0 : index
    %8 = vector.load %arg4[%c0_8, %c0_9] : memref<64x64xbf16, #tpu.memory_space<vmem>>, vector<64x64xbf16>
    %cst_10 = arith.constant dense<0.000000e+00> : vector<1x64xf32>
    %9 = tpu.matmul %7, %8, %cst_10 {dimension_numbers = #tpu.dot_dimension_numbers<[1], [0], [0], [1], [0, 0, 1, 1], [], []>} : vector<1x64xbf16>, vector<64x64xbf16>, vector<1x64xf32> -> vector<1x64xf32>
    %c0_11 = arith.constant 0 : index
    %c0_12 = arith.constant 0 : index
    %10 = vector.load %arg5[%c0_11, %c0_12] : memref<1x64xf32, #tpu.memory_space<vmem>>, vector<1x64xf32>
    %11 = arith.addf %9, %10 : vector<1x64xf32>
    %12 = arith.truncf %6 : vector<8x64xf32> to vector<8x64xbf16>
    %c0_13 = arith.constant 0 : index
    %c0_14 = arith.constant 0 : index
    %13 = vector.load %arg6[%c0_13, %c0_14] : memref<64x128xbf16, #tpu.memory_space<vmem>>, vector<64x128xbf16>
    %cst_15 = arith.constant dense<0.000000e+00> : vector<8x128xf32>
    %14 = tpu.matmul %12, %13, %cst_15 {dimension_numbers = #tpu.dot_dimension_numbers<[1], [0], [0], [1], [0, 0, 1, 1], [], []>} : vector<8x64xbf16>, vector<64x128xbf16>, vector<8x128xf32> -> vector<8x128xf32>
    %c0_16 = arith.constant 0 : index
    %c0_17 = arith.constant 0 : index
    %15 = vector.load %arg7[%c0_16, %c0_17] : memref<1x128xf32, #tpu.memory_space<vmem>>, vector<1x128xf32>
    %16 = vector.broadcast %15 : vector<1x128xf32> to vector<8x128xf32>
    %17 = arith.addf %14, %16 : vector<8x128xf32>
    %cst_18 = arith.constant 2.500000e-01 : f32
    %18 = vector.broadcast %cst_18 : f32 to vector<1x64xf32>
    %19 = arith.mulf %11, %18 : vector<1x64xf32>
    %20 = arith.truncf %19 : vector<1x64xf32> to vector<1x64xbf16>
    %21 = vector.shape_cast %20 : vector<1x64xbf16> to vector<1x1x64xbf16>
    %22 = vector.extract_strided_slice %17 {offsets = [0, 0], sizes = [8, 64], strides = [1, 1]} : vector<8x128xf32> to vector<8x64xf32>
    %23 = arith.truncf %22 : vector<8x64xf32> to vector<8x64xbf16>
    %24 = vector.shape_cast %23 : vector<8x64xbf16> to vector<1x8x64xbf16>
    %25 = vector.extract_strided_slice %17 {offsets = [0, 64], sizes = [8, 64], strides = [1, 1]} : vector<8x128xf32> to vector<8x64xf32>
    %26 = arith.truncf %25 : vector<8x64xf32> to vector<8x64xbf16>
    %27 = vector.shape_cast %26 : vector<8x64xbf16> to vector<1x8x64xbf16>
    %28 = vector.extract_strided_slice %21 {offsets = [0, 0, 0], sizes = [1, 1, 16], strides = [1, 1, 1]} : vector<1x1x64xbf16> to vector<1x1x16xbf16>
    %29 = vector.extract_strided_slice %24 {offsets = [0, 0, 0], sizes = [1, 8, 16], strides = [1, 1, 1]} : vector<1x8x64xbf16> to vector<1x8x16xbf16>
    "tpu.trace_start"() <{level = 10 : i32, message = "bqd,bkd->bqk"}> : () -> ()
    %cst_19 = arith.constant dense<0.000000e+00> : vector<1x1x8xf32>
    %30 = tpu.matmul %28, %29, %cst_19 {dimension_numbers = #tpu.dot_dimension_numbers<[2], [2], [1], [1], [0, 0, 0, 1, 1, 1], [0], [0]>} : vector<1x1x16xbf16>, vector<1x8x16xbf16>, vector<1x1x8xf32> -> vector<1x1x8xf32>
    %cst_20 = arith.constant -1.000000e+30 : f32
    "tpu.trace_stop"() : () -> ()
    %31 = vector.broadcast %cst_20 : f32 to vector<1x1x8xf32>
    %32 = arith.select %4, %31, %30 : vector<1x1x8xi1>, vector<1x1x8xf32>
    %cst_21 = arith.constant dense<0xFF800000> : vector<1x1xf32>
    %33 = vector.multi_reduction <maximumf>, %32, %cst_21 [2] : vector<1x1x8xf32> to vector<1x1xf32>
    %34 = vector.shape_cast %33 : vector<1x1xf32> to vector<1x1x1xf32>
    %35 = vector.broadcast %34 : vector<1x1x1xf32> to vector<1x1x8xf32>
    %36 = arith.subf %32, %35 : vector<1x1x8xf32>
    %37 = math.exp %36 : vector<1x1x8xf32>
    %cst_22 = arith.constant dense<0.000000e+00> : vector<1x1xf32>
    %38 = vector.multi_reduction <add>, %37, %cst_22 [2] : vector<1x1x8xf32> to vector<1x1xf32>
    %39 = vector.shape_cast %38 : vector<1x1xf32> to vector<1x1x1xf32>
    %40 = tpu.reciprocal %39 {approx = true} : vector<1x1x1xf32> -> vector<1x1x1xf32>
    %41 = vector.broadcast %40 : vector<1x1x1xf32> to vector<1x1x8xf32>
    %42 = arith.mulf %37, %41 : vector<1x1x8xf32>
    %43 = arith.truncf %42 : vector<1x1x8xf32> to vector<1x1x8xbf16>
    %44 = vector.extract_strided_slice %27 {offsets = [0, 0, 0], sizes = [1, 8, 16], strides = [1, 1, 1]} : vector<1x8x64xbf16> to vector<1x8x16xbf16>
    "tpu.trace_start"() <{level = 10 : i32, message = "bqk,bkd->bqd"}> : () -> ()
    %cst_23 = arith.constant dense<0.000000e+00> : vector<1x1x16xf32>
    %45 = tpu.matmul %43, %44, %cst_23 {dimension_numbers = #tpu.dot_dimension_numbers<[2], [1], [1], [2], [0, 0, 0, 1, 1, 2], [0], [0]>} : vector<1x1x8xbf16>, vector<1x8x16xbf16>, vector<1x1x16xf32> -> vector<1x1x16xf32>
    "tpu.trace_stop"() : () -> ()
    %46 = vector.shape_cast %45 : vector<1x1x16xf32> to vector<1x16xf32>
    %c0_24 = arith.constant 0 : index
    %c0_25 = arith.constant 0 : index
    %47 = vector.load %arg19[%c0_24, %c0_25] : memref<1x64xf32, #tpu.memory_space<vmem>>, vector<1x16xf32>
    tpu.vector_store %arg19[%c0_24, %c0_25], %46 {strides = array<i32>} : memref<1x64xf32, #tpu.memory_space<vmem>>, vector<1x16xf32>,
    %48 = vector.extract_strided_slice %21 {offsets = [0, 0, 16], sizes = [1, 1, 16], strides = [1, 1, 1]} : vector<1x1x64xbf16> to vector<1x1x16xbf16>
    %49 = vector.extract_strided_slice %24 {offsets = [0, 0, 16], sizes = [1, 8, 16], strides = [1, 1, 1]} : vector<1x8x64xbf16> to vector<1x8x16xbf16>
    "tpu.trace_start"() <{level = 10 : i32, message = "bqd,bkd->bqk"}> : () -> ()
    %cst_26 = arith.constant dense<0.000000e+00> : vector<1x1x8xf32>
    %50 = tpu.matmul %48, %49, %cst_26 {dimension_numbers = #tpu.dot_dimension_numbers<[2], [2], [1], [1], [0, 0, 0, 1, 1, 1], [0], [0]>} : vector<1x1x16xbf16>, vector<1x8x16xbf16>, vector<1x1x8xf32> -> vector<1x1x8xf32>
    %cst_27 = arith.constant -1.000000e+30 : f32
    "tpu.trace_stop"() : () -> ()
    %51 = vector.broadcast %cst_27 : f32 to vector<1x1x8xf32>
    %52 = arith.select %4, %51, %50 : vector<1x1x8xi1>, vector<1x1x8xf32>
    %cst_28 = arith.constant dense<0xFF800000> : vector<1x1xf32>
    %53 = vector.multi_reduction <maximumf>, %52, %cst_28 [2] : vector<1x1x8xf32> to vector<1x1xf32>
    %54 = vector.shape_cast %53 : vector<1x1xf32> to vector<1x1x1xf32>
    %55 = vector.broadcast %54 : vector<1x1x1xf32> to vector<1x1x8xf32>
    %56 = arith.subf %52, %55 : vector<1x1x8xf32>
    %57 = math.exp %56 : vector<1x1x8xf32>
    %cst_29 = arith.constant dense<0.000000e+00> : vector<1x1xf32>
    %58 = vector.multi_reduction <add>, %57, %cst_29 [2] : vector<1x1x8xf32> to vector<1x1xf32>
    %59 = vector.shape_cast %58 : vector<1x1xf32> to vector<1x1x1xf32>
    %60 = tpu.reciprocal %59 {approx = true} : vector<1x1x1xf32> -> vector<1x1x1xf32>
    %61 = vector.broadcast %60 : vector<1x1x1xf32> to vector<1x1x8xf32>
    %62 = arith.mulf %57, %61 : vector<1x1x8xf32>
    %63 = arith.truncf %62 : vector<1x1x8xf32> to vector<1x1x8xbf16>
    %64 = vector.extract_strided_slice %27 {offsets = [0, 0, 16], sizes = [1, 8, 16], strides = [1, 1, 1]} : vector<1x8x64xbf16> to vector<1x8x16xbf16>
    "tpu.trace_start"() <{level = 10 : i32, message = "bqk,bkd->bqd"}> : () -> ()
    %cst_30 = arith.constant dense<0.000000e+00> : vector<1x1x16xf32>
    %65 = tpu.matmul %63, %64, %cst_30 {dimension_numbers = #tpu.dot_dimension_numbers<[2], [1], [1], [2], [0, 0, 0, 1, 1, 2], [0], [0]>} : vector<1x1x8xbf16>, vector<1x8x16xbf16>, vector<1x1x16xf32> -> vector<1x1x16xf32>
    "tpu.trace_stop"() : () -> ()
    %66 = vector.shape_cast %65 : vector<1x1x16xf32> to vector<1x16xf32>
    %c0_31 = arith.constant 0 : index
    %c16 = arith.constant 16 : index
    %67 = vector.load %arg19[%c0_31, %c16] : memref<1x64xf32, #tpu.memory_space<vmem>>, vector<1x16xf32>
    tpu.vector_store %arg19[%c0_31, %c16], %66 {strides = array<i32>} : memref<1x64xf32, #tpu.memory_space<vmem>>, vector<1x16xf32>,
    %68 = vector.extract_strided_slice %21 {offsets = [0, 0, 32], sizes = [1, 1, 16], strides = [1, 1, 1]} : vector<1x1x64xbf16> to vector<1x1x16xbf16>
    %69 = vector.extract_strided_slice %24 {offsets = [0, 0, 32], sizes = [1, 8, 16], strides = [1, 1, 1]} : vector<1x8x64xbf16> to vector<1x8x16xbf16>
    "tpu.trace_start"() <{level = 10 : i32, message = "bqd,bkd->bqk"}> : () -> ()
    %cst_32 = arith.constant dense<0.000000e+00> : vector<1x1x8xf32>
    %70 = tpu.matmul %68, %69, %cst_32 {dimension_numbers = #tpu.dot_dimension_numbers<[2], [2], [1], [1], [0, 0, 0, 1, 1, 1], [0], [0]>} : vector<1x1x16xbf16>, vector<1x8x16xbf16>, vector<1x1x8xf32> -> vector<1x1x8xf32>
    %cst_33 = arith.constant -1.000000e+30 : f32
    "tpu.trace_stop"() : () -> ()
    %71 = vector.broadcast %cst_33 : f32 to vector<1x1x8xf32>
    %72 = arith.select %4, %71, %70 : vector<1x1x8xi1>, vector<1x1x8xf32>
    %cst_34 = arith.constant dense<0xFF800000> : vector<1x1xf32>
    %73 = vector.multi_reduction <maximumf>, %72, %cst_34 [2] : vector<1x1x8xf32> to vector<1x1xf32>
    %74 = vector.shape_cast %73 : vector<1x1xf32> to vector<1x1x1xf32>
    %75 = vector.broadcast %74 : vector<1x1x1xf32> to vector<1x1x8xf32>
    %76 = arith.subf %72, %75 : vector<1x1x8xf32>
    %77 = math.exp %76 : vector<1x1x8xf32>
    %cst_35 = arith.constant dense<0.000000e+00> : vector<1x1xf32>
    %78 = vector.multi_reduction <add>, %77, %cst_35 [2] : vector<1x1x8xf32> to vector<1x1xf32>
    %79 = vector.shape_cast %78 : vector<1x1xf32> to vector<1x1x1xf32>
    %80 = tpu.reciprocal %79 {approx = true} : vector<1x1x1xf32> -> vector<1x1x1xf32>
    %81 = vector.broadcast %80 : vector<1x1x1xf32> to vector<1x1x8xf32>
    %82 = arith.mulf %77, %81 : vector<1x1x8xf32>
    %83 = arith.truncf %82 : vector<1x1x8xf32> to vector<1x1x8xbf16>
    %84 = vector.extract_strided_slice %27 {offsets = [0, 0, 32], sizes = [1, 8, 16], strides = [1, 1, 1]} : vector<1x8x64xbf16> to vector<1x8x16xbf16>
    "tpu.trace_start"() <{level = 10 : i32, message = "bqk,bkd->bqd"}> : () -> ()
    %cst_36 = arith.constant dense<0.000000e+00> : vector<1x1x16xf32>
    %85 = tpu.matmul %83, %84, %cst_36 {dimension_numbers = #tpu.dot_dimension_numbers<[2], [1], [1], [2], [0, 0, 0, 1, 1, 2], [0], [0]>} : vector<1x1x8xbf16>, vector<1x8x16xbf16>, vector<1x1x16xf32> -> vector<1x1x16xf32>
    "tpu.trace_stop"() : () -> ()
    %86 = vector.shape_cast %85 : vector<1x1x16xf32> to vector<1x16xf32>
    %c0_37 = arith.constant 0 : index
    %c32 = arith.constant 32 : index
    %87 = vector.load %arg19[%c0_37, %c32] : memref<1x64xf32, #tpu.memory_space<vmem>>, vector<1x16xf32>
    tpu.vector_store %arg19[%c0_37, %c32], %86 {strides = array<i32>} : memref<1x64xf32, #tpu.memory_space<vmem>>, vector<1x16xf32>,
    %88 = vector.extract_strided_slice %21 {offsets = [0, 0, 48], sizes = [1, 1, 16], strides = [1, 1, 1]} : vector<1x1x64xbf16> to vector<1x1x16xbf16>
    %89 = vector.extract_strided_slice %24 {offsets = [0, 0, 48], sizes = [1, 8, 16], strides = [1, 1, 1]} : vector<1x8x64xbf16> to vector<1x8x16xbf16>
    "tpu.trace_start"() <{level = 10 : i32, message = "bqd,bkd->bqk"}> : () -> ()
    %cst_38 = arith.constant dense<0.000000e+00> : vector<1x1x8xf32>
    %90 = tpu.matmul %88, %89, %cst_38 {dimension_numbers = #tpu.dot_dimension_numbers<[2], [2], [1], [1], [0, 0, 0, 1, 1, 1], [0], [0]>} : vector<1x1x16xbf16>, vector<1x8x16xbf16>, vector<1x1x8xf32> -> vector<1x1x8xf32>
    %cst_39 = arith.constant -1.000000e+30 : f32
    "tpu.trace_stop"() : () -> ()
    %91 = vector.broadcast %cst_39 : f32 to vector<1x1x8xf32>
    %92 = arith.select %4, %91, %90 : vector<1x1x8xi1>, vector<1x1x8xf32>
    %cst_40 = arith.constant dense<0xFF800000> : vector<1x1xf32>
    %93 = vector.multi_reduction <maximumf>, %92, %cst_40 [2] : vector<1x1x8xf32> to vector<1x1xf32>
    %94 = vector.shape_cast %93 : vector<1x1xf32> to vector<1x1x1xf32>
    %95 = vector.broadcast %94 : vector<1x1x1xf32> to vector<1x1x8xf32>
    %96 = arith.subf %92, %95 : vector<1x1x8xf32>
    %97 = math.exp %96 : vector<1x1x8xf32>
    %cst_41 = arith.constant dense<0.000000e+00> : vector<1x1xf32>
    %98 = vector.multi_reduction <add>, %97, %cst_41 [2] : vector<1x1x8xf32> to vector<1x1xf32>
    %99 = vector.shape_cast %98 : vector<1x1xf32> to vector<1x1x1xf32>
    %100 = tpu.reciprocal %99 {approx = true} : vector<1x1x1xf32> -> vector<1x1x1xf32>
    %101 = vector.broadcast %100 : vector<1x1x1xf32> to vector<1x1x8xf32>
    %102 = arith.mulf %97, %101 : vector<1x1x8xf32>
    %103 = arith.truncf %102 : vector<1x1x8xf32> to vector<1x1x8xbf16>
    %104 = vector.extract_strided_slice %27 {offsets = [0, 0, 48], sizes = [1, 8, 16], strides = [1, 1, 1]} : vector<1x8x64xbf16> to vector<1x8x16xbf16>
    "tpu.trace_start"() <{level = 10 : i32, message = "bqk,bkd->bqd"}> : () -> ()
    %cst_42 = arith.constant dense<0.000000e+00> : vector<1x1x16xf32>
    %105 = tpu.matmul %103, %104, %cst_42 {dimension_numbers = #tpu.dot_dimension_numbers<[2], [1], [1], [2], [0, 0, 0, 1, 1, 2], [0], [0]>} : vector<1x1x8xbf16>, vector<1x8x16xbf16>, vector<1x1x16xf32> -> vector<1x1x16xf32>
    "tpu.trace_stop"() : () -> ()
    %106 = vector.shape_cast %105 : vector<1x1x16xf32> to vector<1x16xf32>
    %c0_43 = arith.constant 0 : index
    %c48 = arith.constant 48 : index
    %107 = vector.load %arg19[%c0_43, %c48] : memref<1x64xf32, #tpu.memory_space<vmem>>, vector<1x16xf32>
    tpu.vector_store %arg19[%c0_43, %c48], %106 {strides = array<i32>} : memref<1x64xf32, #tpu.memory_space<vmem>>, vector<1x16xf32>,
    %c0_44 = arith.constant 0 : index
    %c0_45 = arith.constant 0 : index
    %108 = vector.load %arg19[%c0_44, %c0_45] : memref<1x64xf32, #tpu.memory_space<vmem>>, vector<1x64xf32>
    %109 = arith.truncf %108 : vector<1x64xf32> to vector<1x64xbf16>
    %c0_46 = arith.constant 0 : index
    %c0_47 = arith.constant 0 : index
    %110 = vector.load %arg8[%c0_46, %c0_47] : memref<64x64xbf16, #tpu.memory_space<vmem>>, vector<64x64xbf16>
    %cst_48 = arith.constant dense<0.000000e+00> : vector<1x64xf32>
    %111 = tpu.matmul %109, %110, %cst_48 {dimension_numbers = #tpu.dot_dimension_numbers<[1], [0], [0], [1], [0, 0, 1, 1], [], []>} : vector<1x64xbf16>, vector<64x64xbf16>, vector<1x64xf32> -> vector<1x64xf32>
    %c0_49 = arith.constant 0 : index
    %c0_50 = arith.constant 0 : index
    %112 = vector.load %arg9[%c0_49, %c0_50] : memref<1x64xf32, #tpu.memory_space<vmem>>, vector<1x64xf32>
    %113 = arith.addf %111, %112 : vector<1x64xf32>
    %114 = arith.addf %113, %5 : vector<1x64xf32>
    %c0_51 = arith.constant 0 : index
    %c0_52 = arith.constant 0 : index
    %115 = vector.load %arg10[%c0_51, %c0_52] : memref<1x64xf32, #tpu.memory_space<vmem>>, vector<1x64xf32>
    %c0_53 = arith.constant 0 : index
    %c0_54 = arith.constant 0 : index
    %116 = vector.load %arg11[%c0_53, %c0_54] : memref<1x64xf32, #tpu.memory_space<vmem>>, vector<1x64xf32>
    %cst_55 = arith.constant dense<0.000000e+00> : vector<1xf32>
    %117 = vector.multi_reduction <add>, %114, %cst_55 [1] : vector<1x64xf32> to vector<1xf32>
    %118 = vector.shape_cast %117 : vector<1xf32> to vector<1x1xf32>
    %cst_56 = arith.constant 6.400000e+01 : f32
    %119 = vector.broadcast %cst_56 : f32 to vector<1x1xf32>
    %120 = arith.divf %118, %119 : vector<1x1xf32>
    %121 = vector.broadcast %120 : vector<1x1xf32> to vector<1x64xf32>
    %122 = arith.subf %114, %121 : vector<1x64xf32>
    %123 = arith.mulf %122, %122 : vector<1x64xf32>
    %cst_57 = arith.constant dense<0.000000e+00> : vector<1xf32>
    %124 = vector.multi_reduction <add>, %123, %cst_57 [1] : vector<1x64xf32> to vector<1xf32>
    %125 = vector.shape_cast %124 : vector<1xf32> to vector<1x1xf32>
    %cst_58 = arith.constant 6.400000e+01 : f32
    %126 = vector.broadcast %cst_58 : f32 to vector<1x1xf32>
    %127 = arith.divf %125, %126 : vector<1x1xf32>
    %128 = vector.broadcast %120 : vector<1x1xf32> to vector<1x64xf32>
    %129 = arith.subf %114, %128 : vector<1x64xf32>
    %cst_59 = arith.constant 9.99999974E-6 : f32
    %130 = vector.broadcast %cst_59 : f32 to vector<1x1xf32>
    %131 = arith.addf %127, %130 : vector<1x1xf32>
    %132 = math.rsqrt %131 : vector<1x1xf32>
    %133 = vector.broadcast %132 : vector<1x1xf32> to vector<1x64xf32>
    %134 = arith.mulf %129, %133 : vector<1x64xf32>
    %135 = arith.mulf %134, %115 : vector<1x64xf32>
    %136 = arith.addf %135, %116 : vector<1x64xf32>
    %137 = arith.truncf %136 : vector<1x64xf32> to vector<1x64xbf16>
    %c0_60 = arith.constant 0 : index
    %c0_61 = arith.constant 0 : index
    %138 = vector.load %arg12[%c0_60, %c0_61] : memref<64x64xbf16, #tpu.memory_space<vmem>>, vector<64x64xbf16>
    %cst_62 = arith.constant dense<0.000000e+00> : vector<1x64xf32>
    %139 = tpu.matmul %137, %138, %cst_62 {dimension_numbers = #tpu.dot_dimension_numbers<[1], [0], [0], [1], [0, 0, 1, 1], [], []>} : vector<1x64xbf16>, vector<64x64xbf16>, vector<1x64xf32> -> vector<1x64xf32>
    %c0_63 = arith.constant 0 : index
    %c0_64 = arith.constant 0 : index
    %140 = vector.load %arg13[%c0_63, %c0_64] : memref<1x64xf32, #tpu.memory_space<vmem>>, vector<1x64xf32>
    %141 = arith.addf %139, %140 : vector<1x64xf32>
    %cst_65 = arith.constant 0.000000e+00 : f32
    %142 = vector.broadcast %cst_65 : f32 to vector<1x64xf32>
    %143 = arith.maximumf %141, %142 : vector<1x64xf32>
    %144 = arith.truncf %143 : vector<1x64xf32> to vector<1x64xbf16>
    %c0_66 = arith.constant 0 : index
    %c0_67 = arith.constant 0 : index
    %145 = vector.load %arg14[%c0_66, %c0_67] : memref<64x64xbf16, #tpu.memory_space<vmem>>, vector<64x64xbf16>
    %cst_68 = arith.constant dense<0.000000e+00> : vector<1x64xf32>
    %146 = tpu.matmul %144, %145, %cst_68 {dimension_numbers = #tpu.dot_dimension_numbers<[1], [0], [0], [1], [0, 0, 1, 1], [], []>} : vector<1x64xbf16>, vector<64x64xbf16>, vector<1x64xf32> -> vector<1x64xf32>
    %c0_69 = arith.constant 0 : index
    %c0_70 = arith.constant 0 : index
    %147 = vector.load %arg15[%c0_69, %c0_70] : memref<1x64xf32, #tpu.memory_space<vmem>>, vector<1x64xf32>
    %148 = arith.addf %146, %147 : vector<1x64xf32>
    %149 = arith.addf %148, %136 : vector<1x64xf32>
    %c0_71 = arith.constant 0 : index
    %c0_72 = arith.constant 0 : index
    %150 = vector.load %arg16[%c0_71, %c0_72] : memref<1x64xf32, #tpu.memory_space<vmem>>, vector<1x64xf32>
    %c0_73 = arith.constant 0 : index
    %c0_74 = arith.constant 0 : index
    %151 = vector.load %arg17[%c0_73, %c0_74] : memref<1x64xf32, #tpu.memory_space<vmem>>, vector<1x64xf32>
    %cst_75 = arith.constant dense<0.000000e+00> : vector<1xf32>
    %152 = vector.multi_reduction <add>, %149, %cst_75 [1] : vector<1x64xf32> to vector<1xf32>
    %153 = vector.shape_cast %152 : vector<1xf32> to vector<1x1xf32>
    %cst_76 = arith.constant 6.400000e+01 : f32
    %154 = vector.broadcast %cst_76 : f32 to vector<1x1xf32>
    %155 = arith.divf %153, %154 : vector<1x1xf32>
    %156 = vector.broadcast %155 : vector<1x1xf32> to vector<1x64xf32>
    %157 = arith.subf %149, %156 : vector<1x64xf32>
    %158 = arith.mulf %157, %157 : vector<1x64xf32>
    %cst_77 = arith.constant dense<0.000000e+00> : vector<1xf32>
    %159 = vector.multi_reduction <add>, %158, %cst_77 [1] : vector<1x64xf32> to vector<1xf32>
    %160 = vector.shape_cast %159 : vector<1xf32> to vector<1x1xf32>
    %cst_78 = arith.constant 6.400000e+01 : f32
    %161 = vector.broadcast %cst_78 : f32 to vector<1x1xf32>
    %162 = arith.divf %160, %161 : vector<1x1xf32>
    %163 = vector.broadcast %155 : vector<1x1xf32> to vector<1x64xf32>
    %164 = arith.subf %149, %163 : vector<1x64xf32>
    %cst_79 = arith.constant 9.99999974E-6 : f32
    %165 = vector.broadcast %cst_79 : f32 to vector<1x1xf32>
    %166 = arith.addf %162, %165 : vector<1x1xf32>
    %167 = math.rsqrt %166 : vector<1x1xf32>
    %168 = vector.broadcast %167 : vector<1x1xf32> to vector<1x64xf32>
    %169 = arith.mulf %164, %168 : vector<1x64xf32>
    %170 = arith.mulf %169, %150 : vector<1x64xf32>
    %171 = arith.addf %170, %151 : vector<1x64xf32>
    %172 = vector.shape_cast %171 : vector<1x64xf32> to vector<1x1x64xf32>
    %c0_80 = arith.constant 0 : index
    %c0_81 = arith.constant 0 : index
    %c0_82 = arith.constant 0 : index
    %173 = vector.load %arg18[%c0_80, %c0_81, %c0_82] : memref<1x1x64xf32, #tpu.memory_space<vmem>>, vector<1x1x64xf32>
    tpu.vector_store %arg18[%c0_80, %c0_81, %c0_82], %172 {strides = array<i32>} : memref<1x1x64xf32, #tpu.memory_space<vmem>>, vector<1x1x64xf32>,
    return
  }
  func.func @transform_0(%arg0: i32) -> (i32, i32, i32) {
    %c0_i32 = arith.constant 0 : i32
    %c0_i32_0 = arith.constant 0 : i32
    %c0_i32_1 = arith.constant 0 : i32
    return %arg0, %c0_i32, %c0_i32_0 : i32, i32, i32
  }
  func.func @transform_1(%arg0: i32) -> (i32, i32, i32) {
    %c0_i32 = arith.constant 0 : i32
    %c0_i32_0 = arith.constant 0 : i32
    %c0_i32_1 = arith.constant 0 : i32
    return %arg0, %c0_i32, %c0_i32_0 : i32, i32, i32
  }
  func.func @transform_2(%arg0: i32) -> (i32, i32, i32) {
    %c0_i32 = arith.constant 0 : i32
    %c0_i32_0 = arith.constant 0 : i32
    %c0_i32_1 = arith.constant 0 : i32
    return %arg0, %c0_i32, %c0_i32_0 : i32, i32, i32
  }
  func.func @transform_3(%arg0: i32) -> (i32, i32) {
    %c0_i32 = arith.constant 0 : i32
    %c0_i32_0 = arith.constant 0 : i32
    %c0_i32_1 = arith.constant 0 : i32
    return %c0_i32, %c0_i32_0 : i32, i32
  }
  func.func @transform_4(%arg0: i32) -> (i32, i32) {
    %c0_i32 = arith.constant 0 : i32
    %c0_i32_0 = arith.constant 0 : i32
    %c0_i32_1 = arith.constant 0 : i32
    return %c0_i32, %c0_i32_0 : i32, i32
  }
  func.func @transform_5(%arg0: i32) -> (i32, i32) {
    %c0_i32 = arith.constant 0 : i32
    %c0_i32_0 = arith.constant 0 : i32
    %c0_i32_1 = arith.constant 0 : i32
    return %c0_i32, %c0_i32_0 : i32, i32
  }
  func.func @transform_6(%arg0: i32) -> (i32, i32) {
    %c0_i32 = arith.constant 0 : i32
    %c0_i32_0 = arith.constant 0 : i32
    %c0_i32_1 = arith.constant 0 : i32
    return %c0_i32, %c0_i32_0 : i32, i32
  }
  func.func @transform_7(%arg0: i32) -> (i32, i32) {
    %c0_i32 = arith.constant 0 : i32
    %c0_i32_0 = arith.constant 0 : i32
    %c0_i32_1 = arith.constant 0 : i32
    return %c0_i32, %c0_i32_0 : i32, i32
  }
  func.func @transform_8(%arg0: i32) -> (i32, i32) {
    %c0_i32 = arith.constant 0 : i32
    %c0_i32_0 = arith.constant 0 : i32
    %c0_i32_1 = arith.constant 0 : i32
    return %c0_i32, %c0_i32_0 : i32, i32
  }
  func.func @transform_9(%arg0: i32) -> (i32, i32) {
    %c0_i32 = arith.constant 0 : i32
    %c0_i32_0 = arith.constant 0 : i32
    %c0_i32_1 = arith.constant 0 : i32
    return %c0_i32, %c0_i32_0 : i32, i32
  }
  func.func @transform_10(%arg0: i32) -> (i32, i32) {
    %c0_i32 = arith.constant 0 : i32
    %c0_i32_0 = arith.constant 0 : i32
    %c0_i32_1 = arith.constant 0 : i32
    return %c0_i32, %c0_i32_0 : i32, i32
  }
  func.func @transform_11(%arg0: i32) -> (i32, i32) {
    %c0_i32 = arith.constant 0 : i32
    %c0_i32_0 = arith.constant 0 : i32
    %c0_i32_1 = arith.constant 0 : i32
    return %c0_i32, %c0_i32_0 : i32, i32
  }
  func.func @transform_12(%arg0: i32) -> (i32, i32) {
    %c0_i32 = arith.constant 0 : i32
    %c0_i32_0 = arith.constant 0 : i32
    %c0_i32_1 = arith.constant 0 : i32
    return %c0_i32, %c0_i32_0 : i32, i32
  }
  func.func @transform_13(%arg0: i32) -> (i32, i32) {
    %c0_i32 = arith.constant 0 : i32
    %c0_i32_0 = arith.constant 0 : i32
    %c0_i32_1 = arith.constant 0 : i32
    return %c0_i32, %c0_i32_0 : i32, i32
  }
  func.func @transform_14(%arg0: i32) -> (i32, i32) {
    %c0_i32 = arith.constant 0 : i32
    %c0_i32_0 = arith.constant 0 : i32
    %c0_i32_1 = arith.constant 0 : i32
    return %c0_i32, %c0_i32_0 : i32, i32
  }
  func.func @transform_15(%arg0: i32) -> (i32, i32) {
    %c0_i32 = arith.constant 0 : i32
    %c0_i32_0 = arith.constant 0 : i32
    %c0_i32_1 = arith.constant 0 : i32
    return %c0_i32, %c0_i32_0 : i32, i32
  }
  func.func @transform_16(%arg0: i32) -> (i32, i32) {
    %c0_i32 = arith.constant 0 : i32
    %c0_i32_0 = arith.constant 0 : i32
    %c0_i32_1 = arith.constant 0 : i32
    return %c0_i32, %c0_i32_0 : i32, i32
  }
  func.func @transform_17(%arg0: i32) -> (i32, i32, i32) {
    %c0_i32 = arith.constant 0 : i32
    %c0_i32_0 = arith.constant 0 : i32
    %c0_i32_1 = arith.constant 0 : i32
    return %arg0, %c0_i32, %c0_i32_0 : i32, i32, i32
  }
}

module attributes {stable_mosaic.version = 11 : i64} {
  func.func @tail_kernel(%arg0: memref<2x1xf32, #tpu.memory_space<vmem>>, %arg1: memref<1x128xf32, #tpu.memory_space<vmem>>, %arg2: memref<2x64xf32, #tpu.memory_space<vmem>>, %arg3: memref<128x32xbf16, #tpu.memory_space<vmem>>, %arg4: memref<128x32xbf16, #tpu.memory_space<vmem>>, %arg5: memref<1x32xf32, #tpu.memory_space<vmem>>, %arg6: memref<32x32xbf16, #tpu.memory_space<vmem>>, %arg7: memref<1x32xf32, #tpu.memory_space<vmem>>, %arg8: memref<64x64xbf16, #tpu.memory_space<vmem>>, %arg9: memref<32x64xbf16, #tpu.memory_space<vmem>>, %arg10: memref<1x64xf32, #tpu.memory_space<vmem>>, %arg11: memref<64x64xbf16, #tpu.memory_space<vmem>>, %arg12: memref<1x64xf32, #tpu.memory_space<vmem>>, %arg13: memref<2x64xf32, #tpu.memory_space<vmem>>) attributes {dimension_semantics = [], scalar_prefetch = 0 : i64, scratch_operands = 0 : i64, tpu.core_type = #tpu.core_type<tc>} {
    %c0 = arith.constant 0 : index
    %c0_0 = arith.constant 0 : index
    %0 = vector.load %arg0[%c0, %c0_0] : memref<2x1xf32, #tpu.memory_space<vmem>>, vector<2x1xf32>
    %c0_1 = arith.constant 0 : index
    %c0_2 = arith.constant 0 : index
    %1 = vector.load %arg1[%c0_1, %c0_2] : memref<1x128xf32, #tpu.memory_space<vmem>>, vector<1x128xf32>
    %2 = vector.broadcast %0 : vector<2x1xf32> to vector<2x128xf32>
    %3 = vector.broadcast %1 : vector<1x128xf32> to vector<2x128xf32>
    %4 = arith.mulf %2, %3 : vector<2x128xf32>
    %5 = math.cos %4 : vector<2x128xf32>
    %6 = arith.truncf %5 : vector<2x128xf32> to vector<2x128xbf16>
    %c0_3 = arith.constant 0 : index
    %c0_4 = arith.constant 0 : index
    %7 = vector.load %arg3[%c0_3, %c0_4] : memref<128x32xbf16, #tpu.memory_space<vmem>>, vector<128x32xbf16>
    %cst = arith.constant dense<0.000000e+00> : vector<2x32xf32>
    %8 = tpu.matmul %6, %7, %cst {dimension_numbers = #tpu.dot_dimension_numbers<[1], [0], [0], [1], [0, 0, 1, 1], [], []>} : vector<2x128xbf16>, vector<128x32xbf16>, vector<2x32xf32> -> vector<2x32xf32>
    %9 = math.sin %4 : vector<2x128xf32>
    %10 = arith.truncf %9 : vector<2x128xf32> to vector<2x128xbf16>
    %c0_5 = arith.constant 0 : index
    %c0_6 = arith.constant 0 : index
    %11 = vector.load %arg4[%c0_5, %c0_6] : memref<128x32xbf16, #tpu.memory_space<vmem>>, vector<128x32xbf16>
    %cst_7 = arith.constant dense<0.000000e+00> : vector<2x32xf32>
    %12 = tpu.matmul %10, %11, %cst_7 {dimension_numbers = #tpu.dot_dimension_numbers<[1], [0], [0], [1], [0, 0, 1, 1], [], []>} : vector<2x128xbf16>, vector<128x32xbf16>, vector<2x32xf32> -> vector<2x32xf32>
    %13 = arith.addf %8, %12 : vector<2x32xf32>
    %c0_8 = arith.constant 0 : index
    %c0_9 = arith.constant 0 : index
    %14 = vector.load %arg5[%c0_8, %c0_9] : memref<1x32xf32, #tpu.memory_space<vmem>>, vector<1x32xf32>
    %15 = vector.broadcast %14 : vector<1x32xf32> to vector<2x32xf32>
    %16 = arith.addf %13, %15 : vector<2x32xf32>
    %cst_10 = arith.constant 0.000000e+00 : f32
    %17 = vector.broadcast %cst_10 : f32 to vector<2x32xf32>
    %18 = arith.subf %17, %16 : vector<2x32xf32>
    %19 = math.exp %18 : vector<2x32xf32>
    %cst_11 = arith.constant 1.000000e+00 : f32
    %20 = vector.broadcast %cst_11 : f32 to vector<2x32xf32>
    %21 = arith.addf %20, %19 : vector<2x32xf32>
    %22 = tpu.reciprocal %21 {approx = true} : vector<2x32xf32> -> vector<2x32xf32>
    %23 = arith.mulf %16, %22 : vector<2x32xf32>
    %24 = arith.truncf %23 : vector<2x32xf32> to vector<2x32xbf16>
    %c0_12 = arith.constant 0 : index
    %c0_13 = arith.constant 0 : index
    %25 = vector.load %arg6[%c0_12, %c0_13] : memref<32x32xbf16, #tpu.memory_space<vmem>>, vector<32x32xbf16>
    %cst_14 = arith.constant dense<0.000000e+00> : vector<2x32xf32>
    %26 = tpu.matmul %24, %25, %cst_14 {dimension_numbers = #tpu.dot_dimension_numbers<[1], [0], [0], [1], [0, 0, 1, 1], [], []>} : vector<2x32xbf16>, vector<32x32xbf16>, vector<2x32xf32> -> vector<2x32xf32>
    %c0_15 = arith.constant 0 : index
    %c0_16 = arith.constant 0 : index
    %27 = vector.load %arg7[%c0_15, %c0_16] : memref<1x32xf32, #tpu.memory_space<vmem>>, vector<1x32xf32>
    %28 = vector.broadcast %27 : vector<1x32xf32> to vector<2x32xf32>
    %29 = arith.addf %26, %28 : vector<2x32xf32>
    %c0_17 = arith.constant 0 : index
    %c0_18 = arith.constant 0 : index
    %30 = vector.load %arg2[%c0_17, %c0_18] : memref<2x64xf32, #tpu.memory_space<vmem>>, vector<2x64xf32>
    %31 = arith.truncf %30 : vector<2x64xf32> to vector<2x64xbf16>
    %c0_19 = arith.constant 0 : index
    %c0_20 = arith.constant 0 : index
    %32 = vector.load %arg8[%c0_19, %c0_20] : memref<64x64xbf16, #tpu.memory_space<vmem>>, vector<64x64xbf16>
    %cst_21 = arith.constant dense<0.000000e+00> : vector<2x64xf32>
    %33 = tpu.matmul %31, %32, %cst_21 {dimension_numbers = #tpu.dot_dimension_numbers<[1], [0], [0], [1], [0, 0, 1, 1], [], []>} : vector<2x64xbf16>, vector<64x64xbf16>, vector<2x64xf32> -> vector<2x64xf32>
    %34 = arith.truncf %29 : vector<2x32xf32> to vector<2x32xbf16>
    %c0_22 = arith.constant 0 : index
    %c0_23 = arith.constant 0 : index
    %35 = vector.load %arg9[%c0_22, %c0_23] : memref<32x64xbf16, #tpu.memory_space<vmem>>, vector<32x64xbf16>
    %cst_24 = arith.constant dense<0.000000e+00> : vector<2x64xf32>
    %36 = tpu.matmul %34, %35, %cst_24 {dimension_numbers = #tpu.dot_dimension_numbers<[1], [0], [0], [1], [0, 0, 1, 1], [], []>} : vector<2x32xbf16>, vector<32x64xbf16>, vector<2x64xf32> -> vector<2x64xf32>
    %37 = arith.addf %33, %36 : vector<2x64xf32>
    %c0_25 = arith.constant 0 : index
    %c0_26 = arith.constant 0 : index
    %38 = vector.load %arg10[%c0_25, %c0_26] : memref<1x64xf32, #tpu.memory_space<vmem>>, vector<1x64xf32>
    %39 = vector.broadcast %38 : vector<1x64xf32> to vector<2x64xf32>
    %40 = arith.addf %37, %39 : vector<2x64xf32>
    %cst_27 = arith.constant 0.000000e+00 : f32
    %41 = vector.broadcast %cst_27 : f32 to vector<2x64xf32>
    %42 = arith.cmpf oge, %40, %41 : vector<2x64xf32>
    %cst_28 = arith.constant 0.00999999977 : f32
    %43 = vector.broadcast %cst_28 : f32 to vector<2x64xf32>
    %44 = arith.mulf %43, %40 : vector<2x64xf32>
    %45 = arith.select %42, %40, %44 : vector<2x64xi1>, vector<2x64xf32>
    %46 = arith.truncf %45 : vector<2x64xf32> to vector<2x64xbf16>
    %c0_29 = arith.constant 0 : index
    %c0_30 = arith.constant 0 : index
    %47 = vector.load %arg11[%c0_29, %c0_30] : memref<64x64xbf16, #tpu.memory_space<vmem>>, vector<64x64xbf16>
    %cst_31 = arith.constant dense<0.000000e+00> : vector<2x64xf32>
    %48 = tpu.matmul %46, %47, %cst_31 {dimension_numbers = #tpu.dot_dimension_numbers<[1], [0], [0], [1], [0, 0, 1, 1], [], []>} : vector<2x64xbf16>, vector<64x64xbf16>, vector<2x64xf32> -> vector<2x64xf32>
    %c0_32 = arith.constant 0 : index
    %c0_33 = arith.constant 0 : index
    %49 = vector.load %arg12[%c0_32, %c0_33] : memref<1x64xf32, #tpu.memory_space<vmem>>, vector<1x64xf32>
    %50 = vector.broadcast %49 : vector<1x64xf32> to vector<2x64xf32>
    %51 = arith.addf %48, %50 : vector<2x64xf32>
    %c0_34 = arith.constant 0 : index
    %c0_35 = arith.constant 0 : index
    %52 = vector.load %arg13[%c0_34, %c0_35] : memref<2x64xf32, #tpu.memory_space<vmem>>, vector<2x64xf32>
    tpu.vector_store %arg13[%c0_34, %c0_35], %51 {strides = array<i32>} : memref<2x64xf32, #tpu.memory_space<vmem>>, vector<2x64xf32>,
    return
  }
}

</mosaic_0001>

<llo_original>
// kernel: inv_cog_forward.6
$region0: #{inv_cog_forward.6}
  #allocation0 [shape = 'u32[]', space=smem, size = 0x4, offset = 0x4, fixed_abs, tag = 'smem constant byte address 0x4 - core index']
  #allocation1 [shape = 'u32[144,128]{1,0:T(1,128)}', space=vmem, size = 0x12000, scoped, tag = 'internal scratch']
  #allocation2 [shape = 'f32[8,32]{1,0:T(8,128)}', space=vmem, size = 0x1000, scoped, tag = 'scratch operand']
  %s0 = inlined_call_operand.vmem [shape: f32[2,8,32], index: 0, kind: input, shape index: {}]
  %s1 = inlined_call_operand.vmem [shape: f32[2,8,32], index: 1, kind: input, shape index: {}]
  %s2 = inlined_call_operand.vmem [shape: f32[2,1,8], index: 2, kind: input, shape index: {}]
  %s3 = inlined_call_operand.vmem [shape: bf16[32,32], index: 3, kind: input, shape index: {}]
  %s4 = inlined_call_operand.vmem [shape: f32[1,32], index: 4, kind: input, shape index: {}]
  %s5 = inlined_call_operand.vmem [shape: bf16[32,64], index: 5, kind: input, shape index: {}]
  %s6 = inlined_call_operand.vmem [shape: f32[1,64], index: 6, kind: input, shape index: {}]
  %s7 = inlined_call_operand.vmem [shape: bf16[32,32], index: 7, kind: input, shape index: {}]
  %s8 = inlined_call_operand.vmem [shape: f32[1,32], index: 8, kind: input, shape index: {}]
  %s9 = inlined_call_operand.vmem [shape: f32[1,32], index: 9, kind: input, shape index: {}]
  %s10 = inlined_call_operand.vmem [shape: f32[1,32], index: 10, kind: input, shape index: {}]
  %s11 = inlined_call_operand.vmem [shape: bf16[32,32], index: 11, kind: input, shape index: {}]
  %s12 = inlined_call_operand.vmem [shape: f32[1,32], index: 12, kind: input, shape index: {}]
  %s13 = inlined_call_operand.vmem [shape: bf16[32,32], index: 13, kind: input, shape index: {}]
  %s14 = inlined_call_operand.vmem [shape: f32[1,32], index: 14, kind: input, shape index: {}]
  %s15 = inlined_call_operand.vmem [shape: f32[1,32], index: 15, kind: input, shape index: {}]
  %s16 = inlined_call_operand.vmem [shape: f32[1,32], index: 16, kind: input, shape index: {}]
  %s17 = inlined_call_operand.vmem [shape: f32[2,8,32], index: 17, kind: output, shape index: {}]
  %s18 = sld [smem:[#allocation0]]
  $region101: #{inv_cog_forward.6} parent=0
    _
  %s20 = ssub.s32 1, %s18
  %s21 = scalar_select 0, %s20, %s18
  loop: start=0, step=1, limit=4
  $region2: #{inv_cog_forward.6} parent=0 // loop_pre_header
    _
  $region3: #{inv_cog_forward.6} parent=0 // loop_header
    %s23 = sphi 0, %s27
    %p24 = scmp.ge.s32.totalorder %s23, 4
    %s33 = sphi 0, %s35
    %s36 = sphi 0, %s33
    %s37 = sphi 0, %s36
    %s53 = sphi 0, %s37
    %s59 = sphi 0, %s61
    %s62 = sphi 0, %s59
    %s63 = sphi 0, %s62
    %s79 = sphi 0, %s63
    %s85 = sphi 0, %s87
    %s88 = sphi 0, %s85
    %s89 = sphi 0, %s88
    %s105 = sphi 0, %s89
    %s109 = sphi 0, %s109
    %s111 = sphi 0, %s109
    %s112 = sphi 0, %s111
    %s126 = sphi 0, %s112
    %s130 = sphi 0, %s130
    %s132 = sphi 0, %s130
    %s133 = sphi 0, %s132
    %s147 = sphi 0, %s133
    %s151 = sphi 0, %s151
    %s153 = sphi 0, %s151
    %s154 = sphi 0, %s153
    %s168 = sphi 0, %s154
    %s172 = sphi 0, %s172
    %s174 = sphi 0, %s172
    %s175 = sphi 0, %s174
    %s189 = sphi 0, %s175
    %s193 = sphi 0, %s193
    %s195 = sphi 0, %s193
    %s196 = sphi 0, %s195
    %s210 = sphi 0, %s196
    %s214 = sphi 0, %s214
    %s216 = sphi 0, %s214
    %s217 = sphi 0, %s216
    %s231 = sphi 0, %s217
    %s235 = sphi 0, %s235
    %s237 = sphi 0, %s235
    %s238 = sphi 0, %s237
    %s252 = sphi 0, %s238
    %s256 = sphi 0, %s256
    %s258 = sphi 0, %s256
    %s259 = sphi 0, %s258
    %s273 = sphi 0, %s259
    %s277 = sphi 0, %s277
    %s279 = sphi 0, %s277
    %s280 = sphi 0, %s279
    %s294 = sphi 0, %s280
    %s298 = sphi 0, %s298
    %s300 = sphi 0, %s298
    %s301 = sphi 0, %s300
    %s315 = sphi 0, %s301
    %s319 = sphi 0, %s319
    %s321 = sphi 0, %s319
    %s322 = sphi 0, %s321
    %s336 = sphi 0, %s322
    %s340 = sphi 0, %s340
    %s342 = sphi 0, %s340
    %s343 = sphi 0, %s342
    %s357 = sphi 0, %s343
    %s361 = sphi 0, %s361
    %s363 = sphi 0, %s361
    %s364 = sphi 0, %s363
    %s378 = sphi 0, %s364
    %s382 = sphi 0, %s382
    %s384 = sphi 0, %s382
    %s385 = sphi 0, %s384
    %s399 = sphi 0, %s385
    %s405 = sphi 0, %s407
    %s408 = sphi 0, %s405
    %s409 = sphi 0, %s408
    %s425 = sphi 0, %s409
  $region4: #{inv_cog_forward.6} parent=0 // loop_header_branch
    %26 = sbr.rel (%p24) target = $region8
  $region5: #{inv_cog_forward.6} parent=0 // loop_body
    %s28 = ssub.s32 %s23, 1
    %s29 = ssub.s32 %s23, 2
    %s30 = sadd.s32 %s23, 1
    %s31 = ssub.s32 %s23, %s30
    %p32 = scmp.eq.s32.totalorder %s31, 0
    %s34 = sadd.s32 %s33, 1
    %s35 = scalar_select %p32, %s33, %s34
    %p38 = pneg %p32
    %p39 = scmp.eq.s32.totalorder %s23, 1
    %p40 = por %p38, %p39
    %p41 = scmp.ne.s32.totalorder %s33, %s36
    %p42 = scmp.eq.s32.totalorder %s23, 0
    %p43 = por %p41, %p42
    %p44 = scmp.ne.s32.totalorder %s33, %s36
    %p45 = scmp.eq.s32.totalorder %s28, 1
    %p46 = por %p44, %p45
    %p47 = scmp.ne.s32.totalorder %s36, %s37
    %p48 = scmp.eq.s32.totalorder %s28, 0
    %p49 = por %p47, %p48
    %p50 = scmp.ne.s32.totalorder %s36, %s37
    %p51 = scmp.eq.s32.totalorder %s29, 1
    %p52 = por %p50, %p51
    %p54 = scmp.ne.s32.totalorder %s37, %s53
    %p55 = scmp.eq.s32.totalorder %s29, 0
    %p56 = por %p54, %p55
    %s57 = ssub.s32 %s23, %s30
    %p58 = scmp.eq.s32.totalorder %s57, 0
    %s60 = sadd.s32 %s59, 1
    %s61 = scalar_select %p58, %s59, %s60
    %p64 = pneg %p58
    %p65 = scmp.eq.s32.totalorder %s23, 1
    %p66 = por %p64, %p65
    %p67 = scmp.ne.s32.totalorder %s59, %s62
    %p68 = scmp.eq.s32.totalorder %s23, 0
    %p69 = por %p67, %p68
    %p70 = scmp.ne.s32.totalorder %s59, %s62
    %p71 = scmp.eq.s32.totalorder %s28, 1
    %p72 = por %p70, %p71
    %p73 = scmp.ne.s32.totalorder %s62, %s63
    %p74 = scmp.eq.s32.totalorder %s28, 0
    %p75 = por %p73, %p74
    %p76 = scmp.ne.s32.totalorder %s62, %s63
    %p77 = scmp.eq.s32.totalorder %s29, 1
    %p78 = por %p76, %p77
    %p80 = scmp.ne.s32.totalorder %s63, %s79
    %p81 = scmp.eq.s32.totalorder %s29, 0
    %p82 = por %p80, %p81
    %s83 = ssub.s32 %s23, %s30
    %p84 = scmp.eq.s32.totalorder %s83, 0
    %s86 = sadd.s32 %s85, 1
    %s87 = scalar_select %p84, %s85, %s86
    %p90 = pneg %p84
    %p91 = scmp.eq.s32.totalorder %s23, 1
    %p92 = por %p90, %p91
    %p93 = scmp.ne.s32.totalorder %s85, %s88
    %p94 = scmp.eq.s32.totalorder %s23, 0
    %p95 = por %p93, %p94
    %p96 = scmp.ne.s32.totalorder %s85, %s88
    %p97 = scmp.eq.s32.totalorder %s28, 1
    %p98 = por %p96, %p97
    %p99 = scmp.ne.s32.totalorder %s88, %s89
    %p100 = scmp.eq.s32.totalorder %s28, 0
    %p101 = por %p99, %p100
    %p102 = scmp.ne.s32.totalorder %s88, %s89
    %p103 = scmp.eq.s32.totalorder %s29, 1
    %p104 = por %p102, %p103
    %p106 = scmp.ne.s32.totalorder %s89, %s105
    %p107 = scmp.eq.s32.totalorder %s29, 0
    %p108 = por %p106, %p107
    %s110 = sadd.s32 %s109, 1
    %p113 = scmp.eq.s32.totalorder %s23, 1
    %p114 = scmp.ne.s32.totalorder %s109, %s111
    %p115 = scmp.eq.s32.totalorder %s23, 0
    %p116 = por %p114, %p115
    %p117 = scmp.ne.s32.totalorder %s109, %s111
    %p118 = scmp.eq.s32.totalorder %s28, 1
    %p119 = por %p117, %p118
    %p120 = scmp.ne.s32.totalorder %s111, %s112
    %p121 = scmp.eq.s32.totalorder %s28, 0
    %p122 = por %p120, %p121
    %p123 = scmp.ne.s32.totalorder %s111, %s112
    %p124 = scmp.eq.s32.totalorder %s29, 1
    %p125 = por %p123, %p124
    %p127 = scmp.ne.s32.totalorder %s112, %s126
    %p128 = scmp.eq.s32.totalorder %s29, 0
    %p129 = por %p127, %p128
    %s131 = sadd.s32 %s130, 1
    %p134 = scmp.eq.s32.totalorder %s23, 1
    %p135 = scmp.ne.s32.totalorder %s130, %s132
    %p136 = scmp.eq.s32.totalorder %s23, 0
    %p137 = por %p135, %p136
    %p138 = scmp.ne.s32.totalorder %s130, %s132
    %p139 = scmp.eq.s32.totalorder %s28, 1
    %p140 = por %p138, %p139
    %p141 = scmp.ne.s32.totalorder %s132, %s133
    %p142 = scmp.eq.s32.totalorder %s28, 0
    %p143 = por %p141, %p142
    %p144 = scmp.ne.s32.totalorder %s132, %s133
    %p145 = scmp.eq.s32.totalorder %s29, 1
    %p146 = por %p144, %p145
    %p148 = scmp.ne.s32.totalorder %s133, %s147
    %p149 = scmp.eq.s32.totalorder %s29, 0
    %p150 = por %p148, %p149
    %s152 = sadd.s32 %s151, 1
    %p155 = scmp.eq.s32.totalorder %s23, 1
    %p156 = scmp.ne.s32.totalorder %s151, %s153
    %p157 = scmp.eq.s32.totalorder %s23, 0
    %p158 = por %p156, %p157
    %p159 = scmp.ne.s32.totalorder %s151, %s153
    %p160 = scmp.eq.s32.totalorder %s28, 1
    %p161 = por %p159, %p160
    %p162 = scmp.ne.s32.totalorder %s153, %s154
    %p163 = scmp.eq.s32.totalorder %s28, 0
    %p164 = por %p162, %p163
    %p165 = scmp.ne.s32.totalorder %s153, %s154
    %p166 = scmp.eq.s32.totalorder %s29, 1
    %p167 = por %p165, %p166
    %p169 = scmp.ne.s32.totalorder %s154, %s168
    %p170 = scmp.eq.s32.totalorder %s29, 0
    %p171 = por %p169, %p170
    %s173 = sadd.s32 %s172, 1
    %p176 = scmp.eq.s32.totalorder %s23, 1
    %p177 = scmp.ne.s32.totalorder %s172, %s174
    %p178 = scmp.eq.s32.totalorder %s23, 0
    %p179 = por %p177, %p178
    %p180 = scmp.ne.s32.totalorder %s172, %s174
    %p181 = scmp.eq.s32.totalorder %s28, 1
    %p182 = por %p180, %p181
    %p183 = scmp.ne.s32.totalorder %s174, %s175
    %p184 = scmp.eq.s32.totalorder %s28, 0
    %p185 = por %p183, %p184
    %p186 = scmp.ne.s32.totalorder %s174, %s175
    %p187 = scmp.eq.s32.totalorder %s29, 1
    %p188 = por %p186, %p187
    %p190 = scmp.ne.s32.totalorder %s175, %s189
    %p191 = scmp.eq.s32.totalorder %s29, 0
    %p192 = por %p190, %p191
    %s194 = sadd.s32 %s193, 1
    %p197 = scmp.eq.s32.totalorder %s23, 1
    %p198 = scmp.ne.s32.totalorder %s193, %s195
    %p199 = scmp.eq.s32.totalorder %s23, 0
    %p200 = por %p198, %p199
    %p201 = scmp.ne.s32.totalorder %s193, %s195
    %p202 = scmp.eq.s32.totalorder %s28, 1
    %p203 = por %p201, %p202
    %p204 = scmp.ne.s32.totalorder %s195, %s196
    %p205 = scmp.eq.s32.totalorder %s28, 0
    %p206 = por %p204, %p205
    %p207 = scmp.ne.s32.totalorder %s195, %s196
    %p208 = scmp.eq.s32.totalorder %s29, 1
    %p209 = por %p207, %p208
    %p211 = scmp.ne.s32.totalorder %s196, %s210
    %p212 = scmp.eq.s32.totalorder %s29, 0
    %p213 = por %p211, %p212
    %s215 = sadd.s32 %s214, 1
    %p218 = scmp.eq.s32.totalorder %s23, 1
    %p219 = scmp.ne.s32.totalorder %s214, %s216
    %p220 = scmp.eq.s32.totalorder %s23, 0
    %p221 = por %p219, %p220
    %p222 = scmp.ne.s32.totalorder %s214, %s216
    %p223 = scmp.eq.s32.totalorder %s28, 1
    %p224 = por %p222, %p223
    %p225 = scmp.ne.s32.totalorder %s216, %s217
    %p226 = scmp.eq.s32.totalorder %s28, 0
    %p227 = por %p225, %p226
    %p228 = scmp.ne.s32.totalorder %s216, %s217
    %p229 = scmp.eq.s32.totalorder %s29, 1
    %p230 = por %p228, %p229
    %p232 = scmp.ne.s32.totalorder %s217, %s231
    %p233 = scmp.eq.s32.totalorder %s29, 0
    %p234 = por %p232, %p233
    %s236 = sadd.s32 %s235, 1
    %p239 = scmp.eq.s32.totalorder %s23, 1
    %p240 = scmp.ne.s32.totalorder %s235, %s237
    %p241 = scmp.eq.s32.totalorder %s23, 0
    %p242 = por %p240, %p241
    %p243 = scmp.ne.s32.totalorder %s235, %s237
    %p244 = scmp.eq.s32.totalorder %s28, 1
    %p245 = por %p243, %p244
    %p246 = scmp.ne.s32.totalorder %s237, %s238
    %p247 = scmp.eq.s32.totalorder %s28, 0
    %p248 = por %p246, %p247
    %p249 = scmp.ne.s32.totalorder %s237, %s238
    %p250 = scmp.eq.s32.totalorder %s29, 1
    %p251 = por %p249, %p250
    %p253 = scmp.ne.s32.totalorder %s238, %s252
    %p254 = scmp.eq.s32.totalorder %s29, 0
    %p255 = por %p253, %p254
    %s257 = sadd.s32 %s256, 1
    %p260 = scmp.eq.s32.totalorder %s23, 1
    %p261 = scmp.ne.s32.totalorder %s256, %s258
    %p262 = scmp.eq.s32.totalorder %s23, 0
    %p263 = por %p261, %p262
    %p264 = scmp.ne.s32.totalorder %s256, %s258
    %p265 = scmp.eq.s32.totalorder %s28, 1
    %p266 = por %p264, %p265
    %p267 = scmp.ne.s32.totalorder %s258, %s259
    %p268 = scmp.eq.s32.totalorder %s28, 0
    %p269 = por %p267, %p268
    %p270 = scmp.ne.s32.totalorder %s258, %s259
    %p271 = scmp.eq.s32.totalorder %s29, 1
    %p272 = por %p270, %p271
    %p274 = scmp.ne.s32.totalorder %s259, %s273
    %p275 = scmp.eq.s32.totalorder %s29, 0
    %p276 = por %p274, %p275
    %s278 = sadd.s32 %s277, 1
    %p281 = scmp.eq.s32.totalorder %s23, 1
    %p282 = scmp.ne.s32.totalorder %s277, %s279
    %p283 = scmp.eq.s32.totalorder %s23, 0
    %p284 = por %p282, %p283
    %p285 = scmp.ne.s32.totalorder %s277, %s279
    %p286 = scmp.eq.s32.totalorder %s28, 1
    %p287 = por %p285, %p286
    %p288 = scmp.ne.s32.totalorder %s279, %s280
    %p289 = scmp.eq.s32.totalorder %s28, 0
    %p290 = por %p288, %p289
    %p291 = scmp.ne.s32.totalorder %s279, %s280
    %p292 = scmp.eq.s32.totalorder %s29, 1
    %p293 = por %p291, %p292
    %p295 = scmp.ne.s32.totalorder %s280, %s294
    %p296 = scmp.eq.s32.totalorder %s29, 0
    %p297 = por %p295, %p296
    %s299 = sadd.s32 %s298, 1
    %p302 = scmp.eq.s32.totalorder %s23, 1
    %p303 = scmp.ne.s32.totalorder %s298, %s300
    %p304 = scmp.eq.s32.totalorder %s23, 0
    %p305 = por %p303, %p304
    %p306 = scmp.ne.s32.totalorder %s298, %s300
    %p307 = scmp.eq.s32.totalorder %s28, 1
    %p308 = por %p306, %p307
    %p309 = scmp.ne.s32.totalorder %s300, %s301
    %p310 = scmp.eq.s32.totalorder %s28, 0
    %p311 = por %p309, %p310
    %p312 = scmp.ne.s32.totalorder %s300, %s301
    %p313 = scmp.eq.s32.totalorder %s29, 1
    %p314 = por %p312, %p313
    %p316 = scmp.ne.s32.totalorder %s301, %s315
    %p317 = scmp.eq.s32.totalorder %s29, 0
    %p318 = por %p316, %p317
    %s320 = sadd.s32 %s319, 1
    %p323 = scmp.eq.s32.totalorder %s23, 1
    %p324 = scmp.ne.s32.totalorder %s319, %s321
    %p325 = scmp.eq.s32.totalorder %s23, 0
    %p326 = por %p324, %p325
    %p327 = scmp.ne.s32.totalorder %s319, %s321
    %p328 = scmp.eq.s32.totalorder %s28, 1
    %p329 = por %p327, %p328
    %p330 = scmp.ne.s32.totalorder %s321, %s322
    %p331 = scmp.eq.s32.totalorder %s28, 0
    %p332 = por %p330, %p331
    %p333 = scmp.ne.s32.totalorder %s321, %s322
    %p334 = scmp.eq.s32.totalorder %s29, 1
    %p335 = por %p333, %p334
    %p337 = scmp.ne.s32.totalorder %s322, %s336
    %p338 = scmp.eq.s32.totalorder %s29, 0
    %p339 = por %p337, %p338
    %s341 = sadd.s32 %s340, 1
    %p344 = scmp.eq.s32.totalorder %s23, 1
    %p345 = scmp.ne.s32.totalorder %s340, %s342
    %p346 = scmp.eq.s32.totalorder %s23, 0
    %p347 = por %p345, %p346
    %p348 = scmp.ne.s32.totalorder %s340, %s342
    %p349 = scmp.eq.s32.totalorder %s28, 1
    %p350 = por %p348, %p349
    %p351 = scmp.ne.s32.totalorder %s342, %s343
    %p352 = scmp.eq.s32.totalorder %s28, 0
    %p353 = por %p351, %p352
    %p354 = scmp.ne.s32.totalorder %s342, %s343
    %p355 = scmp.eq.s32.totalorder %s29, 1
    %p356 = por %p354, %p355
    %p358 = scmp.ne.s32.totalorder %s343, %s357
    %p359 = scmp.eq.s32.totalorder %s29, 0
    %p360 = por %p358, %p359
    %s362 = sadd.s32 %s361, 1
    %p365 = scmp.eq.s32.totalorder %s23, 1
    %p366 = scmp.ne.s32.totalorder %s361, %s363
    %p367 = scmp.eq.s32.totalorder %s23, 0
    %p368 = por %p366, %p367
    %p369 = scmp.ne.s32.totalorder %s361, %s363
    %p370 = scmp.eq.s32.totalorder %s28, 1
    %p371 = por %p369, %p370
    %p372 = scmp.ne.s32.totalorder %s363, %s364
    %p373 = scmp.eq.s32.totalorder %s28, 0
    %p374 = por %p372, %p373
    %p375 = scmp.ne.s32.totalorder %s363, %s364
    %p376 = scmp.eq.s32.totalorder %s29, 1
    %p377 = por %p375, %p376
    %p379 = scmp.ne.s32.totalorder %s364, %s378
    %p380 = scmp.eq.s32.totalorder %s29, 0
    %p381 = por %p379, %p380
    %s383 = sadd.s32 %s382, 1
    %p386 = scmp.eq.s32.totalorder %s23, 1
    %p387 = scmp.ne.s32.totalorder %s382, %s384
    %p388 = scmp.eq.s32.totalorder %s23, 0
    %p389 = por %p387, %p388
    %p390 = scmp.ne.s32.totalorder %s382, %s384
    %p391 = scmp.eq.s32.totalorder %s28, 1
    %p392 = por %p390, %p391
    %p393 = scmp.ne.s32.totalorder %s384, %s385
    %p394 = scmp.eq.s32.totalorder %s28, 0
    %p395 = por %p393, %p394
    %p396 = scmp.ne.s32.totalorder %s384, %s385
    %p397 = scmp.eq.s32.totalorder %s29, 1
    %p398 = por %p396, %p397
    %p400 = scmp.ne.s32.totalorder %s385, %s399
    %p401 = scmp.eq.s32.totalorder %s29, 0
    %p402 = por %p400, %p401
    %s403 = ssub.s32 %s23, %s30
    %p404 = scmp.eq.s32.totalorder %s403, 0
    %s406 = sadd.s32 %s405, 1
    %s407 = scalar_select %p404, %s405, %s406
    %p410 = pneg %p404
    %p411 = scmp.eq.s32.totalorder %s23, 1
    %p412 = por %p410, %p411
    %p413 = scmp.ne.s32.totalorder %s405, %s408
    %p414 = scmp.eq.s32.totalorder %s23, 0
    %p415 = por %p413, %p414
    %p416 = scmp.ne.s32.totalorder %s405, %s408
    %p417 = scmp.eq.s32.totalorder %s28, 1
    %p418 = por %p416, %p417
    %p419 = scmp.ne.s32.totalorder %s408, %s409
    %p420 = scmp.eq.s32.totalorder %s28, 0
    %p421 = por %p419, %p420
    %p422 = scmp.ne.s32.totalorder %s408, %s409
    %p423 = scmp.eq.s32.totalorder %s29, 1
    %p424 = por %p422, %p423
    %p426 = scmp.ne.s32.totalorder %s409, %s425
    %p427 = scmp.eq.s32.totalorder %s29, 0
    %p428 = por %p426, %p427
    %p429 = scmp.le.s32.totalorder 1, %s23
    %p430 = scmp.lt.s32.totalorder %s23, 3
    %p431 = pnand %p429, %p430
    %p432 = pneg %p431
    // Predicated region
    $region9: #{inv_cog_forward.6} parent=5 // pred_check
      _
    $region10: #{inv_cog_forward.6} parent=5 // pred_check_branch
      %434 = sbr.rel (%p431) target = $region12
    $region11: #{inv_cog_forward.6} parent=5 // pred_region
      %s435 = ssub.s32 %s23, 1
      // Predicated region
      $region13: #{inv_cog_forward.6} parent=11 // pred_check
        %p436 = pneg %p122
      $region14: #{inv_cog_forward.6} parent=11 // pred_check_branch
        %438 = sbr.rel (%p436) target = $region16
      $region15: #{inv_cog_forward.6} parent=11 // pred_region
        _
      $region16: #{inv_cog_forward.6} parent=11 // pred_fallthru
        _
      // Predicated region
      $region17: #{inv_cog_forward.6} parent=11 // pred_check
        %p439 = pneg %p143
      $region18: #{inv_cog_forward.6} parent=11 // pred_check_branch
        %441 = sbr.rel (%p439) target = $region20
      $region19: #{inv_cog_forward.6} parent=11 // pred_region
        _
      $region20: #{inv_cog_forward.6} parent=11 // pred_fallthru
        _
      // Predicated region
      $region21: #{inv_cog_forward.6} parent=11 // pred_check
        %p442 = pneg %p164
      $region22: #{inv_cog_forward.6} parent=11 // pred_check_branch
        %444 = sbr.rel (%p442) target = $region24
      $region23: #{inv_cog_forward.6} parent=11 // pred_region
        _
      $region24: #{inv_cog_forward.6} parent=11 // pred_fallthru
        _
      // Predicated region
      $region25: #{inv_cog_forward.6} parent=11 // pred_check
        %p445 = pneg %p185
      $region26: #{inv_cog_forward.6} parent=11 // pred_check_branch
        %447 = sbr.rel (%p445) target = $region28
      $region27: #{inv_cog_forward.6} parent=11 // pred_region
        _
      $region28: #{inv_cog_forward.6} parent=11 // pred_fallthru
        _
      // Predicated region
      $region29: #{inv_cog_forward.6} parent=11 // pred_check
        %p448 = pneg %p206
      $region30: #{inv_cog_forward.6} parent=11 // pred_check_branch
        %450 = sbr.rel (%p448) target = $region32
      $region31: #{inv_cog_forward.6} parent=11 // pred_region
        _
      $region32: #{inv_cog_forward.6} parent=11 // pred_fallthru
        _
      // Predicated region
      $region33: #{inv_cog_forward.6} parent=11 // pred_check
        %p451 = pneg %p227
      $region34: #{inv_cog_forward.6} parent=11 // pred_check_branch
        %453 = sbr.rel (%p451) target = $region36
      $region35: #{inv_cog_forward.6} parent=11 // pred_region
        _
      $region36: #{inv_cog_forward.6} parent=11 // pred_fallthru
        _
      // Predicated region
      $region37: #{inv_cog_forward.6} parent=11 // pred_check
        %p454 = pneg %p248
      $region38: #{inv_cog_forward.6} parent=11 // pred_check_branch
        %456 = sbr.rel (%p454) target = $region40
      $region39: #{inv_cog_forward.6} parent=11 // pred_region
        _
      $region40: #{inv_cog_forward.6} parent=11 // pred_fallthru
        _
      // Predicated region
      $region41: #{inv_cog_forward.6} parent=11 // pred_check
        %p457 = pneg %p269
      $region42: #{inv_cog_forward.6} parent=11 // pred_check_branch
        %459 = sbr.rel (%p457) target = $region44
      $region43: #{inv_cog_forward.6} parent=11 // pred_region
        _
      $region44: #{inv_cog_forward.6} parent=11 // pred_fallthru
        _
      // Predicated region
      $region45: #{inv_cog_forward.6} parent=11 // pred_check
        %p460 = pneg %p290
      $region46: #{inv_cog_forward.6} parent=11 // pred_check_branch
        %462 = sbr.rel (%p460) target = $region48
      $region47: #{inv_cog_forward.6} parent=11 // pred_region
        _
      $region48: #{inv_cog_forward.6} parent=11 // pred_fallthru
        _
      // Predicated region
      $region49: #{inv_cog_forward.6} parent=11 // pred_check
        %p463 = pneg %p311
      $region50: #{inv_cog_forward.6} parent=11 // pred_check_branch
        %465 = sbr.rel (%p463) target = $region52
      $region51: #{inv_cog_forward.6} parent=11 // pred_region
        _
      $region52: #{inv_cog_forward.6} parent=11 // pred_fallthru
        _
      // Predicated region
      $region53: #{inv_cog_forward.6} parent=11 // pred_check
        %p466 = pneg %p332
      $region54: #{inv_cog_forward.6} parent=11 // pred_check_branch
        %468 = sbr.rel (%p466) target = $region56
      $region55: #{inv_cog_forward.6} parent=11 // pred_region
        _
      $region56: #{inv_cog_forward.6} parent=11 // pred_fallthru
        _
      // Predicated region
      $region57: #{inv_cog_forward.6} parent=11 // pred_check
        %p469 = pneg %p353
      $region58: #{inv_cog_forward.6} parent=11 // pred_check_branch
        %471 = sbr.rel (%p469) target = $region60
      $region59: #{inv_cog_forward.6} parent=11 // pred_region
        _
      $region60: #{inv_cog_forward.6} parent=11 // pred_fallthru
        _
      // Predicated region
      $region61: #{inv_cog_forward.6} parent=11 // pred_check
        %p472 = pneg %p374
      $region62: #{inv_cog_forward.6} parent=11 // pred_check_branch
        %474 = sbr.rel (%p472) target = $region64
      $region63: #{inv_cog_forward.6} parent=11 // pred_region
        _
      $region64: #{inv_cog_forward.6} parent=11 // pred_fallthru
        _
      // Predicated region
      $region65: #{inv_cog_forward.6} parent=11 // pred_check
        %p475 = pneg %p395
      $region66: #{inv_cog_forward.6} parent=11 // pred_check_branch
        %477 = sbr.rel (%p475) target = $region68
      $region67: #{inv_cog_forward.6} parent=11 // pred_region
        _
      $region68: #{inv_cog_forward.6} parent=11 // pred_fallthru
        _
    $region12: #{inv_cog_forward.6} parent=5 // pred_fallthru
      _
    %p478 = scmp.lt.s32.totalorder %s23, 2
    // Predicated region
    $region69: #{inv_cog_forward.6} parent=5 // pred_check
      %p479 = pneg %p478
    $region70: #{inv_cog_forward.6} parent=5 // pred_check_branch
      %481 = sbr.rel (%p479) target = $region72
    $region71: #{inv_cog_forward.6} parent=5 // pred_region
      // Predicated region
      $region73: #{inv_cog_forward.6} parent=71 // pred_check
        %p482 = pneg %p43
      $region74: #{inv_cog_forward.6} parent=71 // pred_check_branch
        %484 = sbr.rel (%p482) target = $region76
      $region75: #{inv_cog_forward.6} parent=71 // pred_region
        %p485 = scmp.lt.s32.totalorder %s23, 1
        %s486 = scalar_select %p485, %s23, 1
        %s487 = smul.addr %s486, 8
        %s488 = scalar_lea.vmem %s0, %s487
      $region76: #{inv_cog_forward.6} parent=71 // pred_fallthru
        _
      // Predicated region
      $region77: #{inv_cog_forward.6} parent=71 // pred_check
        %p489 = pneg %p69
      $region78: #{inv_cog_forward.6} parent=71 // pred_check_branch
        %491 = sbr.rel (%p489) target = $region80
      $region79: #{inv_cog_forward.6} parent=71 // pred_region
        %p492 = scmp.lt.s32.totalorder %s23, 1
        %s493 = scalar_select %p492, %s23, 1
        %s494 = smul.addr %s493, 8
        %s495 = scalar_lea.vmem %s1, %s494
      $region80: #{inv_cog_forward.6} parent=71 // pred_fallthru
        _
      // Predicated region
      $region81: #{inv_cog_forward.6} parent=71 // pred_check
        %p496 = pneg %p95
      $region82: #{inv_cog_forward.6} parent=71 // pred_check_branch
        %498 = sbr.rel (%p496) target = $region84
      $region83: #{inv_cog_forward.6} parent=71 // pred_region
        %p499 = scmp.lt.s32.totalorder %s23, 1
        %s500 = scalar_select %p499, %s23, 1
        %s501 = scalar_lea.vmem %s2, %s500
      $region84: #{inv_cog_forward.6} parent=71 // pred_fallthru
        _
    $region72: #{inv_cog_forward.6} parent=5 // pred_fallthru
      _
    %p502 = scmp.le.s32.totalorder 1, %s23
    %p503 = scmp.lt.s32.totalorder %s23, 3
    %p504 = pnand %p502, %p503
    %p505 = pneg %p504
    // Predicated region
    $region85: #{inv_cog_forward.6} parent=5 // pred_check
      _
    $region86: #{inv_cog_forward.6} parent=5 // pred_check_branch
      %507 = sbr.rel (%p504) target = $region88
    $region87: #{inv_cog_forward.6} parent=5 // pred_region
      %s508 = ssub.s32 %s23, 1
      %p509 = scmp.lt.s32.totalorder %s28, 1
      %s510 = scalar_select %p509, %s28, 1
      %s511 = smul.addr %s510, 8
      %s512 = scalar_lea.vmem %s0, %s511
      %p513 = pneg %p49
      %p514 = pneg %p46
      %p515 = scmp.lt.s32.totalorder %s28, 1
      %s516 = scalar_select %p515, %s28, 1
      %s517 = smul.addr %s516, 8
      %s518 = scalar_lea.vmem %s1, %s517
      %p519 = pneg %p75
      %p520 = pneg %p72
      %p521 = scmp.lt.s32.totalorder %s28, 1
      %s522 = scalar_select %p521, %s28, 1
      %s523 = scalar_lea.vmem %s2, %s522
      %p524 = pneg %p101
      %p525 = pneg %p98
      %p526 = pneg %p122
      %p527 = pneg %p119
      %p528 = pneg %p143
      %p529 = pneg %p140
      %p530 = pneg %p164
      %p531 = pneg %p161
      %p532 = pneg %p185
      %p533 = pneg %p182
      %p534 = pneg %p206
      %p535 = pneg %p203
      %p536 = pneg %p227
      %p537 = pneg %p224
      %p538 = pneg %p248
      %p539 = pneg %p245
      %p540 = pneg %p269
      %p541 = pneg %p266
      %p542 = pneg %p290
      %p543 = pneg %p287
      %p544 = pneg %p311
      %p545 = pneg %p308
      %p546 = pneg %p332
      %p547 = pneg %p329
      %p548 = pneg %p353
      %p549 = pneg %p350
      %p550 = pneg %p374
      %p551 = pneg %p371
      %p552 = pneg %p395
      %p553 = pneg %p392
      %p554 = pneg %p421
      %p555 = pneg %p418
      %p556 = scmp.lt.s32.totalorder %s28, 1
      %s557 = scalar_select %p556, %s28, 1
      %s558 = smul.addr %s557, 8
      %s559 = scalar_lea.vmem %s17, %s558
      %p560 = scmp.lt.s32.totalorder %s28, 1
      %s561 = scalar_select %p560, %s28, 1
      %s562 = smul.addr %s561, 8
      %s563 = scalar_lea.vmem %s0, %s562
      %p564 = scmp.lt.s32.totalorder %s28, 1
      %s565 = scalar_select %p564, %s28, 1
      %s566 = smul.addr %s565, 8
      %s567 = scalar_lea.vmem %s1, %s566
      %p568 = scmp.lt.s32.totalorder %s28, 1
      %s569 = scalar_select %p568, %s28, 1
      %s570 = scalar_lea.vmem %s2, %s569
      %p571 = scmp.lt.s32.totalorder %s28, 1
      %s572 = scalar_select %p571, %s28, 1
      %s573 = smul.addr %s572, 8
      %s574 = scalar_lea.vmem %s17, %s573
      %v576 = vld [vmem:[%s563] sm:$0xff]
      %v577 = vld [vmem:[%s567] sm:$0xff]
      %v578 = vld [vmem:[%s570] sm:$0x1]
      %vm579 = vcmp.gt.f32.partialorder %v578, 0.5
      %v580 = vpack.c.bf16 %v576, %v576
      %v581 = vld [vmem:[%s3] sm:$0xf]
      %v582 = vld [vmem:[%s3 + $0x4] sm:$0xf]
      %v583 = vld [vmem:[%s3 + $0x8] sm:$0xf]
      %v584 = vld [vmem:[%s3 + $0xc] sm:$0xf]
      %v585 = vld [vmem:[%s4] sm:$0x1]
      %v587 = vlaneseq
      %v588 = vshrl.u32 %v587, 7
      %v589 = vsub.s32 0, %v588
      %v590 = vrot.slane %v585, %v589
      %v596 = vunpack.c.l.b16 %v581
      %v597 = vunpack.c.l.b16 %v582
      %v598 = vunpack.c.l.b16 %v583
      %v599 = vunpack.c.l.b16 %v584
      %v600 = vpack.c.b16 %v597, %v596
      %v601 = vpack.c.b16 %v599, %v598
      %vm604 = vcmask 261120
      %v606 = vsel %vm604, %v580, 0
      %608 = vmatprep.subr.bf16.mxu0 0
      %609 = vmatpush1.bf16.msra.mxu0 %v600
      %610 = vmatprep.subr.bf16.mxu0 0
      %611 = vmatpush1.bf16.msra.mxu0 %v601
      %612 = vmatprep.subr.bf16.mxu0 0
      %613 = vmatpush1.bf16.msra.mxu0 0
      %614 = vmatprep.subr.bf16.mxu0 0
      %615 = vmatpush1.bf16.msra.mxu0 0
      %616 = vmatprep.subr.bf16.mxu0 0
      %617 = vmatpush1.bf16.msra.mxu0 0
      %618 = vmatprep.subr.bf16.mxu0 0
      %619 = vmatpush1.bf16.msra.mxu0 0
      %620 = vmatprep.subr.bf16.mxu0 0
      %621 = vmatpush1.bf16.msra.mxu0 0
      %622 = vmatprep.subr.bf16.mxu0 0
      %623 = vmatpush1.bf16.msra.mxu0 0
      %624 = vmatprep.subr.bf16.mxu0 0
      %625 = vmatpush1.bf16.msra.mxu0 0
      %626 = vmatprep.subr.bf16.mxu0 0
      %627 = vmatpush1.bf16.msra.mxu0 0
      %628 = vmatprep.subr.bf16.mxu0 0
      %629 = vmatpush1.bf16.msra.mxu0 0
      %630 = vmatprep.subr.bf16.mxu0 0
      %631 = vmatpush1.bf16.msra.mxu0 0
      %632 = vmatprep.subr.bf16.mxu0 0
      %633 = vmatpush1.bf16.msra.mxu0 0
      %634 = vmatprep.subr.bf16.mxu0 0
      %635 = vmatpush1.bf16.msra.mxu0 0
      %636 = vmatprep.subr.bf16.mxu0 0
      %637 = vmatpush1.bf16.msra.mxu0 0
      %638 = vmatprep.subr.bf16.mxu0 0
      %639 = vmatpush1.bf16.msra.mxu0 0
      %640 = vmatprep.mubr.bf16.mxu0 0
      %641 = vmatmul.mubr.bf16.gmra.mrb[0].mxu0 %v606
      %v642 = vpop.f32.mrb[0].mxu0
      %v643 = vadd.f32 %v590, %v642
      %v644 = vpop.f32.mrb[0].mxu0
      %v645 = vpop.f32.mrb[0].mxu0
      %v646 = vpop.f32.mrb[0].mxu0
      %647 = vdwg.mxu0
      %v648 = vpack.c.bf16 %v577, %v577
      %v649 = vld [vmem:[%s5] sm:$0xf]
      %v650 = vld [vmem:[%s5 + $0x4] sm:$0xf]
      %v651 = vld [vmem:[%s5 + $0x8] sm:$0xf]
      %v652 = vld [vmem:[%s5 + $0xc] sm:$0xf]
      %v653 = vld [vmem:[%s6] sm:$0x1]
      %v655 = vlaneseq
      %v656 = vshrl.u32 %v655, 7
      %v657 = vsub.s32 0, %v656
      %v658 = vrot.slane %v653, %v657
      %v664 = vunpack.c.l.b16 %v649
      %v665 = vunpack.c.l.b16 %v650
      %v666 = vunpack.c.l.b16 %v651
      %v667 = vunpack.c.l.b16 %v652
      %v668 = vpack.c.b16 %v665, %v664
      %v669 = vpack.c.b16 %v667, %v666
      %v673 = vsel %vm604, %v648, 0
      %675 = vmatprep.subr.bf16.mxu0 0
      %676 = vmatpush1.bf16.msra.mxu0 %v668
      %677 = vmatprep.subr.bf16.mxu0 0
      %678 = vmatpush1.bf16.msra.mxu0 %v669
      %679 = vmatprep.subr.bf16.mxu0 0
      %680 = vmatpush1.bf16.msra.mxu0 0
      %681 = vmatprep.subr.bf16.mxu0 0
      %682 = vmatpush1.bf16.msra.mxu0 0
      %683 = vmatprep.subr.bf16.mxu0 0
      %684 = vmatpush1.bf16.msra.mxu0 0
      %685 = vmatprep.subr.bf16.mxu0 0
      %686 = vmatpush1.bf16.msra.mxu0 0
      %687 = vmatprep.subr.bf16.mxu0 0
      %688 = vmatpush1.bf16.msra.mxu0 0
      %689 = vmatprep.subr.bf16.mxu0 0
      %690 = vmatpush1.bf16.msra.mxu0 0
      %691 = vmatprep.subr.bf16.mxu0 0
      %692 = vmatpush1.bf16.msra.mxu0 0
      %693 = vmatprep.subr.bf16.mxu0 0
      %694 = vmatpush1.bf16.msra.mxu0 0
      %695 = vmatprep.subr.bf16.mxu0 0
      %696 = vmatpush1.bf16.msra.mxu0 0
      %697 = vmatprep.subr.bf16.mxu0 0
      %698 = vmatpush1.bf16.msra.mxu0 0
      %699 = vmatprep.subr.bf16.mxu0 0
      %700 = vmatpush1.bf16.msra.mxu0 0
      %701 = vmatprep.subr.bf16.mxu0 0
      %702 = vmatpush1.bf16.msra.mxu0 0
      %703 = vmatprep.subr.bf16.mxu0 0
      %704 = vmatpush1.bf16.msra.mxu0 0
      %705 = vmatprep.subr.bf16.mxu0 0
      %706 = vmatpush1.bf16.msra.mxu0 0
      %707 = vmatprep.mubr.bf16.mxu0 0
      %708 = vmatmul.mubr.bf16.gmra.mrb[0].mxu0 %v673
      %v709 = vpop.f32.mrb[0].mxu0
      %v710 = vadd.f32 %v658, %v709
      %v711 = vpop.f32.mrb[0].mxu0
      %v712 = vpop.f32.mrb[0].mxu0
      %v713 = vpop.f32.mrb[0].mxu0
      %714 = vdwg.mxu0
      %v715 = vmul.f32 %v643, 0.35355338
      %v716 = vpack.c.bf16 %v715, %v715
      %v717 = vpack.c.bf16 %v710, %v710
      %vm718 = vcmask 64512
      %v720 = vsel %vm718, %v716, 0
      %v723 = vsel %vm718, %v717, 0
      %725 = vmatprep.subr.bf16.mxu0 0
      %726 = vmatpush1.bf16.xpose.msra.mxu0 %v723
      %727 = vmatprep.subr.bf16.mxu0 0
      %728 = vmatpush1.bf16.xpose.msra.mxu0 0
      %729 = vmatprep.subr.bf16.mxu0 0
      %730 = vmatpush1.bf16.xpose.msra.mxu0 0
      %731 = vmatprep.subr.bf16.mxu0 0
      %732 = vmatpush1.bf16.xpose.msra.mxu0 0
      %733 = vmatprep.subr.bf16.mxu0 0
      %734 = vmatpush1.bf16.xpose.msra.mxu0 0
      %735 = vmatprep.subr.bf16.mxu0 0
      %736 = vmatpush1.bf16.xpose.msra.mxu0 0
      %737 = vmatprep.subr.bf16.mxu0 0
      %738 = vmatpush1.bf16.xpose.msra.mxu0 0
      %739 = vmatprep.subr.bf16.mxu0 0
      %740 = vmatpush1.bf16.xpose.msra.mxu0 0
      %741 = vmatprep.subr.bf16.mxu0 0
      %742 = vmatpush1.bf16.xpose.msra.mxu0 0
      %743 = vmatprep.subr.bf16.mxu0 0
      %744 = vmatpush1.bf16.xpose.msra.mxu0 0
      %745 = vmatprep.subr.bf16.mxu0 0
      %746 = vmatpush1.bf16.xpose.msra.mxu0 0
      %747 = vmatprep.subr.bf16.mxu0 0
      %748 = vmatpush1.bf16.xpose.msra.mxu0 0
      %749 = vmatprep.subr.bf16.mxu0 0
      %750 = vmatpush1.bf16.xpose.msra.mxu0 0
      %751 = vmatprep.subr.bf16.mxu0 0
      %752 = vmatpush1.bf16.xpose.msra.mxu0 0
      %753 = vmatprep.subr.bf16.mxu0 0
      %754 = vmatpush1.bf16.xpose.msra.mxu0 0
      %755 = vmatprep.subr.bf16.mxu0 0
      %756 = vmatpush1.bf16.xpose.msra.mxu0 0
      %757 = vmatprep.mubr.bf16.mxu0 0
      %758 = vmatmul.mubr.bf16.gmra.mrb[0].mxu0 %v720
      %v759 = vpop.f32.mrb[0].mxu0
      %v760 = vadd.f32 0.0, %v759
      %v761 = vpop.f32.mrb[0].mxu0
      %v762 = vpop.f32.mrb[0].mxu0
      %v763 = vpop.f32.mrb[0].mxu0
      %764 = vdwg.mxu0
      %v765 = vsel %vm579, 1, 0
      %v766 = vlaneseq
      %v767 = vshrl.u32 %v766, 7
      %v768 = vsub.s32 0, %v767
      %v769 = vrot.slane %v765, %v768
      %vm770 = vcmp.eq.s32.totalorder %v769, 1
      %v771 = vsel %vm770, -1e+30, %v760
      %v772 = vsel %vm718, %v771, -inf
      %773 = vmax.xlane.f32.xlu0 %v772
      %v774 = vpop.xlane.xlu0 %773
      %v775 = vsub.f32 %v771, %v774
      %v776 = vmul.f32 %v775, 1.442695
      %v777 = vpow.pop %v776
      %v778 = vsel %vm718, %v777, 0.0
      %779 = vadd.xlane.f32.xlu0 %v778
      %v780 = vpop.xlane.xlu0 %779
      %v781 = vrcp.pop %v780
      %v782 = vmul.f32 %v777, %v781
      %v783 = vpack.c.bf16 %v782, %v782
      %785 = vrot.lane.b32.xlu0 %v717, 96
      %v786 = vpop.permute.xlu0 %785
      %v788 = vsel %vm718, %v783, 0
      %vm790 = vcmask 1043456
      %v792 = vsel %vm790, %v786, 0
      %794 = vmatprep.subr.bf16.mxu0 0
      %795 = vmatpush1.bf16.msra.mxu0 %v792
      %796 = vmatprep.subr.bf16.mxu0 0
      %797 = vmatpush1.bf16.msra.mxu0 0
      %798 = vmatprep.subr.bf16.mxu0 0
      %799 = vmatpush1.bf16.msra.mxu0 0
      %800 = vmatprep.subr.bf16.mxu0 0
      %801 = vmatpush1.bf16.msra.mxu0 0
      %802 = vmatprep.subr.bf16.mxu0 0
      %803 = vmatpush1.bf16.msra.mxu0 0
      %804 = vmatprep.subr.bf16.mxu0 0
      %805 = vmatpush1.bf16.msra.mxu0 0
      %806 = vmatprep.subr.bf16.mxu0 0
      %807 = vmatpush1.bf16.msra.mxu0 0
      %808 = vmatprep.subr.bf16.mxu0 0
      %809 = vmatpush1.bf16.msra.mxu0 0
      %810 = vmatprep.subr.bf16.mxu0 0
      %811 = vmatpush1.bf16.msra.mxu0 0
      %812 = vmatprep.subr.bf16.mxu0 0
      %813 = vmatpush1.bf16.msra.mxu0 0
      %814 = vmatprep.subr.bf16.mxu0 0
      %815 = vmatpush1.bf16.msra.mxu0 0
      %816 = vmatprep.subr.bf16.mxu0 0
      %817 = vmatpush1.bf16.msra.mxu0 0
      %818 = vmatprep.subr.bf16.mxu0 0
      %819 = vmatpush1.bf16.msra.mxu0 0
      %820 = vmatprep.subr.bf16.mxu0 0
      %821 = vmatpush1.bf16.msra.mxu0 0
      %822 = vmatprep.subr.bf16.mxu0 0
      %823 = vmatpush1.bf16.msra.mxu0 0
      %824 = vmatprep.subr.bf16.mxu0 0
      %825 = vmatpush1.bf16.msra.mxu0 0
      %826 = vmatprep.mubr.bf16.mxu0 0
      %827 = vmatmul.mubr.bf16.gmra.mrb[0].mxu0 %v788
      %v828 = vpop.f32.mrb[0].mxu0
      %v829 = vadd.f32 0.0, %v828
      %v830 = vpop.f32.mrb[0].mxu0
      %v831 = vpop.f32.mrb[0].mxu0
      %v832 = vpop.f32.mrb[0].mxu0
      %833 = vdwg.mxu0
      %834 = vst.msk [vmem:[#allocation2] sm:$0xff] %vm718, %v829
      %836 = vrot.lane.b32.xlu0 %v716, 120
      %v837 = vpop.permute.xlu0 %836
      %838 = vrot.lane.b32.xlu0 %v717, 120
      %v839 = vpop.permute.xlu0 %838
      %v841 = vsel %vm718, %v837, 0
      %v844 = vsel %vm718, %v839, 0
      %846 = vmatprep.subr.bf16.mxu0 0
      %847 = vmatpush1.bf16.xpose.msra.mxu0 %v844
      %848 = vmatprep.subr.bf16.mxu0 0
      %849 = vmatpush1.bf16.xpose.msra.mxu0 0
      %850 = vmatprep.subr.bf16.mxu0 0
      %851 = vmatpush1.bf16.xpose.msra.mxu0 0
      %852 = vmatprep.subr.bf16.mxu0 0
      %853 = vmatpush1.bf16.xpose.msra.mxu0 0
      %854 = vmatprep.subr.bf16.mxu0 0
      %855 = vmatpush1.bf16.xpose.msra.mxu0 0
      %856 = vmatprep.subr.bf16.mxu0 0
      %857 = vmatpush1.bf16.xpose.msra.mxu0 0
      %858 = vmatprep.subr.bf16.mxu0 0
      %859 = vmatpush1.bf16.xpose.msra.mxu0 0
      %860 = vmatprep.subr.bf16.mxu0 0
      %861 = vmatpush1.bf16.xpose.msra.mxu0 0
      %862 = vmatprep.subr.bf16.mxu0 0
      %863 = vmatpush1.bf16.xpose.msra.mxu0 0
      %864 = vmatprep.subr.bf16.mxu0 0
      %865 = vmatpush1.bf16.xpose.msra.mxu0 0
      %866 = vmatprep.subr.bf16.mxu0 0
      %867 = vmatpush1.bf16.xpose.msra.mxu0 0
      %868 = vmatprep.subr.bf16.mxu0 0
      %869 = vmatpush1.bf16.xpose.msra.mxu0 0
      %870 = vmatprep.subr.bf16.mxu0 0
      %871 = vmatpush1.bf16.xpose.msra.mxu0 0
      %872 = vmatprep.subr.bf16.mxu0 0
      %873 = vmatpush1.bf16.xpose.msra.mxu0 0
      %874 = vmatprep.subr.bf16.mxu0 0
      %875 = vmatpush1.bf16.xpose.msra.mxu0 0
      %876 = vmatprep.subr.bf16.mxu0 0
      %877 = vmatpush1.bf16.xpose.msra.mxu0 0
      %878 = vmatprep.mubr.bf16.mxu0 0
      %879 = vmatmul.mubr.bf16.gmra.mrb[0].mxu0 %v841
      %v880 = vpop.f32.mrb[0].mxu0
      %v881 = vadd.f32 0.0, %v880
      %v882 = vpop.f32.mrb[0].mxu0
      %v883 = vpop.f32.mrb[0].mxu0
      %v884 = vpop.f32.mrb[0].mxu0
      %885 = vdwg.mxu0
      %v886 = vsel %vm770, -1e+30, %v881
      %v887 = vsel %vm718, %v886, -inf
      %888 = vmax.xlane.f32.xlu0 %v887
      %v889 = vpop.xlane.xlu0 %888
      %v890 = vsub.f32 %v886, %v889
      %v891 = vmul.f32 %v890, 1.442695
      %v892 = vpow.pop %v891
      %v893 = vsel %vm718, %v892, 0.0
      %894 = vadd.xlane.f32.xlu0 %v893
      %v895 = vpop.xlane.xlu0 %894
      %v896 = vrcp.pop %v895
      %v897 = vmul.f32 %v892, %v896
      %v898 = vpack.c.bf16 %v897, %v897
      %899 = vrot.lane.b32.xlu0 %v717, 88
      %v900 = vpop.permute.xlu0 %899
      %v902 = vsel %vm718, %v898, 0
      %v905 = vsel %vm790, %v900, 0
      %907 = vmatprep.subr.bf16.mxu0 0
      %908 = vmatpush1.bf16.msra.mxu0 %v905
      %909 = vmatprep.subr.bf16.mxu0 0
      %910 = vmatpush1.bf16.msra.mxu0 0
      %911 = vmatprep.subr.bf16.mxu0 0
      %912 = vmatpush1.bf16.msra.mxu0 0
      %913 = vmatprep.subr.bf16.mxu0 0
      %914 = vmatpush1.bf16.msra.mxu0 0
      %915 = vmatprep.subr.bf16.mxu0 0
      %916 = vmatpush1.bf16.msra.mxu0 0
      %917 = vmatprep.subr.bf16.mxu0 0
      %918 = vmatpush1.bf16.msra.mxu0 0
      %919 = vmatprep.subr.bf16.mxu0 0
      %920 = vmatpush1.bf16.msra.mxu0 0
      %921 = vmatprep.subr.bf16.mxu0 0
      %922 = vmatpush1.bf16.msra.mxu0 0
      %923 = vmatprep.subr.bf16.mxu0 0
      %924 = vmatpush1.bf16.msra.mxu0 0
      %925 = vmatprep.subr.bf16.mxu0 0
      %926 = vmatpush1.bf16.msra.mxu0 0
      %927 = vmatprep.subr.bf16.mxu0 0
      %928 = vmatpush1.bf16.msra.mxu0 0
      %929 = vmatprep.subr.bf16.mxu0 0
      %930 = vmatpush1.bf16.msra.mxu0 0
      %931 = vmatprep.subr.bf16.mxu0 0
      %932 = vmatpush1.bf16.msra.mxu0 0
      %933 = vmatprep.subr.bf16.mxu0 0
      %934 = vmatpush1.bf16.msra.mxu0 0
      %935 = vmatprep.subr.bf16.mxu0 0
      %936 = vmatpush1.bf16.msra.mxu0 0
      %937 = vmatprep.subr.bf16.mxu0 0
      %938 = vmatpush1.bf16.msra.mxu0 0
      %939 = vmatprep.mubr.bf16.mxu0 0
      %940 = vmatmul.mubr.bf16.gmra.mrb[0].mxu0 %v902
      %v941 = vpop.f32.mrb[0].mxu0
      %v942 = vadd.f32 0.0, %v941
      %v943 = vpop.f32.mrb[0].mxu0
      %v944 = vpop.f32.mrb[0].mxu0
      %v945 = vpop.f32.mrb[0].mxu0
      %946 = vdwg.mxu0
      %948 = vrot.lane.b32.xlu0 %v942, 8
      %v949 = vpop.permute.xlu0 %948
      %vm951 = vcmask 130112
      %952 = vst.msk [vmem:[#allocation2] sm:$0xff] %vm951, %v949
      %953 = vrot.lane.b32.xlu0 %v716, 112
      %v954 = vpop.permute.xlu0 %953
      %955 = vrot.lane.b32.xlu0 %v717, 112
      %v956 = vpop.permute.xlu0 %955
      %v958 = vsel %vm718, %v954, 0
      %v961 = vsel %vm718, %v956, 0
      %963 = vmatprep.subr.bf16.mxu0 0
      %964 = vmatpush1.bf16.xpose.msra.mxu0 %v961
      %965 = vmatprep.subr.bf16.mxu0 0
      %966 = vmatpush1.bf16.xpose.msra.mxu0 0
      %967 = vmatprep.subr.bf16.mxu0 0
      %968 = vmatpush1.bf16.xpose.msra.mxu0 0
      %969 = vmatprep.subr.bf16.mxu0 0
      %970 = vmatpush1.bf16.xpose.msra.mxu0 0
      %971 = vmatprep.subr.bf16.mxu0 0
      %972 = vmatpush1.bf16.xpose.msra.mxu0 0
      %973 = vmatprep.subr.bf16.mxu0 0
      %974 = vmatpush1.bf16.xpose.msra.mxu0 0
      %975 = vmatprep.subr.bf16.mxu0 0
      %976 = vmatpush1.bf16.xpose.msra.mxu0 0
      %977 = vmatprep.subr.bf16.mxu0 0
      %978 = vmatpush1.bf16.xpose.msra.mxu0 0
      %979 = vmatprep.subr.bf16.mxu0 0
      %980 = vmatpush1.bf16.xpose.msra.mxu0 0
      %981 = vmatprep.subr.bf16.mxu0 0
      %982 = vmatpush1.bf16.xpose.msra.mxu0 0
      %983 = vmatprep.subr.bf16.mxu0 0
      %984 = vmatpush1.bf16.xpose.msra.mxu0 0
      %985 = vmatprep.subr.bf16.mxu0 0
      %986 = vmatpush1.bf16.xpose.msra.mxu0 0
      %987 = vmatprep.subr.bf16.mxu0 0
      %988 = vmatpush1.bf16.xpose.msra.mxu0 0
      %989 = vmatprep.subr.bf16.mxu0 0
      %990 = vmatpush1.bf16.xpose.msra.mxu0 0
      %991 = vmatprep.subr.bf16.mxu0 0
      %992 = vmatpush1.bf16.xpose.msra.mxu0 0
      %993 = vmatprep.subr.bf16.mxu0 0
      %994 = vmatpush1.bf16.xpose.msra.mxu0 0
      %995 = vmatprep.mubr.bf16.mxu0 0
      %996 = vmatmul.mubr.bf16.gmra.mrb[0].mxu0 %v958
      %v997 = vpop.f32.mrb[0].mxu0
      %v998 = vadd.f32 0.0, %v997
      %v999 = vpop.f32.mrb[0].mxu0
      %v1000 = vpop.f32.mrb[0].mxu0
      %v1001 = vpop.f32.mrb[0].mxu0
      %1002 = vdwg.mxu0
      %v1003 = vsel %vm770, -1e+30, %v998
      %v1004 = vsel %vm718, %v1003, -inf
      %1005 = vmax.xlane.f32.xlu0 %v1004
      %v1006 = vpop.xlane.xlu0 %1005
      %v1007 = vsub.f32 %v1003, %v1006
      %v1008 = vmul.f32 %v1007, 1.442695
      %v1009 = vpow.pop %v1008
      %v1010 = vsel %vm718, %v1009, 0.0
      %1011 = vadd.xlane.f32.xlu0 %v1010
      %v1012 = vpop.xlane.xlu0 %1011
      %v1013 = vrcp.pop %v1012
      %v1014 = vmul.f32 %v1009, %v1013
      %v1015 = vpack.c.bf16 %v1014, %v1014
      %1016 = vrot.lane.b32.xlu0 %v717, 80
      %v1017 = vpop.permute.xlu0 %1016
      %v1019 = vsel %vm718, %v1015, 0
      %v1022 = vsel %vm790, %v1017, 0
      %1024 = vmatprep.subr.bf16.mxu0 0
      %1025 = vmatpush1.bf16.msra.mxu0 %v1022
      %1026 = vmatprep.subr.bf16.mxu0 0
      %1027 = vmatpush1.bf16.msra.mxu0 0
      %1028 = vmatprep.subr.bf16.mxu0 0
      %1029 = vmatpush1.bf16.msra.mxu0 0
      %1030 = vmatprep.subr.bf16.mxu0 0
      %1031 = vmatpush1.bf16.msra.mxu0 0
      %1032 = vmatprep.subr.bf16.mxu0 0
      %1033 = vmatpush1.bf16.msra.mxu0 0
      %1034 = vmatprep.subr.bf16.mxu0 0
      %1035 = vmatpush1.bf16.msra.mxu0 0
      %1036 = vmatprep.subr.bf16.mxu0 0
      %1037 = vmatpush1.bf16.msra.mxu0 0
      %1038 = vmatprep.subr.bf16.mxu0 0
      %1039 = vmatpush1.bf16.msra.mxu0 0
      %1040 = vmatprep.subr.bf16.mxu0 0
      %1041 = vmatpush1.bf16.msra.mxu0 0
      %1042 = vmatprep.subr.bf16.mxu0 0
      %1043 = vmatpush1.bf16.msra.mxu0 0
      %1044 = vmatprep.subr.bf16.mxu0 0
      %1045 = vmatpush1.bf16.msra.mxu0 0
      %1046 = vmatprep.subr.bf16.mxu0 0
      %1047 = vmatpush1.bf16.msra.mxu0 0
      %1048 = vmatprep.subr.bf16.mxu0 0
      %1049 = vmatpush1.bf16.msra.mxu0 0
      %1050 = vmatprep.subr.bf16.mxu0 0
      %1051 = vmatpush1.bf16.msra.mxu0 0
      %1052 = vmatprep.subr.bf16.mxu0 0
      %1053 = vmatpush1.bf16.msra.mxu0 0
      %1054 = vmatprep.subr.bf16.mxu0 0
      %1055 = vmatpush1.bf16.msra.mxu0 0
      %1056 = vmatprep.mubr.bf16.mxu0 0
      %1057 = vmatmul.mubr.bf16.gmra.mrb[0].mxu0 %v1019
      %v1058 = vpop.f32.mrb[0].mxu0
      %v1059 = vadd.f32 0.0, %v1058
      %v1060 = vpop.f32.mrb[0].mxu0
      %v1061 = vpop.f32.mrb[0].mxu0
      %v1062 = vpop.f32.mrb[0].mxu0
      %1063 = vdwg.mxu0
      %1065 = vrot.lane.b32.xlu0 %v1059, 16
      %v1066 = vpop.permute.xlu0 %1065
      %vm1068 = vcmask 195712
      %1069 = vst.msk [vmem:[#allocation2] sm:$0xff] %vm1068, %v1066
      %1070 = vrot.lane.b32.xlu0 %v716, 104
      %v1071 = vpop.permute.xlu0 %1070
      %1072 = vrot.lane.b32.xlu0 %v717, 104
      %v1073 = vpop.permute.xlu0 %1072
      %v1075 = vsel %vm718, %v1071, 0
      %v1078 = vsel %vm718, %v1073, 0
      %1080 = vmatprep.subr.bf16.mxu0 0
      %1081 = vmatpush1.bf16.xpose.msra.mxu0 %v1078
      %1082 = vmatprep.subr.bf16.mxu0 0
      %1083 = vmatpush1.bf16.xpose.msra.mxu0 0
      %1084 = vmatprep.subr.bf16.mxu0 0
      %1085 = vmatpush1.bf16.xpose.msra.mxu0 0
      %1086 = vmatprep.subr.bf16.mxu0 0
      %1087 = vmatpush1.bf16.xpose.msra.mxu0 0
      %1088 = vmatprep.subr.bf16.mxu0 0
      %1089 = vmatpush1.bf16.xpose.msra.mxu0 0
      %1090 = vmatprep.subr.bf16.mxu0 0
      %1091 = vmatpush1.bf16.xpose.msra.mxu0 0
      %1092 = vmatprep.subr.bf16.mxu0 0
      %1093 = vmatpush1.bf16.xpose.msra.mxu0 0
      %1094 = vmatprep.subr.bf16.mxu0 0
      %1095 = vmatpush1.bf16.xpose.msra.mxu0 0
      %1096 = vmatprep.subr.bf16.mxu0 0
      %1097 = vmatpush1.bf16.xpose.msra.mxu0 0
      %1098 = vmatprep.subr.bf16.mxu0 0
      %1099 = vmatpush1.bf16.xpose.msra.mxu0 0
      %1100 = vmatprep.subr.bf16.mxu0 0
      %1101 = vmatpush1.bf16.xpose.msra.mxu0 0
      %1102 = vmatprep.subr.bf16.mxu0 0
      %1103 = vmatpush1.bf16.xpose.msra.mxu0 0
      %1104 = vmatprep.subr.bf16.mxu0 0
      %1105 = vmatpush1.bf16.xpose.msra.mxu0 0
      %1106 = vmatprep.subr.bf16.mxu0 0
      %1107 = vmatpush1.bf16.xpose.msra.mxu0 0
      %1108 = vmatprep.subr.bf16.mxu0 0
      %1109 = vmatpush1.bf16.xpose.msra.mxu0 0
      %1110 = vmatprep.subr.bf16.mxu0 0
      %1111 = vmatpush1.bf16.xpose.msra.mxu0 0
      %1112 = vmatprep.mubr.bf16.mxu0 0
      %1113 = vmatmul.mubr.bf16.gmra.mrb[0].mxu0 %v1075
      %v1114 = vpop.f32.mrb[0].mxu0
      %v1115 = vadd.f32 0.0, %v1114
      %v1116 = vpop.f32.mrb[0].mxu0
      %v1117 = vpop.f32.mrb[0].mxu0
      %v1118 = vpop.f32.mrb[0].mxu0
      %1119 = vdwg.mxu0
      %v1120 = vsel %vm770, -1e+30, %v1115
      %v1121 = vsel %vm718, %v1120, -inf
      %1122 = vmax.xlane.f32.xlu0 %v1121
      %v1123 = vpop.xlane.xlu0 %1122
      %v1124 = vsub.f32 %v1120, %v1123
      %v1125 = vmul.f32 %v1124, 1.442695
      %v1126 = vpow.pop %v1125
      %v1127 = vsel %vm718, %v1126, 0.0
      %1128 = vadd.xlane.f32.xlu0 %v1127
      %v1129 = vpop.xlane.xlu0 %1128
      %v1130 = vrcp.pop %v1129
      %v1131 = vmul.f32 %v1126, %v1130
      %v1132 = vpack.c.bf16 %v1131, %v1131
      %1133 = vrot.lane.b32.xlu0 %v717, 72
      %v1134 = vpop.permute.xlu0 %1133
      %v1136 = vsel %vm718, %v1132, 0
      %v1139 = vsel %vm790, %v1134, 0
      %1141 = vmatprep.subr.bf16.mxu0 0
      %1142 = vmatpush1.bf16.msra.mxu0 %v1139
      %1143 = vmatprep.subr.bf16.mxu0 0
      %1144 = vmatpush1.bf16.msra.mxu0 0
      %1145 = vmatprep.subr.bf16.mxu0 0
      %1146 = vmatpush1.bf16.msra.mxu0 0
      %1147 = vmatprep.subr.bf16.mxu0 0
      %1148 = vmatpush1.bf16.msra.mxu0 0
      %1149 = vmatprep.subr.bf16.mxu0 0
      %1150 = vmatpush1.bf16.msra.mxu0 0
      %1151 = vmatprep.subr.bf16.mxu0 0
      %1152 = vmatpush1.bf16.msra.mxu0 0
      %1153 = vmatprep.subr.bf16.mxu0 0
      %1154 = vmatpush1.bf16.msra.mxu0 0
      %1155 = vmatprep.subr.bf16.mxu0 0
      %1156 = vmatpush1.bf16.msra.mxu0 0
      %1157 = vmatprep.subr.bf16.mxu0 0
      %1158 = vmatpush1.bf16.msra.mxu0 0
      %1159 = vmatprep.subr.bf16.mxu0 0
      %1160 = vmatpush1.bf16.msra.mxu0 0
      %1161 = vmatprep.subr.bf16.mxu0 0
      %1162 = vmatpush1.bf16.msra.mxu0 0
      %1163 = vmatprep.subr.bf16.mxu0 0
      %1164 = vmatpush1.bf16.msra.mxu0 0
      %1165 = vmatprep.subr.bf16.mxu0 0
      %1166 = vmatpush1.bf16.msra.mxu0 0
      %1167 = vmatprep.subr.bf16.mxu0 0
      %1168 = vmatpush1.bf16.msra.mxu0 0
      %1169 = vmatprep.subr.bf16.mxu0 0
      %1170 = vmatpush1.bf16.msra.mxu0 0
      %1171 = vmatprep.subr.bf16.mxu0 0
      %1172 = vmatpush1.bf16.msra.mxu0 0
      %1173 = vmatprep.mubr.bf16.mxu0 0
      %1174 = vmatmul.mubr.bf16.gmra.mrb[0].mxu0 %v1136
      %v1175 = vpop.f32.mrb[0].mxu0
      %v1176 = vadd.f32 0.0, %v1175
      %v1177 = vpop.f32.mrb[0].mxu0
      %v1178 = vpop.f32.mrb[0].mxu0
      %v1179 = vpop.f32.mrb[0].mxu0
      %1180 = vdwg.mxu0
      %1182 = vrot.lane.b32.xlu0 %v1176, 24
      %v1183 = vpop.permute.xlu0 %1182
      %vm1185 = vcmask 261312
      %1186 = vst.msk [vmem:[#allocation2] sm:$0xff] %vm1185, %v1183
      %v1187 = vld [vmem:[#allocation2] sm:$0xff]
      %v1188 = vpack.c.bf16 %v1187, %v1187
      %v1189 = vld [vmem:[%s7] sm:$0xf]
      %v1190 = vld [vmem:[%s7 + $0x4] sm:$0xf]
      %v1191 = vld [vmem:[%s7 + $0x8] sm:$0xf]
      %v1192 = vld [vmem:[%s7 + $0xc] sm:$0xf]
      %v1193 = vld [vmem:[%s8] sm:$0x1]
      %v1195 = vlaneseq
      %v1196 = vshrl.u32 %v1195, 7
      %v1197 = vsub.s32 0, %v1196
      %v1198 = vrot.slane %v1193, %v1197
      %v1204 = vunpack.c.l.b16 %v1189
      %v1205 = vunpack.c.l.b16 %v1190
      %v1206 = vunpack.c.l.b16 %v1191
      %v1207 = vunpack.c.l.b16 %v1192
      %v1208 = vpack.c.b16 %v1205, %v1204
      %v1209 = vpack.c.b16 %v1207, %v1206
      %v1213 = vsel %vm604, %v1188, 0
      %1215 = vmatprep.subr.bf16.mxu0 0
      %1216 = vmatpush1.bf16.msra.mxu0 %v1208
      %1217 = vmatprep.subr.bf16.mxu0 0
      %1218 = vmatpush1.bf16.msra.mxu0 %v1209
      %1219 = vmatprep.subr.bf16.mxu0 0
      %1220 = vmatpush1.bf16.msra.mxu0 0
      %1221 = vmatprep.subr.bf16.mxu0 0
      %1222 = vmatpush1.bf16.msra.mxu0 0
      %1223 = vmatprep.subr.bf16.mxu0 0
      %1224 = vmatpush1.bf16.msra.mxu0 0
      %1225 = vmatprep.subr.bf16.mxu0 0
      %1226 = vmatpush1.bf16.msra.mxu0 0
      %1227 = vmatprep.subr.bf16.mxu0 0
      %1228 = vmatpush1.bf16.msra.mxu0 0
      %1229 = vmatprep.subr.bf16.mxu0 0
      %1230 = vmatpush1.bf16.msra.mxu0 0
      %1231 = vmatprep.subr.bf16.mxu0 0
      %1232 = vmatpush1.bf16.msra.mxu0 0
      %1233 = vmatprep.subr.bf16.mxu0 0
      %1234 = vmatpush1.bf16.msra.mxu0 0
      %1235 = vmatprep.subr.bf16.mxu0 0
      %1236 = vmatpush1.bf16.msra.mxu0 0
      %1237 = vmatprep.subr.bf16.mxu0 0
      %1238 = vmatpush1.bf16.msra.mxu0 0
      %1239 = vmatprep.subr.bf16.mxu0 0
      %1240 = vmatpush1.bf16.msra.mxu0 0
      %1241 = vmatprep.subr.bf16.mxu0 0
      %1242 = vmatpush1.bf16.msra.mxu0 0
      %1243 = vmatprep.subr.bf16.mxu0 0
      %1244 = vmatpush1.bf16.msra.mxu0 0
      %1245 = vmatprep.subr.bf16.mxu0 0
      %1246 = vmatpush1.bf16.msra.mxu0 0
      %1247 = vmatprep.mubr.bf16.mxu0 0
      %1248 = vmatmul.mubr.bf16.gmra.mrb[0].mxu0 %v1213
      %v1249 = vpop.f32.mrb[0].mxu0
      %v1250 = vadd.f32 %v1198, %v1249
      %v1251 = vpop.f32.mrb[0].mxu0
      %v1252 = vpop.f32.mrb[0].mxu0
      %v1253 = vpop.f32.mrb[0].mxu0
      %1254 = vdwg.mxu0
      %v1255 = vadd.f32 %v1250, %v576
      %v1256 = vld [vmem:[%s9] sm:$0x1]
      %v1257 = vld [vmem:[%s10] sm:$0x1]
      %v1258 = vsel %vm604, %v1255, 0.0
      %1259 = vadd.xlane.f32.xlu0 %v1258
      %v1260 = vpop.xlane.xlu0 %1259
      %v1261 = vrcp.pop 32.0
      %v1262 = vmul.f32 %v1260, %v1261
      %v1263 = vsub.f32 %v1255, %v1262
      %v1264 = vmul.f32 %v1263, %v1263
      %v1265 = vsel %vm604, %v1264, 0.0
      %1266 = vadd.xlane.f32.xlu0 %v1265
      %v1267 = vpop.xlane.xlu0 %1266
      %v1268 = vmul.f32 %v1267, %v1261
      %v1269 = vadd.f32 %v1268, 1e-05
      %v1270 = vrsqrt.pop %v1269
      %v1271 = vmul.f32 %v1263, %v1270
      %v1273 = vlaneseq
      %v1274 = vshrl.u32 %v1273, 7
      %v1275 = vsub.s32 0, %v1274
      %v1276 = vrot.slane %v1256, %v1275
      %v1278 = vmul.f32 %v1271, %v1276
      %v1280 = vlaneseq
      %v1281 = vshrl.u32 %v1280, 7
      %v1282 = vsub.s32 0, %v1281
      %v1283 = vrot.slane %v1257, %v1282
      %v1285 = vadd.f32 %v1278, %v1283
      %v1286 = vpack.c.bf16 %v1285, %v1285
      %v1287 = vld [vmem:[%s11] sm:$0xf]
      %v1288 = vld [vmem:[%s11 + $0x4] sm:$0xf]
      %v1289 = vld [vmem:[%s11 + $0x8] sm:$0xf]
      %v1290 = vld [vmem:[%s11 + $0xc] sm:$0xf]
      %v1291 = vld [vmem:[%s12] sm:$0x1]
      %v1293 = vlaneseq
      %v1294 = vshrl.u32 %v1293, 7
      %v1295 = vsub.s32 0, %v1294
      %v1296 = vrot.slane %v1291, %v1295
      %v1302 = vunpack.c.l.b16 %v1287
      %v1303 = vunpack.c.l.b16 %v1288
      %v1304 = vunpack.c.l.b16 %v1289
      %v1305 = vunpack.c.l.b16 %v1290
      %v1306 = vpack.c.b16 %v1303, %v1302
      %v1307 = vpack.c.b16 %v1305, %v1304
      %v1311 = vsel %vm604, %v1286, 0
      %1313 = vmatprep.subr.bf16.mxu0 0
      %1314 = vmatpush1.bf16.msra.mxu0 %v1306
      %1315 = vmatprep.subr.bf16.mxu0 0
      %1316 = vmatpush1.bf16.msra.mxu0 %v1307
      %1317 = vmatprep.subr.bf16.mxu0 0
      %1318 = vmatpush1.bf16.msra.mxu0 0
      %1319 = vmatprep.subr.bf16.mxu0 0
      %1320 = vmatpush1.bf16.msra.mxu0 0
      %1321 = vmatprep.subr.bf16.mxu0 0
      %1322 = vmatpush1.bf16.msra.mxu0 0
      %1323 = vmatprep.subr.bf16.mxu0 0
      %1324 = vmatpush1.bf16.msra.mxu0 0
      %1325 = vmatprep.subr.bf16.mxu0 0
      %1326 = vmatpush1.bf16.msra.mxu0 0
      %1327 = vmatprep.subr.bf16.mxu0 0
      %1328 = vmatpush1.bf16.msra.mxu0 0
      %1329 = vmatprep.subr.bf16.mxu0 0
      %1330 = vmatpush1.bf16.msra.mxu0 0
      %1331 = vmatprep.subr.bf16.mxu0 0
      %1332 = vmatpush1.bf16.msra.mxu0 0
      %1333 = vmatprep.subr.bf16.mxu0 0
      %1334 = vmatpush1.bf16.msra.mxu0 0
      %1335 = vmatprep.subr.bf16.mxu0 0
      %1336 = vmatpush1.bf16.msra.mxu0 0
      %1337 = vmatprep.subr.bf16.mxu0 0
      %1338 = vmatpush1.bf16.msra.mxu0 0
      %1339 = vmatprep.subr.bf16.mxu0 0
      %1340 = vmatpush1.bf16.msra.mxu0 0
      %1341 = vmatprep.subr.bf16.mxu0 0
      %1342 = vmatpush1.bf16.msra.mxu0 0
      %1343 = vmatprep.subr.bf16.mxu0 0
      %1344 = vmatpush1.bf16.msra.mxu0 0
      %1345 = vmatprep.mubr.bf16.mxu0 0
      %1346 = vmatmul.mubr.bf16.gmra.mrb[0].mxu0 %v1311
      %v1347 = vpop.f32.mrb[0].mxu0
      %v1348 = vadd.f32 %v1296, %v1347
      %v1349 = vpop.f32.mrb[0].mxu0
      %v1350 = vpop.f32.mrb[0].mxu0
      %v1351 = vpop.f32.mrb[0].mxu0
      %1352 = vdwg.mxu0
      %v1353 = vmax.f32 %v1348, 0.0
      %v1354 = vpack.c.bf16 %v1353, %v1353
      %v1355 = vld [vmem:[%s13] sm:$0xf]
      %v1356 = vld [vmem:[%s13 + $0x4] sm:$0xf]
      %v1357 = vld [vmem:[%s13 + $0x8] sm:$0xf]
      %v1358 = vld [vmem:[%s13 + $0xc] sm:$0xf]
      %v1359 = vld [vmem:[%s14] sm:$0x1]
      %v1361 = vlaneseq
      %v1362 = vshrl.u32 %v1361, 7
      %v1363 = vsub.s32 0, %v1362
      %v1364 = vrot.slane %v1359, %v1363
      %v1370 = vunpack.c.l.b16 %v1355
      %v1371 = vunpack.c.l.b16 %v1356
      %v1372 = vunpack.c.l.b16 %v1357
      %v1373 = vunpack.c.l.b16 %v1358
      %v1374 = vpack.c.b16 %v1371, %v1370
      %v1375 = vpack.c.b16 %v1373, %v1372
      %v1379 = vsel %vm604, %v1354, 0
      %1381 = vmatprep.subr.bf16.mxu0 0
      %1382 = vmatpush1.bf16.msra.mxu0 %v1374
      %1383 = vmatprep.subr.bf16.mxu0 0
      %1384 = vmatpush1.bf16.msra.mxu0 %v1375
      %1385 = vmatprep.subr.bf16.mxu0 0
      %1386 = vmatpush1.bf16.msra.mxu0 0
      %1387 = vmatprep.subr.bf16.mxu0 0
      %1388 = vmatpush1.bf16.msra.mxu0 0
      %1389 = vmatprep.subr.bf16.mxu0 0
      %1390 = vmatpush1.bf16.msra.mxu0 0
      %1391 = vmatprep.subr.bf16.mxu0 0
      %1392 = vmatpush1.bf16.msra.mxu0 0
      %1393 = vmatprep.subr.bf16.mxu0 0
      %1394 = vmatpush1.bf16.msra.mxu0 0
      %1395 = vmatprep.subr.bf16.mxu0 0
      %1396 = vmatpush1.bf16.msra.mxu0 0
      %1397 = vmatprep.subr.bf16.mxu0 0
      %1398 = vmatpush1.bf16.msra.mxu0 0
      %1399 = vmatprep.subr.bf16.mxu0 0
      %1400 = vmatpush1.bf16.msra.mxu0 0
      %1401 = vmatprep.subr.bf16.mxu0 0
      %1402 = vmatpush1.bf16.msra.mxu0 0
      %1403 = vmatprep.subr.bf16.mxu0 0
      %1404 = vmatpush1.bf16.msra.mxu0 0
      %1405 = vmatprep.subr.bf16.mxu0 0
      %1406 = vmatpush1.bf16.msra.mxu0 0
      %1407 = vmatprep.subr.bf16.mxu0 0
      %1408 = vmatpush1.bf16.msra.mxu0 0
      %1409 = vmatprep.subr.bf16.mxu0 0
      %1410 = vmatpush1.bf16.msra.mxu0 0
      %1411 = vmatprep.subr.bf16.mxu0 0
      %1412 = vmatpush1.bf16.msra.mxu0 0
      %1413 = vmatprep.mubr.bf16.mxu0 0
      %1414 = vmatmul.mubr.bf16.gmra.mrb[0].mxu0 %v1379
      %v1415 = vpop.f32.mrb[0].mxu0
      %v1416 = vadd.f32 %v1364, %v1415
      %v1417 = vpop.f32.mrb[0].mxu0
      %v1418 = vpop.f32.mrb[0].mxu0
      %v1419 = vpop.f32.mrb[0].mxu0
      %1420 = vdwg.mxu0
      %v1421 = vadd.f32 %v1416, %v1285
      %v1422 = vld [vmem:[%s15] sm:$0x1]
      %v1423 = vld [vmem:[%s16] sm:$0x1]
      %v1424 = vsel %vm604, %v1421, 0.0
      %1425 = vadd.xlane.f32.xlu0 %v1424
      %v1426 = vpop.xlane.xlu0 %1425
      %v1427 = vmul.f32 %v1426, %v1261
      %v1428 = vsub.f32 %v1421, %v1427
      %v1429 = vmul.f32 %v1428, %v1428
      %v1430 = vsel %vm604, %v1429, 0.0
      %1431 = vadd.xlane.f32.xlu0 %v1430
      %v1432 = vpop.xlane.xlu0 %1431
      %v1433 = vmul.f32 %v1432, %v1261
      %v1434 = vadd.f32 %v1433, 1e-05
      %v1435 = vrsqrt.pop %v1434
      %v1436 = vmul.f32 %v1428, %v1435
      %v1438 = vlaneseq
      %v1439 = vshrl.u32 %v1438, 7
      %v1440 = vsub.s32 0, %v1439
      %v1441 = vrot.slane %v1422, %v1440
      %v1443 = vmul.f32 %v1436, %v1441
      %v1445 = vlaneseq
      %v1446 = vshrl.u32 %v1445, 7
      %v1447 = vsub.s32 0, %v1446
      %v1448 = vrot.slane %v1423, %v1447
      %v1450 = vadd.f32 %v1443, %v1448
      %1451 = vst.msk [vmem:[%s574] sm:$0xff] %vm604, %v1450
      %p1452 = scmp.lt.s32.totalorder %s28, 1
      %s1453 = scalar_select %p1452, %s28, 1
      %s1454 = smul.addr %s1453, 8
      %s1455 = scalar_lea.vmem %s17, %s1454
      // Predicated region
      $region89: #{inv_cog_forward.6} parent=87 // pred_check
        %p1456 = pneg %p418
      $region90: #{inv_cog_forward.6} parent=87 // pred_check_branch
        %1458 = sbr.rel (%p1456) target = $region92
      $region91: #{inv_cog_forward.6} parent=87 // pred_region
        _
      $region92: #{inv_cog_forward.6} parent=87 // pred_fallthru
        _
    $region88: #{inv_cog_forward.6} parent=5 // pred_fallthru
      _
    %p1459 = scmp.le.s32.totalorder 2, %s23
    // Predicated region
    $region93: #{inv_cog_forward.6} parent=5 // pred_check
      %p1460 = pneg %p1459
    $region94: #{inv_cog_forward.6} parent=5 // pred_check_branch
      %1462 = sbr.rel (%p1460) target = $region96
    $region95: #{inv_cog_forward.6} parent=5 // pred_region
      %s1463 = ssub.s32 %s23, 2
      // Predicated region
      $region97: #{inv_cog_forward.6} parent=95 // pred_check
        %p1464 = pneg %p424
      $region98: #{inv_cog_forward.6} parent=95 // pred_check_branch
        %1466 = sbr.rel (%p1464) target = $region100
      $region99: #{inv_cog_forward.6} parent=95 // pred_region
        %p1467 = scmp.lt.s32.totalorder %s29, 1
        %s1468 = scalar_select %p1467, %s29, 1
        %s1469 = smul.addr %s1468, 8
        %s1470 = scalar_lea.vmem %s17, %s1469
      $region100: #{inv_cog_forward.6} parent=95 // pred_fallthru
        _
    $region96: #{inv_cog_forward.6} parent=5 // pred_fallthru
      _
  $region6: #{inv_cog_forward.6} parent=0 // loop_footer
    %s27 = sadd.s32 1, %s23
  $region7: #{inv_cog_forward.6} parent=0 // loop_footer_branch
    %22 = sbr.rel target = $region3
  $region8: #{inv_cog_forward.6} parent=0 // loop_exit
    _

// kernel: inv_cog_forward.8
$region0: #{inv_cog_forward.8}
  #allocation0 [shape = 'u32[]', space=smem, size = 0x4, offset = 0x4, fixed_abs, tag = 'smem constant byte address 0x4 - core index']
  #allocation1 [shape = 'u32[144,128]{1,0:T(1,128)}', space=vmem, size = 0x12000, scoped, tag = 'internal scratch']
  #allocation2 [shape = 'f32[1,64]{1,0:T(1,128)}', space=vmem, size = 0x200, scoped, tag = 'scratch operand']
  %s0 = inlined_call_operand.vmem [shape: f32[2,1,64], index: 0, kind: input, shape index: {}]
  %s1 = inlined_call_operand.vmem [shape: f32[2,8,64], index: 1, kind: input, shape index: {}]
  %s2 = inlined_call_operand.vmem [shape: f32[2,1,8], index: 2, kind: input, shape index: {}]
  %s3 = inlined_call_operand.vmem [shape: bf16[64,64], index: 3, kind: input, shape index: {}]
  %s4 = inlined_call_operand.vmem [shape: f32[1,64], index: 4, kind: input, shape index: {}]
  %s5 = inlined_call_operand.vmem [shape: bf16[64,128], index: 5, kind: input, shape index: {}]
  %s6 = inlined_call_operand.vmem [shape: f32[1,128], index: 6, kind: input, shape index: {}]
  %s7 = inlined_call_operand.vmem [shape: bf16[64,64], index: 7, kind: input, shape index: {}]
  %s8 = inlined_call_operand.vmem [shape: f32[1,64], index: 8, kind: input, shape index: {}]
  %s9 = inlined_call_operand.vmem [shape: f32[1,64], index: 9, kind: input, shape index: {}]
  %s10 = inlined_call_operand.vmem [shape: f32[1,64], index: 10, kind: input, shape index: {}]
  %s11 = inlined_call_operand.vmem [shape: bf16[64,64], index: 11, kind: input, shape index: {}]
  %s12 = inlined_call_operand.vmem [shape: f32[1,64], index: 12, kind: input, shape index: {}]
  %s13 = inlined_call_operand.vmem [shape: bf16[64,64], index: 13, kind: input, shape index: {}]
  %s14 = inlined_call_operand.vmem [shape: f32[1,64], index: 14, kind: input, shape index: {}]
  %s15 = inlined_call_operand.vmem [shape: f32[1,64], index: 15, kind: input, shape index: {}]
  %s16 = inlined_call_operand.vmem [shape: f32[1,64], index: 16, kind: input, shape index: {}]
  %s17 = inlined_call_operand.vmem [shape: f32[2,1,64], index: 17, kind: output, shape index: {}]
  %s18 = sld [smem:[#allocation0]]
  $region101: #{inv_cog_forward.8} parent=0
    _
  %s20 = ssub.s32 1, %s18
  %s21 = scalar_select 0, %s20, %s18
  loop: start=0, step=1, limit=4
  $region2: #{inv_cog_forward.8} parent=0 // loop_pre_header
    _
  $region3: #{inv_cog_forward.8} parent=0 // loop_header
    %s23 = sphi 0, %s27
    %p24 = scmp.ge.s32.totalorder %s23, 4
    %s33 = sphi 0, %s35
    %s36 = sphi 0, %s33
    %s37 = sphi 0, %s36
    %s53 = sphi 0, %s37
    %s59 = sphi 0, %s61
    %s62 = sphi 0, %s59
    %s63 = sphi 0, %s62
    %s79 = sphi 0, %s63
    %s85 = sphi 0, %s87
    %s88 = sphi 0, %s85
    %s89 = sphi 0, %s88
    %s105 = sphi 0, %s89
    %s109 = sphi 0, %s109
    %s111 = sphi 0, %s109
    %s112 = sphi 0, %s111
    %s126 = sphi 0, %s112
    %s130 = sphi 0, %s130
    %s132 = sphi 0, %s130
    %s133 = sphi 0, %s132
    %s147 = sphi 0, %s133
    %s151 = sphi 0, %s151
    %s153 = sphi 0, %s151
    %s154 = sphi 0, %s153
    %s168 = sphi 0, %s154
    %s172 = sphi 0, %s172
    %s174 = sphi 0, %s172
    %s175 = sphi 0, %s174
    %s189 = sphi 0, %s175
    %s193 = sphi 0, %s193
    %s195 = sphi 0, %s193
    %s196 = sphi 0, %s195
    %s210 = sphi 0, %s196
    %s214 = sphi 0, %s214
    %s216 = sphi 0, %s214
    %s217 = sphi 0, %s216
    %s231 = sphi 0, %s217
    %s235 = sphi 0, %s235
    %s237 = sphi 0, %s235
    %s238 = sphi 0, %s237
    %s252 = sphi 0, %s238
    %s256 = sphi 0, %s256
    %s258 = sphi 0, %s256
    %s259 = sphi 0, %s258
    %s273 = sphi 0, %s259
    %s277 = sphi 0, %s277
    %s279 = sphi 0, %s277
    %s280 = sphi 0, %s279
    %s294 = sphi 0, %s280
    %s298 = sphi 0, %s298
    %s300 = sphi 0, %s298
    %s301 = sphi 0, %s300
    %s315 = sphi 0, %s301
    %s319 = sphi 0, %s319
    %s321 = sphi 0, %s319
    %s322 = sphi 0, %s321
    %s336 = sphi 0, %s322
    %s340 = sphi 0, %s340
    %s342 = sphi 0, %s340
    %s343 = sphi 0, %s342
    %s357 = sphi 0, %s343
    %s361 = sphi 0, %s361
    %s363 = sphi 0, %s361
    %s364 = sphi 0, %s363
    %s378 = sphi 0, %s364
    %s382 = sphi 0, %s382
    %s384 = sphi 0, %s382
    %s385 = sphi 0, %s384
    %s399 = sphi 0, %s385
    %s405 = sphi 0, %s407
    %s408 = sphi 0, %s405
    %s409 = sphi 0, %s408
    %s425 = sphi 0, %s409
  $region4: #{inv_cog_forward.8} parent=0 // loop_header_branch
    %26 = sbr.rel (%p24) target = $region8
  $region5: #{inv_cog_forward.8} parent=0 // loop_body
    %s28 = ssub.s32 %s23, 1
    %s29 = ssub.s32 %s23, 2
    %s30 = sadd.s32 %s23, 1
    %s31 = ssub.s32 %s23, %s30
    %p32 = scmp.eq.s32.totalorder %s31, 0
    %s34 = sadd.s32 %s33, 1
    %s35 = scalar_select %p32, %s33, %s34
    %p38 = pneg %p32
    %p39 = scmp.eq.s32.totalorder %s23, 1
    %p40 = por %p38, %p39
    %p41 = scmp.ne.s32.totalorder %s33, %s36
    %p42 = scmp.eq.s32.totalorder %s23, 0
    %p43 = por %p41, %p42
    %p44 = scmp.ne.s32.totalorder %s33, %s36
    %p45 = scmp.eq.s32.totalorder %s28, 1
    %p46 = por %p44, %p45
    %p47 = scmp.ne.s32.totalorder %s36, %s37
    %p48 = scmp.eq.s32.totalorder %s28, 0
    %p49 = por %p47, %p48
    %p50 = scmp.ne.s32.totalorder %s36, %s37
    %p51 = scmp.eq.s32.totalorder %s29, 1
    %p52 = por %p50, %p51
    %p54 = scmp.ne.s32.totalorder %s37, %s53
    %p55 = scmp.eq.s32.totalorder %s29, 0
    %p56 = por %p54, %p55
    %s57 = ssub.s32 %s23, %s30
    %p58 = scmp.eq.s32.totalorder %s57, 0
    %s60 = sadd.s32 %s59, 1
    %s61 = scalar_select %p58, %s59, %s60
    %p64 = pneg %p58
    %p65 = scmp.eq.s32.totalorder %s23, 1
    %p66 = por %p64, %p65
    %p67 = scmp.ne.s32.totalorder %s59, %s62
    %p68 = scmp.eq.s32.totalorder %s23, 0
    %p69 = por %p67, %p68
    %p70 = scmp.ne.s32.totalorder %s59, %s62
    %p71 = scmp.eq.s32.totalorder %s28, 1
    %p72 = por %p70, %p71
    %p73 = scmp.ne.s32.totalorder %s62, %s63
    %p74 = scmp.eq.s32.totalorder %s28, 0
    %p75 = por %p73, %p74
    %p76 = scmp.ne.s32.totalorder %s62, %s63
    %p77 = scmp.eq.s32.totalorder %s29, 1
    %p78 = por %p76, %p77
    %p80 = scmp.ne.s32.totalorder %s63, %s79
    %p81 = scmp.eq.s32.totalorder %s29, 0
    %p82 = por %p80, %p81
    %s83 = ssub.s32 %s23, %s30
    %p84 = scmp.eq.s32.totalorder %s83, 0
    %s86 = sadd.s32 %s85, 1
    %s87 = scalar_select %p84, %s85, %s86
    %p90 = pneg %p84
    %p91 = scmp.eq.s32.totalorder %s23, 1
    %p92 = por %p90, %p91
    %p93 = scmp.ne.s32.totalorder %s85, %s88
    %p94 = scmp.eq.s32.totalorder %s23, 0
    %p95 = por %p93, %p94
    %p96 = scmp.ne.s32.totalorder %s85, %s88
    %p97 = scmp.eq.s32.totalorder %s28, 1
    %p98 = por %p96, %p97
    %p99 = scmp.ne.s32.totalorder %s88, %s89
    %p100 = scmp.eq.s32.totalorder %s28, 0
    %p101 = por %p99, %p100
    %p102 = scmp.ne.s32.totalorder %s88, %s89
    %p103 = scmp.eq.s32.totalorder %s29, 1
    %p104 = por %p102, %p103
    %p106 = scmp.ne.s32.totalorder %s89, %s105
    %p107 = scmp.eq.s32.totalorder %s29, 0
    %p108 = por %p106, %p107
    %s110 = sadd.s32 %s109, 1
    %p113 = scmp.eq.s32.totalorder %s23, 1
    %p114 = scmp.ne.s32.totalorder %s109, %s111
    %p115 = scmp.eq.s32.totalorder %s23, 0
    %p116 = por %p114, %p115
    %p117 = scmp.ne.s32.totalorder %s109, %s111
    %p118 = scmp.eq.s32.totalorder %s28, 1
    %p119 = por %p117, %p118
    %p120 = scmp.ne.s32.totalorder %s111, %s112
    %p121 = scmp.eq.s32.totalorder %s28, 0
    %p122 = por %p120, %p121
    %p123 = scmp.ne.s32.totalorder %s111, %s112
    %p124 = scmp.eq.s32.totalorder %s29, 1
    %p125 = por %p123, %p124
    %p127 = scmp.ne.s32.totalorder %s112, %s126
    %p128 = scmp.eq.s32.totalorder %s29, 0
    %p129 = por %p127, %p128
    %s131 = sadd.s32 %s130, 1
    %p134 = scmp.eq.s32.totalorder %s23, 1
    %p135 = scmp.ne.s32.totalorder %s130, %s132
    %p136 = scmp.eq.s32.totalorder %s23, 0
    %p137 = por %p135, %p136
    %p138 = scmp.ne.s32.totalorder %s130, %s132
    %p139 = scmp.eq.s32.totalorder %s28, 1
    %p140 = por %p138, %p139
    %p141 = scmp.ne.s32.totalorder %s132, %s133
    %p142 = scmp.eq.s32.totalorder %s28, 0
    %p143 = por %p141, %p142
    %p144 = scmp.ne.s32.totalorder %s132, %s133
    %p145 = scmp.eq.s32.totalorder %s29, 1
    %p146 = por %p144, %p145
    %p148 = scmp.ne.s32.totalorder %s133, %s147
    %p149 = scmp.eq.s32.totalorder %s29, 0
    %p150 = por %p148, %p149
    %s152 = sadd.s32 %s151, 1
    %p155 = scmp.eq.s32.totalorder %s23, 1
    %p156 = scmp.ne.s32.totalorder %s151, %s153
    %p157 = scmp.eq.s32.totalorder %s23, 0
    %p158 = por %p156, %p157
    %p159 = scmp.ne.s32.totalorder %s151, %s153
    %p160 = scmp.eq.s32.totalorder %s28, 1
    %p161 = por %p159, %p160
    %p162 = scmp.ne.s32.totalorder %s153, %s154
    %p163 = scmp.eq.s32.totalorder %s28, 0
    %p164 = por %p162, %p163
    %p165 = scmp.ne.s32.totalorder %s153, %s154
    %p166 = scmp.eq.s32.totalorder %s29, 1
    %p167 = por %p165, %p166
    %p169 = scmp.ne.s32.totalorder %s154, %s168
    %p170 = scmp.eq.s32.totalorder %s29, 0
    %p171 = por %p169, %p170
    %s173 = sadd.s32 %s172, 1
    %p176 = scmp.eq.s32.totalorder %s23, 1
    %p177 = scmp.ne.s32.totalorder %s172, %s174
    %p178 = scmp.eq.s32.totalorder %s23, 0
    %p179 = por %p177, %p178
    %p180 = scmp.ne.s32.totalorder %s172, %s174
    %p181 = scmp.eq.s32.totalorder %s28, 1
    %p182 = por %p180, %p181
    %p183 = scmp.ne.s32.totalorder %s174, %s175
    %p184 = scmp.eq.s32.totalorder %s28, 0
    %p185 = por %p183, %p184
    %p186 = scmp.ne.s32.totalorder %s174, %s175
    %p187 = scmp.eq.s32.totalorder %s29, 1
    %p188 = por %p186, %p187
    %p190 = scmp.ne.s32.totalorder %s175, %s189
    %p191 = scmp.eq.s32.totalorder %s29, 0
    %p192 = por %p190, %p191
    %s194 = sadd.s32 %s193, 1
    %p197 = scmp.eq.s32.totalorder %s23, 1
    %p198 = scmp.ne.s32.totalorder %s193, %s195
    %p199 = scmp.eq.s32.totalorder %s23, 0
    %p200 = por %p198, %p199
    %p201 = scmp.ne.s32.totalorder %s193, %s195
    %p202 = scmp.eq.s32.totalorder %s28, 1
    %p203 = por %p201, %p202
    %p204 = scmp.ne.s32.totalorder %s195, %s196
    %p205 = scmp.eq.s32.totalorder %s28, 0
    %p206 = por %p204, %p205
    %p207 = scmp.ne.s32.totalorder %s195, %s196
    %p208 = scmp.eq.s32.totalorder %s29, 1
    %p209 = por %p207, %p208
    %p211 = scmp.ne.s32.totalorder %s196, %s210
    %p212 = scmp.eq.s32.totalorder %s29, 0
    %p213 = por %p211, %p212
    %s215 = sadd.s32 %s214, 1
    %p218 = scmp.eq.s32.totalorder %s23, 1
    %p219 = scmp.ne.s32.totalorder %s214, %s216
    %p220 = scmp.eq.s32.totalorder %s23, 0
    %p221 = por %p219, %p220
    %p222 = scmp.ne.s32.totalorder %s214, %s216
    %p223 = scmp.eq.s32.totalorder %s28, 1
    %p224 = por %p222, %p223
    %p225 = scmp.ne.s32.totalorder %s216, %s217
    %p226 = scmp.eq.s32.totalorder %s28, 0
    %p227 = por %p225, %p226
    %p228 = scmp.ne.s32.totalorder %s216, %s217
    %p229 = scmp.eq.s32.totalorder %s29, 1
    %p230 = por %p228, %p229
    %p232 = scmp.ne.s32.totalorder %s217, %s231
    %p233 = scmp.eq.s32.totalorder %s29, 0
    %p234 = por %p232, %p233
    %s236 = sadd.s32 %s235, 1
    %p239 = scmp.eq.s32.totalorder %s23, 1
    %p240 = scmp.ne.s32.totalorder %s235, %s237
    %p241 = scmp.eq.s32.totalorder %s23, 0
    %p242 = por %p240, %p241
    %p243 = scmp.ne.s32.totalorder %s235, %s237
    %p244 = scmp.eq.s32.totalorder %s28, 1
    %p245 = por %p243, %p244
    %p246 = scmp.ne.s32.totalorder %s237, %s238
    %p247 = scmp.eq.s32.totalorder %s28, 0
    %p248 = por %p246, %p247
    %p249 = scmp.ne.s32.totalorder %s237, %s238
    %p250 = scmp.eq.s32.totalorder %s29, 1
    %p251 = por %p249, %p250
    %p253 = scmp.ne.s32.totalorder %s238, %s252
    %p254 = scmp.eq.s32.totalorder %s29, 0
    %p255 = por %p253, %p254
    %s257 = sadd.s32 %s256, 1
    %p260 = scmp.eq.s32.totalorder %s23, 1
    %p261 = scmp.ne.s32.totalorder %s256, %s258
    %p262 = scmp.eq.s32.totalorder %s23, 0
    %p263 = por %p261, %p262
    %p264 = scmp.ne.s32.totalorder %s256, %s258
    %p265 = scmp.eq.s32.totalorder %s28, 1
    %p266 = por %p264, %p265
    %p267 = scmp.ne.s32.totalorder %s258, %s259
    %p268 = scmp.eq.s32.totalorder %s28, 0
    %p269 = por %p267, %p268
    %p270 = scmp.ne.s32.totalorder %s258, %s259
    %p271 = scmp.eq.s32.totalorder %s29, 1
    %p272 = por %p270, %p271
    %p274 = scmp.ne.s32.totalorder %s259, %s273
    %p275 = scmp.eq.s32.totalorder %s29, 0
    %p276 = por %p274, %p275
    %s278 = sadd.s32 %s277, 1
    %p281 = scmp.eq.s32.totalorder %s23, 1
    %p282 = scmp.ne.s32.totalorder %s277, %s279
    %p283 = scmp.eq.s32.totalorder %s23, 0
    %p284 = por %p282, %p283
    %p285 = scmp.ne.s32.totalorder %s277, %s279
    %p286 = scmp.eq.s32.totalorder %s28, 1
    %p287 = por %p285, %p286
    %p288 = scmp.ne.s32.totalorder %s279, %s280
    %p289 = scmp.eq.s32.totalorder %s28, 0
    %p290 = por %p288, %p289
    %p291 = scmp.ne.s32.totalorder %s279, %s280
    %p292 = scmp.eq.s32.totalorder %s29, 1
    %p293 = por %p291, %p292
    %p295 = scmp.ne.s32.totalorder %s280, %s294
    %p296 = scmp.eq.s32.totalorder %s29, 0
    %p297 = por %p295, %p296
    %s299 = sadd.s32 %s298, 1
    %p302 = scmp.eq.s32.totalorder %s23, 1
    %p303 = scmp.ne.s32.totalorder %s298, %s300
    %p304 = scmp.eq.s32.totalorder %s23, 0
    %p305 = por %p303, %p304
    %p306 = scmp.ne.s32.totalorder %s298, %s300
    %p307 = scmp.eq.s32.totalorder %s28, 1
    %p308 = por %p306, %p307
    %p309 = scmp.ne.s32.totalorder %s300, %s301
    %p310 = scmp.eq.s32.totalorder %s28, 0
    %p311 = por %p309, %p310
    %p312 = scmp.ne.s32.totalorder %s300, %s301
    %p313 = scmp.eq.s32.totalorder %s29, 1
    %p314 = por %p312, %p313
    %p316 = scmp.ne.s32.totalorder %s301, %s315
    %p317 = scmp.eq.s32.totalorder %s29, 0
    %p318 = por %p316, %p317
    %s320 = sadd.s32 %s319, 1
    %p323 = scmp.eq.s32.totalorder %s23, 1
    %p324 = scmp.ne.s32.totalorder %s319, %s321
    %p325 = scmp.eq.s32.totalorder %s23, 0
    %p326 = por %p324, %p325
    %p327 = scmp.ne.s32.totalorder %s319, %s321
    %p328 = scmp.eq.s32.totalorder %s28, 1
    %p329 = por %p327, %p328
    %p330 = scmp.ne.s32.totalorder %s321, %s322
    %p331 = scmp.eq.s32.totalorder %s28, 0
    %p332 = por %p330, %p331
    %p333 = scmp.ne.s32.totalorder %s321, %s322
    %p334 = scmp.eq.s32.totalorder %s29, 1
    %p335 = por %p333, %p334
    %p337 = scmp.ne.s32.totalorder %s322, %s336
    %p338 = scmp.eq.s32.totalorder %s29, 0
    %p339 = por %p337, %p338
    %s341 = sadd.s32 %s340, 1
    %p344 = scmp.eq.s32.totalorder %s23, 1
    %p345 = scmp.ne.s32.totalorder %s340, %s342
    %p346 = scmp.eq.s32.totalorder %s23, 0
    %p347 = por %p345, %p346
    %p348 = scmp.ne.s32.totalorder %s340, %s342
    %p349 = scmp.eq.s32.totalorder %s28, 1
    %p350 = por %p348, %p349
    %p351 = scmp.ne.s32.totalorder %s342, %s343
    %p352 = scmp.eq.s32.totalorder %s28, 0
    %p353 = por %p351, %p352
    %p354 = scmp.ne.s32.totalorder %s342, %s343
    %p355 = scmp.eq.s32.totalorder %s29, 1
    %p356 = por %p354, %p355
    %p358 = scmp.ne.s32.totalorder %s343, %s357
    %p359 = scmp.eq.s32.totalorder %s29, 0
    %p360 = por %p358, %p359
    %s362 = sadd.s32 %s361, 1
    %p365 = scmp.eq.s32.totalorder %s23, 1
    %p366 = scmp.ne.s32.totalorder %s361, %s363
    %p367 = scmp.eq.s32.totalorder %s23, 0
    %p368 = por %p366, %p367
    %p369 = scmp.ne.s32.totalorder %s361, %s363
    %p370 = scmp.eq.s32.totalorder %s28, 1
    %p371 = por %p369, %p370
    %p372 = scmp.ne.s32.totalorder %s363, %s364
    %p373 = scmp.eq.s32.totalorder %s28, 0
    %p374 = por %p372, %p373
    %p375 = scmp.ne.s32.totalorder %s363, %s364
    %p376 = scmp.eq.s32.totalorder %s29, 1
    %p377 = por %p375, %p376
    %p379 = scmp.ne.s32.totalorder %s364, %s378
    %p380 = scmp.eq.s32.totalorder %s29, 0
    %p381 = por %p379, %p380
    %s383 = sadd.s32 %s382, 1
    %p386 = scmp.eq.s32.totalorder %s23, 1
    %p387 = scmp.ne.s32.totalorder %s382, %s384
    %p388 = scmp.eq.s32.totalorder %s23, 0
    %p389 = por %p387, %p388
    %p390 = scmp.ne.s32.totalorder %s382, %s384
    %p391 = scmp.eq.s32.totalorder %s28, 1
    %p392 = por %p390, %p391
    %p393 = scmp.ne.s32.totalorder %s384, %s385
    %p394 = scmp.eq.s32.totalorder %s28, 0
    %p395 = por %p393, %p394
    %p396 = scmp.ne.s32.totalorder %s384, %s385
    %p397 = scmp.eq.s32.totalorder %s29, 1
    %p398 = por %p396, %p397
    %p400 = scmp.ne.s32.totalorder %s385, %s399
    %p401 = scmp.eq.s32.totalorder %s29, 0
    %p402 = por %p400, %p401
    %s403 = ssub.s32 %s23, %s30
    %p404 = scmp.eq.s32.totalorder %s403, 0
    %s406 = sadd.s32 %s405, 1
    %s407 = scalar_select %p404, %s405, %s406
    %p410 = pneg %p404
    %p411 = scmp.eq.s32.totalorder %s23, 1
    %p412 = por %p410, %p411
    %p413 = scmp.ne.s32.totalorder %s405, %s408
    %p414 = scmp.eq.s32.totalorder %s23, 0
    %p415 = por %p413, %p414
    %p416 = scmp.ne.s32.totalorder %s405, %s408
    %p417 = scmp.eq.s32.totalorder %s28, 1
    %p418 = por %p416, %p417
    %p419 = scmp.ne.s32.totalorder %s408, %s409
    %p420 = scmp.eq.s32.totalorder %s28, 0
    %p421 = por %p419, %p420
    %p422 = scmp.ne.s32.totalorder %s408, %s409
    %p423 = scmp.eq.s32.totalorder %s29, 1
    %p424 = por %p422, %p423
    %p426 = scmp.ne.s32.totalorder %s409, %s425
    %p427 = scmp.eq.s32.totalorder %s29, 0
    %p428 = por %p426, %p427
    %p429 = scmp.le.s32.totalorder 1, %s23
    %p430 = scmp.lt.s32.totalorder %s23, 3
    %p431 = pnand %p429, %p430
    %p432 = pneg %p431
    // Predicated region
    $region9: #{inv_cog_forward.8} parent=5 // pred_check
      _
    $region10: #{inv_cog_forward.8} parent=5 // pred_check_branch
      %434 = sbr.rel (%p431) target = $region12
    $region11: #{inv_cog_forward.8} parent=5 // pred_region
      %s435 = ssub.s32 %s23, 1
      // Predicated region
      $region13: #{inv_cog_forward.8} parent=11 // pred_check
        %p436 = pneg %p122
      $region14: #{inv_cog_forward.8} parent=11 // pred_check_branch
        %438 = sbr.rel (%p436) target = $region16
      $region15: #{inv_cog_forward.8} parent=11 // pred_region
        _
      $region16: #{inv_cog_forward.8} parent=11 // pred_fallthru
        _
      // Predicated region
      $region17: #{inv_cog_forward.8} parent=11 // pred_check
        %p439 = pneg %p143
      $region18: #{inv_cog_forward.8} parent=11 // pred_check_branch
        %441 = sbr.rel (%p439) target = $region20
      $region19: #{inv_cog_forward.8} parent=11 // pred_region
        _
      $region20: #{inv_cog_forward.8} parent=11 // pred_fallthru
        _
      // Predicated region
      $region21: #{inv_cog_forward.8} parent=11 // pred_check
        %p442 = pneg %p164
      $region22: #{inv_cog_forward.8} parent=11 // pred_check_branch
        %444 = sbr.rel (%p442) target = $region24
      $region23: #{inv_cog_forward.8} parent=11 // pred_region
        _
      $region24: #{inv_cog_forward.8} parent=11 // pred_fallthru
        _
      // Predicated region
      $region25: #{inv_cog_forward.8} parent=11 // pred_check
        %p445 = pneg %p185
      $region26: #{inv_cog_forward.8} parent=11 // pred_check_branch
        %447 = sbr.rel (%p445) target = $region28
      $region27: #{inv_cog_forward.8} parent=11 // pred_region
        _
      $region28: #{inv_cog_forward.8} parent=11 // pred_fallthru
        _
      // Predicated region
      $region29: #{inv_cog_forward.8} parent=11 // pred_check
        %p448 = pneg %p206
      $region30: #{inv_cog_forward.8} parent=11 // pred_check_branch
        %450 = sbr.rel (%p448) target = $region32
      $region31: #{inv_cog_forward.8} parent=11 // pred_region
        _
      $region32: #{inv_cog_forward.8} parent=11 // pred_fallthru
        _
      // Predicated region
      $region33: #{inv_cog_forward.8} parent=11 // pred_check
        %p451 = pneg %p227
      $region34: #{inv_cog_forward.8} parent=11 // pred_check_branch
        %453 = sbr.rel (%p451) target = $region36
      $region35: #{inv_cog_forward.8} parent=11 // pred_region
        _
      $region36: #{inv_cog_forward.8} parent=11 // pred_fallthru
        _
      // Predicated region
      $region37: #{inv_cog_forward.8} parent=11 // pred_check
        %p454 = pneg %p248
      $region38: #{inv_cog_forward.8} parent=11 // pred_check_branch
        %456 = sbr.rel (%p454) target = $region40
      $region39: #{inv_cog_forward.8} parent=11 // pred_region
        _
      $region40: #{inv_cog_forward.8} parent=11 // pred_fallthru
        _
      // Predicated region
      $region41: #{inv_cog_forward.8} parent=11 // pred_check
        %p457 = pneg %p269
      $region42: #{inv_cog_forward.8} parent=11 // pred_check_branch
        %459 = sbr.rel (%p457) target = $region44
      $region43: #{inv_cog_forward.8} parent=11 // pred_region
        _
      $region44: #{inv_cog_forward.8} parent=11 // pred_fallthru
        _
      // Predicated region
      $region45: #{inv_cog_forward.8} parent=11 // pred_check
        %p460 = pneg %p290
      $region46: #{inv_cog_forward.8} parent=11 // pred_check_branch
        %462 = sbr.rel (%p460) target = $region48
      $region47: #{inv_cog_forward.8} parent=11 // pred_region
        _
      $region48: #{inv_cog_forward.8} parent=11 // pred_fallthru
        _
      // Predicated region
      $region49: #{inv_cog_forward.8} parent=11 // pred_check
        %p463 = pneg %p311
      $region50: #{inv_cog_forward.8} parent=11 // pred_check_branch
        %465 = sbr.rel (%p463) target = $region52
      $region51: #{inv_cog_forward.8} parent=11 // pred_region
        _
      $region52: #{inv_cog_forward.8} parent=11 // pred_fallthru
        _
      // Predicated region
      $region53: #{inv_cog_forward.8} parent=11 // pred_check
        %p466 = pneg %p332
      $region54: #{inv_cog_forward.8} parent=11 // pred_check_branch
        %468 = sbr.rel (%p466) target = $region56
      $region55: #{inv_cog_forward.8} parent=11 // pred_region
        _
      $region56: #{inv_cog_forward.8} parent=11 // pred_fallthru
        _
      // Predicated region
      $region57: #{inv_cog_forward.8} parent=11 // pred_check
        %p469 = pneg %p353
      $region58: #{inv_cog_forward.8} parent=11 // pred_check_branch
        %471 = sbr.rel (%p469) target = $region60
      $region59: #{inv_cog_forward.8} parent=11 // pred_region
        _
      $region60: #{inv_cog_forward.8} parent=11 // pred_fallthru
        _
      // Predicated region
      $region61: #{inv_cog_forward.8} parent=11 // pred_check
        %p472 = pneg %p374
      $region62: #{inv_cog_forward.8} parent=11 // pred_check_branch
        %474 = sbr.rel (%p472) target = $region64
      $region63: #{inv_cog_forward.8} parent=11 // pred_region
        _
      $region64: #{inv_cog_forward.8} parent=11 // pred_fallthru
        _
      // Predicated region
      $region65: #{inv_cog_forward.8} parent=11 // pred_check
        %p475 = pneg %p395
      $region66: #{inv_cog_forward.8} parent=11 // pred_check_branch
        %477 = sbr.rel (%p475) target = $region68
      $region67: #{inv_cog_forward.8} parent=11 // pred_region
        _
      $region68: #{inv_cog_forward.8} parent=11 // pred_fallthru
        _
    $region12: #{inv_cog_forward.8} parent=5 // pred_fallthru
      _
    %p478 = scmp.lt.s32.totalorder %s23, 2
    // Predicated region
    $region69: #{inv_cog_forward.8} parent=5 // pred_check
      %p479 = pneg %p478
    $region70: #{inv_cog_forward.8} parent=5 // pred_check_branch
      %481 = sbr.rel (%p479) target = $region72
    $region71: #{inv_cog_forward.8} parent=5 // pred_region
      // Predicated region
      $region73: #{inv_cog_forward.8} parent=71 // pred_check
        %p482 = pneg %p43
      $region74: #{inv_cog_forward.8} parent=71 // pred_check_branch
        %484 = sbr.rel (%p482) target = $region76
      $region75: #{inv_cog_forward.8} parent=71 // pred_region
        %p485 = scmp.lt.s32.totalorder %s23, 1
        %s486 = scalar_select %p485, %s23, 1
        %s487 = scalar_lea.vmem %s0, %s486
      $region76: #{inv_cog_forward.8} parent=71 // pred_fallthru
        _
      // Predicated region
      $region77: #{inv_cog_forward.8} parent=71 // pred_check
        %p488 = pneg %p69
      $region78: #{inv_cog_forward.8} parent=71 // pred_check_branch
        %490 = sbr.rel (%p488) target = $region80
      $region79: #{inv_cog_forward.8} parent=71 // pred_region
        %p491 = scmp.lt.s32.totalorder %s23, 1
        %s492 = scalar_select %p491, %s23, 1
        %s493 = smul.addr %s492, 8
        %s494 = scalar_lea.vmem %s1, %s493
      $region80: #{inv_cog_forward.8} parent=71 // pred_fallthru
        _
      // Predicated region
      $region81: #{inv_cog_forward.8} parent=71 // pred_check
        %p495 = pneg %p95
      $region82: #{inv_cog_forward.8} parent=71 // pred_check_branch
        %497 = sbr.rel (%p495) target = $region84
      $region83: #{inv_cog_forward.8} parent=71 // pred_region
        %p498 = scmp.lt.s32.totalorder %s23, 1
        %s499 = scalar_select %p498, %s23, 1
        %s500 = scalar_lea.vmem %s2, %s499
      $region84: #{inv_cog_forward.8} parent=71 // pred_fallthru
        _
    $region72: #{inv_cog_forward.8} parent=5 // pred_fallthru
      _
    %p501 = scmp.le.s32.totalorder 1, %s23
    %p502 = scmp.lt.s32.totalorder %s23, 3
    %p503 = pnand %p501, %p502
    %p504 = pneg %p503
    // Predicated region
    $region85: #{inv_cog_forward.8} parent=5 // pred_check
      _
    $region86: #{inv_cog_forward.8} parent=5 // pred_check_branch
      %506 = sbr.rel (%p503) target = $region88
    $region87: #{inv_cog_forward.8} parent=5 // pred_region
      %s507 = ssub.s32 %s23, 1
      %p508 = scmp.lt.s32.totalorder %s28, 1
      %s509 = scalar_select %p508, %s28, 1
      %s510 = scalar_lea.vmem %s0, %s509
      %p511 = pneg %p49
      %p512 = pneg %p46
      %p513 = scmp.lt.s32.totalorder %s28, 1
      %s514 = scalar_select %p513, %s28, 1
      %s515 = smul.addr %s514, 8
      %s516 = scalar_lea.vmem %s1, %s515
      %p517 = pneg %p75
      %p518 = pneg %p72
      %p519 = scmp.lt.s32.totalorder %s28, 1
      %s520 = scalar_select %p519, %s28, 1
      %s521 = scalar_lea.vmem %s2, %s520
      %p522 = pneg %p101
      %p523 = pneg %p98
      %p524 = pneg %p122
      %p525 = pneg %p119
      %p526 = pneg %p143
      %p527 = pneg %p140
      %p528 = pneg %p164
      %p529 = pneg %p161
      %p530 = pneg %p185
      %p531 = pneg %p182
      %p532 = pneg %p206
      %p533 = pneg %p203
      %p534 = pneg %p227
      %p535 = pneg %p224
      %p536 = pneg %p248
      %p537 = pneg %p245
      %p538 = pneg %p269
      %p539 = pneg %p266
      %p540 = pneg %p290
      %p541 = pneg %p287
      %p542 = pneg %p311
      %p543 = pneg %p308
      %p544 = pneg %p332
      %p545 = pneg %p329
      %p546 = pneg %p353
      %p547 = pneg %p350
      %p548 = pneg %p374
      %p549 = pneg %p371
      %p550 = pneg %p395
      %p551 = pneg %p392
      %p552 = pneg %p421
      %p553 = pneg %p418
      %p554 = scmp.lt.s32.totalorder %s28, 1
      %s555 = scalar_select %p554, %s28, 1
      %s556 = scalar_lea.vmem %s17, %s555
      %p557 = scmp.lt.s32.totalorder %s28, 1
      %s558 = scalar_select %p557, %s28, 1
      %s559 = scalar_lea.vmem %s0, %s558
      %p560 = scmp.lt.s32.totalorder %s28, 1
      %s561 = scalar_select %p560, %s28, 1
      %s562 = smul.addr %s561, 8
      %s563 = scalar_lea.vmem %s1, %s562
      %p564 = scmp.lt.s32.totalorder %s28, 1
      %s565 = scalar_select %p564, %s28, 1
      %s566 = scalar_lea.vmem %s2, %s565
      %p567 = scmp.lt.s32.totalorder %s28, 1
      %s568 = scalar_select %p567, %s28, 1
      %s569 = scalar_lea.vmem %s17, %s568
      %v571 = vld [vmem:[%s559] sm:$0x1]
      %v572 = vld [vmem:[%s563] sm:$0xff]
      %v573 = vld [vmem:[%s566] sm:$0x1]
      %vm574 = vcmp.gt.f32.partialorder %v573, 0.5
      %v575 = vpack.c.bf16 %v571, %v571
      %v576 = vld [vmem:[%s3] sm:$0xf]
      %v577 = vld [vmem:[%s3 + $0x4] sm:$0xf]
      %v578 = vld [vmem:[%s3 + $0x8] sm:$0xf]
      %v579 = vld [vmem:[%s3 + $0xc] sm:$0xf]
      %v580 = vld [vmem:[%s3 + $0x10] sm:$0xf]
      %v581 = vld [vmem:[%s3 + $0x14] sm:$0xf]
      %v582 = vld [vmem:[%s3 + $0x18] sm:$0xf]
      %v583 = vld [vmem:[%s3 + $0x1c] sm:$0xf]
      %v584 = vld [vmem:[%s4] sm:$0x1]
      %v593 = vunpack.c.l.b16 %v576
      %v594 = vunpack.c.l.b16 %v577
      %v595 = vunpack.c.l.b16 %v578
      %v596 = vunpack.c.l.b16 %v579
      %v597 = vunpack.c.l.b16 %v580
      %v598 = vunpack.c.l.b16 %v581
      %v599 = vunpack.c.l.b16 %v582
      %v600 = vunpack.c.l.b16 %v583
      %v601 = vpack.c.b16 %v594, %v593
      %v602 = vpack.c.b16 %v596, %v595
      %v603 = vpack.c.b16 %v598, %v597
      %v604 = vpack.c.b16 %v600, %v599
      %vm609 = vcmask 523264
      %v611 = vsel %vm609, %v575, 0
      %613 = vmatprep.subr.bf16.mxu0 0
      %614 = vmatpush1.bf16.msra.mxu0 %v601
      %615 = vmatprep.subr.bf16.mxu0 0
      %616 = vmatpush1.bf16.msra.mxu0 %v602
      %617 = vmatprep.subr.bf16.mxu0 0
      %618 = vmatpush1.bf16.msra.mxu0 %v603
      %619 = vmatprep.subr.bf16.mxu0 0
      %620 = vmatpush1.bf16.msra.mxu0 %v604
      %621 = vmatprep.subr.bf16.mxu0 0
      %622 = vmatpush1.bf16.msra.mxu0 0
      %623 = vmatprep.subr.bf16.mxu0 0
      %624 = vmatpush1.bf16.msra.mxu0 0
      %625 = vmatprep.subr.bf16.mxu0 0
      %626 = vmatpush1.bf16.msra.mxu0 0
      %627 = vmatprep.subr.bf16.mxu0 0
      %628 = vmatpush1.bf16.msra.mxu0 0
      %629 = vmatprep.subr.bf16.mxu0 0
      %630 = vmatpush1.bf16.msra.mxu0 0
      %631 = vmatprep.subr.bf16.mxu0 0
      %632 = vmatpush1.bf16.msra.mxu0 0
      %633 = vmatprep.subr.bf16.mxu0 0
      %634 = vmatpush1.bf16.msra.mxu0 0
      %635 = vmatprep.subr.bf16.mxu0 0
      %636 = vmatpush1.bf16.msra.mxu0 0
      %637 = vmatprep.subr.bf16.mxu0 0
      %638 = vmatpush1.bf16.msra.mxu0 0
      %639 = vmatprep.subr.bf16.mxu0 0
      %640 = vmatpush1.bf16.msra.mxu0 0
      %641 = vmatprep.subr.bf16.mxu0 0
      %642 = vmatpush1.bf16.msra.mxu0 0
      %643 = vmatprep.subr.bf16.mxu0 0
      %644 = vmatpush1.bf16.msra.mxu0 0
      %645 = vmatprep.mubr.bf16.mxu0 0
      %646 = vmatmul.mubr.bf16.gmra.mrb[0].mxu0 %v611
      %v647 = vpop.f32.mrb[0].mxu0
      %v648 = vadd.f32 %v584, %v647
      %v649 = vpop.f32.mrb[0].mxu0
      %v650 = vpop.f32.mrb[0].mxu0
      %v651 = vpop.f32.mrb[0].mxu0
      %652 = vdwg.mxu0
      %v653 = vpack.c.bf16 %v572, %v572
      %v654 = vld [vmem:[%s5] sm:$0xf]
      %v655 = vld [vmem:[%s5 + $0x4] sm:$0xf]
      %v656 = vld [vmem:[%s5 + $0x8] sm:$0xf]
      %v657 = vld [vmem:[%s5 + $0xc] sm:$0xf]
      %v658 = vld [vmem:[%s5 + $0x10] sm:$0xf]
      %v659 = vld [vmem:[%s5 + $0x14] sm:$0xf]
      %v660 = vld [vmem:[%s5 + $0x18] sm:$0xf]
      %v661 = vld [vmem:[%s5 + $0x1c] sm:$0xf]
      %v662 = vld [vmem:[%s6] sm:$0x1]
      %v664 = vlaneseq
      %v665 = vshrl.u32 %v664, 7
      %v666 = vsub.s32 0, %v665
      %v667 = vrot.slane %v662, %v666
      %v677 = vunpack.c.l.b16 %v654
      %v678 = vunpack.c.l.b16 %v655
      %v679 = vunpack.c.l.b16 %v656
      %v680 = vunpack.c.l.b16 %v657
      %v681 = vunpack.c.l.b16 %v658
      %v682 = vunpack.c.l.b16 %v659
      %v683 = vunpack.c.l.b16 %v660
      %v684 = vunpack.c.l.b16 %v661
      %v685 = vpack.c.b16 %v678, %v677
      %v686 = vpack.c.b16 %v680, %v679
      %v687 = vpack.c.b16 %v682, %v681
      %v688 = vpack.c.b16 %v684, %v683
      %v694 = vsel %vm609, %v653, 0
      %696 = vmatprep.subr.bf16.mxu0 0
      %697 = vmatpush1.bf16.msra.mxu0 %v685
      %698 = vmatprep.subr.bf16.mxu0 0
      %699 = vmatpush1.bf16.msra.mxu0 %v686
      %700 = vmatprep.subr.bf16.mxu0 0
      %701 = vmatpush1.bf16.msra.mxu0 %v687
      %702 = vmatprep.subr.bf16.mxu0 0
      %703 = vmatpush1.bf16.msra.mxu0 %v688
      %704 = vmatprep.subr.bf16.mxu0 0
      %705 = vmatpush1.bf16.msra.mxu0 0
      %706 = vmatprep.subr.bf16.mxu0 0
      %707 = vmatpush1.bf16.msra.mxu0 0
      %708 = vmatprep.subr.bf16.mxu0 0
      %709 = vmatpush1.bf16.msra.mxu0 0
      %710 = vmatprep.subr.bf16.mxu0 0
      %711 = vmatpush1.bf16.msra.mxu0 0
      %712 = vmatprep.subr.bf16.mxu0 0
      %713 = vmatpush1.bf16.msra.mxu0 0
      %714 = vmatprep.subr.bf16.mxu0 0
      %715 = vmatpush1.bf16.msra.mxu0 0
      %716 = vmatprep.subr.bf16.mxu0 0
      %717 = vmatpush1.bf16.msra.mxu0 0
      %718 = vmatprep.subr.bf16.mxu0 0
      %719 = vmatpush1.bf16.msra.mxu0 0
      %720 = vmatprep.subr.bf16.mxu0 0
      %721 = vmatpush1.bf16.msra.mxu0 0
      %722 = vmatprep.subr.bf16.mxu0 0
      %723 = vmatpush1.bf16.msra.mxu0 0
      %724 = vmatprep.subr.bf16.mxu0 0
      %725 = vmatpush1.bf16.msra.mxu0 0
      %726 = vmatprep.subr.bf16.mxu0 0
      %727 = vmatpush1.bf16.msra.mxu0 0
      %728 = vmatprep.mubr.bf16.mxu0 0
      %729 = vmatmul.mubr.bf16.gmra.mrb[0].mxu0 %v694
      %v730 = vpop.f32.mrb[0].mxu0
      %v731 = vadd.f32 %v667, %v730
      %v732 = vpop.f32.mrb[0].mxu0
      %v733 = vpop.f32.mrb[0].mxu0
      %v734 = vpop.f32.mrb[0].mxu0
      %735 = vdwg.mxu0
      %v736 = vmul.f32 %v648, 0.25
      %v737 = vpack.c.bf16 %v736, %v736
      %v738 = vpack.c.bf16 %v731, %v731
      %vm739 = vcmask 130048
      %v741 = vsel %vm739, %v737, 0
      %v744 = vsel %vm739, %v738, 0
      %746 = vmatprep.subr.bf16.mxu0 0
      %747 = vmatpush1.bf16.xpose.msra.mxu0 %v744
      %748 = vmatprep.subr.bf16.mxu0 0
      %749 = vmatpush1.bf16.xpose.msra.mxu0 0
      %750 = vmatprep.subr.bf16.mxu0 0
      %751 = vmatpush1.bf16.xpose.msra.mxu0 0
      %752 = vmatprep.subr.bf16.mxu0 0
      %753 = vmatpush1.bf16.xpose.msra.mxu0 0
      %754 = vmatprep.subr.bf16.mxu0 0
      %755 = vmatpush1.bf16.xpose.msra.mxu0 0
      %756 = vmatprep.subr.bf16.mxu0 0
      %757 = vmatpush1.bf16.xpose.msra.mxu0 0
      %758 = vmatprep.subr.bf16.mxu0 0
      %759 = vmatpush1.bf16.xpose.msra.mxu0 0
      %760 = vmatprep.subr.bf16.mxu0 0
      %761 = vmatpush1.bf16.xpose.msra.mxu0 0
      %762 = vmatprep.subr.bf16.mxu0 0
      %763 = vmatpush1.bf16.xpose.msra.mxu0 0
      %764 = vmatprep.subr.bf16.mxu0 0
      %765 = vmatpush1.bf16.xpose.msra.mxu0 0
      %766 = vmatprep.subr.bf16.mxu0 0
      %767 = vmatpush1.bf16.xpose.msra.mxu0 0
      %768 = vmatprep.subr.bf16.mxu0 0
      %769 = vmatpush1.bf16.xpose.msra.mxu0 0
      %770 = vmatprep.subr.bf16.mxu0 0
      %771 = vmatpush1.bf16.xpose.msra.mxu0 0
      %772 = vmatprep.subr.bf16.mxu0 0
      %773 = vmatpush1.bf16.xpose.msra.mxu0 0
      %774 = vmatprep.subr.bf16.mxu0 0
      %775 = vmatpush1.bf16.xpose.msra.mxu0 0
      %776 = vmatprep.subr.bf16.mxu0 0
      %777 = vmatpush1.bf16.xpose.msra.mxu0 0
      %778 = vmatprep.mubr.bf16.mxu0 0
      %779 = vmatmul.mubr.bf16.gmra.mrb[0].mxu0 %v741
      %v780 = vpop.f32.mrb[0].mxu0
      %v781 = vadd.f32 0.0, %v780
      %v782 = vpop.f32.mrb[0].mxu0
      %v783 = vpop.f32.mrb[0].mxu0
      %v784 = vpop.f32.mrb[0].mxu0
      %785 = vdwg.mxu0
      %v786 = vsel %vm574, -1e+30, %v781
      %vm787 = vcmask 57344
      %v788 = vsel %vm787, %v786, -inf
      %789 = vmax.xlane.f32.xlu0 %v788
      %v790 = vpop.xlane.xlu0 %789
      %v791 = vsub.f32 %v786, %v790
      %v792 = vmul.f32 %v791, 1.442695
      %v793 = vpow.pop %v792
      %v794 = vsel %vm787, %v793, 0.0
      %795 = vadd.xlane.f32.xlu0 %v794
      %v796 = vpop.xlane.xlu0 %795
      %v797 = vrcp.pop %v796
      %v798 = vmul.f32 %v793, %v797
      %v799 = vpack.c.bf16 %v798, %v798
      %801 = vrot.lane.b32.xlu0 %v738, 64
      %v802 = vpop.permute.xlu0 %801
      %vm803 = vcmask 64512
      %v805 = vsel %vm803, %v799, 0
      %vm807 = vcmask 1043456
      %v809 = vsel %vm807, %v802, 0
      %811 = vmatprep.subr.bf16.mxu0 0
      %812 = vmatpush1.bf16.msra.mxu0 %v809
      %813 = vmatprep.subr.bf16.mxu0 0
      %814 = vmatpush1.bf16.msra.mxu0 0
      %815 = vmatprep.subr.bf16.mxu0 0
      %816 = vmatpush1.bf16.msra.mxu0 0
      %817 = vmatprep.subr.bf16.mxu0 0
      %818 = vmatpush1.bf16.msra.mxu0 0
      %819 = vmatprep.subr.bf16.mxu0 0
      %820 = vmatpush1.bf16.msra.mxu0 0
      %821 = vmatprep.subr.bf16.mxu0 0
      %822 = vmatpush1.bf16.msra.mxu0 0
      %823 = vmatprep.subr.bf16.mxu0 0
      %824 = vmatpush1.bf16.msra.mxu0 0
      %825 = vmatprep.subr.bf16.mxu0 0
      %826 = vmatpush1.bf16.msra.mxu0 0
      %827 = vmatprep.subr.bf16.mxu0 0
      %828 = vmatpush1.bf16.msra.mxu0 0
      %829 = vmatprep.subr.bf16.mxu0 0
      %830 = vmatpush1.bf16.msra.mxu0 0
      %831 = vmatprep.subr.bf16.mxu0 0
      %832 = vmatpush1.bf16.msra.mxu0 0
      %833 = vmatprep.subr.bf16.mxu0 0
      %834 = vmatpush1.bf16.msra.mxu0 0
      %835 = vmatprep.subr.bf16.mxu0 0
      %836 = vmatpush1.bf16.msra.mxu0 0
      %837 = vmatprep.subr.bf16.mxu0 0
      %838 = vmatpush1.bf16.msra.mxu0 0
      %839 = vmatprep.subr.bf16.mxu0 0
      %840 = vmatpush1.bf16.msra.mxu0 0
      %841 = vmatprep.subr.bf16.mxu0 0
      %842 = vmatpush1.bf16.msra.mxu0 0
      %843 = vmatprep.mubr.bf16.mxu0 0
      %844 = vmatmul.mubr.bf16.gmra.mrb[0].mxu0 %v805
      %v845 = vpop.f32.mrb[0].mxu0
      %v846 = vadd.f32 0.0, %v845
      %v847 = vpop.f32.mrb[0].mxu0
      %v848 = vpop.f32.mrb[0].mxu0
      %v849 = vpop.f32.mrb[0].mxu0
      %850 = vdwg.mxu0
      %vm851 = vcmask 122880
      %852 = vst.msk [vmem:[#allocation2] sm:$0x1] %vm851, %v846
      %854 = vrot.lane.b32.xlu0 %v737, 112
      %v855 = vpop.permute.xlu0 %854
      %856 = vrot.lane.b32.xlu0 %v738, 112
      %v857 = vpop.permute.xlu0 %856
      %v859 = vsel %vm739, %v855, 0
      %v862 = vsel %vm739, %v857, 0
      %864 = vmatprep.subr.bf16.mxu0 0
      %865 = vmatpush1.bf16.xpose.msra.mxu0 %v862
      %866 = vmatprep.subr.bf16.mxu0 0
      %867 = vmatpush1.bf16.xpose.msra.mxu0 0
      %868 = vmatprep.subr.bf16.mxu0 0
      %869 = vmatpush1.bf16.xpose.msra.mxu0 0
      %870 = vmatprep.subr.bf16.mxu0 0
      %871 = vmatpush1.bf16.xpose.msra.mxu0 0
      %872 = vmatprep.subr.bf16.mxu0 0
      %873 = vmatpush1.bf16.xpose.msra.mxu0 0
      %874 = vmatprep.subr.bf16.mxu0 0
      %875 = vmatpush1.bf16.xpose.msra.mxu0 0
      %876 = vmatprep.subr.bf16.mxu0 0
      %877 = vmatpush1.bf16.xpose.msra.mxu0 0
      %878 = vmatprep.subr.bf16.mxu0 0
      %879 = vmatpush1.bf16.xpose.msra.mxu0 0
      %880 = vmatprep.subr.bf16.mxu0 0
      %881 = vmatpush1.bf16.xpose.msra.mxu0 0
      %882 = vmatprep.subr.bf16.mxu0 0
      %883 = vmatpush1.bf16.xpose.msra.mxu0 0
      %884 = vmatprep.subr.bf16.mxu0 0
      %885 = vmatpush1.bf16.xpose.msra.mxu0 0
      %886 = vmatprep.subr.bf16.mxu0 0
      %887 = vmatpush1.bf16.xpose.msra.mxu0 0
      %888 = vmatprep.subr.bf16.mxu0 0
      %889 = vmatpush1.bf16.xpose.msra.mxu0 0
      %890 = vmatprep.subr.bf16.mxu0 0
      %891 = vmatpush1.bf16.xpose.msra.mxu0 0
      %892 = vmatprep.subr.bf16.mxu0 0
      %893 = vmatpush1.bf16.xpose.msra.mxu0 0
      %894 = vmatprep.subr.bf16.mxu0 0
      %895 = vmatpush1.bf16.xpose.msra.mxu0 0
      %896 = vmatprep.mubr.bf16.mxu0 0
      %897 = vmatmul.mubr.bf16.gmra.mrb[0].mxu0 %v859
      %v898 = vpop.f32.mrb[0].mxu0
      %v899 = vadd.f32 0.0, %v898
      %v900 = vpop.f32.mrb[0].mxu0
      %v901 = vpop.f32.mrb[0].mxu0
      %v902 = vpop.f32.mrb[0].mxu0
      %903 = vdwg.mxu0
      %v904 = vsel %vm574, -1e+30, %v899
      %v905 = vsel %vm787, %v904, -inf
      %906 = vmax.xlane.f32.xlu0 %v905
      %v907 = vpop.xlane.xlu0 %906
      %v908 = vsub.f32 %v904, %v907
      %v909 = vmul.f32 %v908, 1.442695
      %v910 = vpow.pop %v909
      %v911 = vsel %vm787, %v910, 0.0
      %912 = vadd.xlane.f32.xlu0 %v911
      %v913 = vpop.xlane.xlu0 %912
      %v914 = vrcp.pop %v913
      %v915 = vmul.f32 %v910, %v914
      %v916 = vpack.c.bf16 %v915, %v915
      %917 = vrot.lane.b32.xlu0 %v738, 48
      %v918 = vpop.permute.xlu0 %917
      %v920 = vsel %vm803, %v916, 0
      %v923 = vsel %vm807, %v918, 0
      %925 = vmatprep.subr.bf16.mxu0 0
      %926 = vmatpush1.bf16.msra.mxu0 %v923
      %927 = vmatprep.subr.bf16.mxu0 0
      %928 = vmatpush1.bf16.msra.mxu0 0
      %929 = vmatprep.subr.bf16.mxu0 0
      %930 = vmatpush1.bf16.msra.mxu0 0
      %931 = vmatprep.subr.bf16.mxu0 0
      %932 = vmatpush1.bf16.msra.mxu0 0
      %933 = vmatprep.subr.bf16.mxu0 0
      %934 = vmatpush1.bf16.msra.mxu0 0
      %935 = vmatprep.subr.bf16.mxu0 0
      %936 = vmatpush1.bf16.msra.mxu0 0
      %937 = vmatprep.subr.bf16.mxu0 0
      %938 = vmatpush1.bf16.msra.mxu0 0
      %939 = vmatprep.subr.bf16.mxu0 0
      %940 = vmatpush1.bf16.msra.mxu0 0
      %941 = vmatprep.subr.bf16.mxu0 0
      %942 = vmatpush1.bf16.msra.mxu0 0
      %943 = vmatprep.subr.bf16.mxu0 0
      %944 = vmatpush1.bf16.msra.mxu0 0
      %945 = vmatprep.subr.bf16.mxu0 0
      %946 = vmatpush1.bf16.msra.mxu0 0
      %947 = vmatprep.subr.bf16.mxu0 0
      %948 = vmatpush1.bf16.msra.mxu0 0
      %949 = vmatprep.subr.bf16.mxu0 0
      %950 = vmatpush1.bf16.msra.mxu0 0
      %951 = vmatprep.subr.bf16.mxu0 0
      %952 = vmatpush1.bf16.msra.mxu0 0
      %953 = vmatprep.subr.bf16.mxu0 0
      %954 = vmatpush1.bf16.msra.mxu0 0
      %955 = vmatprep.subr.bf16.mxu0 0
      %956 = vmatpush1.bf16.msra.mxu0 0
      %957 = vmatprep.mubr.bf16.mxu0 0
      %958 = vmatmul.mubr.bf16.gmra.mrb[0].mxu0 %v920
      %v959 = vpop.f32.mrb[0].mxu0
      %v960 = vadd.f32 0.0, %v959
      %v961 = vpop.f32.mrb[0].mxu0
      %v962 = vpop.f32.mrb[0].mxu0
      %v963 = vpop.f32.mrb[0].mxu0
      %964 = vdwg.mxu0
      %966 = vrot.lane.b32.xlu0 %v960, 16
      %v967 = vpop.permute.xlu0 %966
      %vm969 = vcmask 254080
      %970 = vst.msk [vmem:[#allocation2] sm:$0x1] %vm969, %v967
      %971 = vrot.lane.b32.xlu0 %v737, 96
      %v972 = vpop.permute.xlu0 %971
      %973 = vrot.lane.b32.xlu0 %v738, 96
      %v974 = vpop.permute.xlu0 %973
      %v976 = vsel %vm739, %v972, 0
      %v979 = vsel %vm739, %v974, 0
      %981 = vmatprep.subr.bf16.mxu0 0
      %982 = vmatpush1.bf16.xpose.msra.mxu0 %v979
      %983 = vmatprep.subr.bf16.mxu0 0
      %984 = vmatpush1.bf16.xpose.msra.mxu0 0
      %985 = vmatprep.subr.bf16.mxu0 0
      %986 = vmatpush1.bf16.xpose.msra.mxu0 0
      %987 = vmatprep.subr.bf16.mxu0 0
      %988 = vmatpush1.bf16.xpose.msra.mxu0 0
      %989 = vmatprep.subr.bf16.mxu0 0
      %990 = vmatpush1.bf16.xpose.msra.mxu0 0
      %991 = vmatprep.subr.bf16.mxu0 0
      %992 = vmatpush1.bf16.xpose.msra.mxu0 0
      %993 = vmatprep.subr.bf16.mxu0 0
      %994 = vmatpush1.bf16.xpose.msra.mxu0 0
      %995 = vmatprep.subr.bf16.mxu0 0
      %996 = vmatpush1.bf16.xpose.msra.mxu0 0
      %997 = vmatprep.subr.bf16.mxu0 0
      %998 = vmatpush1.bf16.xpose.msra.mxu0 0
      %999 = vmatprep.subr.bf16.mxu0 0
      %1000 = vmatpush1.bf16.xpose.msra.mxu0 0
      %1001 = vmatprep.subr.bf16.mxu0 0
      %1002 = vmatpush1.bf16.xpose.msra.mxu0 0
      %1003 = vmatprep.subr.bf16.mxu0 0
      %1004 = vmatpush1.bf16.xpose.msra.mxu0 0
      %1005 = vmatprep.subr.bf16.mxu0 0
      %1006 = vmatpush1.bf16.xpose.msra.mxu0 0
      %1007 = vmatprep.subr.bf16.mxu0 0
      %1008 = vmatpush1.bf16.xpose.msra.mxu0 0
      %1009 = vmatprep.subr.bf16.mxu0 0
      %1010 = vmatpush1.bf16.xpose.msra.mxu0 0
      %1011 = vmatprep.subr.bf16.mxu0 0
      %1012 = vmatpush1.bf16.xpose.msra.mxu0 0
      %1013 = vmatprep.mubr.bf16.mxu0 0
      %1014 = vmatmul.mubr.bf16.gmra.mrb[0].mxu0 %v976
      %v1015 = vpop.f32.mrb[0].mxu0
      %v1016 = vadd.f32 0.0, %v1015
      %v1017 = vpop.f32.mrb[0].mxu0
      %v1018 = vpop.f32.mrb[0].mxu0
      %v1019 = vpop.f32.mrb[0].mxu0
      %1020 = vdwg.mxu0
      %v1021 = vsel %vm574, -1e+30, %v1016
      %v1022 = vsel %vm787, %v1021, -inf
      %1023 = vmax.xlane.f32.xlu0 %v1022
      %v1024 = vpop.xlane.xlu0 %1023
      %v1025 = vsub.f32 %v1021, %v1024
      %v1026 = vmul.f32 %v1025, 1.442695
      %v1027 = vpow.pop %v1026
      %v1028 = vsel %vm787, %v1027, 0.0
      %1029 = vadd.xlane.f32.xlu0 %v1028
      %v1030 = vpop.xlane.xlu0 %1029
      %v1031 = vrcp.pop %v1030
      %v1032 = vmul.f32 %v1027, %v1031
      %v1033 = vpack.c.bf16 %v1032, %v1032
      %1034 = vrot.lane.b32.xlu0 %v738, 32
      %v1035 = vpop.permute.xlu0 %1034
      %v1037 = vsel %vm803, %v1033, 0
      %v1040 = vsel %vm807, %v1035, 0
      %1042 = vmatprep.subr.bf16.mxu0 0
      %1043 = vmatpush1.bf16.msra.mxu0 %v1040
      %1044 = vmatprep.subr.bf16.mxu0 0
      %1045 = vmatpush1.bf16.msra.mxu0 0
      %1046 = vmatprep.subr.bf16.mxu0 0
      %1047 = vmatpush1.bf16.msra.mxu0 0
      %1048 = vmatprep.subr.bf16.mxu0 0
      %1049 = vmatpush1.bf16.msra.mxu0 0
      %1050 = vmatprep.subr.bf16.mxu0 0
      %1051 = vmatpush1.bf16.msra.mxu0 0
      %1052 = vmatprep.subr.bf16.mxu0 0
      %1053 = vmatpush1.bf16.msra.mxu0 0
      %1054 = vmatprep.subr.bf16.mxu0 0
      %1055 = vmatpush1.bf16.msra.mxu0 0
      %1056 = vmatprep.subr.bf16.mxu0 0
      %1057 = vmatpush1.bf16.msra.mxu0 0
      %1058 = vmatprep.subr.bf16.mxu0 0
      %1059 = vmatpush1.bf16.msra.mxu0 0
      %1060 = vmatprep.subr.bf16.mxu0 0
      %1061 = vmatpush1.bf16.msra.mxu0 0
      %1062 = vmatprep.subr.bf16.mxu0 0
      %1063 = vmatpush1.bf16.msra.mxu0 0
      %1064 = vmatprep.subr.bf16.mxu0 0
      %1065 = vmatpush1.bf16.msra.mxu0 0
      %1066 = vmatprep.subr.bf16.mxu0 0
      %1067 = vmatpush1.bf16.msra.mxu0 0
      %1068 = vmatprep.subr.bf16.mxu0 0
      %1069 = vmatpush1.bf16.msra.mxu0 0
      %1070 = vmatprep.subr.bf16.mxu0 0
      %1071 = vmatpush1.bf16.msra.mxu0 0
      %1072 = vmatprep.subr.bf16.mxu0 0
      %1073 = vmatpush1.bf16.msra.mxu0 0
      %1074 = vmatprep.mubr.bf16.mxu0 0
      %1075 = vmatmul.mubr.bf16.gmra.mrb[0].mxu0 %v1037
      %v1076 = vpop.f32.mrb[0].mxu0
      %v1077 = vadd.f32 0.0, %v1076
      %v1078 = vpop.f32.mrb[0].mxu0
      %v1079 = vpop.f32.mrb[0].mxu0
      %v1080 = vpop.f32.mrb[0].mxu0
      %1081 = vdwg.mxu0
      %1083 = vrot.lane.b32.xlu0 %v1077, 32
      %v1084 = vpop.permute.xlu0 %1083
      %vm1086 = vcmask 385280
      %1087 = vst.msk [vmem:[#allocation2] sm:$0x1] %vm1086, %v1084
      %1088 = vrot.lane.b32.xlu0 %v737, 80
      %v1089 = vpop.permute.xlu0 %1088
      %1090 = vrot.lane.b32.xlu0 %v738, 80
      %v1091 = vpop.permute.xlu0 %1090
      %v1093 = vsel %vm739, %v1089, 0
      %v1096 = vsel %vm739, %v1091, 0
      %1098 = vmatprep.subr.bf16.mxu0 0
      %1099 = vmatpush1.bf16.xpose.msra.mxu0 %v1096
      %1100 = vmatprep.subr.bf16.mxu0 0
      %1101 = vmatpush1.bf16.xpose.msra.mxu0 0
      %1102 = vmatprep.subr.bf16.mxu0 0
      %1103 = vmatpush1.bf16.xpose.msra.mxu0 0
      %1104 = vmatprep.subr.bf16.mxu0 0
      %1105 = vmatpush1.bf16.xpose.msra.mxu0 0
      %1106 = vmatprep.subr.bf16.mxu0 0
      %1107 = vmatpush1.bf16.xpose.msra.mxu0 0
      %1108 = vmatprep.subr.bf16.mxu0 0
      %1109 = vmatpush1.bf16.xpose.msra.mxu0 0
      %1110 = vmatprep.subr.bf16.mxu0 0
      %1111 = vmatpush1.bf16.xpose.msra.mxu0 0
      %1112 = vmatprep.subr.bf16.mxu0 0
      %1113 = vmatpush1.bf16.xpose.msra.mxu0 0
      %1114 = vmatprep.subr.bf16.mxu0 0
      %1115 = vmatpush1.bf16.xpose.msra.mxu0 0
      %1116 = vmatprep.subr.bf16.mxu0 0
      %1117 = vmatpush1.bf16.xpose.msra.mxu0 0
      %1118 = vmatprep.subr.bf16.mxu0 0
      %1119 = vmatpush1.bf16.xpose.msra.mxu0 0
      %1120 = vmatprep.subr.bf16.mxu0 0
      %1121 = vmatpush1.bf16.xpose.msra.mxu0 0
      %1122 = vmatprep.subr.bf16.mxu0 0
      %1123 = vmatpush1.bf16.xpose.msra.mxu0 0
      %1124 = vmatprep.subr.bf16.mxu0 0
      %1125 = vmatpush1.bf16.xpose.msra.mxu0 0
      %1126 = vmatprep.subr.bf16.mxu0 0
      %1127 = vmatpush1.bf16.xpose.msra.mxu0 0
      %1128 = vmatprep.subr.bf16.mxu0 0
      %1129 = vmatpush1.bf16.xpose.msra.mxu0 0
      %1130 = vmatprep.mubr.bf16.mxu0 0
      %1131 = vmatmul.mubr.bf16.gmra.mrb[0].mxu0 %v1093
      %v1132 = vpop.f32.mrb[0].mxu0
      %v1133 = vadd.f32 0.0, %v1132
      %v1134 = vpop.f32.mrb[0].mxu0
      %v1135 = vpop.f32.mrb[0].mxu0
      %v1136 = vpop.f32.mrb[0].mxu0
      %1137 = vdwg.mxu0
      %v1138 = vsel %vm574, -1e+30, %v1133
      %v1139 = vsel %vm787, %v1138, -inf
      %1140 = vmax.xlane.f32.xlu0 %v1139
      %v1141 = vpop.xlane.xlu0 %1140
      %v1142 = vsub.f32 %v1138, %v1141
      %v1143 = vmul.f32 %v1142, 1.442695
      %v1144 = vpow.pop %v1143
      %v1145 = vsel %vm787, %v1144, 0.0
      %1146 = vadd.xlane.f32.xlu0 %v1145
      %v1147 = vpop.xlane.xlu0 %1146
      %v1148 = vrcp.pop %v1147
      %v1149 = vmul.f32 %v1144, %v1148
      %v1150 = vpack.c.bf16 %v1149, %v1149
      %1151 = vrot.lane.b32.xlu0 %v738, 16
      %v1152 = vpop.permute.xlu0 %1151
      %v1154 = vsel %vm803, %v1150, 0
      %v1157 = vsel %vm807, %v1152, 0
      %1159 = vmatprep.subr.bf16.mxu0 0
      %1160 = vmatpush1.bf16.msra.mxu0 %v1157
      %1161 = vmatprep.subr.bf16.mxu0 0
      %1162 = vmatpush1.bf16.msra.mxu0 0
      %1163 = vmatprep.subr.bf16.mxu0 0
      %1164 = vmatpush1.bf16.msra.mxu0 0
      %1165 = vmatprep.subr.bf16.mxu0 0
      %1166 = vmatpush1.bf16.msra.mxu0 0
      %1167 = vmatprep.subr.bf16.mxu0 0
      %1168 = vmatpush1.bf16.msra.mxu0 0
      %1169 = vmatprep.subr.bf16.mxu0 0
      %1170 = vmatpush1.bf16.msra.mxu0 0
      %1171 = vmatprep.subr.bf16.mxu0 0
      %1172 = vmatpush1.bf16.msra.mxu0 0
      %1173 = vmatprep.subr.bf16.mxu0 0
      %1174 = vmatpush1.bf16.msra.mxu0 0
      %1175 = vmatprep.subr.bf16.mxu0 0
      %1176 = vmatpush1.bf16.msra.mxu0 0
      %1177 = vmatprep.subr.bf16.mxu0 0
      %1178 = vmatpush1.bf16.msra.mxu0 0
      %1179 = vmatprep.subr.bf16.mxu0 0
      %1180 = vmatpush1.bf16.msra.mxu0 0
      %1181 = vmatprep.subr.bf16.mxu0 0
      %1182 = vmatpush1.bf16.msra.mxu0 0
      %1183 = vmatprep.subr.bf16.mxu0 0
      %1184 = vmatpush1.bf16.msra.mxu0 0
      %1185 = vmatprep.subr.bf16.mxu0 0
      %1186 = vmatpush1.bf16.msra.mxu0 0
      %1187 = vmatprep.subr.bf16.mxu0 0
      %1188 = vmatpush1.bf16.msra.mxu0 0
      %1189 = vmatprep.subr.bf16.mxu0 0
      %1190 = vmatpush1.bf16.msra.mxu0 0
      %1191 = vmatprep.mubr.bf16.mxu0 0
      %1192 = vmatmul.mubr.bf16.gmra.mrb[0].mxu0 %v1154
      %v1193 = vpop.f32.mrb[0].mxu0
      %v1194 = vadd.f32 0.0, %v1193
      %v1195 = vpop.f32.mrb[0].mxu0
      %v1196 = vpop.f32.mrb[0].mxu0
      %v1197 = vpop.f32.mrb[0].mxu0
      %1198 = vdwg.mxu0
      %1200 = vrot.lane.b32.xlu0 %v1194, 48
      %v1201 = vpop.permute.xlu0 %1200
      %vm1203 = vcmask 516480
      %1204 = vst.msk [vmem:[#allocation2] sm:$0x1] %vm1203, %v1201
      %v1205 = vld [vmem:[#allocation2] sm:$0x1]
      %v1206 = vpack.c.bf16 %v1205, %v1205
      %v1207 = vld [vmem:[%s7] sm:$0xf]
      %v1208 = vld [vmem:[%s7 + $0x4] sm:$0xf]
      %v1209 = vld [vmem:[%s7 + $0x8] sm:$0xf]
      %v1210 = vld [vmem:[%s7 + $0xc] sm:$0xf]
      %v1211 = vld [vmem:[%s7 + $0x10] sm:$0xf]
      %v1212 = vld [vmem:[%s7 + $0x14] sm:$0xf]
      %v1213 = vld [vmem:[%s7 + $0x18] sm:$0xf]
      %v1214 = vld [vmem:[%s7 + $0x1c] sm:$0xf]
      %v1215 = vld [vmem:[%s8] sm:$0x1]
      %v1224 = vunpack.c.l.b16 %v1207
      %v1225 = vunpack.c.l.b16 %v1208
      %v1226 = vunpack.c.l.b16 %v1209
      %v1227 = vunpack.c.l.b16 %v1210
      %v1228 = vunpack.c.l.b16 %v1211
      %v1229 = vunpack.c.l.b16 %v1212
      %v1230 = vunpack.c.l.b16 %v1213
      %v1231 = vunpack.c.l.b16 %v1214
      %v1232 = vpack.c.b16 %v1225, %v1224
      %v1233 = vpack.c.b16 %v1227, %v1226
      %v1234 = vpack.c.b16 %v1229, %v1228
      %v1235 = vpack.c.b16 %v1231, %v1230
      %v1241 = vsel %vm609, %v1206, 0
      %1243 = vmatprep.subr.bf16.mxu0 0
      %1244 = vmatpush1.bf16.msra.mxu0 %v1232
      %1245 = vmatprep.subr.bf16.mxu0 0
      %1246 = vmatpush1.bf16.msra.mxu0 %v1233
      %1247 = vmatprep.subr.bf16.mxu0 0
      %1248 = vmatpush1.bf16.msra.mxu0 %v1234
      %1249 = vmatprep.subr.bf16.mxu0 0
      %1250 = vmatpush1.bf16.msra.mxu0 %v1235
      %1251 = vmatprep.subr.bf16.mxu0 0
      %1252 = vmatpush1.bf16.msra.mxu0 0
      %1253 = vmatprep.subr.bf16.mxu0 0
      %1254 = vmatpush1.bf16.msra.mxu0 0
      %1255 = vmatprep.subr.bf16.mxu0 0
      %1256 = vmatpush1.bf16.msra.mxu0 0
      %1257 = vmatprep.subr.bf16.mxu0 0
      %1258 = vmatpush1.bf16.msra.mxu0 0
      %1259 = vmatprep.subr.bf16.mxu0 0
      %1260 = vmatpush1.bf16.msra.mxu0 0
      %1261 = vmatprep.subr.bf16.mxu0 0
      %1262 = vmatpush1.bf16.msra.mxu0 0
      %1263 = vmatprep.subr.bf16.mxu0 0
      %1264 = vmatpush1.bf16.msra.mxu0 0
      %1265 = vmatprep.subr.bf16.mxu0 0
      %1266 = vmatpush1.bf16.msra.mxu0 0
      %1267 = vmatprep.subr.bf16.mxu0 0
      %1268 = vmatpush1.bf16.msra.mxu0 0
      %1269 = vmatprep.subr.bf16.mxu0 0
      %1270 = vmatpush1.bf16.msra.mxu0 0
      %1271 = vmatprep.subr.bf16.mxu0 0
      %1272 = vmatpush1.bf16.msra.mxu0 0
      %1273 = vmatprep.subr.bf16.mxu0 0
      %1274 = vmatpush1.bf16.msra.mxu0 0
      %1275 = vmatprep.mubr.bf16.mxu0 0
      %1276 = vmatmul.mubr.bf16.gmra.mrb[0].mxu0 %v1241
      %v1277 = vpop.f32.mrb[0].mxu0
      %v1278 = vadd.f32 %v1215, %v1277
      %v1279 = vpop.f32.mrb[0].mxu0
      %v1280 = vpop.f32.mrb[0].mxu0
      %v1281 = vpop.f32.mrb[0].mxu0
      %1282 = vdwg.mxu0
      %v1283 = vadd.f32 %v1278, %v571
      %v1284 = vld [vmem:[%s9] sm:$0x1]
      %v1285 = vld [vmem:[%s10] sm:$0x1]
      %vm1286 = vcmask 516096
      %v1287 = vsel %vm1286, %v1283, 0.0
      %1288 = vadd.xlane.f32.xlu0 %v1287
      %v1289 = vpop.xlane.xlu0 %1288
      %v1290 = vrcp.pop 64.0
      %v1291 = vmul.f32 %v1289, %v1290
      %v1292 = vsub.f32 %v1283, %v1291
      %v1293 = vmul.f32 %v1292, %v1292
      %v1294 = vsel %vm1286, %v1293, 0.0
      %1295 = vadd.xlane.f32.xlu0 %v1294
      %v1296 = vpop.xlane.xlu0 %1295
      %v1297 = vmul.f32 %v1296, %v1290
      %v1298 = vadd.f32 %v1297, 1e-05
      %v1299 = vrsqrt.pop %v1298
      %v1300 = vmul.f32 %v1292, %v1299
      %v1301 = vmul.f32 %v1300, %v1284
      %v1302 = vadd.f32 %v1301, %v1285
      %v1303 = vpack.c.bf16 %v1302, %v1302
      %v1304 = vld [vmem:[%s11] sm:$0xf]
      %v1305 = vld [vmem:[%s11 + $0x4] sm:$0xf]
      %v1306 = vld [vmem:[%s11 + $0x8] sm:$0xf]
      %v1307 = vld [vmem:[%s11 + $0xc] sm:$0xf]
      %v1308 = vld [vmem:[%s11 + $0x10] sm:$0xf]
      %v1309 = vld [vmem:[%s11 + $0x14] sm:$0xf]
      %v1310 = vld [vmem:[%s11 + $0x18] sm:$0xf]
      %v1311 = vld [vmem:[%s11 + $0x1c] sm:$0xf]
      %v1312 = vld [vmem:[%s12] sm:$0x1]
      %v1321 = vunpack.c.l.b16 %v1304
      %v1322 = vunpack.c.l.b16 %v1305
      %v1323 = vunpack.c.l.b16 %v1306
      %v1324 = vunpack.c.l.b16 %v1307
      %v1325 = vunpack.c.l.b16 %v1308
      %v1326 = vunpack.c.l.b16 %v1309
      %v1327 = vunpack.c.l.b16 %v1310
      %v1328 = vunpack.c.l.b16 %v1311
      %v1329 = vpack.c.b16 %v1322, %v1321
      %v1330 = vpack.c.b16 %v1324, %v1323
      %v1331 = vpack.c.b16 %v1326, %v1325
      %v1332 = vpack.c.b16 %v1328, %v1327
      %v1338 = vsel %vm609, %v1303, 0
      %1340 = vmatprep.subr.bf16.mxu0 0
      %1341 = vmatpush1.bf16.msra.mxu0 %v1329
      %1342 = vmatprep.subr.bf16.mxu0 0
      %1343 = vmatpush1.bf16.msra.mxu0 %v1330
      %1344 = vmatprep.subr.bf16.mxu0 0
      %1345 = vmatpush1.bf16.msra.mxu0 %v1331
      %1346 = vmatprep.subr.bf16.mxu0 0
      %1347 = vmatpush1.bf16.msra.mxu0 %v1332
      %1348 = vmatprep.subr.bf16.mxu0 0
      %1349 = vmatpush1.bf16.msra.mxu0 0
      %1350 = vmatprep.subr.bf16.mxu0 0
      %1351 = vmatpush1.bf16.msra.mxu0 0
      %1352 = vmatprep.subr.bf16.mxu0 0
      %1353 = vmatpush1.bf16.msra.mxu0 0
      %1354 = vmatprep.subr.bf16.mxu0 0
      %1355 = vmatpush1.bf16.msra.mxu0 0
      %1356 = vmatprep.subr.bf16.mxu0 0
      %1357 = vmatpush1.bf16.msra.mxu0 0
      %1358 = vmatprep.subr.bf16.mxu0 0
      %1359 = vmatpush1.bf16.msra.mxu0 0
      %1360 = vmatprep.subr.bf16.mxu0 0
      %1361 = vmatpush1.bf16.msra.mxu0 0
      %1362 = vmatprep.subr.bf16.mxu0 0
      %1363 = vmatpush1.bf16.msra.mxu0 0
      %1364 = vmatprep.subr.bf16.mxu0 0
      %1365 = vmatpush1.bf16.msra.mxu0 0
      %1366 = vmatprep.subr.bf16.mxu0 0
      %1367 = vmatpush1.bf16.msra.mxu0 0
      %1368 = vmatprep.subr.bf16.mxu0 0
      %1369 = vmatpush1.bf16.msra.mxu0 0
      %1370 = vmatprep.subr.bf16.mxu0 0
      %1371 = vmatpush1.bf16.msra.mxu0 0
      %1372 = vmatprep.mubr.bf16.mxu0 0
      %1373 = vmatmul.mubr.bf16.gmra.mrb[0].mxu0 %v1338
      %v1374 = vpop.f32.mrb[0].mxu0
      %v1375 = vadd.f32 %v1312, %v1374
      %v1376 = vpop.f32.mrb[0].mxu0
      %v1377 = vpop.f32.mrb[0].mxu0
      %v1378 = vpop.f32.mrb[0].mxu0
      %1379 = vdwg.mxu0
      %v1380 = vmax.f32 %v1375, 0.0
      %v1381 = vpack.c.bf16 %v1380, %v1380
      %v1382 = vld [vmem:[%s13] sm:$0xf]
      %v1383 = vld [vmem:[%s13 + $0x4] sm:$0xf]
      %v1384 = vld [vmem:[%s13 + $0x8] sm:$0xf]
      %v1385 = vld [vmem:[%s13 + $0xc] sm:$0xf]
      %v1386 = vld [vmem:[%s13 + $0x10] sm:$0xf]
      %v1387 = vld [vmem:[%s13 + $0x14] sm:$0xf]
      %v1388 = vld [vmem:[%s13 + $0x18] sm:$0xf]
      %v1389 = vld [vmem:[%s13 + $0x1c] sm:$0xf]
      %v1390 = vld [vmem:[%s14] sm:$0x1]
      %v1399 = vunpack.c.l.b16 %v1382
      %v1400 = vunpack.c.l.b16 %v1383
      %v1401 = vunpack.c.l.b16 %v1384
      %v1402 = vunpack.c.l.b16 %v1385
      %v1403 = vunpack.c.l.b16 %v1386
      %v1404 = vunpack.c.l.b16 %v1387
      %v1405 = vunpack.c.l.b16 %v1388
      %v1406 = vunpack.c.l.b16 %v1389
      %v1407 = vpack.c.b16 %v1400, %v1399
      %v1408 = vpack.c.b16 %v1402, %v1401
      %v1409 = vpack.c.b16 %v1404, %v1403
      %v1410 = vpack.c.b16 %v1406, %v1405
      %v1416 = vsel %vm609, %v1381, 0
      %1418 = vmatprep.subr.bf16.mxu0 0
      %1419 = vmatpush1.bf16.msra.mxu0 %v1407
      %1420 = vmatprep.subr.bf16.mxu0 0
      %1421 = vmatpush1.bf16.msra.mxu0 %v1408
      %1422 = vmatprep.subr.bf16.mxu0 0
      %1423 = vmatpush1.bf16.msra.mxu0 %v1409
      %1424 = vmatprep.subr.bf16.mxu0 0
      %1425 = vmatpush1.bf16.msra.mxu0 %v1410
      %1426 = vmatprep.subr.bf16.mxu0 0
      %1427 = vmatpush1.bf16.msra.mxu0 0
      %1428 = vmatprep.subr.bf16.mxu0 0
      %1429 = vmatpush1.bf16.msra.mxu0 0
      %1430 = vmatprep.subr.bf16.mxu0 0
      %1431 = vmatpush1.bf16.msra.mxu0 0
      %1432 = vmatprep.subr.bf16.mxu0 0
      %1433 = vmatpush1.bf16.msra.mxu0 0
      %1434 = vmatprep.subr.bf16.mxu0 0
      %1435 = vmatpush1.bf16.msra.mxu0 0
      %1436 = vmatprep.subr.bf16.mxu0 0
      %1437 = vmatpush1.bf16.msra.mxu0 0
      %1438 = vmatprep.subr.bf16.mxu0 0
      %1439 = vmatpush1.bf16.msra.mxu0 0
      %1440 = vmatprep.subr.bf16.mxu0 0
      %1441 = vmatpush1.bf16.msra.mxu0 0
      %1442 = vmatprep.subr.bf16.mxu0 0
      %1443 = vmatpush1.bf16.msra.mxu0 0
      %1444 = vmatprep.subr.bf16.mxu0 0
      %1445 = vmatpush1.bf16.msra.mxu0 0
      %1446 = vmatprep.subr.bf16.mxu0 0
      %1447 = vmatpush1.bf16.msra.mxu0 0
      %1448 = vmatprep.subr.bf16.mxu0 0
      %1449 = vmatpush1.bf16.msra.mxu0 0
      %1450 = vmatprep.mubr.bf16.mxu0 0
      %1451 = vmatmul.mubr.bf16.gmra.mrb[0].mxu0 %v1416
      %v1452 = vpop.f32.mrb[0].mxu0
      %v1453 = vadd.f32 %v1390, %v1452
      %v1454 = vpop.f32.mrb[0].mxu0
      %v1455 = vpop.f32.mrb[0].mxu0
      %v1456 = vpop.f32.mrb[0].mxu0
      %1457 = vdwg.mxu0
      %v1458 = vadd.f32 %v1453, %v1302
      %v1459 = vld [vmem:[%s15] sm:$0x1]
      %v1460 = vld [vmem:[%s16] sm:$0x1]
      %v1461 = vsel %vm1286, %v1458, 0.0
      %1462 = vadd.xlane.f32.xlu0 %v1461
      %v1463 = vpop.xlane.xlu0 %1462
      %v1464 = vmul.f32 %v1463, %v1290
      %v1465 = vsub.f32 %v1458, %v1464
      %v1466 = vmul.f32 %v1465, %v1465
      %v1467 = vsel %vm1286, %v1466, 0.0
      %1468 = vadd.xlane.f32.xlu0 %v1467
      %v1469 = vpop.xlane.xlu0 %1468
      %v1470 = vmul.f32 %v1469, %v1290
      %v1471 = vadd.f32 %v1470, 1e-05
      %v1472 = vrsqrt.pop %v1471
      %v1473 = vmul.f32 %v1465, %v1472
      %v1474 = vmul.f32 %v1473, %v1459
      %v1475 = vadd.f32 %v1474, %v1460
      %1476 = vst.msk [vmem:[%s569] sm:$0x1] %vm1286, %v1475
      %p1477 = scmp.lt.s32.totalorder %s28, 1
      %s1478 = scalar_select %p1477, %s28, 1
      %s1479 = scalar_lea.vmem %s17, %s1478
      // Predicated region
      $region89: #{inv_cog_forward.8} parent=87 // pred_check
        %p1480 = pneg %p418
      $region90: #{inv_cog_forward.8} parent=87 // pred_check_branch
        %1482 = sbr.rel (%p1480) target = $region92
      $region91: #{inv_cog_forward.8} parent=87 // pred_region
        _
      $region92: #{inv_cog_forward.8} parent=87 // pred_fallthru
        _
    $region88: #{inv_cog_forward.8} parent=5 // pred_fallthru
      _
    %p1483 = scmp.le.s32.totalorder 2, %s23
    // Predicated region
    $region93: #{inv_cog_forward.8} parent=5 // pred_check
      %p1484 = pneg %p1483
    $region94: #{inv_cog_forward.8} parent=5 // pred_check_branch
      %1486 = sbr.rel (%p1484) target = $region96
    $region95: #{inv_cog_forward.8} parent=5 // pred_region
      %s1487 = ssub.s32 %s23, 2
      // Predicated region
      $region97: #{inv_cog_forward.8} parent=95 // pred_check
        %p1488 = pneg %p424
      $region98: #{inv_cog_forward.8} parent=95 // pred_check_branch
        %1490 = sbr.rel (%p1488) target = $region100
      $region99: #{inv_cog_forward.8} parent=95 // pred_region
        %p1491 = scmp.lt.s32.totalorder %s29, 1
        %s1492 = scalar_select %p1491, %s29, 1
        %s1493 = scalar_lea.vmem %s17, %s1492
      $region100: #{inv_cog_forward.8} parent=95 // pred_fallthru
        _
    $region96: #{inv_cog_forward.8} parent=5 // pred_fallthru
      _
  $region6: #{inv_cog_forward.8} parent=0 // loop_footer
    %s27 = sadd.s32 1, %s23
  $region7: #{inv_cog_forward.8} parent=0 // loop_footer_branch
    %22 = sbr.rel target = $region3
  $region8: #{inv_cog_forward.8} parent=0 // loop_exit
    _

// kernel: inv_cog_forward.9
$region0: #{inv_cog_forward.9}
  #allocation0 [shape = 'u32[]', space=smem, size = 0x4, offset = 0x4, fixed_abs, tag = 'smem constant byte address 0x4 - core index']
  #allocation1 [shape = 'u32[144,128]{1,0:T(1,128)}', space=vmem, size = 0x12000, scoped, tag = 'internal scratch']
  %s0 = inlined_call_operand.vmem [shape: f32[2,1], index: 0, kind: input, shape index: {}]
  %s1 = inlined_call_operand.vmem [shape: f32[1,128], index: 1, kind: input, shape index: {}]
  %s2 = inlined_call_operand.vmem [shape: f32[2,64], index: 2, kind: input, shape index: {}]
  %s3 = inlined_call_operand.vmem [shape: bf16[128,32], index: 3, kind: input, shape index: {}]
  %s4 = inlined_call_operand.vmem [shape: bf16[128,32], index: 4, kind: input, shape index: {}]
  %s5 = inlined_call_operand.vmem [shape: f32[1,32], index: 5, kind: input, shape index: {}]
  %s6 = inlined_call_operand.vmem [shape: bf16[32,32], index: 6, kind: input, shape index: {}]
  %s7 = inlined_call_operand.vmem [shape: f32[1,32], index: 7, kind: input, shape index: {}]
  %s8 = inlined_call_operand.vmem [shape: bf16[64,64], index: 8, kind: input, shape index: {}]
  %s9 = inlined_call_operand.vmem [shape: bf16[32,64], index: 9, kind: input, shape index: {}]
  %s10 = inlined_call_operand.vmem [shape: f32[1,64], index: 10, kind: input, shape index: {}]
  %s11 = inlined_call_operand.vmem [shape: bf16[64,64], index: 11, kind: input, shape index: {}]
  %s12 = inlined_call_operand.vmem [shape: f32[1,64], index: 12, kind: input, shape index: {}]
  %s13 = inlined_call_operand.hbm [shape: f32[2,64], index: 13, kind: output, shape index: {}]
  %s14 = sld [smem:[#allocation0]]
  $region62: #{inv_cog_forward.9} parent=0
    _
  %s16 = ssub.s32 1, %s14
  %s17 = scalar_select 0, %s16, %s14
  $region1: #{inv_cog_forward.9} parent=0
    #allocation2 [shape = 'u8[1024]{0}', space=vmem, size = 0x400, scoped, tag = 'output window, operand 0, single buffered']
    #allocation3 [shape = 's32[1]{0}', space=sflag, size = 0x4, scoped, tag = 'scoped memory for inv_cog_forward.9']
    %18 = vsyncpa [#allocation3], 0
    // Predicated region
    $region2: #{inv_cog_forward.9} parent=1 // pred_check
      _
    $region3: #{inv_cog_forward.9} parent=1 // pred_check_branch
      %20 = sbr.rel (0) target = $region5
    $region4: #{inv_cog_forward.9} parent=1 // pred_region
      _
    $region5: #{inv_cog_forward.9} parent=1 // pred_fallthru
      _
    // Predicated region
    $region6: #{inv_cog_forward.9} parent=1 // pred_check
      _
    $region7: #{inv_cog_forward.9} parent=1 // pred_check_branch
      %22 = sbr.rel (0) target = $region9
    $region8: #{inv_cog_forward.9} parent=1 // pred_region
      _
    $region9: #{inv_cog_forward.9} parent=1 // pred_fallthru
      _
    // Predicated region
    $region10: #{inv_cog_forward.9} parent=1 // pred_check
      _
    $region11: #{inv_cog_forward.9} parent=1 // pred_check_branch
      %24 = sbr.rel (0) target = $region13
    $region12: #{inv_cog_forward.9} parent=1 // pred_region
      _
    $region13: #{inv_cog_forward.9} parent=1 // pred_fallthru
      _
    // Predicated region
    $region14: #{inv_cog_forward.9} parent=1 // pred_check
      _
    $region15: #{inv_cog_forward.9} parent=1 // pred_check_branch
      %26 = sbr.rel (0) target = $region17
    $region16: #{inv_cog_forward.9} parent=1 // pred_region
      _
    $region17: #{inv_cog_forward.9} parent=1 // pred_fallthru
      _
    // Predicated region
    $region18: #{inv_cog_forward.9} parent=1 // pred_check
      _
    $region19: #{inv_cog_forward.9} parent=1 // pred_check_branch
      %28 = sbr.rel (0) target = $region21
    $region20: #{inv_cog_forward.9} parent=1 // pred_region
      _
    $region21: #{inv_cog_forward.9} parent=1 // pred_fallthru
      _
    // Predicated region
    $region22: #{inv_cog_forward.9} parent=1 // pred_check
      _
    $region23: #{inv_cog_forward.9} parent=1 // pred_check_branch
      %30 = sbr.rel (0) target = $region25
    $region24: #{inv_cog_forward.9} parent=1 // pred_region
      _
    $region25: #{inv_cog_forward.9} parent=1 // pred_fallthru
      _
    // Predicated region
    $region26: #{inv_cog_forward.9} parent=1 // pred_check
      _
    $region27: #{inv_cog_forward.9} parent=1 // pred_check_branch
      %32 = sbr.rel (0) target = $region29
    $region28: #{inv_cog_forward.9} parent=1 // pred_region
      _
    $region29: #{inv_cog_forward.9} parent=1 // pred_fallthru
      _
    // Predicated region
    $region30: #{inv_cog_forward.9} parent=1 // pred_check
      _
    $region31: #{inv_cog_forward.9} parent=1 // pred_check_branch
      %34 = sbr.rel (0) target = $region33
    $region32: #{inv_cog_forward.9} parent=1 // pred_region
      _
    $region33: #{inv_cog_forward.9} parent=1 // pred_fallthru
      _
    // Predicated region
    $region34: #{inv_cog_forward.9} parent=1 // pred_check
      _
    $region35: #{inv_cog_forward.9} parent=1 // pred_check_branch
      %36 = sbr.rel (0) target = $region37
    $region36: #{inv_cog_forward.9} parent=1 // pred_region
      _
    $region37: #{inv_cog_forward.9} parent=1 // pred_fallthru
      _
    // Predicated region
    $region38: #{inv_cog_forward.9} parent=1 // pred_check
      _
    $region39: #{inv_cog_forward.9} parent=1 // pred_check_branch
      %38 = sbr.rel (0) target = $region41
    $region40: #{inv_cog_forward.9} parent=1 // pred_region
      _
    $region41: #{inv_cog_forward.9} parent=1 // pred_fallthru
      _
    // Predicated region
    $region42: #{inv_cog_forward.9} parent=1 // pred_check
      _
    $region43: #{inv_cog_forward.9} parent=1 // pred_check_branch
      %40 = sbr.rel (0) target = $region45
    $region44: #{inv_cog_forward.9} parent=1 // pred_region
      _
    $region45: #{inv_cog_forward.9} parent=1 // pred_fallthru
      _
    // Predicated region
    $region46: #{inv_cog_forward.9} parent=1 // pred_check
      _
    $region47: #{inv_cog_forward.9} parent=1 // pred_check_branch
      %42 = sbr.rel (0) target = $region49
    $region48: #{inv_cog_forward.9} parent=1 // pred_region
      _
    $region49: #{inv_cog_forward.9} parent=1 // pred_fallthru
      _
    // Predicated region
    $region50: #{inv_cog_forward.9} parent=1 // pred_check
      _
    $region51: #{inv_cog_forward.9} parent=1 // pred_check_branch
      %44 = sbr.rel (0) target = $region53
    $region52: #{inv_cog_forward.9} parent=1 // pred_region
      _
    $region53: #{inv_cog_forward.9} parent=1 // pred_fallthru
      _
    %v46 = vld [vmem:[%s0] sm:$0x3]
    %v47 = vld [vmem:[%s1] sm:$0x1]
    %49 = vset.pattern.permute.xlu0 0
    %50 = vperm.xlu0 %49, %v46
    %v51 = vpop.permute.xlu0 %50
    %v54 = vlaneseq
    %v55 = vshrl.u32 %v54, 7
    %v56 = vsub.s32 0, %v55
    %v57 = vrot.slane %v47, %v56
    %v59 = vmul.f32 %v51, %v57
    %v60 = vand.u32 2147483647, %v59
    %vm61 = vcmp.le.f32.partialorder %v60, 0.7853982
    %vm62 = vcmp.lt.s32.totalorder %v59, 0
    %v63 = vand.u32 %v59, 2139095040
    %v64 = vshrl.u32 %v63, 23
    %v65 = vsub.s32 %v64, 127
    %v66 = vand.u32 2147483647, %v59
    %v67 = vand.u32 %v66, 8388607
    %v68 = vor.u32 %v67, 8388608
    %v69 = vsub.s32 0, %v68
    %v70 = vadd.s32 %v65, 1
    %vm71 = vcmp.gt.s32.totalorder %v70, 0
    %v72 = vsel %vm71, %v70, 0
    %v73 = vshrl.u32 %v72, 5
    %v74 = vand.u32 %v72, 31
    %v75 = vsub.s32 32, %v74
    %v76 = vshrl.u32 683565275, %v75
    %v77 = vshll.u32 683565275, %v74
    %v78 = vshrl.u32 2475754826, %v75
    %v79 = vor.u32 %v77, %v78
    %v80 = vshll.u32 2475754826, %v74
    %v81 = vshrl.u32 2131351028, %v75
    %v82 = vor.u32 %v80, %v81
    %v83 = vshll.u32 2131351028, %v74
    %v84 = vshrl.u32 2102212464, %v75
    %v85 = vor.u32 %v83, %v84
    %v86 = vshll.u32 2102212464, %v74
    %v87 = vshrl.u32 920167782, %v75
    %v88 = vor.u32 %v86, %v87
    %v89 = vshll.u32 920167782, %v74
    %v90 = vshrl.u32 1326507024, %v75
    %v91 = vor.u32 %v89, %v90
    %vm92 = vcmp.lt.s32.totalorder %v73, 1
    %vm93 = vcmp.lt.s32.totalorder %v73, 2
    %vm94 = vcmp.lt.s32.totalorder %v73, 3
    %vm95 = vcmp.lt.s32.totalorder %v73, 4
    %v96 = vsel %vm92, %v76, %v79
    %v97 = vsel %vm95, %v85, 2102212464
    %v98 = vsel %vm94, %v82, %v97
    %v99 = vsel %vm93, %v96, %v98
    %v100 = vsel %vm92, %v79, %v82
    %v101 = vsel %vm95, %v88, 920167782
    %v102 = vsel %vm94, %v85, %v101
    %v103 = vsel %vm93, %v100, %v102
    %v104 = vsel %vm92, %v82, %v85
    %v105 = vsel %vm95, %v91, 1326507024
    %v106 = vsel %vm94, %v88, %v105
    %v107 = vsel %vm93, %v104, %v106
    %v108 = vshll.u32 %v68, 8
    %v109 = vmul.u32.u64.compose %v108, %v107
    %v110 = vextract.low.u32 %v109
    %v111 = vextract.high.u32 %v109
    %v112 = vmul.u32.u64.compose %v108, %v103
    %v113 = vextract.low.u32 %v112
    %v114 = vextract.high.u32 %v112
    %v115 = vmul.u32 %v108, %v99
    %v116 = vadd.s32 %v111, %v113
    %vm117 = vc.u32 %v111, %v113
    %v118 = vadd.s32 %v114, 1
    %v119 = vsel %vm117, %v118, %v114
    %v120 = vadd.s32 %v115, %v119
    %v121 = vadd.s32 %v120, 536870912
    %v122 = vshrl.u32 %v121, 30
    %v123 = vshll.u32 %v122, 30
    %v124 = vsub.s32 %v120, %v123
    %vm125 = vcmp.lt.s32.totalorder %v124, 0
    %v126 = vsub.s32 0, %v124
    %v127 = vsel %vm125, %v126, %v124
    %v128 = vclz %v127
    %v129 = vsub.s32 %v128, 2
    %vm130 = vcmp.gt.s32.totalorder 0, %v129
    %v131 = vsel %vm130, 0, %v129
    %v132 = vsub.s32 32, %v131
    %v133 = vshll.u32 %v124, %v131
    %v134 = vshrl.u32 %v116, %v132
    %v135 = vor.u32 %v133, %v134
    %v136 = vsub.s32 4294967266, %v131
    %v137 = vadd.s32 %v136, 127
    %v138 = vshll.u32 %v137, 23
    %v139 = vor.u32 4788187, %v138
    %v140 = vand.u32 2147483647, %v139
    %v142 = vcvt.s32.f32 %v135
    %v143 = vmul.f32 %v142, %v140
    %v144 = vxor.u32 %v143, 2147483648
    %v145 = vsel %vm62, %v144, %v143
    %v146 = vsub.s32 4, %v122
    %v147 = vsel %vm62, %v146, %v122
    %v148 = vsel %vm61, %v59, %v145
    %v149 = vsel %vm61, 0, %v147
    %v150 = vcosq.f32.pop %v148
    %v151 = vsinq.f32.pop %v148
    %vm152 = vweird.f32 %v59
    %v153 = vand.u32 %v149, 3
    %vm154 = vcmp.lt.s32.totalorder %v153, 2
    %vm155 = vcmp.eq.s32.totalorder %v153, 0
    %v156 = vxor.u32 %v151, 2147483648
    %v157 = vsel %vm155, %v150, %v156
    %vm158 = vcmp.eq.s32.totalorder %v153, 2
    %v159 = vxor.u32 %v150, 2147483648
    %v160 = vsel %vm158, %v159, %v151
    %v161 = vsel %vm154, %v157, %v160
    %v162 = vsel %vm152, nan, %v161
    %v163 = vpack.c.bf16 %v162, %v162
    %v164 = vld [vmem:[%s3] sm:$0xf]
    %v165 = vld [vmem:[%s3 + $0x4] sm:$0xf]
    %v166 = vld [vmem:[%s3 + $0x8] sm:$0xf]
    %v167 = vld [vmem:[%s3 + $0xc] sm:$0xf]
    %v168 = vld [vmem:[%s3 + $0x10] sm:$0xf]
    %v169 = vld [vmem:[%s3 + $0x14] sm:$0xf]
    %v170 = vld [vmem:[%s3 + $0x18] sm:$0xf]
    %v171 = vld [vmem:[%s3 + $0x1c] sm:$0xf]
    %v172 = vld [vmem:[%s3 + $0x20] sm:$0xf]
    %v173 = vld [vmem:[%s3 + $0x24] sm:$0xf]
    %v174 = vld [vmem:[%s3 + $0x28] sm:$0xf]
    %v175 = vld [vmem:[%s3 + $0x2c] sm:$0xf]
    %v176 = vld [vmem:[%s3 + $0x30] sm:$0xf]
    %v177 = vld [vmem:[%s3 + $0x34] sm:$0xf]
    %v178 = vld [vmem:[%s3 + $0x38] sm:$0xf]
    %v179 = vld [vmem:[%s3 + $0x3c] sm:$0xf]
    %v180 = vand.u32 2147483647, %v59
    %vm181 = vcmp.le.f32.partialorder %v180, 0.7853982
    %vm182 = vcmp.lt.s32.totalorder %v59, 0
    %v183 = vand.u32 %v59, 2139095040
    %v184 = vshrl.u32 %v183, 23
    %v185 = vsub.s32 %v184, 127
    %v186 = vand.u32 2147483647, %v59
    %v187 = vand.u32 %v186, 8388607
    %v188 = vor.u32 %v187, 8388608
    %v189 = vsub.s32 0, %v188
    %v190 = vadd.s32 %v185, 1
    %vm191 = vcmp.gt.s32.totalorder %v190, 0
    %v192 = vsel %vm191, %v190, 0
    %v193 = vshrl.u32 %v192, 5
    %v194 = vand.u32 %v192, 31
    %v195 = vsub.s32 32, %v194
    %v196 = vshrl.u32 683565275, %v195
    %v197 = vshll.u32 683565275, %v194
    %v198 = vshrl.u32 2475754826, %v195
    %v199 = vor.u32 %v197, %v198
    %v200 = vshll.u32 2475754826, %v194
    %v201 = vshrl.u32 2131351028, %v195
    %v202 = vor.u32 %v200, %v201
    %v203 = vshll.u32 2131351028, %v194
    %v204 = vshrl.u32 2102212464, %v195
    %v205 = vor.u32 %v203, %v204
    %v206 = vshll.u32 2102212464, %v194
    %v207 = vshrl.u32 920167782, %v195
    %v208 = vor.u32 %v206, %v207
    %v209 = vshll.u32 920167782, %v194
    %v210 = vshrl.u32 1326507024, %v195
    %v211 = vor.u32 %v209, %v210
    %vm212 = vcmp.lt.s32.totalorder %v193, 1
    %vm213 = vcmp.lt.s32.totalorder %v193, 2
    %vm214 = vcmp.lt.s32.totalorder %v193, 3
    %vm215 = vcmp.lt.s32.totalorder %v193, 4
    %v216 = vsel %vm212, %v196, %v199
    %v217 = vsel %vm215, %v205, 2102212464
    %v218 = vsel %vm214, %v202, %v217
    %v219 = vsel %vm213, %v216, %v218
    %v220 = vsel %vm212, %v199, %v202
    %v221 = vsel %vm215, %v208, 920167782
    %v222 = vsel %vm214, %v205, %v221
    %v223 = vsel %vm213, %v220, %v222
    %v224 = vsel %vm212, %v202, %v205
    %v225 = vsel %vm215, %v211, 1326507024
    %v226 = vsel %vm214, %v208, %v225
    %v227 = vsel %vm213, %v224, %v226
    %v228 = vshll.u32 %v188, 8
    %v229 = vmul.u32.u64.compose %v228, %v227
    %v230 = vextract.low.u32 %v229
    %v231 = vextract.high.u32 %v229
    %v232 = vmul.u32.u64.compose %v228, %v223
    %v233 = vextract.low.u32 %v232
    %v234 = vextract.high.u32 %v232
    %v235 = vmul.u32 %v228, %v219
    %v236 = vadd.s32 %v231, %v233
    %vm237 = vc.u32 %v231, %v233
    %v238 = vadd.s32 %v234, 1
    %v239 = vsel %vm237, %v238, %v234
    %v240 = vadd.s32 %v235, %v239
    %v241 = vadd.s32 %v240, 536870912
    %v242 = vshrl.u32 %v241, 30
    %v243 = vshll.u32 %v242, 30
    %v244 = vsub.s32 %v240, %v243
    %vm245 = vcmp.lt.s32.totalorder %v244, 0
    %v246 = vsub.s32 0, %v244
    %v247 = vsel %vm245, %v246, %v244
    %v248 = vclz %v247
    %v249 = vsub.s32 %v248, 2
    %vm250 = vcmp.gt.s32.totalorder 0, %v249
    %v251 = vsel %vm250, 0, %v249
    %v252 = vsub.s32 32, %v251
    %v253 = vshll.u32 %v244, %v251
    %v254 = vshrl.u32 %v236, %v252
    %v255 = vor.u32 %v253, %v254
    %v256 = vsub.s32 4294967266, %v251
    %v257 = vadd.s32 %v256, 127
    %v258 = vshll.u32 %v257, 23
    %v259 = vor.u32 4788187, %v258
    %v260 = vand.u32 2147483647, %v259
    %v262 = vcvt.s32.f32 %v255
    %v263 = vmul.f32 %v262, %v260
    %v264 = vxor.u32 %v263, 2147483648
    %v265 = vsel %vm182, %v264, %v263
    %v266 = vsub.s32 4, %v242
    %v267 = vsel %vm182, %v266, %v242
    %v268 = vsel %vm181, %v59, %v265
    %v269 = vsel %vm181, 0, %v267
    %v270 = vcosq.f32.pop %v268
    %v271 = vsinq.f32.pop %v268
    %vm272 = vweird.f32 %v59
    %v273 = vadd.s32 %v269, 3
    %v274 = vand.u32 %v273, 3
    %vm275 = vcmp.lt.s32.totalorder %v274, 2
    %vm276 = vcmp.eq.s32.totalorder %v274, 0
    %v277 = vxor.u32 %v271, 2147483648
    %v278 = vsel %vm276, %v270, %v277
    %vm279 = vcmp.eq.s32.totalorder %v274, 2
    %v280 = vxor.u32 %v270, 2147483648
    %v281 = vsel %vm279, %v280, %v271
    %v282 = vsel %vm275, %v278, %v281
    %v283 = vsel %vm272, nan, %v282
    %v284 = vpack.c.bf16 %v283, %v283
    %v285 = vld [vmem:[%s4] sm:$0xf]
    %v286 = vld [vmem:[%s4 + $0x4] sm:$0xf]
    %v287 = vld [vmem:[%s4 + $0x8] sm:$0xf]
    %v288 = vld [vmem:[%s4 + $0xc] sm:$0xf]
    %v289 = vld [vmem:[%s4 + $0x10] sm:$0xf]
    %v290 = vld [vmem:[%s4 + $0x14] sm:$0xf]
    %v291 = vld [vmem:[%s4 + $0x18] sm:$0xf]
    %v292 = vld [vmem:[%s4 + $0x1c] sm:$0xf]
    %v293 = vld [vmem:[%s4 + $0x20] sm:$0xf]
    %v294 = vld [vmem:[%s4 + $0x24] sm:$0xf]
    %v295 = vld [vmem:[%s4 + $0x28] sm:$0xf]
    %v296 = vld [vmem:[%s4 + $0x2c] sm:$0xf]
    %v297 = vld [vmem:[%s4 + $0x30] sm:$0xf]
    %v298 = vld [vmem:[%s4 + $0x34] sm:$0xf]
    %v299 = vld [vmem:[%s4 + $0x38] sm:$0xf]
    %v300 = vld [vmem:[%s4 + $0x3c] sm:$0xf]
    %v317 = vunpack.c.l.b16 %v285
    %v318 = vunpack.c.l.b16 %v286
    %v319 = vunpack.c.l.b16 %v287
    %v320 = vunpack.c.l.b16 %v288
    %v321 = vunpack.c.l.b16 %v289
    %v322 = vunpack.c.l.b16 %v290
    %v323 = vunpack.c.l.b16 %v291
    %v324 = vunpack.c.l.b16 %v292
    %v325 = vunpack.c.l.b16 %v293
    %v326 = vunpack.c.l.b16 %v294
    %v327 = vunpack.c.l.b16 %v295
    %v328 = vunpack.c.l.b16 %v296
    %v329 = vunpack.c.l.b16 %v297
    %v330 = vunpack.c.l.b16 %v298
    %v331 = vunpack.c.l.b16 %v299
    %v332 = vunpack.c.l.b16 %v300
    %v333 = vpack.c.b16 %v318, %v317
    %v334 = vpack.c.b16 %v320, %v319
    %v335 = vpack.c.b16 %v322, %v321
    %v336 = vpack.c.b16 %v324, %v323
    %v337 = vpack.c.b16 %v326, %v325
    %v338 = vpack.c.b16 %v328, %v327
    %v339 = vpack.c.b16 %v330, %v329
    %v340 = vpack.c.b16 %v332, %v331
    %349 = vmatprep.subr.bf16.mxu0 0
    %350 = vmatpush1.bf16.msra.mxu0 %v333
    %351 = vmatprep.subr.bf16.mxu0 0
    %352 = vmatpush1.bf16.msra.mxu0 %v334
    %353 = vmatprep.subr.bf16.mxu0 0
    %354 = vmatpush1.bf16.msra.mxu0 %v335
    %355 = vmatprep.subr.bf16.mxu0 0
    %356 = vmatpush1.bf16.msra.mxu0 %v336
    %357 = vmatprep.subr.bf16.mxu0 0
    %358 = vmatpush1.bf16.msra.mxu0 %v337
    %359 = vmatprep.subr.bf16.mxu0 0
    %360 = vmatpush1.bf16.msra.mxu0 %v338
    %361 = vmatprep.subr.bf16.mxu0 0
    %362 = vmatpush1.bf16.msra.mxu0 %v339
    %363 = vmatprep.subr.bf16.mxu0 0
    %364 = vmatpush1.bf16.msra.mxu0 %v340
    %365 = vmatprep.subr.bf16.mxu0 0
    %366 = vmatpush1.bf16.msra.mxu0 0
    %367 = vmatprep.subr.bf16.mxu0 0
    %368 = vmatpush1.bf16.msra.mxu0 0
    %369 = vmatprep.subr.bf16.mxu0 0
    %370 = vmatpush1.bf16.msra.mxu0 0
    %371 = vmatprep.subr.bf16.mxu0 0
    %372 = vmatpush1.bf16.msra.mxu0 0
    %373 = vmatprep.subr.bf16.mxu0 0
    %374 = vmatpush1.bf16.msra.mxu0 0
    %375 = vmatprep.subr.bf16.mxu0 0
    %376 = vmatpush1.bf16.msra.mxu0 0
    %377 = vmatprep.subr.bf16.mxu0 0
    %378 = vmatpush1.bf16.msra.mxu0 0
    %379 = vmatprep.subr.bf16.mxu0 0
    %380 = vmatpush1.bf16.msra.mxu0 0
    %381 = vmatprep.mubr.bf16.mxu0 0
    %382 = vmatmul.mubr.bf16.gmra.mrb[0].mxu0 %v284
    %v383 = vpop.f32.mrb[0].mxu0
    %v384 = vadd.f32 0.0, %v383
    %v385 = vpop.f32.mrb[0].mxu0
    %v386 = vpop.f32.mrb[0].mxu0
    %v387 = vpop.f32.mrb[0].mxu0
    %388 = vdwg.mxu0
    %v405 = vunpack.c.l.b16 %v164
    %v406 = vunpack.c.l.b16 %v165
    %v407 = vunpack.c.l.b16 %v166
    %v408 = vunpack.c.l.b16 %v167
    %v409 = vunpack.c.l.b16 %v168
    %v410 = vunpack.c.l.b16 %v169
    %v411 = vunpack.c.l.b16 %v170
    %v412 = vunpack.c.l.b16 %v171
    %v413 = vunpack.c.l.b16 %v172
    %v414 = vunpack.c.l.b16 %v173
    %v415 = vunpack.c.l.b16 %v174
    %v416 = vunpack.c.l.b16 %v175
    %v417 = vunpack.c.l.b16 %v176
    %v418 = vunpack.c.l.b16 %v177
    %v419 = vunpack.c.l.b16 %v178
    %v420 = vunpack.c.l.b16 %v179
    %v421 = vpack.c.b16 %v406, %v405
    %v422 = vpack.c.b16 %v408, %v407
    %v423 = vpack.c.b16 %v410, %v409
    %v424 = vpack.c.b16 %v412, %v411
    %v425 = vpack.c.b16 %v414, %v413
    %v426 = vpack.c.b16 %v416, %v415
    %v427 = vpack.c.b16 %v418, %v417
    %v428 = vpack.c.b16 %v420, %v419
    %437 = vmatprep.subr.bf16.mxu0 0
    %438 = vmatpush1.bf16.msra.mxu0 %v421
    %439 = vmatprep.subr.bf16.mxu0 0
    %440 = vmatpush1.bf16.msra.mxu0 %v422
    %441 = vmatprep.subr.bf16.mxu0 0
    %442 = vmatpush1.bf16.msra.mxu0 %v423
    %443 = vmatprep.subr.bf16.mxu0 0
    %444 = vmatpush1.bf16.msra.mxu0 %v424
    %445 = vmatprep.subr.bf16.mxu0 0
    %446 = vmatpush1.bf16.msra.mxu0 %v425
    %447 = vmatprep.subr.bf16.mxu0 0
    %448 = vmatpush1.bf16.msra.mxu0 %v426
    %449 = vmatprep.subr.bf16.mxu0 0
    %450 = vmatpush1.bf16.msra.mxu0 %v427
    %451 = vmatprep.subr.bf16.mxu0 0
    %452 = vmatpush1.bf16.msra.mxu0 %v428
    %453 = vmatprep.subr.bf16.mxu0 0
    %454 = vmatpush1.bf16.msra.mxu0 0
    %455 = vmatprep.subr.bf16.mxu0 0
    %456 = vmatpush1.bf16.msra.mxu0 0
    %457 = vmatprep.subr.bf16.mxu0 0
    %458 = vmatpush1.bf16.msra.mxu0 0
    %459 = vmatprep.subr.bf16.mxu0 0
    %460 = vmatpush1.bf16.msra.mxu0 0
    %461 = vmatprep.subr.bf16.mxu0 0
    %462 = vmatpush1.bf16.msra.mxu0 0
    %463 = vmatprep.subr.bf16.mxu0 0
    %464 = vmatpush1.bf16.msra.mxu0 0
    %465 = vmatprep.subr.bf16.mxu0 0
    %466 = vmatpush1.bf16.msra.mxu0 0
    %467 = vmatprep.subr.bf16.mxu0 0
    %468 = vmatpush1.bf16.msra.mxu0 0
    %469 = vmatprep.mubr.bf16.mxu0 0
    %470 = vmatmul.mubr.bf16.gmra.mrb[0].mxu0 %v163
    %v471 = vpop.f32.mrb[0].mxu0
    %v472 = vadd.f32 %v384, %v471
    %v473 = vpop.f32.mrb[0].mxu0
    %v474 = vpop.f32.mrb[0].mxu0
    %v475 = vpop.f32.mrb[0].mxu0
    %476 = vdwg.mxu0
    %v477 = vld [vmem:[%s5] sm:$0x1]
    %v479 = vlaneseq
    %v480 = vshrl.u32 %v479, 7
    %v481 = vsub.s32 0, %v480
    %v482 = vrot.slane %v477, %v481
    %v484 = vadd.f32 %v472, %v482
    %v485 = vsub.f32 0.0, %v484
    %v486 = vmul.f32 %v485, 1.442695
    %v487 = vpow.pop %v486
    %v488 = vadd.f32 %v487, 1.0
    %v489 = vrcp.pop %v488
    %v490 = vmul.f32 %v484, %v489
    %v491 = vpack.c.bf16 %v490, %v490
    %v492 = vld [vmem:[%s6] sm:$0xf]
    %v493 = vld [vmem:[%s6 + $0x4] sm:$0xf]
    %v494 = vld [vmem:[%s6 + $0x8] sm:$0xf]
    %v495 = vld [vmem:[%s6 + $0xc] sm:$0xf]
    %v496 = vld [vmem:[%s7] sm:$0x1]
    %v498 = vlaneseq
    %v499 = vshrl.u32 %v498, 7
    %v500 = vsub.s32 0, %v499
    %v501 = vrot.slane %v496, %v500
    %v507 = vunpack.c.l.b16 %v492
    %v508 = vunpack.c.l.b16 %v493
    %v509 = vunpack.c.l.b16 %v494
    %v510 = vunpack.c.l.b16 %v495
    %v511 = vpack.c.b16 %v508, %v507
    %v512 = vpack.c.b16 %v510, %v509
    %vm515 = vcmask 261120
    %v517 = vsel %vm515, %v491, 0
    %519 = vmatprep.subr.bf16.mxu0 0
    %520 = vmatpush1.bf16.msra.mxu0 %v511
    %521 = vmatprep.subr.bf16.mxu0 0
    %522 = vmatpush1.bf16.msra.mxu0 %v512
    %523 = vmatprep.subr.bf16.mxu0 0
    %524 = vmatpush1.bf16.msra.mxu0 0
    %525 = vmatprep.subr.bf16.mxu0 0
    %526 = vmatpush1.bf16.msra.mxu0 0
    %527 = vmatprep.subr.bf16.mxu0 0
    %528 = vmatpush1.bf16.msra.mxu0 0
    %529 = vmatprep.subr.bf16.mxu0 0
    %530 = vmatpush1.bf16.msra.mxu0 0
    %531 = vmatprep.subr.bf16.mxu0 0
    %532 = vmatpush1.bf16.msra.mxu0 0
    %533 = vmatprep.subr.bf16.mxu0 0
    %534 = vmatpush1.bf16.msra.mxu0 0
    %535 = vmatprep.subr.bf16.mxu0 0
    %536 = vmatpush1.bf16.msra.mxu0 0
    %537 = vmatprep.subr.bf16.mxu0 0
    %538 = vmatpush1.bf16.msra.mxu0 0
    %539 = vmatprep.subr.bf16.mxu0 0
    %540 = vmatpush1.bf16.msra.mxu0 0
    %541 = vmatprep.subr.bf16.mxu0 0
    %542 = vmatpush1.bf16.msra.mxu0 0
    %543 = vmatprep.subr.bf16.mxu0 0
    %544 = vmatpush1.bf16.msra.mxu0 0
    %545 = vmatprep.subr.bf16.mxu0 0
    %546 = vmatpush1.bf16.msra.mxu0 0
    %547 = vmatprep.subr.bf16.mxu0 0
    %548 = vmatpush1.bf16.msra.mxu0 0
    %549 = vmatprep.subr.bf16.mxu0 0
    %550 = vmatpush1.bf16.msra.mxu0 0
    %551 = vmatprep.mubr.bf16.mxu0 0
    %552 = vmatmul.mubr.bf16.gmra.mrb[0].mxu0 %v517
    %v553 = vpop.f32.mrb[0].mxu0
    %v554 = vadd.f32 %v501, %v553
    %v555 = vpop.f32.mrb[0].mxu0
    %v556 = vpop.f32.mrb[0].mxu0
    %v557 = vpop.f32.mrb[0].mxu0
    %558 = vdwg.mxu0
    %v559 = vld [vmem:[%s2] sm:$0x3]
    %v560 = vpack.c.bf16 %v559, %v559
    %v561 = vld [vmem:[%s8] sm:$0xf]
    %v562 = vld [vmem:[%s8 + $0x4] sm:$0xf]
    %v563 = vld [vmem:[%s8 + $0x8] sm:$0xf]
    %v564 = vld [vmem:[%s8 + $0xc] sm:$0xf]
    %v565 = vld [vmem:[%s8 + $0x10] sm:$0xf]
    %v566 = vld [vmem:[%s8 + $0x14] sm:$0xf]
    %v567 = vld [vmem:[%s8 + $0x18] sm:$0xf]
    %v568 = vld [vmem:[%s8 + $0x1c] sm:$0xf]
    %v569 = vpack.c.bf16 %v554, %v554
    %v570 = vld [vmem:[%s9] sm:$0xf]
    %v571 = vld [vmem:[%s9 + $0x4] sm:$0xf]
    %v572 = vld [vmem:[%s9 + $0x8] sm:$0xf]
    %v573 = vld [vmem:[%s9 + $0xc] sm:$0xf]
    %v578 = vunpack.c.l.b16 %v570
    %v579 = vunpack.c.l.b16 %v571
    %v580 = vunpack.c.l.b16 %v572
    %v581 = vunpack.c.l.b16 %v573
    %v582 = vpack.c.b16 %v579, %v578
    %v583 = vpack.c.b16 %v581, %v580
    %v587 = vsel %vm515, %v569, 0
    %589 = vmatprep.subr.bf16.mxu0 0
    %590 = vmatpush1.bf16.msra.mxu0 %v582
    %591 = vmatprep.subr.bf16.mxu0 0
    %592 = vmatpush1.bf16.msra.mxu0 %v583
    %593 = vmatprep.subr.bf16.mxu0 0
    %594 = vmatpush1.bf16.msra.mxu0 0
    %595 = vmatprep.subr.bf16.mxu0 0
    %596 = vmatpush1.bf16.msra.mxu0 0
    %597 = vmatprep.subr.bf16.mxu0 0
    %598 = vmatpush1.bf16.msra.mxu0 0
    %599 = vmatprep.subr.bf16.mxu0 0
    %600 = vmatpush1.bf16.msra.mxu0 0
    %601 = vmatprep.subr.bf16.mxu0 0
    %602 = vmatpush1.bf16.msra.mxu0 0
    %603 = vmatprep.subr.bf16.mxu0 0
    %604 = vmatpush1.bf16.msra.mxu0 0
    %605 = vmatprep.subr.bf16.mxu0 0
    %606 = vmatpush1.bf16.msra.mxu0 0
    %607 = vmatprep.subr.bf16.mxu0 0
    %608 = vmatpush1.bf16.msra.mxu0 0
    %609 = vmatprep.subr.bf16.mxu0 0
    %610 = vmatpush1.bf16.msra.mxu0 0
    %611 = vmatprep.subr.bf16.mxu0 0
    %612 = vmatpush1.bf16.msra.mxu0 0
    %613 = vmatprep.subr.bf16.mxu0 0
    %614 = vmatpush1.bf16.msra.mxu0 0
    %615 = vmatprep.subr.bf16.mxu0 0
    %616 = vmatpush1.bf16.msra.mxu0 0
    %617 = vmatprep.subr.bf16.mxu0 0
    %618 = vmatpush1.bf16.msra.mxu0 0
    %619 = vmatprep.subr.bf16.mxu0 0
    %620 = vmatpush1.bf16.msra.mxu0 0
    %621 = vmatprep.mubr.bf16.mxu0 0
    %622 = vmatmul.mubr.bf16.gmra.mrb[0].mxu0 %v587
    %v623 = vpop.f32.mrb[0].mxu0
    %v624 = vadd.f32 0.0, %v623
    %v625 = vpop.f32.mrb[0].mxu0
    %v626 = vpop.f32.mrb[0].mxu0
    %v627 = vpop.f32.mrb[0].mxu0
    %628 = vdwg.mxu0
    %v637 = vunpack.c.l.b16 %v561
    %v638 = vunpack.c.l.b16 %v562
    %v639 = vunpack.c.l.b16 %v563
    %v640 = vunpack.c.l.b16 %v564
    %v641 = vunpack.c.l.b16 %v565
    %v642 = vunpack.c.l.b16 %v566
    %v643 = vunpack.c.l.b16 %v567
    %v644 = vunpack.c.l.b16 %v568
    %v645 = vpack.c.b16 %v638, %v637
    %v646 = vpack.c.b16 %v640, %v639
    %v647 = vpack.c.b16 %v642, %v641
    %v648 = vpack.c.b16 %v644, %v643
    %vm653 = vcmask 523264
    %v655 = vsel %vm653, %v560, 0
    %657 = vmatprep.subr.bf16.mxu0 0
    %658 = vmatpush1.bf16.msra.mxu0 %v645
    %659 = vmatprep.subr.bf16.mxu0 0
    %660 = vmatpush1.bf16.msra.mxu0 %v646
    %661 = vmatprep.subr.bf16.mxu0 0
    %662 = vmatpush1.bf16.msra.mxu0 %v647
    %663 = vmatprep.subr.bf16.mxu0 0
    %664 = vmatpush1.bf16.msra.mxu0 %v648
    %665 = vmatprep.subr.bf16.mxu0 0
    %666 = vmatpush1.bf16.msra.mxu0 0
    %667 = vmatprep.subr.bf16.mxu0 0
    %668 = vmatpush1.bf16.msra.mxu0 0
    %669 = vmatprep.subr.bf16.mxu0 0
    %670 = vmatpush1.bf16.msra.mxu0 0
    %671 = vmatprep.subr.bf16.mxu0 0
    %672 = vmatpush1.bf16.msra.mxu0 0
    %673 = vmatprep.subr.bf16.mxu0 0
    %674 = vmatpush1.bf16.msra.mxu0 0
    %675 = vmatprep.subr.bf16.mxu0 0
    %676 = vmatpush1.bf16.msra.mxu0 0
    %677 = vmatprep.subr.bf16.mxu0 0
    %678 = vmatpush1.bf16.msra.mxu0 0
    %679 = vmatprep.subr.bf16.mxu0 0
    %680 = vmatpush1.bf16.msra.mxu0 0
    %681 = vmatprep.subr.bf16.mxu0 0
    %682 = vmatpush1.bf16.msra.mxu0 0
    %683 = vmatprep.subr.bf16.mxu0 0
    %684 = vmatpush1.bf16.msra.mxu0 0
    %685 = vmatprep.subr.bf16.mxu0 0
    %686 = vmatpush1.bf16.msra.mxu0 0
    %687 = vmatprep.subr.bf16.mxu0 0
    %688 = vmatpush1.bf16.msra.mxu0 0
    %689 = vmatprep.mubr.bf16.mxu0 0
    %690 = vmatmul.mubr.bf16.gmra.mrb[0].mxu0 %v655
    %v691 = vpop.f32.mrb[0].mxu0
    %v692 = vadd.f32 %v624, %v691
    %v693 = vpop.f32.mrb[0].mxu0
    %v694 = vpop.f32.mrb[0].mxu0
    %v695 = vpop.f32.mrb[0].mxu0
    %696 = vdwg.mxu0
    %v697 = vld [vmem:[%s10] sm:$0x1]
    %v699 = vlaneseq
    %v700 = vshrl.u32 %v699, 7
    %v701 = vsub.s32 0, %v700
    %v702 = vrot.slane %v697, %v701
    %v704 = vadd.f32 %v692, %v702
    %vm705 = vcmp.ge.f32.partialorder %v704, 0.0
    %v706 = vmul.f32 %v704, 0.01
    %v707 = vsel %vm705, %v704, %v706
    %v708 = vpack.c.bf16 %v707, %v707
    %v709 = vld [vmem:[%s11] sm:$0xf]
    %v710 = vld [vmem:[%s11 + $0x4] sm:$0xf]
    %v711 = vld [vmem:[%s11 + $0x8] sm:$0xf]
    %v712 = vld [vmem:[%s11 + $0xc] sm:$0xf]
    %v713 = vld [vmem:[%s11 + $0x10] sm:$0xf]
    %v714 = vld [vmem:[%s11 + $0x14] sm:$0xf]
    %v715 = vld [vmem:[%s11 + $0x18] sm:$0xf]
    %v716 = vld [vmem:[%s11 + $0x1c] sm:$0xf]
    %v717 = vld [vmem:[%s12] sm:$0x1]
    %v719 = vlaneseq
    %v720 = vshrl.u32 %v719, 7
    %v721 = vsub.s32 0, %v720
    %v722 = vrot.slane %v717, %v721
    %v732 = vunpack.c.l.b16 %v709
    %v733 = vunpack.c.l.b16 %v710
    %v734 = vunpack.c.l.b16 %v711
    %v735 = vunpack.c.l.b16 %v712
    %v736 = vunpack.c.l.b16 %v713
    %v737 = vunpack.c.l.b16 %v714
    %v738 = vunpack.c.l.b16 %v715
    %v739 = vunpack.c.l.b16 %v716
    %v740 = vpack.c.b16 %v733, %v732
    %v741 = vpack.c.b16 %v735, %v734
    %v742 = vpack.c.b16 %v737, %v736
    %v743 = vpack.c.b16 %v739, %v738
    %v749 = vsel %vm653, %v708, 0
    %751 = vmatprep.subr.bf16.mxu0 0
    %752 = vmatpush1.bf16.msra.mxu0 %v740
    %753 = vmatprep.subr.bf16.mxu0 0
    %754 = vmatpush1.bf16.msra.mxu0 %v741
    %755 = vmatprep.subr.bf16.mxu0 0
    %756 = vmatpush1.bf16.msra.mxu0 %v742
    %757 = vmatprep.subr.bf16.mxu0 0
    %758 = vmatpush1.bf16.msra.mxu0 %v743
    %759 = vmatprep.subr.bf16.mxu0 0
    %760 = vmatpush1.bf16.msra.mxu0 0
    %761 = vmatprep.subr.bf16.mxu0 0
    %762 = vmatpush1.bf16.msra.mxu0 0
    %763 = vmatprep.subr.bf16.mxu0 0
    %764 = vmatpush1.bf16.msra.mxu0 0
    %765 = vmatprep.subr.bf16.mxu0 0
    %766 = vmatpush1.bf16.msra.mxu0 0
    %767 = vmatprep.subr.bf16.mxu0 0
    %768 = vmatpush1.bf16.msra.mxu0 0
    %769 = vmatprep.subr.bf16.mxu0 0
    %770 = vmatpush1.bf16.msra.mxu0 0
    %771 = vmatprep.subr.bf16.mxu0 0
    %772 = vmatpush1.bf16.msra.mxu0 0
    %773 = vmatprep.subr.bf16.mxu0 0
    %774 = vmatpush1.bf16.msra.mxu0 0
    %775 = vmatprep.subr.bf16.mxu0 0
    %776 = vmatpush1.bf16.msra.mxu0 0
    %777 = vmatprep.subr.bf16.mxu0 0
    %778 = vmatpush1.bf16.msra.mxu0 0
    %779 = vmatprep.subr.bf16.mxu0 0
    %780 = vmatpush1.bf16.msra.mxu0 0
    %781 = vmatprep.subr.bf16.mxu0 0
    %782 = vmatpush1.bf16.msra.mxu0 0
    %783 = vmatprep.mubr.bf16.mxu0 0
    %784 = vmatmul.mubr.bf16.gmra.mrb[0].mxu0 %v749
    %v785 = vpop.f32.mrb[0].mxu0
    %v786 = vadd.f32 %v722, %v785
    %v787 = vpop.f32.mrb[0].mxu0
    %v788 = vpop.f32.mrb[0].mxu0
    %v789 = vpop.f32.mrb[0].mxu0
    %790 = vdwg.mxu0
    %vm791 = vcmask 517120
    %792 = vst.msk [vmem:[#allocation2] sm:$0x3] %vm791, %v786
    // Predicated region
    $region54: #{inv_cog_forward.9} parent=1 // pred_check
      _
    $region55: #{inv_cog_forward.9} parent=1 // pred_check_branch
      %794 = sbr.rel (0) target = $region57
    $region56: #{inv_cog_forward.9} parent=1 // pred_region
      %s796 = ssub.s32 32, 32
      %797 = vsyncadd [#allocation3], %s796
      %s799 = sshll.u32 [#allocation2], 4
      %s800 = int_to_ptr.vmem [resolvable:$true] %s799
      %802 = dma.vmem_to_hbm [thread:$0]  %s800, 32, %s13, [#allocation3]
    $region57: #{inv_cog_forward.9} parent=1 // pred_fallthru
      _
    // Predicated region
    $region58: #{inv_cog_forward.9} parent=1 // pred_check
      _
    $region59: #{inv_cog_forward.9} parent=1 // pred_check_branch
      %804 = sbr.rel (0) target = $region61
    $region60: #{inv_cog_forward.9} parent=1 // pred_region
      %805 = dma.done [#allocation3], 32
    $region61: #{inv_cog_forward.9} parent=1 // pred_fallthru
      _
    %806 = vsyncpa [#allocation3], 1

// kernel: inv_cog_forward.5
$region0: #{inv_cog_forward.5}
  #allocation0 [shape = 'u32[]', space=smem, size = 0x4, offset = 0x4, fixed_abs, tag = 'smem constant byte address 0x4 - core index']
  #allocation1 [shape = 'u32[144,128]{1,0:T(1,128)}', space=vmem, size = 0x12000, scoped, tag = 'internal scratch']
  %s0 = inlined_call_operand.vmem [shape: f32[16,1024], index: 0, kind: input, shape index: {}]
  %s1 = inlined_call_operand.hbm [shape: bf16[1024,512], index: 1, kind: input, shape index: {}]
  %s2 = inlined_call_operand.vmem [shape: f32[1,512], index: 2, kind: input, shape index: {}]
  %s3 = inlined_call_operand.vmem [shape: bf16[512,32], index: 3, kind: input, shape index: {}]
  %s4 = inlined_call_operand.vmem [shape: f32[1,32], index: 4, kind: input, shape index: {}]
  %s5 = inlined_call_operand.vmem [shape: f32[16,32], index: 5, kind: output, shape index: {}]
  %s6 = sld [smem:[#allocation0]]
  $region57: #{inv_cog_forward.5} parent=0
    _
  %s8 = ssub.s32 1, %s6
  %s9 = scalar_select 0, %s8, %s6
  $region1: #{inv_cog_forward.5} parent=0
    #allocation2 [shape = 'u8[1048576]{0}', space=vmem, size = 0x100000, scoped, tag = 'input window, operand 1, single buffered']
    #allocation3 [shape = 's32[2]{0}', space=sflag, size = 0x8, scoped, tag = 'scoped memory for inv_cog_forward.5']
    %10 = vsyncpa [#allocation3], 0
    loop: start=0, step=1, limit=4
    $region2: #{inv_cog_forward.5} parent=1 // loop_pre_header
      _
    $region3: #{inv_cog_forward.5} parent=1 // loop_header
      %s12 = sphi 0, %s16
      %p13 = scmp.ge.s32.totalorder %s12, 4
      %s22 = sphi 0, %s24
      %s25 = sphi 0, %s22
      %s26 = sphi 0, %s25
      %s42 = sphi 0, %s26
      %s46 = sphi 0, %s46
      %s48 = sphi 0, %s46
      %s49 = sphi 0, %s48
      %s63 = sphi 0, %s49
      %s67 = sphi 0, %s67
      %s69 = sphi 0, %s67
      %s70 = sphi 0, %s69
      %s84 = sphi 0, %s70
      %s88 = sphi 0, %s88
      %s90 = sphi 0, %s88
      %s91 = sphi 0, %s90
      %s105 = sphi 0, %s91
      %s109 = sphi 0, %s109
      %s111 = sphi 0, %s109
      %s112 = sphi 0, %s111
      %s126 = sphi 0, %s112
      %s132 = sphi 0, %s134
      %s135 = sphi 0, %s132
      %s136 = sphi 0, %s135
      %s152 = sphi 0, %s136
    $region4: #{inv_cog_forward.5} parent=1 // loop_header_branch
      %15 = sbr.rel (%p13) target = $region8
    $region5: #{inv_cog_forward.5} parent=1 // loop_body
      %s17 = ssub.s32 %s12, 1
      %s18 = ssub.s32 %s12, 2
      %s19 = sadd.s32 %s12, 1
      %s20 = ssub.s32 %s12, %s19
      %p21 = scmp.eq.s32.totalorder %s20, 0
      %s23 = sadd.s32 %s22, 1
      %s24 = scalar_select %p21, %s22, %s23
      %p27 = pneg %p21
      %p28 = scmp.eq.s32.totalorder %s12, 1
      %p29 = por %p27, %p28
      %p30 = scmp.ne.s32.totalorder %s22, %s25
      %p31 = scmp.eq.s32.totalorder %s12, 0
      %p32 = por %p30, %p31
      %p33 = scmp.ne.s32.totalorder %s22, %s25
      %p34 = scmp.eq.s32.totalorder %s17, 1
      %p35 = por %p33, %p34
      %p36 = scmp.ne.s32.totalorder %s25, %s26
      %p37 = scmp.eq.s32.totalorder %s17, 0
      %p38 = por %p36, %p37
      %p39 = scmp.ne.s32.totalorder %s25, %s26
      %p40 = scmp.eq.s32.totalorder %s18, 1
      %p41 = por %p39, %p40
      %p43 = scmp.ne.s32.totalorder %s26, %s42
      %p44 = scmp.eq.s32.totalorder %s18, 0
      %p45 = por %p43, %p44
      %s47 = sadd.s32 %s46, 1
      %p50 = scmp.eq.s32.totalorder %s12, 1
      %p51 = scmp.ne.s32.totalorder %s46, %s48
      %p52 = scmp.eq.s32.totalorder %s12, 0
      %p53 = por %p51, %p52
      %p54 = scmp.ne.s32.totalorder %s46, %s48
      %p55 = scmp.eq.s32.totalorder %s17, 1
      %p56 = por %p54, %p55
      %p57 = scmp.ne.s32.totalorder %s48, %s49
      %p58 = scmp.eq.s32.totalorder %s17, 0
      %p59 = por %p57, %p58
      %p60 = scmp.ne.s32.totalorder %s48, %s49
      %p61 = scmp.eq.s32.totalorder %s18, 1
      %p62 = por %p60, %p61
      %p64 = scmp.ne.s32.totalorder %s49, %s63
      %p65 = scmp.eq.s32.totalorder %s18, 0
      %p66 = por %p64, %p65
      %s68 = sadd.s32 %s67, 1
      %p71 = scmp.eq.s32.totalorder %s12, 1
      %p72 = scmp.ne.s32.totalorder %s67, %s69
      %p73 = scmp.eq.s32.totalorder %s12, 0
      %p74 = por %p72, %p73
      %p75 = scmp.ne.s32.totalorder %s67, %s69
      %p76 = scmp.eq.s32.totalorder %s17, 1
      %p77 = por %p75, %p76
      %p78 = scmp.ne.s32.totalorder %s69, %s70
      %p79 = scmp.eq.s32.totalorder %s17, 0
      %p80 = por %p78, %p79
      %p81 = scmp.ne.s32.totalorder %s69, %s70
      %p82 = scmp.eq.s32.totalorder %s18, 1
      %p83 = por %p81, %p82
      %p85 = scmp.ne.s32.totalorder %s70, %s84
      %p86 = scmp.eq.s32.totalorder %s18, 0
      %p87 = por %p85, %p86
      %s89 = sadd.s32 %s88, 1
      %p92 = scmp.eq.s32.totalorder %s12, 1
      %p93 = scmp.ne.s32.totalorder %s88, %s90
      %p94 = scmp.eq.s32.totalorder %s12, 0
      %p95 = por %p93, %p94
      %p96 = scmp.ne.s32.totalorder %s88, %s90
      %p97 = scmp.eq.s32.totalorder %s17, 1
      %p98 = por %p96, %p97
      %p99 = scmp.ne.s32.totalorder %s90, %s91
      %p100 = scmp.eq.s32.totalorder %s17, 0
      %p101 = por %p99, %p100
      %p102 = scmp.ne.s32.totalorder %s90, %s91
      %p103 = scmp.eq.s32.totalorder %s18, 1
      %p104 = por %p102, %p103
      %p106 = scmp.ne.s32.totalorder %s91, %s105
      %p107 = scmp.eq.s32.totalorder %s18, 0
      %p108 = por %p106, %p107
      %s110 = sadd.s32 %s109, 1
      %p113 = scmp.eq.s32.totalorder %s12, 1
      %p114 = scmp.ne.s32.totalorder %s109, %s111
      %p115 = scmp.eq.s32.totalorder %s12, 0
      %p116 = por %p114, %p115
      %p117 = scmp.ne.s32.totalorder %s109, %s111
      %p118 = scmp.eq.s32.totalorder %s17, 1
      %p119 = por %p117, %p118
      %p120 = scmp.ne.s32.totalorder %s111, %s112
      %p121 = scmp.eq.s32.totalorder %s17, 0
      %p122 = por %p120, %p121
      %p123 = scmp.ne.s32.totalorder %s111, %s112
      %p124 = scmp.eq.s32.totalorder %s18, 1
      %p125 = por %p123, %p124
      %p127 = scmp.ne.s32.totalorder %s112, %s126
      %p128 = scmp.eq.s32.totalorder %s18, 0
      %p129 = por %p127, %p128
      %s130 = ssub.s32 %s12, %s19
      %p131 = scmp.eq.s32.totalorder %s130, 0
      %s133 = sadd.s32 %s132, 1
      %s134 = scalar_select %p131, %s132, %s133
      %p137 = pneg %p131
      %p138 = scmp.eq.s32.totalorder %s12, 1
      %p139 = por %p137, %p138
      %p140 = scmp.ne.s32.totalorder %s132, %s135
      %p141 = scmp.eq.s32.totalorder %s12, 0
      %p142 = por %p140, %p141
      %p143 = scmp.ne.s32.totalorder %s132, %s135
      %p144 = scmp.eq.s32.totalorder %s17, 1
      %p145 = por %p143, %p144
      %p146 = scmp.ne.s32.totalorder %s135, %s136
      %p147 = scmp.eq.s32.totalorder %s17, 0
      %p148 = por %p146, %p147
      %p149 = scmp.ne.s32.totalorder %s135, %s136
      %p150 = scmp.eq.s32.totalorder %s18, 1
      %p151 = por %p149, %p150
      %p153 = scmp.ne.s32.totalorder %s136, %s152
      %p154 = scmp.eq.s32.totalorder %s18, 0
      %p155 = por %p153, %p154
      %p156 = scmp.le.s32.totalorder 1, %s12
      %p157 = scmp.lt.s32.totalorder %s12, 3
      %p158 = pnand %p156, %p157
      %p159 = pneg %p158
      // Predicated region
      $region9: #{inv_cog_forward.5} parent=5 // pred_check
        _
      $region10: #{inv_cog_forward.5} parent=5 // pred_check_branch
        %161 = sbr.rel (%p158) target = $region12
      $region11: #{inv_cog_forward.5} parent=5 // pred_region
        %s162 = ssub.s32 %s12, 1
        // Predicated region
        $region13: #{inv_cog_forward.5} parent=11 // pred_check
          %p163 = pneg %p59
        $region14: #{inv_cog_forward.5} parent=11 // pred_check_branch
          %165 = sbr.rel (%p163) target = $region16
        $region15: #{inv_cog_forward.5} parent=11 // pred_region
          %s167 = ssub.s32 32768, 32768
          %168 = vsyncadd [#allocation3], %s167
          %s169 = sshll.u32 [#allocation2], 4
          %s170 = int_to_ptr.vmem [resolvable:$true] %s169
          %175 = dma.hbm_to_vmem [thread:$0]  %s1, 32768, %s170, [#allocation3], 256, 256, 16
        $region16: #{inv_cog_forward.5} parent=11 // pred_fallthru
          _
        // Predicated region
        $region17: #{inv_cog_forward.5} parent=11 // pred_check
          %p176 = pneg %p80
        $region18: #{inv_cog_forward.5} parent=11 // pred_check_branch
          %178 = sbr.rel (%p176) target = $region20
        $region19: #{inv_cog_forward.5} parent=11 // pred_region
          _
        $region20: #{inv_cog_forward.5} parent=11 // pred_fallthru
          _
        // Predicated region
        $region21: #{inv_cog_forward.5} parent=11 // pred_check
          %p179 = pneg %p101
        $region22: #{inv_cog_forward.5} parent=11 // pred_check_branch
          %181 = sbr.rel (%p179) target = $region24
        $region23: #{inv_cog_forward.5} parent=11 // pred_region
          _
        $region24: #{inv_cog_forward.5} parent=11 // pred_fallthru
          _
        // Predicated region
        $region25: #{inv_cog_forward.5} parent=11 // pred_check
          %p182 = pneg %p122
        $region26: #{inv_cog_forward.5} parent=11 // pred_check_branch
          %184 = sbr.rel (%p182) target = $region28
        $region27: #{inv_cog_forward.5} parent=11 // pred_region
          _
        $region28: #{inv_cog_forward.5} parent=11 // pred_fallthru
          _
      $region12: #{inv_cog_forward.5} parent=5 // pred_fallthru
        _
      %p185 = scmp.lt.s32.totalorder %s12, 2
      // Predicated region
      $region29: #{inv_cog_forward.5} parent=5 // pred_check
        %p186 = pneg %p185
      $region30: #{inv_cog_forward.5} parent=5 // pred_check_branch
        %188 = sbr.rel (%p186) target = $region32
      $region31: #{inv_cog_forward.5} parent=5 // pred_region
        // Predicated region
        $region33: #{inv_cog_forward.5} parent=31 // pred_check
          %p189 = pneg %p32
        $region34: #{inv_cog_forward.5} parent=31 // pred_check_branch
          %191 = sbr.rel (%p189) target = $region36
        $region35: #{inv_cog_forward.5} parent=31 // pred_region
          %p192 = scmp.lt.s32.totalorder %s12, 1
          %s193 = scalar_select %p192, %s12, 1
          %s194 = smul.addr %s193, 8
          %s195 = smul.addr %s194, 8
          %s196 = scalar_lea.vmem %s0, %s195
        $region36: #{inv_cog_forward.5} parent=31 // pred_fallthru
          _
      $region32: #{inv_cog_forward.5} parent=5 // pred_fallthru
        _
      %p197 = scmp.le.s32.totalorder 1, %s12
      %p198 = scmp.lt.s32.totalorder %s12, 3
      %p199 = pnand %p197, %p198
      %p200 = pneg %p199
      // Predicated region
      $region37: #{inv_cog_forward.5} parent=5 // pred_check
        _
      $region38: #{inv_cog_forward.5} parent=5 // pred_check_branch
        %202 = sbr.rel (%p199) target = $region40
      $region39: #{inv_cog_forward.5} parent=5 // pred_region
        %s203 = ssub.s32 %s12, 1
        // Predicated region
        $region41: #{inv_cog_forward.5} parent=39 // pred_check
          %p204 = pneg %p59
        $region42: #{inv_cog_forward.5} parent=39 // pred_check_branch
          %206 = sbr.rel (%p204) target = $region44
        $region43: #{inv_cog_forward.5} parent=39 // pred_region
          %207 = dma.done [#allocation3], 32768
        $region44: #{inv_cog_forward.5} parent=39 // pred_fallthru
          _
        %p208 = scmp.lt.s32.totalorder %s17, 1
        %s209 = scalar_select %p208, %s17, 1
        %s210 = smul.addr %s209, 8
        %s211 = smul.addr %s210, 8
        %s212 = scalar_lea.vmem %s0, %s211
        %p213 = pneg %p38
        %p214 = pneg %p35
        %p215 = pneg %p59
        %p216 = pneg %p56
        %p217 = pneg %p80
        %p218 = pneg %p77
        %p219 = pneg %p101
        %p220 = pneg %p98
        %p221 = pneg %p122
        %p222 = pneg %p119
        %p223 = pneg %p148
        %p224 = pneg %p145
        %p225 = scmp.lt.s32.totalorder %s17, 1
        %s226 = scalar_select %p225, %s17, 1
        %s227 = smul.addr %s226, 8
        %s228 = scalar_lea.vmem %s5, %s227
        %p229 = scmp.lt.s32.totalorder %s17, 1
        %s230 = scalar_select %p229, %s17, 1
        %s231 = smul.addr %s230, 8
        %s232 = smul.addr %s231, 8
        %s233 = scalar_lea.vmem %s0, %s232
        %p234 = scmp.lt.s32.totalorder %s17, 1
        %s235 = scalar_select %p234, %s17, 1
        %s236 = smul.addr %s235, 8
        %s237 = scalar_lea.vmem %s5, %s236
        %v239 = vld [vmem:[%s233] sm:$0xff]
        %v240 = vld [vmem:[%s233 + $0x8] sm:$0xff]
        %v241 = vld [vmem:[%s233 + $0x10] sm:$0xff]
        %v242 = vld [vmem:[%s233 + $0x18] sm:$0xff]
        %v243 = vld [vmem:[%s233 + $0x20] sm:$0xff]
        %v244 = vld [vmem:[%s233 + $0x28] sm:$0xff]
        %v245 = vld [vmem:[%s233 + $0x30] sm:$0xff]
        %v246 = vld [vmem:[%s233 + $0x38] sm:$0xff]
        %v247 = vpack.c.bf16 %v239, %v239
        %v248 = vpack.c.bf16 %v240, %v240
        %v249 = vpack.c.bf16 %v241, %v241
        %v250 = vpack.c.bf16 %v242, %v242
        %v251 = vpack.c.bf16 %v243, %v243
        %v252 = vpack.c.bf16 %v244, %v244
        %v253 = vpack.c.bf16 %v245, %v245
        %v254 = vpack.c.bf16 %v246, %v246
        %v255 = vld [vmem:[#allocation2] sm:$0xff]
        %v256 = vld [vmem:[#allocation2 + $0x8] sm:$0xff]
        %v257 = vld [vmem:[#allocation2 + $0x10] sm:$0xff]
        %v258 = vld [vmem:[#allocation2 + $0x18] sm:$0xff]
        %v259 = vld [vmem:[#allocation2 + $0x20] sm:$0xff]
        %v260 = vld [vmem:[#allocation2 + $0x28] sm:$0xff]
        %v261 = vld [vmem:[#allocation2 + $0x30] sm:$0xff]
        %v262 = vld [vmem:[#allocation2 + $0x38] sm:$0xff]
        %v263 = vld [vmem:[#allocation2 + $0x40] sm:$0xff]
        %v264 = vld [vmem:[#allocation2 + $0x48] sm:$0xff]
        %v265 = vld [vmem:[#allocation2 + $0x50] sm:$0xff]
        %v266 = vld [vmem:[#allocation2 + $0x58] sm:$0xff]
        %v267 = vld [vmem:[#allocation2 + $0x60] sm:$0xff]
        %v268 = vld [vmem:[#allocation2 + $0x68] sm:$0xff]
        %v269 = vld [vmem:[#allocation2 + $0x70] sm:$0xff]
        %v270 = vld [vmem:[#allocation2 + $0x78] sm:$0xff]
        %v271 = vld [vmem:[#allocation2 + $0x80] sm:$0xff]
        %v272 = vld [vmem:[#allocation2 + $0x88] sm:$0xff]
        %v273 = vld [vmem:[#allocation2 + $0x90] sm:$0xff]
        %v274 = vld [vmem:[#allocation2 + $0x98] sm:$0xff]
        %v275 = vld [vmem:[#allocation2 + $0xa0] sm:$0xff]
        %v276 = vld [vmem:[#allocation2 + $0xa8] sm:$0xff]
        %v277 = vld [vmem:[#allocation2 + $0xb0] sm:$0xff]
        %v278 = vld [vmem:[#allocation2 + $0xb8] sm:$0xff]
        %v279 = vld [vmem:[#allocation2 + $0xc0] sm:$0xff]
        %v280 = vld [vmem:[#allocation2 + $0xc8] sm:$0xff]
        %v281 = vld [vmem:[#allocation2 + $0xd0] sm:$0xff]
        %v282 = vld [vmem:[#allocation2 + $0xd8] sm:$0xff]
        %v283 = vld [vmem:[#allocation2 + $0xe0] sm:$0xff]
        %v284 = vld [vmem:[#allocation2 + $0xe8] sm:$0xff]
        %v285 = vld [vmem:[#allocation2 + $0xf0] sm:$0xff]
        %v286 = vld [vmem:[#allocation2 + $0xf8] sm:$0xff]
        %v287 = vld [vmem:[#allocation2 + $0x100] sm:$0xff]
        %v288 = vld [vmem:[#allocation2 + $0x108] sm:$0xff]
        %v289 = vld [vmem:[#allocation2 + $0x110] sm:$0xff]
        %v290 = vld [vmem:[#allocation2 + $0x118] sm:$0xff]
        %v291 = vld [vmem:[#allocation2 + $0x120] sm:$0xff]
        %v292 = vld [vmem:[#allocation2 + $0x128] sm:$0xff]
        %v293 = vld [vmem:[#allocation2 + $0x130] sm:$0xff]
        %v294 = vld [vmem:[#allocation2 + $0x138] sm:$0xff]
        %v295 = vld [vmem:[#allocation2 + $0x140] sm:$0xff]
        %v296 = vld [vmem:[#allocation2 + $0x148] sm:$0xff]
        %v297 = vld [vmem:[#allocation2 + $0x150] sm:$0xff]
        %v298 = vld [vmem:[#allocation2 + $0x158] sm:$0xff]
        %v299 = vld [vmem:[#allocation2 + $0x160] sm:$0xff]
        %v300 = vld [vmem:[#allocation2 + $0x168] sm:$0xff]
        %v301 = vld [vmem:[#allocation2 + $0x170] sm:$0xff]
        %v302 = vld [vmem:[#allocation2 + $0x178] sm:$0xff]
        %v303 = vld [vmem:[#allocation2 + $0x180] sm:$0xff]
        %v304 = vld [vmem:[#allocation2 + $0x188] sm:$0xff]
        %v305 = vld [vmem:[#allocation2 + $0x190] sm:$0xff]
        %v306 = vld [vmem:[#allocation2 + $0x198] sm:$0xff]
        %v307 = vld [vmem:[#allocation2 + $0x1a0] sm:$0xff]
        %v308 = vld [vmem:[#allocation2 + $0x1a8] sm:$0xff]
        %v309 = vld [vmem:[#allocation2 + $0x1b0] sm:$0xff]
        %v310 = vld [vmem:[#allocation2 + $0x1b8] sm:$0xff]
        %v311 = vld [vmem:[#allocation2 + $0x1c0] sm:$0xff]
        %v312 = vld [vmem:[#allocation2 + $0x1c8] sm:$0xff]
        %v313 = vld [vmem:[#allocation2 + $0x1d0] sm:$0xff]
        %v314 = vld [vmem:[#allocation2 + $0x1d8] sm:$0xff]
        %v315 = vld [vmem:[#allocation2 + $0x1e0] sm:$0xff]
        %v316 = vld [vmem:[#allocation2 + $0x1e8] sm:$0xff]
        %v317 = vld [vmem:[#allocation2 + $0x1f0] sm:$0xff]
        %v318 = vld [vmem:[#allocation2 + $0x1f8] sm:$0xff]
        %v319 = vld [vmem:[#allocation2 + $0x200] sm:$0xff]
        %v320 = vld [vmem:[#allocation2 + $0x208] sm:$0xff]
        %v321 = vld [vmem:[#allocation2 + $0x210] sm:$0xff]
        %v322 = vld [vmem:[#allocation2 + $0x218] sm:$0xff]
        %v323 = vld [vmem:[#allocation2 + $0x220] sm:$0xff]
        %v324 = vld [vmem:[#allocation2 + $0x228] sm:$0xff]
        %v325 = vld [vmem:[#allocation2 + $0x230] sm:$0xff]
        %v326 = vld [vmem:[#allocation2 + $0x238] sm:$0xff]
        %v327 = vld [vmem:[#allocation2 + $0x240] sm:$0xff]
        %v328 = vld [vmem:[#allocation2 + $0x248] sm:$0xff]
        %v329 = vld [vmem:[#allocation2 + $0x250] sm:$0xff]
        %v330 = vld [vmem:[#allocation2 + $0x258] sm:$0xff]
        %v331 = vld [vmem:[#allocation2 + $0x260] sm:$0xff]
        %v332 = vld [vmem:[#allocation2 + $0x268] sm:$0xff]
        %v333 = vld [vmem:[#allocation2 + $0x270] sm:$0xff]
        %v334 = vld [vmem:[#allocation2 + $0x278] sm:$0xff]
        %v335 = vld [vmem:[#allocation2 + $0x280] sm:$0xff]
        %v336 = vld [vmem:[#allocation2 + $0x288] sm:$0xff]
        %v337 = vld [vmem:[#allocation2 + $0x290] sm:$0xff]
        %v338 = vld [vmem:[#allocation2 + $0x298] sm:$0xff]
        %v339 = vld [vmem:[#allocation2 + $0x2a0] sm:$0xff]
        %v340 = vld [vmem:[#allocation2 + $0x2a8] sm:$0xff]
        %v341 = vld [vmem:[#allocation2 + $0x2b0] sm:$0xff]
        %v342 = vld [vmem:[#allocation2 + $0x2b8] sm:$0xff]
        %v343 = vld [vmem:[#allocation2 + $0x2c0] sm:$0xff]
        %v344 = vld [vmem:[#allocation2 + $0x2c8] sm:$0xff]
        %v345 = vld [vmem:[#allocation2 + $0x2d0] sm:$0xff]
        %v346 = vld [vmem:[#allocation2 + $0x2d8] sm:$0xff]
        %v347 = vld [vmem:[#allocation2 + $0x2e0] sm:$0xff]
        %v348 = vld [vmem:[#allocation2 + $0x2e8] sm:$0xff]
        %v349 = vld [vmem:[#allocation2 + $0x2f0] sm:$0xff]
        %v350 = vld [vmem:[#allocation2 + $0x2f8] sm:$0xff]
        %v351 = vld [vmem:[#allocation2 + $0x300] sm:$0xff]
        %v352 = vld [vmem:[#allocation2 + $0x308] sm:$0xff]
        %v353 = vld [vmem:[#allocation2 + $0x310] sm:$0xff]
        %v354 = vld [vmem:[#allocation2 + $0x318] sm:$0xff]
        %v355 = vld [vmem:[#allocation2 + $0x320] sm:$0xff]
        %v356 = vld [vmem:[#allocation2 + $0x328] sm:$0xff]
        %v357 = vld [vmem:[#allocation2 + $0x330] sm:$0xff]
        %v358 = vld [vmem:[#allocation2 + $0x338] sm:$0xff]
        %v359 = vld [vmem:[#allocation2 + $0x340] sm:$0xff]
        %v360 = vld [vmem:[#allocation2 + $0x348] sm:$0xff]
        %v361 = vld [vmem:[#allocation2 + $0x350] sm:$0xff]
        %v362 = vld [vmem:[#allocation2 + $0x358] sm:$0xff]
        %v363 = vld [vmem:[#allocation2 + $0x360] sm:$0xff]
        %v364 = vld [vmem:[#allocation2 + $0x368] sm:$0xff]
        %v365 = vld [vmem:[#allocation2 + $0x370] sm:$0xff]
        %v366 = vld [vmem:[#allocation2 + $0x378] sm:$0xff]
        %v367 = vld [vmem:[#allocation2 + $0x380] sm:$0xff]
        %v368 = vld [vmem:[#allocation2 + $0x388] sm:$0xff]
        %v369 = vld [vmem:[#allocation2 + $0x390] sm:$0xff]
        %v370 = vld [vmem:[#allocation2 + $0x398] sm:$0xff]
        %v371 = vld [vmem:[#allocation2 + $0x3a0] sm:$0xff]
        %v372 = vld [vmem:[#allocation2 + $0x3a8] sm:$0xff]
        %v373 = vld [vmem:[#allocation2 + $0x3b0] sm:$0xff]
        %v374 = vld [vmem:[#allocation2 + $0x3b8] sm:$0xff]
        %v375 = vld [vmem:[#allocation2 + $0x3c0] sm:$0xff]
        %v376 = vld [vmem:[#allocation2 + $0x3c8] sm:$0xff]
        %v377 = vld [vmem:[#allocation2 + $0x3d0] sm:$0xff]
        %v378 = vld [vmem:[#allocation2 + $0x3d8] sm:$0xff]
        %v379 = vld [vmem:[#allocation2 + $0x3e0] sm:$0xff]
        %v380 = vld [vmem:[#allocation2 + $0x3e8] sm:$0xff]
        %v381 = vld [vmem:[#allocation2 + $0x3f0] sm:$0xff]
        %v382 = vld [vmem:[#allocation2 + $0x3f8] sm:$0xff]
        %v383 = vld [vmem:[#allocation2 + $0x400] sm:$0xff]
        %v384 = vld [vmem:[#allocation2 + $0x408] sm:$0xff]
        %v385 = vld [vmem:[#allocation2 + $0x410] sm:$0xff]
        %v386 = vld [vmem:[#allocation2 + $0x418] sm:$0xff]
        %v387 = vld [vmem:[#allocation2 + $0x420] sm:$0xff]
        %v388 = vld [vmem:[#allocation2 + $0x428] sm:$0xff]
        %v389 = vld [vmem:[#allocation2 + $0x430] sm:$0xff]
        %v390 = vld [vmem:[#allocation2 + $0x438] sm:$0xff]
        %v391 = vld [vmem:[#allocation2 + $0x440] sm:$0xff]
        %v392 = vld [vmem:[#allocation2 + $0x448] sm:$0xff]
        %v393 = vld [vmem:[#allocation2 + $0x450] sm:$0xff]
        %v394 = vld [vmem:[#allocation2 + $0x458] sm:$0xff]
        %v395 = vld [vmem:[#allocation2 + $0x460] sm:$0xff]
        %v396 = vld [vmem:[#allocation2 + $0x468] sm:$0xff]
        %v397 = vld [vmem:[#allocation2 + $0x470] sm:$0xff]
        %v398 = vld [vmem:[#allocation2 + $0x478] sm:$0xff]
        %v399 = vld [vmem:[#allocation2 + $0x480] sm:$0xff]
        %v400 = vld [vmem:[#allocation2 + $0x488] sm:$0xff]
        %v401 = vld [vmem:[#allocation2 + $0x490] sm:$0xff]
        %v402 = vld [vmem:[#allocation2 + $0x498] sm:$0xff]
        %v403 = vld [vmem:[#allocation2 + $0x4a0] sm:$0xff]
        %v404 = vld [vmem:[#allocation2 + $0x4a8] sm:$0xff]
        %v405 = vld [vmem:[#allocation2 + $0x4b0] sm:$0xff]
        %v406 = vld [vmem:[#allocation2 + $0x4b8] sm:$0xff]
        %v407 = vld [vmem:[#allocation2 + $0x4c0] sm:$0xff]
        %v408 = vld [vmem:[#allocation2 + $0x4c8] sm:$0xff]
        %v409 = vld [vmem:[#allocation2 + $0x4d0] sm:$0xff]
        %v410 = vld [vmem:[#allocation2 + $0x4d8] sm:$0xff]
        %v411 = vld [vmem:[#allocation2 + $0x4e0] sm:$0xff]
        %v412 = vld [vmem:[#allocation2 + $0x4e8] sm:$0xff]
        %v413 = vld [vmem:[#allocation2 + $0x4f0] sm:$0xff]
        %v414 = vld [vmem:[#allocation2 + $0x4f8] sm:$0xff]
        %v415 = vld [vmem:[#allocation2 + $0x500] sm:$0xff]
        %v416 = vld [vmem:[#allocation2 + $0x508] sm:$0xff]
        %v417 = vld [vmem:[#allocation2 + $0x510] sm:$0xff]
        %v418 = vld [vmem:[#allocation2 + $0x518] sm:$0xff]
        %v419 = vld [vmem:[#allocation2 + $0x520] sm:$0xff]
        %v420 = vld [vmem:[#allocation2 + $0x528] sm:$0xff]
        %v421 = vld [vmem:[#allocation2 + $0x530] sm:$0xff]
        %v422 = vld [vmem:[#allocation2 + $0x538] sm:$0xff]
        %v423 = vld [vmem:[#allocation2 + $0x540] sm:$0xff]
        %v424 = vld [vmem:[#allocation2 + $0x548] sm:$0xff]
        %v425 = vld [vmem:[#allocation2 + $0x550] sm:$0xff]
        %v426 = vld [vmem:[#allocation2 + $0x558] sm:$0xff]
        %v427 = vld [vmem:[#allocation2 + $0x560] sm:$0xff]
        %v428 = vld [vmem:[#allocation2 + $0x568] sm:$0xff]
        %v429 = vld [vmem:[#allocation2 + $0x570] sm:$0xff]
        %v430 = vld [vmem:[#allocation2 + $0x578] sm:$0xff]
        %v431 = vld [vmem:[#allocation2 + $0x580] sm:$0xff]
        %v432 = vld [vmem:[#allocation2 + $0x588] sm:$0xff]
        %v433 = vld [vmem:[#allocation2 + $0x590] sm:$0xff]
        %v434 = vld [vmem:[#allocation2 + $0x598] sm:$0xff]
        %v435 = vld [vmem:[#allocation2 + $0x5a0] sm:$0xff]
        %v436 = vld [vmem:[#allocation2 + $0x5a8] sm:$0xff]
        %v437 = vld [vmem:[#allocation2 + $0x5b0] sm:$0xff]
        %v438 = vld [vmem:[#allocation2 + $0x5b8] sm:$0xff]
        %v439 = vld [vmem:[#allocation2 + $0x5c0] sm:$0xff]
        %v440 = vld [vmem:[#allocation2 + $0x5c8] sm:$0xff]
        %v441 = vld [vmem:[#allocation2 + $0x5d0] sm:$0xff]
        %v442 = vld [vmem:[#allocation2 + $0x5d8] sm:$0xff]
        %v443 = vld [vmem:[#allocation2 + $0x5e0] sm:$0xff]
        %v444 = vld [vmem:[#allocation2 + $0x5e8] sm:$0xff]
        %v445 = vld [vmem:[#allocation2 + $0x5f0] sm:$0xff]
        %v446 = vld [vmem:[#allocation2 + $0x5f8] sm:$0xff]
        %v447 = vld [vmem:[#allocation2 + $0x600] sm:$0xff]
        %v448 = vld [vmem:[#allocation2 + $0x608] sm:$0xff]
        %v449 = vld [vmem:[#allocation2 + $0x610] sm:$0xff]
        %v450 = vld [vmem:[#allocation2 + $0x618] sm:$0xff]
        %v451 = vld [vmem:[#allocation2 + $0x620] sm:$0xff]
        %v452 = vld [vmem:[#allocation2 + $0x628] sm:$0xff]
        %v453 = vld [vmem:[#allocation2 + $0x630] sm:$0xff]
        %v454 = vld [vmem:[#allocation2 + $0x638] sm:$0xff]
        %v455 = vld [vmem:[#allocation2 + $0x640] sm:$0xff]
        %v456 = vld [vmem:[#allocation2 + $0x648] sm:$0xff]
        %v457 = vld [vmem:[#allocation2 + $0x650] sm:$0xff]
        %v458 = vld [vmem:[#allocation2 + $0x658] sm:$0xff]
        %v459 = vld [vmem:[#allocation2 + $0x660] sm:$0xff]
        %v460 = vld [vmem:[#allocation2 + $0x668] sm:$0xff]
        %v461 = vld [vmem:[#allocation2 + $0x670] sm:$0xff]
        %v462 = vld [vmem:[#allocation2 + $0x678] sm:$0xff]
        %v463 = vld [vmem:[#allocation2 + $0x680] sm:$0xff]
        %v464 = vld [vmem:[#allocation2 + $0x688] sm:$0xff]
        %v465 = vld [vmem:[#allocation2 + $0x690] sm:$0xff]
        %v466 = vld [vmem:[#allocation2 + $0x698] sm:$0xff]
        %v467 = vld [vmem:[#allocation2 + $0x6a0] sm:$0xff]
        %v468 = vld [vmem:[#allocation2 + $0x6a8] sm:$0xff]
        %v469 = vld [vmem:[#allocation2 + $0x6b0] sm:$0xff]
        %v470 = vld [vmem:[#allocation2 + $0x6b8] sm:$0xff]
        %v471 = vld [vmem:[#allocation2 + $0x6c0] sm:$0xff]
        %v472 = vld [vmem:[#allocation2 + $0x6c8] sm:$0xff]
        %v473 = vld [vmem:[#allocation2 + $0x6d0] sm:$0xff]
        %v474 = vld [vmem:[#allocation2 + $0x6d8] sm:$0xff]
        %v475 = vld [vmem:[#allocation2 + $0x6e0] sm:$0xff]
        %v476 = vld [vmem:[#allocation2 + $0x6e8] sm:$0xff]
        %v477 = vld [vmem:[#allocation2 + $0x6f0] sm:$0xff]
        %v478 = vld [vmem:[#allocation2 + $0x6f8] sm:$0xff]
        %v479 = vld [vmem:[#allocation2 + $0x700] sm:$0xff]
        %v480 = vld [vmem:[#allocation2 + $0x708] sm:$0xff]
        %v481 = vld [vmem:[#allocation2 + $0x710] sm:$0xff]
        %v482 = vld [vmem:[#allocation2 + $0x718] sm:$0xff]
        %v483 = vld [vmem:[#allocation2 + $0x720] sm:$0xff]
        %v484 = vld [vmem:[#allocation2 + $0x728] sm:$0xff]
        %v485 = vld [vmem:[#allocation2 + $0x730] sm:$0xff]
        %v486 = vld [vmem:[#allocation2 + $0x738] sm:$0xff]
        %v487 = vld [vmem:[#allocation2 + $0x740] sm:$0xff]
        %v488 = vld [vmem:[#allocation2 + $0x748] sm:$0xff]
        %v489 = vld [vmem:[#allocation2 + $0x750] sm:$0xff]
        %v490 = vld [vmem:[#allocation2 + $0x758] sm:$0xff]
        %v491 = vld [vmem:[#allocation2 + $0x760] sm:$0xff]
        %v492 = vld [vmem:[#allocation2 + $0x768] sm:$0xff]
        %v493 = vld [vmem:[#allocation2 + $0x770] sm:$0xff]
        %v494 = vld [vmem:[#allocation2 + $0x778] sm:$0xff]
        %v495 = vld [vmem:[#allocation2 + $0x780] sm:$0xff]
        %v496 = vld [vmem:[#allocation2 + $0x788] sm:$0xff]
        %v497 = vld [vmem:[#allocation2 + $0x790] sm:$0xff]
        %v498 = vld [vmem:[#allocation2 + $0x798] sm:$0xff]
        %v499 = vld [vmem:[#allocation2 + $0x7a0] sm:$0xff]
        %v500 = vld [vmem:[#allocation2 + $0x7a8] sm:$0xff]
        %v501 = vld [vmem:[#allocation2 + $0x7b0] sm:$0xff]
        %v502 = vld [vmem:[#allocation2 + $0x7b8] sm:$0xff]
        %v503 = vld [vmem:[#allocation2 + $0x7c0] sm:$0xff]
        %v504 = vld [vmem:[#allocation2 + $0x7c8] sm:$0xff]
        %v505 = vld [vmem:[#allocation2 + $0x7d0] sm:$0xff]
        %v506 = vld [vmem:[#allocation2 + $0x7d8] sm:$0xff]
        %v507 = vld [vmem:[#allocation2 + $0x7e0] sm:$0xff]
        %v508 = vld [vmem:[#allocation2 + $0x7e8] sm:$0xff]
        %v509 = vld [vmem:[#allocation2 + $0x7f0] sm:$0xff]
        %v510 = vld [vmem:[#allocation2 + $0x7f8] sm:$0xff]
        %v511 = vld [vmem:[%s2] sm:$0xf]
        %v513 = vlaneseq
        %v514 = vshrl.u32 %v513, 7
        %v515 = vsub.s32 0, %v514
        %v516 = vrot.slane %v511, %v515
        %v517 = vlaneseq
        %v518 = vshrl.u32 %v517, 7
        %v519 = vsub.s32 1, %v518
        %v520 = vrot.slane %v511, %v519
        %v521 = vlaneseq
        %v522 = vshrl.u32 %v521, 7
        %v523 = vsub.s32 2, %v522
        %v524 = vrot.slane %v511, %v523
        %v525 = vlaneseq
        %v526 = vshrl.u32 %v525, 7
        %v527 = vsub.s32 3, %v526
        %v528 = vrot.slane %v511, %v527
        %v789 = vunpack.c.l.b16 %v255
        %v790 = vunpack.c.h.b16 %v255
        %v791 = vunpack.c.l.b16 %v256
        %v792 = vunpack.c.h.b16 %v256
        %v793 = vunpack.c.l.b16 %v257
        %v794 = vunpack.c.h.b16 %v257
        %v795 = vunpack.c.l.b16 %v258
        %v796 = vunpack.c.h.b16 %v258
        %v797 = vunpack.c.l.b16 %v259
        %v798 = vunpack.c.h.b16 %v259
        %v799 = vunpack.c.l.b16 %v260
        %v800 = vunpack.c.h.b16 %v260
        %v801 = vunpack.c.l.b16 %v261
        %v802 = vunpack.c.h.b16 %v261
        %v803 = vunpack.c.l.b16 %v262
        %v804 = vunpack.c.h.b16 %v262
        %v805 = vunpack.c.l.b16 %v263
        %v806 = vunpack.c.h.b16 %v263
        %v807 = vunpack.c.l.b16 %v264
        %v808 = vunpack.c.h.b16 %v264
        %v809 = vunpack.c.l.b16 %v265
        %v810 = vunpack.c.h.b16 %v265
        %v811 = vunpack.c.l.b16 %v266
        %v812 = vunpack.c.h.b16 %v266
        %v813 = vunpack.c.l.b16 %v267
        %v814 = vunpack.c.h.b16 %v267
        %v815 = vunpack.c.l.b16 %v268
        %v816 = vunpack.c.h.b16 %v268
        %v817 = vunpack.c.l.b16 %v269
        %v818 = vunpack.c.h.b16 %v269
        %v819 = vunpack.c.l.b16 %v270
        %v820 = vunpack.c.h.b16 %v270
        %v821 = vunpack.c.l.b16 %v271
        %v822 = vunpack.c.h.b16 %v271
        %v823 = vunpack.c.l.b16 %v272
        %v824 = vunpack.c.h.b16 %v272
        %v825 = vunpack.c.l.b16 %v273
        %v826 = vunpack.c.h.b16 %v273
        %v827 = vunpack.c.l.b16 %v274
        %v828 = vunpack.c.h.b16 %v274
        %v829 = vunpack.c.l.b16 %v275
        %v830 = vunpack.c.h.b16 %v275
        %v831 = vunpack.c.l.b16 %v276
        %v832 = vunpack.c.h.b16 %v276
        %v833 = vunpack.c.l.b16 %v277
        %v834 = vunpack.c.h.b16 %v277
        %v835 = vunpack.c.l.b16 %v278
        %v836 = vunpack.c.h.b16 %v278
        %v837 = vunpack.c.l.b16 %v279
        %v838 = vunpack.c.h.b16 %v279
        %v839 = vunpack.c.l.b16 %v280
        %v840 = vunpack.c.h.b16 %v280
        %v841 = vunpack.c.l.b16 %v281
        %v842 = vunpack.c.h.b16 %v281
        %v843 = vunpack.c.l.b16 %v282
        %v844 = vunpack.c.h.b16 %v282
        %v845 = vunpack.c.l.b16 %v283
        %v846 = vunpack.c.h.b16 %v283
        %v847 = vunpack.c.l.b16 %v284
        %v848 = vunpack.c.h.b16 %v284
        %v849 = vunpack.c.l.b16 %v285
        %v850 = vunpack.c.h.b16 %v285
        %v851 = vunpack.c.l.b16 %v286
        %v852 = vunpack.c.h.b16 %v286
        %v853 = vunpack.c.l.b16 %v287
        %v854 = vunpack.c.h.b16 %v287
        %v855 = vunpack.c.l.b16 %v288
        %v856 = vunpack.c.h.b16 %v288
        %v857 = vunpack.c.l.b16 %v289
        %v858 = vunpack.c.h.b16 %v289
        %v859 = vunpack.c.l.b16 %v290
        %v860 = vunpack.c.h.b16 %v290
        %v861 = vunpack.c.l.b16 %v291
        %v862 = vunpack.c.h.b16 %v291
        %v863 = vunpack.c.l.b16 %v292
        %v864 = vunpack.c.h.b16 %v292
        %v865 = vunpack.c.l.b16 %v293
        %v866 = vunpack.c.h.b16 %v293
        %v867 = vunpack.c.l.b16 %v294
        %v868 = vunpack.c.h.b16 %v294
        %v869 = vunpack.c.l.b16 %v295
        %v870 = vunpack.c.h.b16 %v295
        %v871 = vunpack.c.l.b16 %v296
        %v872 = vunpack.c.h.b16 %v296
        %v873 = vunpack.c.l.b16 %v297
        %v874 = vunpack.c.h.b16 %v297
        %v875 = vunpack.c.l.b16 %v298
        %v876 = vunpack.c.h.b16 %v298
        %v877 = vunpack.c.l.b16 %v299
        %v878 = vunpack.c.h.b16 %v299
        %v879 = vunpack.c.l.b16 %v300
        %v880 = vunpack.c.h.b16 %v300
        %v881 = vunpack.c.l.b16 %v301
        %v882 = vunpack.c.h.b16 %v301
        %v883 = vunpack.c.l.b16 %v302
        %v884 = vunpack.c.h.b16 %v302
        %v885 = vunpack.c.l.b16 %v303
        %v886 = vunpack.c.h.b16 %v303
        %v887 = vunpack.c.l.b16 %v304
        %v888 = vunpack.c.h.b16 %v304
        %v889 = vunpack.c.l.b16 %v305
        %v890 = vunpack.c.h.b16 %v305
        %v891 = vunpack.c.l.b16 %v306
        %v892 = vunpack.c.h.b16 %v306
        %v893 = vunpack.c.l.b16 %v307
        %v894 = vunpack.c.h.b16 %v307
        %v895 = vunpack.c.l.b16 %v308
        %v896 = vunpack.c.h.b16 %v308
        %v897 = vunpack.c.l.b16 %v309
        %v898 = vunpack.c.h.b16 %v309
        %v899 = vunpack.c.l.b16 %v310
        %v900 = vunpack.c.h.b16 %v310
        %v901 = vunpack.c.l.b16 %v311
        %v902 = vunpack.c.h.b16 %v311
        %v903 = vunpack.c.l.b16 %v312
        %v904 = vunpack.c.h.b16 %v312
        %v905 = vunpack.c.l.b16 %v313
        %v906 = vunpack.c.h.b16 %v313
        %v907 = vunpack.c.l.b16 %v314
        %v908 = vunpack.c.h.b16 %v314
        %v909 = vunpack.c.l.b16 %v315
        %v910 = vunpack.c.h.b16 %v315
        %v911 = vunpack.c.l.b16 %v316
        %v912 = vunpack.c.h.b16 %v316
        %v913 = vunpack.c.l.b16 %v317
        %v914 = vunpack.c.h.b16 %v317
        %v915 = vunpack.c.l.b16 %v318
        %v916 = vunpack.c.h.b16 %v318
        %v917 = vunpack.c.l.b16 %v319
        %v918 = vunpack.c.h.b16 %v319
        %v919 = vunpack.c.l.b16 %v320
        %v920 = vunpack.c.h.b16 %v320
        %v921 = vunpack.c.l.b16 %v321
        %v922 = vunpack.c.h.b16 %v321
        %v923 = vunpack.c.l.b16 %v322
        %v924 = vunpack.c.h.b16 %v322
        %v925 = vunpack.c.l.b16 %v323
        %v926 = vunpack.c.h.b16 %v323
        %v927 = vunpack.c.l.b16 %v324
        %v928 = vunpack.c.h.b16 %v324
        %v929 = vunpack.c.l.b16 %v325
        %v930 = vunpack.c.h.b16 %v325
        %v931 = vunpack.c.l.b16 %v326
        %v932 = vunpack.c.h.b16 %v326
        %v933 = vunpack.c.l.b16 %v327
        %v934 = vunpack.c.h.b16 %v327
        %v935 = vunpack.c.l.b16 %v328
        %v936 = vunpack.c.h.b16 %v328
        %v937 = vunpack.c.l.b16 %v329
        %v938 = vunpack.c.h.b16 %v329
        %v939 = vunpack.c.l.b16 %v330
        %v940 = vunpack.c.h.b16 %v330
        %v941 = vunpack.c.l.b16 %v331
        %v942 = vunpack.c.h.b16 %v331
        %v943 = vunpack.c.l.b16 %v332
        %v944 = vunpack.c.h.b16 %v332
        %v945 = vunpack.c.l.b16 %v333
        %v946 = vunpack.c.h.b16 %v333
        %v947 = vunpack.c.l.b16 %v334
        %v948 = vunpack.c.h.b16 %v334
        %v949 = vunpack.c.l.b16 %v335
        %v950 = vunpack.c.h.b16 %v335
        %v951 = vunpack.c.l.b16 %v336
        %v952 = vunpack.c.h.b16 %v336
        %v953 = vunpack.c.l.b16 %v337
        %v954 = vunpack.c.h.b16 %v337
        %v955 = vunpack.c.l.b16 %v338
        %v956 = vunpack.c.h.b16 %v338
        %v957 = vunpack.c.l.b16 %v339
        %v958 = vunpack.c.h.b16 %v339
        %v959 = vunpack.c.l.b16 %v340
        %v960 = vunpack.c.h.b16 %v340
        %v961 = vunpack.c.l.b16 %v341
        %v962 = vunpack.c.h.b16 %v341
        %v963 = vunpack.c.l.b16 %v342
        %v964 = vunpack.c.h.b16 %v342
        %v965 = vunpack.c.l.b16 %v343
        %v966 = vunpack.c.h.b16 %v343
        %v967 = vunpack.c.l.b16 %v344
        %v968 = vunpack.c.h.b16 %v344
        %v969 = vunpack.c.l.b16 %v345
        %v970 = vunpack.c.h.b16 %v345
        %v971 = vunpack.c.l.b16 %v346
        %v972 = vunpack.c.h.b16 %v346
        %v973 = vunpack.c.l.b16 %v347
        %v974 = vunpack.c.h.b16 %v347
        %v975 = vunpack.c.l.b16 %v348
        %v976 = vunpack.c.h.b16 %v348
        %v977 = vunpack.c.l.b16 %v349
        %v978 = vunpack.c.h.b16 %v349
        %v979 = vunpack.c.l.b16 %v350
        %v980 = vunpack.c.h.b16 %v350
        %v981 = vunpack.c.l.b16 %v351
        %v982 = vunpack.c.h.b16 %v351
        %v983 = vunpack.c.l.b16 %v352
        %v984 = vunpack.c.h.b16 %v352
        %v985 = vunpack.c.l.b16 %v353
        %v986 = vunpack.c.h.b16 %v353
        %v987 = vunpack.c.l.b16 %v354
        %v988 = vunpack.c.h.b16 %v354
        %v989 = vunpack.c.l.b16 %v355
        %v990 = vunpack.c.h.b16 %v355
        %v991 = vunpack.c.l.b16 %v356
        %v992 = vunpack.c.h.b16 %v356
        %v993 = vunpack.c.l.b16 %v357
        %v994 = vunpack.c.h.b16 %v357
        %v995 = vunpack.c.l.b16 %v358
        %v996 = vunpack.c.h.b16 %v358
        %v997 = vunpack.c.l.b16 %v359
        %v998 = vunpack.c.h.b16 %v359
        %v999 = vunpack.c.l.b16 %v360
        %v1000 = vunpack.c.h.b16 %v360
        %v1001 = vunpack.c.l.b16 %v361
        %v1002 = vunpack.c.h.b16 %v361
        %v1003 = vunpack.c.l.b16 %v362
        %v1004 = vunpack.c.h.b16 %v362
        %v1005 = vunpack.c.l.b16 %v363
        %v1006 = vunpack.c.h.b16 %v363
        %v1007 = vunpack.c.l.b16 %v364
        %v1008 = vunpack.c.h.b16 %v364
        %v1009 = vunpack.c.l.b16 %v365
        %v1010 = vunpack.c.h.b16 %v365
        %v1011 = vunpack.c.l.b16 %v366
        %v1012 = vunpack.c.h.b16 %v366
        %v1013 = vunpack.c.l.b16 %v367
        %v1014 = vunpack.c.h.b16 %v367
        %v1015 = vunpack.c.l.b16 %v368
        %v1016 = vunpack.c.h.b16 %v368
        %v1017 = vunpack.c.l.b16 %v369
        %v1018 = vunpack.c.h.b16 %v369
        %v1019 = vunpack.c.l.b16 %v370
        %v1020 = vunpack.c.h.b16 %v370
        %v1021 = vunpack.c.l.b16 %v371
        %v1022 = vunpack.c.h.b16 %v371
        %v1023 = vunpack.c.l.b16 %v372
        %v1024 = vunpack.c.h.b16 %v372
        %v1025 = vunpack.c.l.b16 %v373
        %v1026 = vunpack.c.h.b16 %v373
        %v1027 = vunpack.c.l.b16 %v374
        %v1028 = vunpack.c.h.b16 %v374
        %v1029 = vunpack.c.l.b16 %v375
        %v1030 = vunpack.c.h.b16 %v375
        %v1031 = vunpack.c.l.b16 %v376
        %v1032 = vunpack.c.h.b16 %v376
        %v1033 = vunpack.c.l.b16 %v377
        %v1034 = vunpack.c.h.b16 %v377
        %v1035 = vunpack.c.l.b16 %v378
        %v1036 = vunpack.c.h.b16 %v378
        %v1037 = vunpack.c.l.b16 %v379
        %v1038 = vunpack.c.h.b16 %v379
        %v1039 = vunpack.c.l.b16 %v380
        %v1040 = vunpack.c.h.b16 %v380
        %v1041 = vunpack.c.l.b16 %v381
        %v1042 = vunpack.c.h.b16 %v381
        %v1043 = vunpack.c.l.b16 %v382
        %v1044 = vunpack.c.h.b16 %v382
        %v1045 = vunpack.c.l.b16 %v383
        %v1046 = vunpack.c.h.b16 %v383
        %v1047 = vunpack.c.l.b16 %v384
        %v1048 = vunpack.c.h.b16 %v384
        %v1049 = vunpack.c.l.b16 %v385
        %v1050 = vunpack.c.h.b16 %v385
        %v1051 = vunpack.c.l.b16 %v386
        %v1052 = vunpack.c.h.b16 %v386
        %v1053 = vunpack.c.l.b16 %v387
        %v1054 = vunpack.c.h.b16 %v387
        %v1055 = vunpack.c.l.b16 %v388
        %v1056 = vunpack.c.h.b16 %v388
        %v1057 = vunpack.c.l.b16 %v389
        %v1058 = vunpack.c.h.b16 %v389
        %v1059 = vunpack.c.l.b16 %v390
        %v1060 = vunpack.c.h.b16 %v390
        %v1061 = vunpack.c.l.b16 %v391
        %v1062 = vunpack.c.h.b16 %v391
        %v1063 = vunpack.c.l.b16 %v392
        %v1064 = vunpack.c.h.b16 %v392
        %v1065 = vunpack.c.l.b16 %v393
        %v1066 = vunpack.c.h.b16 %v393
        %v1067 = vunpack.c.l.b16 %v394
        %v1068 = vunpack.c.h.b16 %v394
        %v1069 = vunpack.c.l.b16 %v395
        %v1070 = vunpack.c.h.b16 %v395
        %v1071 = vunpack.c.l.b16 %v396
        %v1072 = vunpack.c.h.b16 %v396
        %v1073 = vunpack.c.l.b16 %v397
        %v1074 = vunpack.c.h.b16 %v397
        %v1075 = vunpack.c.l.b16 %v398
        %v1076 = vunpack.c.h.b16 %v398
        %v1077 = vunpack.c.l.b16 %v399
        %v1078 = vunpack.c.h.b16 %v399
        %v1079 = vunpack.c.l.b16 %v400
        %v1080 = vunpack.c.h.b16 %v400
        %v1081 = vunpack.c.l.b16 %v401
        %v1082 = vunpack.c.h.b16 %v401
        %v1083 = vunpack.c.l.b16 %v402
        %v1084 = vunpack.c.h.b16 %v402
        %v1085 = vunpack.c.l.b16 %v403
        %v1086 = vunpack.c.h.b16 %v403
        %v1087 = vunpack.c.l.b16 %v404
        %v1088 = vunpack.c.h.b16 %v404
        %v1089 = vunpack.c.l.b16 %v405
        %v1090 = vunpack.c.h.b16 %v405
        %v1091 = vunpack.c.l.b16 %v406
        %v1092 = vunpack.c.h.b16 %v406
        %v1093 = vunpack.c.l.b16 %v407
        %v1094 = vunpack.c.h.b16 %v407
        %v1095 = vunpack.c.l.b16 %v408
        %v1096 = vunpack.c.h.b16 %v408
        %v1097 = vunpack.c.l.b16 %v409
        %v1098 = vunpack.c.h.b16 %v409
        %v1099 = vunpack.c.l.b16 %v410
        %v1100 = vunpack.c.h.b16 %v410
        %v1101 = vunpack.c.l.b16 %v411
        %v1102 = vunpack.c.h.b16 %v411
        %v1103 = vunpack.c.l.b16 %v412
        %v1104 = vunpack.c.h.b16 %v412
        %v1105 = vunpack.c.l.b16 %v413
        %v1106 = vunpack.c.h.b16 %v413
        %v1107 = vunpack.c.l.b16 %v414
        %v1108 = vunpack.c.h.b16 %v414
        %v1109 = vunpack.c.l.b16 %v415
        %v1110 = vunpack.c.h.b16 %v415
        %v1111 = vunpack.c.l.b16 %v416
        %v1112 = vunpack.c.h.b16 %v416
        %v1113 = vunpack.c.l.b16 %v417
        %v1114 = vunpack.c.h.b16 %v417
        %v1115 = vunpack.c.l.b16 %v418
        %v1116 = vunpack.c.h.b16 %v418
        %v1117 = vunpack.c.l.b16 %v419
        %v1118 = vunpack.c.h.b16 %v419
        %v1119 = vunpack.c.l.b16 %v420
        %v1120 = vunpack.c.h.b16 %v420
        %v1121 = vunpack.c.l.b16 %v421
        %v1122 = vunpack.c.h.b16 %v421
        %v1123 = vunpack.c.l.b16 %v422
        %v1124 = vunpack.c.h.b16 %v422
        %v1125 = vunpack.c.l.b16 %v423
        %v1126 = vunpack.c.h.b16 %v423
        %v1127 = vunpack.c.l.b16 %v424
        %v1128 = vunpack.c.h.b16 %v424
        %v1129 = vunpack.c.l.b16 %v425
        %v1130 = vunpack.c.h.b16 %v425
        %v1131 = vunpack.c.l.b16 %v426
        %v1132 = vunpack.c.h.b16 %v426
        %v1133 = vunpack.c.l.b16 %v427
        %v1134 = vunpack.c.h.b16 %v427
        %v1135 = vunpack.c.l.b16 %v428
        %v1136 = vunpack.c.h.b16 %v428
        %v1137 = vunpack.c.l.b16 %v429
        %v1138 = vunpack.c.h.b16 %v429
        %v1139 = vunpack.c.l.b16 %v430
        %v1140 = vunpack.c.h.b16 %v430
        %v1141 = vunpack.c.l.b16 %v431
        %v1142 = vunpack.c.h.b16 %v431
        %v1143 = vunpack.c.l.b16 %v432
        %v1144 = vunpack.c.h.b16 %v432
        %v1145 = vunpack.c.l.b16 %v433
        %v1146 = vunpack.c.h.b16 %v433
        %v1147 = vunpack.c.l.b16 %v434
        %v1148 = vunpack.c.h.b16 %v434
        %v1149 = vunpack.c.l.b16 %v435
        %v1150 = vunpack.c.h.b16 %v435
        %v1151 = vunpack.c.l.b16 %v436
        %v1152 = vunpack.c.h.b16 %v436
        %v1153 = vunpack.c.l.b16 %v437
        %v1154 = vunpack.c.h.b16 %v437
        %v1155 = vunpack.c.l.b16 %v438
        %v1156 = vunpack.c.h.b16 %v438
        %v1157 = vunpack.c.l.b16 %v439
        %v1158 = vunpack.c.h.b16 %v439
        %v1159 = vunpack.c.l.b16 %v440
        %v1160 = vunpack.c.h.b16 %v440
        %v1161 = vunpack.c.l.b16 %v441
        %v1162 = vunpack.c.h.b16 %v441
        %v1163 = vunpack.c.l.b16 %v442
        %v1164 = vunpack.c.h.b16 %v442
        %v1165 = vunpack.c.l.b16 %v443
        %v1166 = vunpack.c.h.b16 %v443
        %v1167 = vunpack.c.l.b16 %v444
        %v1168 = vunpack.c.h.b16 %v444
        %v1169 = vunpack.c.l.b16 %v445
        %v1170 = vunpack.c.h.b16 %v445
        %v1171 = vunpack.c.l.b16 %v446
        %v1172 = vunpack.c.h.b16 %v446
        %v1173 = vunpack.c.l.b16 %v447
        %v1174 = vunpack.c.h.b16 %v447
        %v1175 = vunpack.c.l.b16 %v448
        %v1176 = vunpack.c.h.b16 %v448
        %v1177 = vunpack.c.l.b16 %v449
        %v1178 = vunpack.c.h.b16 %v449
        %v1179 = vunpack.c.l.b16 %v450
        %v1180 = vunpack.c.h.b16 %v450
        %v1181 = vunpack.c.l.b16 %v451
        %v1182 = vunpack.c.h.b16 %v451
        %v1183 = vunpack.c.l.b16 %v452
        %v1184 = vunpack.c.h.b16 %v452
        %v1185 = vunpack.c.l.b16 %v453
        %v1186 = vunpack.c.h.b16 %v453
        %v1187 = vunpack.c.l.b16 %v454
        %v1188 = vunpack.c.h.b16 %v454
        %v1189 = vunpack.c.l.b16 %v455
        %v1190 = vunpack.c.h.b16 %v455
        %v1191 = vunpack.c.l.b16 %v456
        %v1192 = vunpack.c.h.b16 %v456
        %v1193 = vunpack.c.l.b16 %v457
        %v1194 = vunpack.c.h.b16 %v457
        %v1195 = vunpack.c.l.b16 %v458
        %v1196 = vunpack.c.h.b16 %v458
        %v1197 = vunpack.c.l.b16 %v459
        %v1198 = vunpack.c.h.b16 %v459
        %v1199 = vunpack.c.l.b16 %v460
        %v1200 = vunpack.c.h.b16 %v460
        %v1201 = vunpack.c.l.b16 %v461
        %v1202 = vunpack.c.h.b16 %v461
        %v1203 = vunpack.c.l.b16 %v462
        %v1204 = vunpack.c.h.b16 %v462
        %v1205 = vunpack.c.l.b16 %v463
        %v1206 = vunpack.c.h.b16 %v463
        %v1207 = vunpack.c.l.b16 %v464
        %v1208 = vunpack.c.h.b16 %v464
        %v1209 = vunpack.c.l.b16 %v465
        %v1210 = vunpack.c.h.b16 %v465
        %v1211 = vunpack.c.l.b16 %v466
        %v1212 = vunpack.c.h.b16 %v466
        %v1213 = vunpack.c.l.b16 %v467
        %v1214 = vunpack.c.h.b16 %v467
        %v1215 = vunpack.c.l.b16 %v468
        %v1216 = vunpack.c.h.b16 %v468
        %v1217 = vunpack.c.l.b16 %v469
        %v1218 = vunpack.c.h.b16 %v469
        %v1219 = vunpack.c.l.b16 %v470
        %v1220 = vunpack.c.h.b16 %v470
        %v1221 = vunpack.c.l.b16 %v471
        %v1222 = vunpack.c.h.b16 %v471
        %v1223 = vunpack.c.l.b16 %v472
        %v1224 = vunpack.c.h.b16 %v472
        %v1225 = vunpack.c.l.b16 %v473
        %v1226 = vunpack.c.h.b16 %v473
        %v1227 = vunpack.c.l.b16 %v474
        %v1228 = vunpack.c.h.b16 %v474
        %v1229 = vunpack.c.l.b16 %v475
        %v1230 = vunpack.c.h.b16 %v475
        %v1231 = vunpack.c.l.b16 %v476
        %v1232 = vunpack.c.h.b16 %v476
        %v1233 = vunpack.c.l.b16 %v477
        %v1234 = vunpack.c.h.b16 %v477
        %v1235 = vunpack.c.l.b16 %v478
        %v1236 = vunpack.c.h.b16 %v478
        %v1237 = vunpack.c.l.b16 %v479
        %v1238 = vunpack.c.h.b16 %v479
        %v1239 = vunpack.c.l.b16 %v480
        %v1240 = vunpack.c.h.b16 %v480
        %v1241 = vunpack.c.l.b16 %v481
        %v1242 = vunpack.c.h.b16 %v481
        %v1243 = vunpack.c.l.b16 %v482
        %v1244 = vunpack.c.h.b16 %v482
        %v1245 = vunpack.c.l.b16 %v483
        %v1246 = vunpack.c.h.b16 %v483
        %v1247 = vunpack.c.l.b16 %v484
        %v1248 = vunpack.c.h.b16 %v484
        %v1249 = vunpack.c.l.b16 %v485
        %v1250 = vunpack.c.h.b16 %v485
        %v1251 = vunpack.c.l.b16 %v486
        %v1252 = vunpack.c.h.b16 %v486
        %v1253 = vunpack.c.l.b16 %v487
        %v1254 = vunpack.c.h.b16 %v487
        %v1255 = vunpack.c.l.b16 %v488
        %v1256 = vunpack.c.h.b16 %v488
        %v1257 = vunpack.c.l.b16 %v489
        %v1258 = vunpack.c.h.b16 %v489
        %v1259 = vunpack.c.l.b16 %v490
        %v1260 = vunpack.c.h.b16 %v490
        %v1261 = vunpack.c.l.b16 %v491
        %v1262 = vunpack.c.h.b16 %v491
        %v1263 = vunpack.c.l.b16 %v492
        %v1264 = vunpack.c.h.b16 %v492
        %v1265 = vunpack.c.l.b16 %v493
        %v1266 = vunpack.c.h.b16 %v493
        %v1267 = vunpack.c.l.b16 %v494
        %v1268 = vunpack.c.h.b16 %v494
        %v1269 = vunpack.c.l.b16 %v495
        %v1270 = vunpack.c.h.b16 %v495
        %v1271 = vunpack.c.l.b16 %v496
        %v1272 = vunpack.c.h.b16 %v496
        %v1273 = vunpack.c.l.b16 %v497
        %v1274 = vunpack.c.h.b16 %v497
        %v1275 = vunpack.c.l.b16 %v498
        %v1276 = vunpack.c.h.b16 %v498
        %v1277 = vunpack.c.l.b16 %v499
        %v1278 = vunpack.c.h.b16 %v499
        %v1279 = vunpack.c.l.b16 %v500
        %v1280 = vunpack.c.h.b16 %v500
        %v1281 = vunpack.c.l.b16 %v501
        %v1282 = vunpack.c.h.b16 %v501
        %v1283 = vunpack.c.l.b16 %v502
        %v1284 = vunpack.c.h.b16 %v502
        %v1285 = vunpack.c.l.b16 %v503
        %v1286 = vunpack.c.h.b16 %v503
        %v1287 = vunpack.c.l.b16 %v504
        %v1288 = vunpack.c.h.b16 %v504
        %v1289 = vunpack.c.l.b16 %v505
        %v1290 = vunpack.c.h.b16 %v505
        %v1291 = vunpack.c.l.b16 %v506
        %v1292 = vunpack.c.h.b16 %v506
        %v1293 = vunpack.c.l.b16 %v507
        %v1294 = vunpack.c.h.b16 %v507
        %v1295 = vunpack.c.l.b16 %v508
        %v1296 = vunpack.c.h.b16 %v508
        %v1297 = vunpack.c.l.b16 %v509
        %v1298 = vunpack.c.h.b16 %v509
        %v1299 = vunpack.c.l.b16 %v510
        %v1300 = vunpack.c.h.b16 %v510
        %v1301 = vpack.c.b16 %v793, %v789
        %v1302 = vpack.c.b16 %v794, %v790
        %v1303 = vpack.c.b16 %v795, %v791
        %v1304 = vpack.c.b16 %v796, %v792
        %v1305 = vpack.c.b16 %v801, %v797
        %v1306 = vpack.c.b16 %v802, %v798
        %v1307 = vpack.c.b16 %v803, %v799
        %v1308 = vpack.c.b16 %v804, %v800
        %v1309 = vpack.c.b16 %v809, %v805
        %v1310 = vpack.c.b16 %v810, %v806
        %v1311 = vpack.c.b16 %v811, %v807
        %v1312 = vpack.c.b16 %v812, %v808
        %v1313 = vpack.c.b16 %v817, %v813
        %v1314 = vpack.c.b16 %v818, %v814
        %v1315 = vpack.c.b16 %v819, %v815
        %v1316 = vpack.c.b16 %v820, %v816
        %v1317 = vpack.c.b16 %v825, %v821
        %v1318 = vpack.c.b16 %v826, %v822
        %v1319 = vpack.c.b16 %v827, %v823
        %v1320 = vpack.c.b16 %v828, %v824
        %v1321 = vpack.c.b16 %v833, %v829
        %v1322 = vpack.c.b16 %v834, %v830
        %v1323 = vpack.c.b16 %v835, %v831
        %v1324 = vpack.c.b16 %v836, %v832
        %v1325 = vpack.c.b16 %v841, %v837
        %v1326 = vpack.c.b16 %v842, %v838
        %v1327 = vpack.c.b16 %v843, %v839
        %v1328 = vpack.c.b16 %v844, %v840
        %v1329 = vpack.c.b16 %v849, %v845
        %v1330 = vpack.c.b16 %v850, %v846
        %v1331 = vpack.c.b16 %v851, %v847
        %v1332 = vpack.c.b16 %v852, %v848
        %v1333 = vpack.c.b16 %v857, %v853
        %v1334 = vpack.c.b16 %v858, %v854
        %v1335 = vpack.c.b16 %v859, %v855
        %v1336 = vpack.c.b16 %v860, %v856
        %v1337 = vpack.c.b16 %v865, %v861
        %v1338 = vpack.c.b16 %v866, %v862
        %v1339 = vpack.c.b16 %v867, %v863
        %v1340 = vpack.c.b16 %v868, %v864
        %v1341 = vpack.c.b16 %v873, %v869
        %v1342 = vpack.c.b16 %v874, %v870
        %v1343 = vpack.c.b16 %v875, %v871
        %v1344 = vpack.c.b16 %v876, %v872
        %v1345 = vpack.c.b16 %v881, %v877
        %v1346 = vpack.c.b16 %v882, %v878
        %v1347 = vpack.c.b16 %v883, %v879
        %v1348 = vpack.c.b16 %v884, %v880
        %v1349 = vpack.c.b16 %v889, %v885
        %v1350 = vpack.c.b16 %v890, %v886
        %v1351 = vpack.c.b16 %v891, %v887
        %v1352 = vpack.c.b16 %v892, %v888
        %v1353 = vpack.c.b16 %v897, %v893
        %v1354 = vpack.c.b16 %v898, %v894
        %v1355 = vpack.c.b16 %v899, %v895
        %v1356 = vpack.c.b16 %v900, %v896
        %v1357 = vpack.c.b16 %v905, %v901
        %v1358 = vpack.c.b16 %v906, %v902
        %v1359 = vpack.c.b16 %v907, %v903
        %v1360 = vpack.c.b16 %v908, %v904
        %v1361 = vpack.c.b16 %v913, %v909
        %v1362 = vpack.c.b16 %v914, %v910
        %v1363 = vpack.c.b16 %v915, %v911
        %v1364 = vpack.c.b16 %v916, %v912
        %v1365 = vpack.c.b16 %v921, %v917
        %v1366 = vpack.c.b16 %v922, %v918
        %v1367 = vpack.c.b16 %v923, %v919
        %v1368 = vpack.c.b16 %v924, %v920
        %v1369 = vpack.c.b16 %v929, %v925
        %v1370 = vpack.c.b16 %v930, %v926
        %v1371 = vpack.c.b16 %v931, %v927
        %v1372 = vpack.c.b16 %v932, %v928
        %v1373 = vpack.c.b16 %v937, %v933
        %v1374 = vpack.c.b16 %v938, %v934
        %v1375 = vpack.c.b16 %v939, %v935
        %v1376 = vpack.c.b16 %v940, %v936
        %v1377 = vpack.c.b16 %v945, %v941
        %v1378 = vpack.c.b16 %v946, %v942
        %v1379 = vpack.c.b16 %v947, %v943
        %v1380 = vpack.c.b16 %v948, %v944
        %v1381 = vpack.c.b16 %v953, %v949
        %v1382 = vpack.c.b16 %v954, %v950
        %v1383 = vpack.c.b16 %v955, %v951
        %v1384 = vpack.c.b16 %v956, %v952
        %v1385 = vpack.c.b16 %v961, %v957
        %v1386 = vpack.c.b16 %v962, %v958
        %v1387 = vpack.c.b16 %v963, %v959
        %v1388 = vpack.c.b16 %v964, %v960
        %v1389 = vpack.c.b16 %v969, %v965
        %v1390 = vpack.c.b16 %v970, %v966
        %v1391 = vpack.c.b16 %v971, %v967
        %v1392 = vpack.c.b16 %v972, %v968
        %v1393 = vpack.c.b16 %v977, %v973
        %v1394 = vpack.c.b16 %v978, %v974
        %v1395 = vpack.c.b16 %v979, %v975
        %v1396 = vpack.c.b16 %v980, %v976
        %v1397 = vpack.c.b16 %v985, %v981
        %v1398 = vpack.c.b16 %v986, %v982
        %v1399 = vpack.c.b16 %v987, %v983
        %v1400 = vpack.c.b16 %v988, %v984
        %v1401 = vpack.c.b16 %v993, %v989
        %v1402 = vpack.c.b16 %v994, %v990
        %v1403 = vpack.c.b16 %v995, %v991
        %v1404 = vpack.c.b16 %v996, %v992
        %v1405 = vpack.c.b16 %v1001, %v997
        %v1406 = vpack.c.b16 %v1002, %v998
        %v1407 = vpack.c.b16 %v1003, %v999
        %v1408 = vpack.c.b16 %v1004, %v1000
        %v1409 = vpack.c.b16 %v1009, %v1005
        %v1410 = vpack.c.b16 %v1010, %v1006
        %v1411 = vpack.c.b16 %v1011, %v1007
        %v1412 = vpack.c.b16 %v1012, %v1008
        %v1413 = vpack.c.b16 %v1017, %v1013
        %v1414 = vpack.c.b16 %v1018, %v1014
        %v1415 = vpack.c.b16 %v1019, %v1015
        %v1416 = vpack.c.b16 %v1020, %v1016
        %v1417 = vpack.c.b16 %v1025, %v1021
        %v1418 = vpack.c.b16 %v1026, %v1022
        %v1419 = vpack.c.b16 %v1027, %v1023
        %v1420 = vpack.c.b16 %v1028, %v1024
        %v1421 = vpack.c.b16 %v1033, %v1029
        %v1422 = vpack.c.b16 %v1034, %v1030
        %v1423 = vpack.c.b16 %v1035, %v1031
        %v1424 = vpack.c.b16 %v1036, %v1032
        %v1425 = vpack.c.b16 %v1041, %v1037
        %v1426 = vpack.c.b16 %v1042, %v1038
        %v1427 = vpack.c.b16 %v1043, %v1039
        %v1428 = vpack.c.b16 %v1044, %v1040
        %v1429 = vpack.c.b16 %v1049, %v1045
        %v1430 = vpack.c.b16 %v1050, %v1046
        %v1431 = vpack.c.b16 %v1051, %v1047
        %v1432 = vpack.c.b16 %v1052, %v1048
        %v1433 = vpack.c.b16 %v1057, %v1053
        %v1434 = vpack.c.b16 %v1058, %v1054
        %v1435 = vpack.c.b16 %v1059, %v1055
        %v1436 = vpack.c.b16 %v1060, %v1056
        %v1437 = vpack.c.b16 %v1065, %v1061
        %v1438 = vpack.c.b16 %v1066, %v1062
        %v1439 = vpack.c.b16 %v1067, %v1063
        %v1440 = vpack.c.b16 %v1068, %v1064
        %v1441 = vpack.c.b16 %v1073, %v1069
        %v1442 = vpack.c.b16 %v1074, %v1070
        %v1443 = vpack.c.b16 %v1075, %v1071
        %v1444 = vpack.c.b16 %v1076, %v1072
        %v1445 = vpack.c.b16 %v1081, %v1077
        %v1446 = vpack.c.b16 %v1082, %v1078
        %v1447 = vpack.c.b16 %v1083, %v1079
        %v1448 = vpack.c.b16 %v1084, %v1080
        %v1449 = vpack.c.b16 %v1089, %v1085
        %v1450 = vpack.c.b16 %v1090, %v1086
        %v1451 = vpack.c.b16 %v1091, %v1087
        %v1452 = vpack.c.b16 %v1092, %v1088
        %v1453 = vpack.c.b16 %v1097, %v1093
        %v1454 = vpack.c.b16 %v1098, %v1094
        %v1455 = vpack.c.b16 %v1099, %v1095
        %v1456 = vpack.c.b16 %v1100, %v1096
        %v1457 = vpack.c.b16 %v1105, %v1101
        %v1458 = vpack.c.b16 %v1106, %v1102
        %v1459 = vpack.c.b16 %v1107, %v1103
        %v1460 = vpack.c.b16 %v1108, %v1104
        %v1461 = vpack.c.b16 %v1113, %v1109
        %v1462 = vpack.c.b16 %v1114, %v1110
        %v1463 = vpack.c.b16 %v1115, %v1111
        %v1464 = vpack.c.b16 %v1116, %v1112
        %v1465 = vpack.c.b16 %v1121, %v1117
        %v1466 = vpack.c.b16 %v1122, %v1118
        %v1467 = vpack.c.b16 %v1123, %v1119
        %v1468 = vpack.c.b16 %v1124, %v1120
        %v1469 = vpack.c.b16 %v1129, %v1125
        %v1470 = vpack.c.b16 %v1130, %v1126
        %v1471 = vpack.c.b16 %v1131, %v1127
        %v1472 = vpack.c.b16 %v1132, %v1128
        %v1473 = vpack.c.b16 %v1137, %v1133
        %v1474 = vpack.c.b16 %v1138, %v1134
        %v1475 = vpack.c.b16 %v1139, %v1135
        %v1476 = vpack.c.b16 %v1140, %v1136
        %v1477 = vpack.c.b16 %v1145, %v1141
        %v1478 = vpack.c.b16 %v1146, %v1142
        %v1479 = vpack.c.b16 %v1147, %v1143
        %v1480 = vpack.c.b16 %v1148, %v1144
        %v1481 = vpack.c.b16 %v1153, %v1149
        %v1482 = vpack.c.b16 %v1154, %v1150
        %v1483 = vpack.c.b16 %v1155, %v1151
        %v1484 = vpack.c.b16 %v1156, %v1152
        %v1485 = vpack.c.b16 %v1161, %v1157
        %v1486 = vpack.c.b16 %v1162, %v1158
        %v1487 = vpack.c.b16 %v1163, %v1159
        %v1488 = vpack.c.b16 %v1164, %v1160
        %v1489 = vpack.c.b16 %v1169, %v1165
        %v1490 = vpack.c.b16 %v1170, %v1166
        %v1491 = vpack.c.b16 %v1171, %v1167
        %v1492 = vpack.c.b16 %v1172, %v1168
        %v1493 = vpack.c.b16 %v1177, %v1173
        %v1494 = vpack.c.b16 %v1178, %v1174
        %v1495 = vpack.c.b16 %v1179, %v1175
        %v1496 = vpack.c.b16 %v1180, %v1176
        %v1497 = vpack.c.b16 %v1185, %v1181
        %v1498 = vpack.c.b16 %v1186, %v1182
        %v1499 = vpack.c.b16 %v1187, %v1183
        %v1500 = vpack.c.b16 %v1188, %v1184
        %v1501 = vpack.c.b16 %v1193, %v1189
        %v1502 = vpack.c.b16 %v1194, %v1190
        %v1503 = vpack.c.b16 %v1195, %v1191
        %v1504 = vpack.c.b16 %v1196, %v1192
        %v1505 = vpack.c.b16 %v1201, %v1197
        %v1506 = vpack.c.b16 %v1202, %v1198
        %v1507 = vpack.c.b16 %v1203, %v1199
        %v1508 = vpack.c.b16 %v1204, %v1200
        %v1509 = vpack.c.b16 %v1209, %v1205
        %v1510 = vpack.c.b16 %v1210, %v1206
        %v1511 = vpack.c.b16 %v1211, %v1207
        %v1512 = vpack.c.b16 %v1212, %v1208
        %v1513 = vpack.c.b16 %v1217, %v1213
        %v1514 = vpack.c.b16 %v1218, %v1214
        %v1515 = vpack.c.b16 %v1219, %v1215
        %v1516 = vpack.c.b16 %v1220, %v1216
        %v1517 = vpack.c.b16 %v1225, %v1221
        %v1518 = vpack.c.b16 %v1226, %v1222
        %v1519 = vpack.c.b16 %v1227, %v1223
        %v1520 = vpack.c.b16 %v1228, %v1224
        %v1521 = vpack.c.b16 %v1233, %v1229
        %v1522 = vpack.c.b16 %v1234, %v1230
        %v1523 = vpack.c.b16 %v1235, %v1231
        %v1524 = vpack.c.b16 %v1236, %v1232
        %v1525 = vpack.c.b16 %v1241, %v1237
        %v1526 = vpack.c.b16 %v1242, %v1238
        %v1527 = vpack.c.b16 %v1243, %v1239
        %v1528 = vpack.c.b16 %v1244, %v1240
        %v1529 = vpack.c.b16 %v1249, %v1245
        %v1530 = vpack.c.b16 %v1250, %v1246
        %v1531 = vpack.c.b16 %v1251, %v1247
        %v1532 = vpack.c.b16 %v1252, %v1248
        %v1533 = vpack.c.b16 %v1257, %v1253
        %v1534 = vpack.c.b16 %v1258, %v1254
        %v1535 = vpack.c.b16 %v1259, %v1255
        %v1536 = vpack.c.b16 %v1260, %v1256
        %v1537 = vpack.c.b16 %v1265, %v1261
        %v1538 = vpack.c.b16 %v1266, %v1262
        %v1539 = vpack.c.b16 %v1267, %v1263
        %v1540 = vpack.c.b16 %v1268, %v1264
        %v1541 = vpack.c.b16 %v1273, %v1269
        %v1542 = vpack.c.b16 %v1274, %v1270
        %v1543 = vpack.c.b16 %v1275, %v1271
        %v1544 = vpack.c.b16 %v1276, %v1272
        %v1545 = vpack.c.b16 %v1281, %v1277
        %v1546 = vpack.c.b16 %v1282, %v1278
        %v1547 = vpack.c.b16 %v1283, %v1279
        %v1548 = vpack.c.b16 %v1284, %v1280
        %v1549 = vpack.c.b16 %v1289, %v1285
        %v1550 = vpack.c.b16 %v1290, %v1286
        %v1551 = vpack.c.b16 %v1291, %v1287
        %v1552 = vpack.c.b16 %v1292, %v1288
        %v1553 = vpack.c.b16 %v1297, %v1293
        %v1554 = vpack.c.b16 %v1298, %v1294
        %v1555 = vpack.c.b16 %v1299, %v1295
        %v1556 = vpack.c.b16 %v1300, %v1296
        %1813 = vmatprep.subr.bf16.mxu0 %v1302
        %1814 = vmatpush1.bf16.msra.mxu0 %v1301
        %1815 = vmatprep.subr.bf16.mxu0 %v1306
        %1816 = vmatpush1.bf16.msra.mxu0 %v1305
        %1817 = vmatprep.subr.bf16.mxu0 %v1310
        %1818 = vmatpush1.bf16.msra.mxu0 %v1309
        %1819 = vmatprep.subr.bf16.mxu0 %v1314
        %1820 = vmatpush1.bf16.msra.mxu0 %v1313
        %1821 = vmatprep.subr.bf16.mxu0 %v1318
        %1822 = vmatpush1.bf16.msra.mxu0 %v1317
        %1823 = vmatprep.subr.bf16.mxu0 %v1322
        %1824 = vmatpush1.bf16.msra.mxu0 %v1321
        %1825 = vmatprep.subr.bf16.mxu0 %v1326
        %1826 = vmatpush1.bf16.msra.mxu0 %v1325
        %1827 = vmatprep.subr.bf16.mxu0 %v1330
        %1828 = vmatpush1.bf16.msra.mxu0 %v1329
        %1829 = vmatprep.subr.bf16.mxu0 %v1334
        %1830 = vmatpush1.bf16.msra.mxu0 %v1333
        %1831 = vmatprep.subr.bf16.mxu0 %v1338
        %1832 = vmatpush1.bf16.msra.mxu0 %v1337
        %1833 = vmatprep.subr.bf16.mxu0 %v1342
        %1834 = vmatpush1.bf16.msra.mxu0 %v1341
        %1835 = vmatprep.subr.bf16.mxu0 %v1346
        %1836 = vmatpush1.bf16.msra.mxu0 %v1345
        %1837 = vmatprep.subr.bf16.mxu0 %v1350
        %1838 = vmatpush1.bf16.msra.mxu0 %v1349
        %1839 = vmatprep.subr.bf16.mxu0 %v1354
        %1840 = vmatpush1.bf16.msra.mxu0 %v1353
        %1841 = vmatprep.subr.bf16.mxu0 %v1358
        %1842 = vmatpush1.bf16.msra.mxu0 %v1357
        %1843 = vmatprep.subr.bf16.mxu0 %v1362
        %1844 = vmatpush1.bf16.msra.mxu0 %v1361
        %1845 = vmatprep.mubr.bf16.mxu0 %v248
        %1846 = vmatmul.mubr.bf16.gmra.mrb[0].mxu0 %v247
        %v1847 = vpop.f32.mrb[0].mxu0
        %v1848 = vadd.f32 %v516, %v1847
        %v1849 = vpop.f32.mrb[0].mxu0
        %v1850 = vadd.f32 %v520, %v1849
        %v1851 = vpop.f32.mrb[0].mxu0
        %v1852 = vpop.f32.mrb[0].mxu0
        %1853 = vdwg.mxu0
        %1854 = vmatprep.subr.bf16.mxu0 %v1366
        %1855 = vmatpush1.bf16.msra.mxu0 %v1365
        %1856 = vmatprep.subr.bf16.mxu0 %v1370
        %1857 = vmatpush1.bf16.msra.mxu0 %v1369
        %1858 = vmatprep.subr.bf16.mxu0 %v1374
        %1859 = vmatpush1.bf16.msra.mxu0 %v1373
        %1860 = vmatprep.subr.bf16.mxu0 %v1378
        %1861 = vmatpush1.bf16.msra.mxu0 %v1377
        %1862 = vmatprep.subr.bf16.mxu0 %v1382
        %1863 = vmatpush1.bf16.msra.mxu0 %v1381
        %1864 = vmatprep.subr.bf16.mxu0 %v1386
        %1865 = vmatpush1.bf16.msra.mxu0 %v1385
        %1866 = vmatprep.subr.bf16.mxu0 %v1390
        %1867 = vmatpush1.bf16.msra.mxu0 %v1389
        %1868 = vmatprep.subr.bf16.mxu0 %v1394
        %1869 = vmatpush1.bf16.msra.mxu0 %v1393
        %1870 = vmatprep.subr.bf16.mxu0 %v1398
        %1871 = vmatpush1.bf16.msra.mxu0 %v1397
        %1872 = vmatprep.subr.bf16.mxu0 %v1402
        %1873 = vmatpush1.bf16.msra.mxu0 %v1401
        %1874 = vmatprep.subr.bf16.mxu0 %v1406
        %1875 = vmatpush1.bf16.msra.mxu0 %v1405
        %1876 = vmatprep.subr.bf16.mxu0 %v1410
        %1877 = vmatpush1.bf16.msra.mxu0 %v1409
        %1878 = vmatprep.subr.bf16.mxu0 %v1414
        %1879 = vmatpush1.bf16.msra.mxu0 %v1413
        %1880 = vmatprep.subr.bf16.mxu0 %v1418
        %1881 = vmatpush1.bf16.msra.mxu0 %v1417
        %1882 = vmatprep.subr.bf16.mxu0 %v1422
        %1883 = vmatpush1.bf16.msra.mxu0 %v1421
        %1884 = vmatprep.subr.bf16.mxu0 %v1426
        %1885 = vmatpush1.bf16.msra.mxu0 %v1425
        %1886 = vmatprep.mubr.bf16.mxu0 %v250
        %1887 = vmatmul.mubr.bf16.gmra.mrb[0].mxu0 %v249
        %v1888 = vpop.f32.mrb[0].mxu0
        %v1889 = vadd.f32 %v1848, %v1888
        %v1890 = vpop.f32.mrb[0].mxu0
        %v1891 = vadd.f32 %v1850, %v1890
        %v1892 = vpop.f32.mrb[0].mxu0
        %v1893 = vpop.f32.mrb[0].mxu0
        %1894 = vdwg.mxu0
        %1895 = vmatprep.subr.bf16.mxu0 %v1430
        %1896 = vmatpush1.bf16.msra.mxu0 %v1429
        %1897 = vmatprep.subr.bf16.mxu0 %v1434
        %1898 = vmatpush1.bf16.msra.mxu0 %v1433
        %1899 = vmatprep.subr.bf16.mxu0 %v1438
        %1900 = vmatpush1.bf16.msra.mxu0 %v1437
        %1901 = vmatprep.subr.bf16.mxu0 %v1442
        %1902 = vmatpush1.bf16.msra.mxu0 %v1441
        %1903 = vmatprep.subr.bf16.mxu0 %v1446
        %1904 = vmatpush1.bf16.msra.mxu0 %v1445
        %1905 = vmatprep.subr.bf16.mxu0 %v1450
        %1906 = vmatpush1.bf16.msra.mxu0 %v1449
        %1907 = vmatprep.subr.bf16.mxu0 %v1454
        %1908 = vmatpush1.bf16.msra.mxu0 %v1453
        %1909 = vmatprep.subr.bf16.mxu0 %v1458
        %1910 = vmatpush1.bf16.msra.mxu0 %v1457
        %1911 = vmatprep.subr.bf16.mxu0 %v1462
        %1912 = vmatpush1.bf16.msra.mxu0 %v1461
        %1913 = vmatprep.subr.bf16.mxu0 %v1466
        %1914 = vmatpush1.bf16.msra.mxu0 %v1465
        %1915 = vmatprep.subr.bf16.mxu0 %v1470
        %1916 = vmatpush1.bf16.msra.mxu0 %v1469
        %1917 = vmatprep.subr.bf16.mxu0 %v1474
        %1918 = vmatpush1.bf16.msra.mxu0 %v1473
        %1919 = vmatprep.subr.bf16.mxu0 %v1478
        %1920 = vmatpush1.bf16.msra.mxu0 %v1477
        %1921 = vmatprep.subr.bf16.mxu0 %v1482
        %1922 = vmatpush1.bf16.msra.mxu0 %v1481
        %1923 = vmatprep.subr.bf16.mxu0 %v1486
        %1924 = vmatpush1.bf16.msra.mxu0 %v1485
        %1925 = vmatprep.subr.bf16.mxu0 %v1490
        %1926 = vmatpush1.bf16.msra.mxu0 %v1489
        %1927 = vmatprep.mubr.bf16.mxu0 %v252
        %1928 = vmatmul.mubr.bf16.gmra.mrb[0].mxu0 %v251
        %v1929 = vpop.f32.mrb[0].mxu0
        %v1930 = vadd.f32 %v1889, %v1929
        %v1931 = vpop.f32.mrb[0].mxu0
        %v1932 = vadd.f32 %v1891, %v1931
        %v1933 = vpop.f32.mrb[0].mxu0
        %v1934 = vpop.f32.mrb[0].mxu0
        %1935 = vdwg.mxu0
        %1936 = vmatprep.subr.bf16.mxu0 %v1494
        %1937 = vmatpush1.bf16.msra.mxu0 %v1493
        %1938 = vmatprep.subr.bf16.mxu0 %v1498
        %1939 = vmatpush1.bf16.msra.mxu0 %v1497
        %1940 = vmatprep.subr.bf16.mxu0 %v1502
        %1941 = vmatpush1.bf16.msra.mxu0 %v1501
        %1942 = vmatprep.subr.bf16.mxu0 %v1506
        %1943 = vmatpush1.bf16.msra.mxu0 %v1505
        %1944 = vmatprep.subr.bf16.mxu0 %v1510
        %1945 = vmatpush1.bf16.msra.mxu0 %v1509
        %1946 = vmatprep.subr.bf16.mxu0 %v1514
        %1947 = vmatpush1.bf16.msra.mxu0 %v1513
        %1948 = vmatprep.subr.bf16.mxu0 %v1518
        %1949 = vmatpush1.bf16.msra.mxu0 %v1517
        %1950 = vmatprep.subr.bf16.mxu0 %v1522
        %1951 = vmatpush1.bf16.msra.mxu0 %v1521
        %1952 = vmatprep.subr.bf16.mxu0 %v1526
        %1953 = vmatpush1.bf16.msra.mxu0 %v1525
        %1954 = vmatprep.subr.bf16.mxu0 %v1530
        %1955 = vmatpush1.bf16.msra.mxu0 %v1529
        %1956 = vmatprep.subr.bf16.mxu0 %v1534
        %1957 = vmatpush1.bf16.msra.mxu0 %v1533
        %1958 = vmatprep.subr.bf16.mxu0 %v1538
        %1959 = vmatpush1.bf16.msra.mxu0 %v1537
        %1960 = vmatprep.subr.bf16.mxu0 %v1542
        %1961 = vmatpush1.bf16.msra.mxu0 %v1541
        %1962 = vmatprep.subr.bf16.mxu0 %v1546
        %1963 = vmatpush1.bf16.msra.mxu0 %v1545
        %1964 = vmatprep.subr.bf16.mxu0 %v1550
        %1965 = vmatpush1.bf16.msra.mxu0 %v1549
        %1966 = vmatprep.subr.bf16.mxu0 %v1554
        %1967 = vmatpush1.bf16.msra.mxu0 %v1553
        %1968 = vmatprep.mubr.bf16.mxu0 %v254
        %1969 = vmatmul.mubr.bf16.gmra.mrb[0].mxu0 %v253
        %v1970 = vpop.f32.mrb[0].mxu0
        %v1971 = vadd.f32 %v1930, %v1970
        %v1972 = vpop.f32.mrb[0].mxu0
        %v1973 = vadd.f32 %v1932, %v1972
        %v1974 = vpop.f32.mrb[0].mxu0
        %v1975 = vpop.f32.mrb[0].mxu0
        %1976 = vdwg.mxu0
        %1977 = vmatprep.subr.bf16.mxu0 %v1304
        %1978 = vmatpush1.bf16.msra.mxu0 %v1303
        %1979 = vmatprep.subr.bf16.mxu0 %v1308
        %1980 = vmatpush1.bf16.msra.mxu0 %v1307
        %1981 = vmatprep.subr.bf16.mxu0 %v1312
        %1982 = vmatpush1.bf16.msra.mxu0 %v1311
        %1983 = vmatprep.subr.bf16.mxu0 %v1316
        %1984 = vmatpush1.bf16.msra.mxu0 %v1315
        %1985 = vmatprep.subr.bf16.mxu0 %v1320
        %1986 = vmatpush1.bf16.msra.mxu0 %v1319
        %1987 = vmatprep.subr.bf16.mxu0 %v1324
        %1988 = vmatpush1.bf16.msra.mxu0 %v1323
        %1989 = vmatprep.subr.bf16.mxu0 %v1328
        %1990 = vmatpush1.bf16.msra.mxu0 %v1327
        %1991 = vmatprep.subr.bf16.mxu0 %v1332
        %1992 = vmatpush1.bf16.msra.mxu0 %v1331
        %1993 = vmatprep.subr.bf16.mxu0 %v1336
        %1994 = vmatpush1.bf16.msra.mxu0 %v1335
        %1995 = vmatprep.subr.bf16.mxu0 %v1340
        %1996 = vmatpush1.bf16.msra.mxu0 %v1339
        %1997 = vmatprep.subr.bf16.mxu0 %v1344
        %1998 = vmatpush1.bf16.msra.mxu0 %v1343
        %1999 = vmatprep.subr.bf16.mxu0 %v1348
        %2000 = vmatpush1.bf16.msra.mxu0 %v1347
        %2001 = vmatprep.subr.bf16.mxu0 %v1352
        %2002 = vmatpush1.bf16.msra.mxu0 %v1351
        %2003 = vmatprep.subr.bf16.mxu0 %v1356
        %2004 = vmatpush1.bf16.msra.mxu0 %v1355
        %2005 = vmatprep.subr.bf16.mxu0 %v1360
        %2006 = vmatpush1.bf16.msra.mxu0 %v1359
        %2007 = vmatprep.subr.bf16.mxu0 %v1364
        %2008 = vmatpush1.bf16.msra.mxu0 %v1363
        %2009 = vmatprep.mubr.bf16.mxu0 %v248
        %2010 = vmatmul.mubr.bf16.gmra.mrb[0].mxu0 %v247
        %v2011 = vpop.f32.mrb[0].mxu0
        %v2012 = vadd.f32 %v524, %v2011
        %v2013 = vpop.f32.mrb[0].mxu0
        %v2014 = vadd.f32 %v528, %v2013
        %v2015 = vpop.f32.mrb[0].mxu0
        %v2016 = vpop.f32.mrb[0].mxu0
        %2017 = vdwg.mxu0
        %2018 = vmatprep.subr.bf16.mxu0 %v1368
        %2019 = vmatpush1.bf16.msra.mxu0 %v1367
        %2020 = vmatprep.subr.bf16.mxu0 %v1372
        %2021 = vmatpush1.bf16.msra.mxu0 %v1371
        %2022 = vmatprep.subr.bf16.mxu0 %v1376
        %2023 = vmatpush1.bf16.msra.mxu0 %v1375
        %2024 = vmatprep.subr.bf16.mxu0 %v1380
        %2025 = vmatpush1.bf16.msra.mxu0 %v1379
        %2026 = vmatprep.subr.bf16.mxu0 %v1384
        %2027 = vmatpush1.bf16.msra.mxu0 %v1383
        %2028 = vmatprep.subr.bf16.mxu0 %v1388
        %2029 = vmatpush1.bf16.msra.mxu0 %v1387
        %2030 = vmatprep.subr.bf16.mxu0 %v1392
        %2031 = vmatpush1.bf16.msra.mxu0 %v1391
        %2032 = vmatprep.subr.bf16.mxu0 %v1396
        %2033 = vmatpush1.bf16.msra.mxu0 %v1395
        %2034 = vmatprep.subr.bf16.mxu0 %v1400
        %2035 = vmatpush1.bf16.msra.mxu0 %v1399
        %2036 = vmatprep.subr.bf16.mxu0 %v1404
        %2037 = vmatpush1.bf16.msra.mxu0 %v1403
        %2038 = vmatprep.subr.bf16.mxu0 %v1408
        %2039 = vmatpush1.bf16.msra.mxu0 %v1407
        %2040 = vmatprep.subr.bf16.mxu0 %v1412
        %2041 = vmatpush1.bf16.msra.mxu0 %v1411
        %2042 = vmatprep.subr.bf16.mxu0 %v1416
        %2043 = vmatpush1.bf16.msra.mxu0 %v1415
        %2044 = vmatprep.subr.bf16.mxu0 %v1420
        %2045 = vmatpush1.bf16.msra.mxu0 %v1419
        %2046 = vmatprep.subr.bf16.mxu0 %v1424
        %2047 = vmatpush1.bf16.msra.mxu0 %v1423
        %2048 = vmatprep.subr.bf16.mxu0 %v1428
        %2049 = vmatpush1.bf16.msra.mxu0 %v1427
        %2050 = vmatprep.mubr.bf16.mxu0 %v250
        %2051 = vmatmul.mubr.bf16.gmra.mrb[0].mxu0 %v249
        %v2052 = vpop.f32.mrb[0].mxu0
        %v2053 = vadd.f32 %v2012, %v2052
        %v2054 = vpop.f32.mrb[0].mxu0
        %v2055 = vadd.f32 %v2014, %v2054
        %v2056 = vpop.f32.mrb[0].mxu0
        %v2057 = vpop.f32.mrb[0].mxu0
        %2058 = vdwg.mxu0
        %2059 = vmatprep.subr.bf16.mxu0 %v1432
        %2060 = vmatpush1.bf16.msra.mxu0 %v1431
        %2061 = vmatprep.subr.bf16.mxu0 %v1436
        %2062 = vmatpush1.bf16.msra.mxu0 %v1435
        %2063 = vmatprep.subr.bf16.mxu0 %v1440
        %2064 = vmatpush1.bf16.msra.mxu0 %v1439
        %2065 = vmatprep.subr.bf16.mxu0 %v1444
        %2066 = vmatpush1.bf16.msra.mxu0 %v1443
        %2067 = vmatprep.subr.bf16.mxu0 %v1448
        %2068 = vmatpush1.bf16.msra.mxu0 %v1447
        %2069 = vmatprep.subr.bf16.mxu0 %v1452
        %2070 = vmatpush1.bf16.msra.mxu0 %v1451
        %2071 = vmatprep.subr.bf16.mxu0 %v1456
        %2072 = vmatpush1.bf16.msra.mxu0 %v1455
        %2073 = vmatprep.subr.bf16.mxu0 %v1460
        %2074 = vmatpush1.bf16.msra.mxu0 %v1459
        %2075 = vmatprep.subr.bf16.mxu0 %v1464
        %2076 = vmatpush1.bf16.msra.mxu0 %v1463
        %2077 = vmatprep.subr.bf16.mxu0 %v1468
        %2078 = vmatpush1.bf16.msra.mxu0 %v1467
        %2079 = vmatprep.subr.bf16.mxu0 %v1472
        %2080 = vmatpush1.bf16.msra.mxu0 %v1471
        %2081 = vmatprep.subr.bf16.mxu0 %v1476
        %2082 = vmatpush1.bf16.msra.mxu0 %v1475
        %2083 = vmatprep.subr.bf16.mxu0 %v1480
        %2084 = vmatpush1.bf16.msra.mxu0 %v1479
        %2085 = vmatprep.subr.bf16.mxu0 %v1484
        %2086 = vmatpush1.bf16.msra.mxu0 %v1483
        %2087 = vmatprep.subr.bf16.mxu0 %v1488
        %2088 = vmatpush1.bf16.msra.mxu0 %v1487
        %2089 = vmatprep.subr.bf16.mxu0 %v1492
        %2090 = vmatpush1.bf16.msra.mxu0 %v1491
        %2091 = vmatprep.mubr.bf16.mxu0 %v252
        %2092 = vmatmul.mubr.bf16.gmra.mrb[0].mxu0 %v251
        %v2093 = vpop.f32.mrb[0].mxu0
        %v2094 = vadd.f32 %v2053, %v2093
        %v2095 = vpop.f32.mrb[0].mxu0
        %v2096 = vadd.f32 %v2055, %v2095
        %v2097 = vpop.f32.mrb[0].mxu0
        %v2098 = vpop.f32.mrb[0].mxu0
        %2099 = vdwg.mxu0
        %2100 = vmatprep.subr.bf16.mxu0 %v1496
        %2101 = vmatpush1.bf16.msra.mxu0 %v1495
        %2102 = vmatprep.subr.bf16.mxu0 %v1500
        %2103 = vmatpush1.bf16.msra.mxu0 %v1499
        %2104 = vmatprep.subr.bf16.mxu0 %v1504
        %2105 = vmatpush1.bf16.msra.mxu0 %v1503
        %2106 = vmatprep.subr.bf16.mxu0 %v1508
        %2107 = vmatpush1.bf16.msra.mxu0 %v1507
        %2108 = vmatprep.subr.bf16.mxu0 %v1512
        %2109 = vmatpush1.bf16.msra.mxu0 %v1511
        %2110 = vmatprep.subr.bf16.mxu0 %v1516
        %2111 = vmatpush1.bf16.msra.mxu0 %v1515
        %2112 = vmatprep.subr.bf16.mxu0 %v1520
        %2113 = vmatpush1.bf16.msra.mxu0 %v1519
        %2114 = vmatprep.subr.bf16.mxu0 %v1524
        %2115 = vmatpush1.bf16.msra.mxu0 %v1523
        %2116 = vmatprep.subr.bf16.mxu0 %v1528
        %2117 = vmatpush1.bf16.msra.mxu0 %v1527
        %2118 = vmatprep.subr.bf16.mxu0 %v1532
        %2119 = vmatpush1.bf16.msra.mxu0 %v1531
        %2120 = vmatprep.subr.bf16.mxu0 %v1536
        %2121 = vmatpush1.bf16.msra.mxu0 %v1535
        %2122 = vmatprep.subr.bf16.mxu0 %v1540
        %2123 = vmatpush1.bf16.msra.mxu0 %v1539
        %2124 = vmatprep.subr.bf16.mxu0 %v1544
        %2125 = vmatpush1.bf16.msra.mxu0 %v1543
        %2126 = vmatprep.subr.bf16.mxu0 %v1548
        %2127 = vmatpush1.bf16.msra.mxu0 %v1547
        %2128 = vmatprep.subr.bf16.mxu0 %v1552
        %2129 = vmatpush1.bf16.msra.mxu0 %v1551
        %2130 = vmatprep.subr.bf16.mxu0 %v1556
        %2131 = vmatpush1.bf16.msra.mxu0 %v1555
        %2132 = vmatprep.mubr.bf16.mxu0 %v254
        %2133 = vmatmul.mubr.bf16.gmra.mrb[0].mxu0 %v253
        %v2134 = vpop.f32.mrb[0].mxu0
        %v2135 = vadd.f32 %v2094, %v2134
        %v2136 = vpop.f32.mrb[0].mxu0
        %v2137 = vadd.f32 %v2096, %v2136
        %v2138 = vpop.f32.mrb[0].mxu0
        %v2139 = vpop.f32.mrb[0].mxu0
        %2140 = vdwg.mxu0
        %vm2141 = vcmp.ge.f32.partialorder %v1971, 0.0
        %vm2142 = vcmp.ge.f32.partialorder %v1973, 0.0
        %vm2143 = vcmp.ge.f32.partialorder %v2135, 0.0
        %vm2144 = vcmp.ge.f32.partialorder %v2137, 0.0
        %v2145 = vmul.f32 %v1971, 0.01
        %v2146 = vmul.f32 %v1973, 0.01
        %v2147 = vmul.f32 %v2135, 0.01
        %v2148 = vmul.f32 %v2137, 0.01
        %v2149 = vsel %vm2141, %v1971, %v2145
        %v2150 = vsel %vm2142, %v1973, %v2146
        %v2151 = vsel %vm2143, %v2135, %v2147
        %v2152 = vsel %vm2144, %v2137, %v2148
        %v2153 = vpack.c.bf16 %v2149, %v2149
        %v2154 = vpack.c.bf16 %v2150, %v2150
        %v2155 = vpack.c.bf16 %v2151, %v2151
        %v2156 = vpack.c.bf16 %v2152, %v2152
        %v2157 = vld [vmem:[%s3] sm:$0xf]
        %v2158 = vld [vmem:[%s3 + $0x4] sm:$0xf]
        %v2159 = vld [vmem:[%s3 + $0x8] sm:$0xf]
        %v2160 = vld [vmem:[%s3 + $0xc] sm:$0xf]
        %v2161 = vld [vmem:[%s3 + $0x10] sm:$0xf]
        %v2162 = vld [vmem:[%s3 + $0x14] sm:$0xf]
        %v2163 = vld [vmem:[%s3 + $0x18] sm:$0xf]
        %v2164 = vld [vmem:[%s3 + $0x1c] sm:$0xf]
        %v2165 = vld [vmem:[%s3 + $0x20] sm:$0xf]
        %v2166 = vld [vmem:[%s3 + $0x24] sm:$0xf]
        %v2167 = vld [vmem:[%s3 + $0x28] sm:$0xf]
        %v2168 = vld [vmem:[%s3 + $0x2c] sm:$0xf]
        %v2169 = vld [vmem:[%s3 + $0x30] sm:$0xf]
        %v2170 = vld [vmem:[%s3 + $0x34] sm:$0xf]
        %v2171 = vld [vmem:[%s3 + $0x38] sm:$0xf]
        %v2172 = vld [vmem:[%s3 + $0x3c] sm:$0xf]
        %v2173 = vld [vmem:[%s3 + $0x40] sm:$0xf]
        %v2174 = vld [vmem:[%s3 + $0x44] sm:$0xf]
        %v2175 = vld [vmem:[%s3 + $0x48] sm:$0xf]
        %v2176 = vld [vmem:[%s3 + $0x4c] sm:$0xf]
        %v2177 = vld [vmem:[%s3 + $0x50] sm:$0xf]
        %v2178 = vld [vmem:[%s3 + $0x54] sm:$0xf]
        %v2179 = vld [vmem:[%s3 + $0x58] sm:$0xf]
        %v2180 = vld [vmem:[%s3 + $0x5c] sm:$0xf]
        %v2181 = vld [vmem:[%s3 + $0x60] sm:$0xf]
        %v2182 = vld [vmem:[%s3 + $0x64] sm:$0xf]
        %v2183 = vld [vmem:[%s3 + $0x68] sm:$0xf]
        %v2184 = vld [vmem:[%s3 + $0x6c] sm:$0xf]
        %v2185 = vld [vmem:[%s3 + $0x70] sm:$0xf]
        %v2186 = vld [vmem:[%s3 + $0x74] sm:$0xf]
        %v2187 = vld [vmem:[%s3 + $0x78] sm:$0xf]
        %v2188 = vld [vmem:[%s3 + $0x7c] sm:$0xf]
        %v2189 = vld [vmem:[%s3 + $0x80] sm:$0xf]
        %v2190 = vld [vmem:[%s3 + $0x84] sm:$0xf]
        %v2191 = vld [vmem:[%s3 + $0x88] sm:$0xf]
        %v2192 = vld [vmem:[%s3 + $0x8c] sm:$0xf]
        %v2193 = vld [vmem:[%s3 + $0x90] sm:$0xf]
        %v2194 = vld [vmem:[%s3 + $0x94] sm:$0xf]
        %v2195 = vld [vmem:[%s3 + $0x98] sm:$0xf]
        %v2196 = vld [vmem:[%s3 + $0x9c] sm:$0xf]
        %v2197 = vld [vmem:[%s3 + $0xa0] sm:$0xf]
        %v2198 = vld [vmem:[%s3 + $0xa4] sm:$0xf]
        %v2199 = vld [vmem:[%s3 + $0xa8] sm:$0xf]
        %v2200 = vld [vmem:[%s3 + $0xac] sm:$0xf]
        %v2201 = vld [vmem:[%s3 + $0xb0] sm:$0xf]
        %v2202 = vld [vmem:[%s3 + $0xb4] sm:$0xf]
        %v2203 = vld [vmem:[%s3 + $0xb8] sm:$0xf]
        %v2204 = vld [vmem:[%s3 + $0xbc] sm:$0xf]
        %v2205 = vld [vmem:[%s3 + $0xc0] sm:$0xf]
        %v2206 = vld [vmem:[%s3 + $0xc4] sm:$0xf]
        %v2207 = vld [vmem:[%s3 + $0xc8] sm:$0xf]
        %v2208 = vld [vmem:[%s3 + $0xcc] sm:$0xf]
        %v2209 = vld [vmem:[%s3 + $0xd0] sm:$0xf]
        %v2210 = vld [vmem:[%s3 + $0xd4] sm:$0xf]
        %v2211 = vld [vmem:[%s3 + $0xd8] sm:$0xf]
        %v2212 = vld [vmem:[%s3 + $0xdc] sm:$0xf]
        %v2213 = vld [vmem:[%s3 + $0xe0] sm:$0xf]
        %v2214 = vld [vmem:[%s3 + $0xe4] sm:$0xf]
        %v2215 = vld [vmem:[%s3 + $0xe8] sm:$0xf]
        %v2216 = vld [vmem:[%s3 + $0xec] sm:$0xf]
        %v2217 = vld [vmem:[%s3 + $0xf0] sm:$0xf]
        %v2218 = vld [vmem:[%s3 + $0xf4] sm:$0xf]
        %v2219 = vld [vmem:[%s3 + $0xf8] sm:$0xf]
        %v2220 = vld [vmem:[%s3 + $0xfc] sm:$0xf]
        %v2221 = vld [vmem:[%s4] sm:$0x1]
        %v2223 = vlaneseq
        %v2224 = vshrl.u32 %v2223, 7
        %v2225 = vsub.s32 0, %v2224
        %v2226 = vrot.slane %v2221, %v2225
        %v2292 = vunpack.c.l.b16 %v2157
        %v2293 = vunpack.c.l.b16 %v2158
        %v2294 = vunpack.c.l.b16 %v2159
        %v2295 = vunpack.c.l.b16 %v2160
        %v2296 = vunpack.c.l.b16 %v2161
        %v2297 = vunpack.c.l.b16 %v2162
        %v2298 = vunpack.c.l.b16 %v2163
        %v2299 = vunpack.c.l.b16 %v2164
        %v2300 = vunpack.c.l.b16 %v2165
        %v2301 = vunpack.c.l.b16 %v2166
        %v2302 = vunpack.c.l.b16 %v2167
        %v2303 = vunpack.c.l.b16 %v2168
        %v2304 = vunpack.c.l.b16 %v2169
        %v2305 = vunpack.c.l.b16 %v2170
        %v2306 = vunpack.c.l.b16 %v2171
        %v2307 = vunpack.c.l.b16 %v2172
        %v2308 = vunpack.c.l.b16 %v2173
        %v2309 = vunpack.c.l.b16 %v2174
        %v2310 = vunpack.c.l.b16 %v2175
        %v2311 = vunpack.c.l.b16 %v2176
        %v2312 = vunpack.c.l.b16 %v2177
        %v2313 = vunpack.c.l.b16 %v2178
        %v2314 = vunpack.c.l.b16 %v2179
        %v2315 = vunpack.c.l.b16 %v2180
        %v2316 = vunpack.c.l.b16 %v2181
        %v2317 = vunpack.c.l.b16 %v2182
        %v2318 = vunpack.c.l.b16 %v2183
        %v2319 = vunpack.c.l.b16 %v2184
        %v2320 = vunpack.c.l.b16 %v2185
        %v2321 = vunpack.c.l.b16 %v2186
        %v2322 = vunpack.c.l.b16 %v2187
        %v2323 = vunpack.c.l.b16 %v2188
        %v2324 = vunpack.c.l.b16 %v2189
        %v2325 = vunpack.c.l.b16 %v2190
        %v2326 = vunpack.c.l.b16 %v2191
        %v2327 = vunpack.c.l.b16 %v2192
        %v2328 = vunpack.c.l.b16 %v2193
        %v2329 = vunpack.c.l.b16 %v2194
        %v2330 = vunpack.c.l.b16 %v2195
        %v2331 = vunpack.c.l.b16 %v2196
        %v2332 = vunpack.c.l.b16 %v2197
        %v2333 = vunpack.c.l.b16 %v2198
        %v2334 = vunpack.c.l.b16 %v2199
        %v2335 = vunpack.c.l.b16 %v2200
        %v2336 = vunpack.c.l.b16 %v2201
        %v2337 = vunpack.c.l.b16 %v2202
        %v2338 = vunpack.c.l.b16 %v2203
        %v2339 = vunpack.c.l.b16 %v2204
        %v2340 = vunpack.c.l.b16 %v2205
        %v2341 = vunpack.c.l.b16 %v2206
        %v2342 = vunpack.c.l.b16 %v2207
        %v2343 = vunpack.c.l.b16 %v2208
        %v2344 = vunpack.c.l.b16 %v2209
        %v2345 = vunpack.c.l.b16 %v2210
        %v2346 = vunpack.c.l.b16 %v2211
        %v2347 = vunpack.c.l.b16 %v2212
        %v2348 = vunpack.c.l.b16 %v2213
        %v2349 = vunpack.c.l.b16 %v2214
        %v2350 = vunpack.c.l.b16 %v2215
        %v2351 = vunpack.c.l.b16 %v2216
        %v2352 = vunpack.c.l.b16 %v2217
        %v2353 = vunpack.c.l.b16 %v2218
        %v2354 = vunpack.c.l.b16 %v2219
        %v2355 = vunpack.c.l.b16 %v2220
        %v2356 = vpack.c.b16 %v2293, %v2292
        %v2357 = vpack.c.b16 %v2295, %v2294
        %v2358 = vpack.c.b16 %v2297, %v2296
        %v2359 = vpack.c.b16 %v2299, %v2298
        %v2360 = vpack.c.b16 %v2301, %v2300
        %v2361 = vpack.c.b16 %v2303, %v2302
        %v2362 = vpack.c.b16 %v2305, %v2304
        %v2363 = vpack.c.b16 %v2307, %v2306
        %v2364 = vpack.c.b16 %v2309, %v2308
        %v2365 = vpack.c.b16 %v2311, %v2310
        %v2366 = vpack.c.b16 %v2313, %v2312
        %v2367 = vpack.c.b16 %v2315, %v2314
        %v2368 = vpack.c.b16 %v2317, %v2316
        %v2369 = vpack.c.b16 %v2319, %v2318
        %v2370 = vpack.c.b16 %v2321, %v2320
        %v2371 = vpack.c.b16 %v2323, %v2322
        %v2372 = vpack.c.b16 %v2325, %v2324
        %v2373 = vpack.c.b16 %v2327, %v2326
        %v2374 = vpack.c.b16 %v2329, %v2328
        %v2375 = vpack.c.b16 %v2331, %v2330
        %v2376 = vpack.c.b16 %v2333, %v2332
        %v2377 = vpack.c.b16 %v2335, %v2334
        %v2378 = vpack.c.b16 %v2337, %v2336
        %v2379 = vpack.c.b16 %v2339, %v2338
        %v2380 = vpack.c.b16 %v2341, %v2340
        %v2381 = vpack.c.b16 %v2343, %v2342
        %v2382 = vpack.c.b16 %v2345, %v2344
        %v2383 = vpack.c.b16 %v2347, %v2346
        %v2384 = vpack.c.b16 %v2349, %v2348
        %v2385 = vpack.c.b16 %v2351, %v2350
        %v2386 = vpack.c.b16 %v2353, %v2352
        %v2387 = vpack.c.b16 %v2355, %v2354
        %2420 = vmatprep.subr.bf16.mxu0 0
        %2421 = vmatpush1.bf16.msra.mxu0 %v2356
        %2422 = vmatprep.subr.bf16.mxu0 0
        %2423 = vmatpush1.bf16.msra.mxu0 %v2357
        %2424 = vmatprep.subr.bf16.mxu0 0
        %2425 = vmatpush1.bf16.msra.mxu0 %v2358
        %2426 = vmatprep.subr.bf16.mxu0 0
        %2427 = vmatpush1.bf16.msra.mxu0 %v2359
        %2428 = vmatprep.subr.bf16.mxu0 0
        %2429 = vmatpush1.bf16.msra.mxu0 %v2360
        %2430 = vmatprep.subr.bf16.mxu0 0
        %2431 = vmatpush1.bf16.msra.mxu0 %v2361
        %2432 = vmatprep.subr.bf16.mxu0 0
        %2433 = vmatpush1.bf16.msra.mxu0 %v2362
        %2434 = vmatprep.subr.bf16.mxu0 0
        %2435 = vmatpush1.bf16.msra.mxu0 %v2363
        %2436 = vmatprep.subr.bf16.mxu0 0
        %2437 = vmatpush1.bf16.msra.mxu0 %v2364
        %2438 = vmatprep.subr.bf16.mxu0 0
        %2439 = vmatpush1.bf16.msra.mxu0 %v2365
        %2440 = vmatprep.subr.bf16.mxu0 0
        %2441 = vmatpush1.bf16.msra.mxu0 %v2366
        %2442 = vmatprep.subr.bf16.mxu0 0
        %2443 = vmatpush1.bf16.msra.mxu0 %v2367
        %2444 = vmatprep.subr.bf16.mxu0 0
        %2445 = vmatpush1.bf16.msra.mxu0 %v2368
        %2446 = vmatprep.subr.bf16.mxu0 0
        %2447 = vmatpush1.bf16.msra.mxu0 %v2369
        %2448 = vmatprep.subr.bf16.mxu0 0
        %2449 = vmatpush1.bf16.msra.mxu0 %v2370
        %2450 = vmatprep.subr.bf16.mxu0 0
        %2451 = vmatpush1.bf16.msra.mxu0 %v2371
        %2452 = vmatprep.mubr.bf16.mxu0 %v2154
        %2453 = vmatmul.mubr.bf16.gmra.mrb[0].mxu0 %v2153
        %v2454 = vpop.f32.mrb[0].mxu0
        %v2455 = vadd.f32 %v2226, %v2454
        %v2456 = vpop.f32.mrb[0].mxu0
        %v2457 = vpop.f32.mrb[0].mxu0
        %v2458 = vpop.f32.mrb[0].mxu0
        %2459 = vdwg.mxu0
        %2460 = vmatprep.subr.bf16.mxu0 0
        %2461 = vmatpush1.bf16.msra.mxu0 %v2372
        %2462 = vmatprep.subr.bf16.mxu0 0
        %2463 = vmatpush1.bf16.msra.mxu0 %v2373
        %2464 = vmatprep.subr.bf16.mxu0 0
        %2465 = vmatpush1.bf16.msra.mxu0 %v2374
        %2466 = vmatprep.subr.bf16.mxu0 0
        %2467 = vmatpush1.bf16.msra.mxu0 %v2375
        %2468 = vmatprep.subr.bf16.mxu0 0
        %2469 = vmatpush1.bf16.msra.mxu0 %v2376
        %2470 = vmatprep.subr.bf16.mxu0 0
        %2471 = vmatpush1.bf16.msra.mxu0 %v2377
        %2472 = vmatprep.subr.bf16.mxu0 0
        %2473 = vmatpush1.bf16.msra.mxu0 %v2378
        %2474 = vmatprep.subr.bf16.mxu0 0
        %2475 = vmatpush1.bf16.msra.mxu0 %v2379
        %2476 = vmatprep.subr.bf16.mxu0 0
        %2477 = vmatpush1.bf16.msra.mxu0 %v2380
        %2478 = vmatprep.subr.bf16.mxu0 0
        %2479 = vmatpush1.bf16.msra.mxu0 %v2381
        %2480 = vmatprep.subr.bf16.mxu0 0
        %2481 = vmatpush1.bf16.msra.mxu0 %v2382
        %2482 = vmatprep.subr.bf16.mxu0 0
        %2483 = vmatpush1.bf16.msra.mxu0 %v2383
        %2484 = vmatprep.subr.bf16.mxu0 0
        %2485 = vmatpush1.bf16.msra.mxu0 %v2384
        %2486 = vmatprep.subr.bf16.mxu0 0
        %2487 = vmatpush1.bf16.msra.mxu0 %v2385
        %2488 = vmatprep.subr.bf16.mxu0 0
        %2489 = vmatpush1.bf16.msra.mxu0 %v2386
        %2490 = vmatprep.subr.bf16.mxu0 0
        %2491 = vmatpush1.bf16.msra.mxu0 %v2387
        %2492 = vmatprep.mubr.bf16.mxu0 %v2156
        %2493 = vmatmul.mubr.bf16.gmra.mrb[0].mxu0 %v2155
        %v2494 = vpop.f32.mrb[0].mxu0
        %v2495 = vadd.f32 %v2455, %v2494
        %v2496 = vpop.f32.mrb[0].mxu0
        %v2497 = vpop.f32.mrb[0].mxu0
        %v2498 = vpop.f32.mrb[0].mxu0
        %2499 = vdwg.mxu0
        %vm2500 = vcmask 261120
        %2501 = vst.msk [vmem:[%s237] sm:$0xff] %vm2500, %v2495
        %p2502 = scmp.lt.s32.totalorder %s17, 1
        %s2503 = scalar_select %p2502, %s17, 1
        %s2504 = smul.addr %s2503, 8
        %s2505 = scalar_lea.vmem %s5, %s2504
        // Predicated region
        $region45: #{inv_cog_forward.5} parent=39 // pred_check
          %p2506 = pneg %p145
        $region46: #{inv_cog_forward.5} parent=39 // pred_check_branch
          %2508 = sbr.rel (%p2506) target = $region48
        $region47: #{inv_cog_forward.5} parent=39 // pred_region
          _
        $region48: #{inv_cog_forward.5} parent=39 // pred_fallthru
          _
      $region40: #{inv_cog_forward.5} parent=5 // pred_fallthru
        _
      %p2509 = scmp.le.s32.totalorder 2, %s12
      // Predicated region
      $region49: #{inv_cog_forward.5} parent=5 // pred_check
        %p2510 = pneg %p2509
      $region50: #{inv_cog_forward.5} parent=5 // pred_check_branch
        %2512 = sbr.rel (%p2510) target = $region52
      $region51: #{inv_cog_forward.5} parent=5 // pred_region
        %s2513 = ssub.s32 %s12, 2
        // Predicated region
        $region53: #{inv_cog_forward.5} parent=51 // pred_check
          %p2514 = pneg %p151
        $region54: #{inv_cog_forward.5} parent=51 // pred_check_branch
          %2516 = sbr.rel (%p2514) target = $region56
        $region55: #{inv_cog_forward.5} parent=51 // pred_region
          %p2517 = scmp.lt.s32.totalorder %s18, 1
          %s2518 = scalar_select %p2517, %s18, 1
          %s2519 = smul.addr %s2518, 8
          %s2520 = scalar_lea.vmem %s5, %s2519
        $region56: #{inv_cog_forward.5} parent=51 // pred_fallthru
          _
      $region52: #{inv_cog_forward.5} parent=5 // pred_fallthru
        _
    $region6: #{inv_cog_forward.5} parent=1 // loop_footer
      %s16 = sadd.s32 1, %s12
    $region7: #{inv_cog_forward.5} parent=1 // loop_footer_branch
      %11 = sbr.rel target = $region3
    $region8: #{inv_cog_forward.5} parent=1 // loop_exit
      _
    %2521 = vsyncpa [#allocation3], 1
    %s2522 = scalar_lea.sflag [#allocation3], 1
    %2523 = vsyncpa %s2522, 1

</llo_original>
